<compile_context>
chip_gen: v6e
topology: v6e:2x2x1
jax: 0.10.0
libtpu: 0.0.40
codegen_flags: <defaults>
</compile_context>

<pallas_src>
import functools

import numpy as np
import jax
import jax.numpy as jnp
from jax import lax
from jax.experimental import pallas as pl
from jax.experimental.pallas import tpu as pltpu

# ---------------------------------------------------------------------------
# Static geometry of LeNetMNIST for (1, 14, 28) inputs (=> Linear(336)).
# ---------------------------------------------------------------------------
H_IN, W_IN = 14, 28
C_CONV = 12                      # channels of conv1/2/3
OH1, OW1 = 7, 14                 # conv1: k5 s2 p2
OH2, OW2 = 4, 7                  # conv2: k5 s2 p2
OH3, OW3 = 4, 7                  # conv3: k5 s1 p2

QW = 32                          # lanes per parity quadrant in the packed layout
CP = 128                         # lane-dense channel padding
K1P = 128                        # conv1 im2col K (25) padded to a full lane group

NPHASE = 4                       # 2x2 spatial parities
A_MAX = (OH1 + 1) // 2           # 4 packed block-rows of conv1 output
B_MAX = OW1 // 2                 # 7 packed block-cols of conv1 output
ROWS1 = NPHASE * A_MAX * B_MAX   # 112 conv1 GEMM rows per image

HB2, WB2 = 6, 9                  # packed + padded conv1 output (input of conv2)
HP3, WP3 = OH3 + 4, OW3 + 4      # plain + padded conv2 output (input of conv3)


# ---------------------------------------------------------------------------
# The fused kernel: one grid step = one image, everything stays in VMEM.
# ---------------------------------------------------------------------------
def _fused_lenet_kernel(c1_ref, w1_ref, b1_ref, w2_ref, b2_ref, w3_ref, b3_ref,
                        fcw_ref, fcb_ref, out_ref, packed2, plain3, *, classes):
    f32 = jnp.float32

    # Padding regions of the activation scratch buffers must be zero.
    packed2[...] = jnp.zeros_like(packed2)
    plain3[...] = jnp.zeros_like(plain3)

    # ---- conv1 (+ReLU): ONE GEMM over all 4 output parities (host pre-grouped rows) ----
    y1 = jnp.dot(c1_ref[...], w1_ref[...], preferred_element_type=f32)     # (112, 32)
    y1 = jnp.maximum(y1 + b1_ref[...], 0.0)
    # Scatter into the 2x2-packed, zero-padded layout expected by conv2: block (a+1, b+1)
    # holds output pixels (2a+p, 2b+q) in lane quadrant p*2+q.
    for a in range(A_MAX):
        quads = []
        for q in range(NPHASE):
            p = q // 2
            if 2 * a + p < OH1:
                start = q * (A_MAX * B_MAX) + a * B_MAX
                quads.append(y1[start:start + B_MAX, :])
            else:                                    # this output row does not exist
                quads.append(jnp.zeros((B_MAX, QW), f32))
        packed2[a + 1, 1:1 + B_MAX, :] = jnp.concatenate(quads, axis=1)    # (7, 128)

    # ---- conv2 (stride 2, +ReLU): 9 contiguous slabs -> 1 lane-dense GEMM per out-row ----
    for oh in range(OH2):
        slabs = [packed2[oh + ash, bsh:bsh + OW2, :]
                 for ash in range(3) for bsh in range(3)]
        lhs = jnp.concatenate(slabs, axis=1)                               # (7, 1152)
        row = jnp.dot(lhs, w2_ref[...], preferred_element_type=f32)        # (7, 128)
        row = jnp.maximum(row + b2_ref[...], 0.0)
        plain3[oh + 2, 2:2 + OW2, :] = row

    # ---- conv3 (stride 1, +ReLU) fused with the fc reduction -----------------------------
    logits = [jnp.zeros((), f32) for _ in range(classes)]
    for oh in range(OH3):
        slabs = [plain3[oh + di, dj:dj + OW3, :]
                 for di in range(5) for dj in range(5)]
        lhs = jnp.concatenate(slabs, axis=1)                               # (7, 3200)
        row = jnp.dot(lhs, w3_ref[...], preferred_element_type=f32)        # (7, 128)
        row = jnp.maximum(row + b3_ref[...], 0.0)
        for k in range(classes):
            logits[k] = logits[k] + jnp.sum(row * fcw_ref[k, oh])

    # Lane-dense (1, 128) output row: logits land in lanes [0, classes).
    lane = lax.broadcasted_iota(jnp.int32, (1, CP), 1)
    out_row = fcb_ref[...]
    for k in range(classes):
        out_row = out_row + jnp.where(lane == k, logits[k], 0.0)
    out_ref[0] = out_row


# ---------------------------------------------------------------------------
# Host glue: conv1 im2col rows (one-time transform of the raw input).
# ---------------------------------------------------------------------------
def _prep_conv1_patches(x):
    """x: (N, 1, 14, 28) NCHW -> phase-grouped, lane-padded conv1 im2col rows (N*112, 128)."""
    n = x.shape[0]
    # Conv padding of 2, plus 2 extra zero rows at the bottom so the (nonexistent)
    # odd-parity block row a=3 can be gathered without going out of bounds.
    xp = jnp.pad(x[:, 0], ((0, 0), (2, 4), (2, 2)))                        # (N, 20, 32)
    blocks = []
    for p in (0, 1):
        for qw in (0, 1):
            hh = 4 * np.arange(A_MAX)[:, None] + 2 * p + np.arange(5)[None, :]   # (4, 5)
            ww = 4 * np.arange(B_MAX)[:, None] + 2 * qw + np.arange(5)[None, :]  # (7, 5)
            sub = xp[:, hh][:, :, :, ww]                    # (N, a, di, b, dj)
            sub = sub.transpose(0, 1, 3, 2, 4).reshape(n, A_MAX, B_MAX, 25)
            blocks.append(sub)
    pat = jnp.stack(blocks, axis=1)                          # (N, 4, 4, 7, 25)
    pat = jnp.pad(pat, ((0, 0), (0, 0), (0, 0), (0, 0), (0, K1P - 25)))
    return pat.reshape(n * ROWS1, K1P)


# ---------------------------------------------------------------------------
# Forward pass: host patch prep + one fused pallas_call.
# ---------------------------------------------------------------------------
def lenet_mnist_forward(gemm_params, x):
    """x: (N, 1, 14, 28) float32 NCHW -> (N, classes) logits."""
    n = x.shape[0]
    assert x.shape[1:] == (1, H_IN, W_IN), x.shape
    classes = gemm_params["fcw"].shape[0]
    c1_rows = _prep_conv1_patches(x)

    grid_spec = pltpu.PrefetchScalarGridSpec(
        num_scalar_prefetch=0,
        grid=(n,),
        in_specs=[
            pl.BlockSpec((ROWS1, K1P), lambda i: (i, 0)),           # conv1 im2col rows (per image)
            pl.BlockSpec((K1P, QW), lambda i: (0, 0)),              # w1
            pl.BlockSpec((1, QW), lambda i: (0, 0)),                # b1
            pl.BlockSpec((9 * CP, CP), lambda i: (0, 0)),           # w2
            pl.BlockSpec((1, CP), lambda i: (0, 0)),                # b2
            pl.BlockSpec((25 * CP, CP), lambda i: (0, 0)),          # w3
            pl.BlockSpec((1, CP), lambda i: (0, 0)),                # b3
            pl.BlockSpec((classes, OH3, OW3, CP), lambda i: (0, 0, 0, 0)),  # fc weight
            pl.BlockSpec((1, CP), lambda i: (0, 0)),                # fc bias
        ],
        out_specs=pl.BlockSpec((1, 1, CP), lambda i: (i, 0, 0)),
        scratch_shapes=[
            pltpu.VMEM((HB2, WB2, CP), jnp.float32),    # packed conv1 output (conv2 input)
            pltpu.VMEM((HP3, WP3, CP), jnp.float32),    # padded conv2 output (conv3 input)
        ],
    )
    out = pl.pallas_call(
        functools.partial(_fused_lenet_kernel, classes=classes),
        out_shape=jax.ShapeDtypeStruct((n, 1, CP), jnp.float32),
        grid_spec=grid_spec,
        compiler_params=pltpu.CompilerParams(dimension_semantics=("parallel",)),
    )(c1_rows, gemm_params["w1"], gemm_params["b1"], gemm_params["w2"], gemm_params["b2"],
      gemm_params["w3"], gemm_params["b3"], gemm_params["fcw"], gemm_params["fcb"])
    return out[:, 0, :classes]


# ---------------------------------------------------------------------------
# Parameters: deterministic synthetic init + one-time GEMM-layout transform.
# ---------------------------------------------------------------------------
def init_params(key, classes=2):
    ks = jax.random.split(key, 8)

    def u(k, shape, fan_in):
        bound = 1.0 / jnp.sqrt(fan_in)
        return jax.random.uniform(k, shape, jnp.float32, -bound, bound)

    return {
        "conv1_w": u(ks[0], (12, 1, 5, 5), 1 * 25),
        "conv1_b": u(ks[1], (12,), 1 * 25),
        "conv2_w": u(ks[2], (12, 12, 5, 5), 12 * 25),
        "conv2_b": u(ks[3], (12,), 12 * 25),
        "conv3_w": u(ks[4], (12, 12, 5, 5), 12 * 25),
        "conv3_b": u(ks[5], (12,), 12 * 25),
        "fc_w":    u(ks[6], (classes, 336), 336),
        "fc_b":    u(ks[7], (classes,), 336),
    }


def prep_gemm_params(params):
    """One-time transform of PyTorch-layout params into lane-padded, fused-kernel layout."""
    f32 = jnp.float32
    classes = params["fc_w"].shape[0]

    # conv1: rows = im2col index di*5+dj, cols = output channel (one 32-lane quadrant).
    w1 = jnp.zeros((K1P, QW), f32).at[:25, :C_CONV].set(params["conv1_w"].reshape(C_CONV, 25).T)
    b1 = jnp.zeros((1, QW), f32).at[0, :C_CONV].set(params["conv1_b"])

    # conv2 consumes the 2x2-packed conv1 output: row block (di//2*3 + dj//2)*128,
    # lane quadrant (di%2)*2 + dj%2.
    w2 = jnp.zeros((9 * CP, CP), f32)
    for di in range(5):
        for dj in range(5):
            base = ((di // 2) * 3 + (dj // 2)) * CP + ((di % 2) * 2 + (dj % 2)) * QW
            w2 = w2.at[base:base + C_CONV, :C_CONV].set(params["conv2_w"][:, :, di, dj].T)
    b2 = jnp.zeros((1, CP), f32).at[0, :C_CONV].set(params["conv2_b"])

    # conv3 consumes the plain channels-last conv2 output: row block (di*5+dj)*128.
    w3 = jnp.zeros((25 * CP, CP), f32)
    for di in range(5):
        for dj in range(5):
            base = (di * 5 + dj) * CP
            w3 = w3.at[base:base + C_CONV, :C_CONV].set(params["conv3_w"][:, :, di, dj].T)
    b3 = jnp.zeros((1, CP), f32).at[0, :C_CONV].set(params["conv3_b"])

    # fc: fold the torch NCHW .view(N, -1) order (c*28 + h*7 + w) into channels-last.
    fcw = params["fc_w"].reshape(classes, C_CONV, OH3, OW3).transpose(0, 2, 3, 1)
    fcw = jnp.zeros((classes, OH3, OW3, CP), f32).at[:, :, :, :C_CONV].set(fcw)
    fcb = jnp.zeros((1, CP), f32).at[0, :classes].set(params["fc_b"])

    return {"w1": w1, "b1": b1, "w2": w2, "b2": b2, "w3": w3, "b3": b3,
            "fcw": fcw, "fcb": fcb}


# ---------------------------------------------------------------------------
# Pure-JAX reference (semantics check against the original PyTorch module).
# ---------------------------------------------------------------------------
def _ref_forward(params, x):
    def conv(h, w, b, s):
        y = lax.conv_general_dilated(
            h, w, window_strides=(s, s), padding=((2, 2), (2, 2)),
            dimension_numbers=("NCHW", "OIHW", "NCHW"))
        return jax.nn.relu(y + b[None, :, None, None])

    out = conv(x, params["conv1_w"], params["conv1_b"], 2)
    out = conv(out, params["conv2_w"], params["conv2_b"], 2)
    out = conv(out, params["conv3_w"], params["conv3_b"], 1)
    flat = out.reshape(out.shape[0], -1)
    return flat @ params["fc_w"].T + params["fc_b"]


if __name__ == "__main__":
    key = jax.random.PRNGKey(0)
    kp, kx = jax.random.split(key)
    params = init_params(kp, classes=2)
    gemm_params = prep_gemm_params(params)     # weight re-layout hoisted out of the forward

    # Input implied by the module: Linear(336) => 12 * 4 * 7 => input (N, 1, 14, 28).
    x = jax.random.normal(kx, (2, 1, H_IN, W_IN), dtype=jnp.float32)

    fwd = jax.jit(lenet_mnist_forward)
    out = jax.block_until_ready(fwd(gemm_params, x))

    ref = _ref_forward(params, x)
    assert out.shape == (2, 2), out.shape
    assert jnp.allclose(out, ref, rtol=1e-2, atol=1e-2), (out, ref)
    print("KERNEL_OK")
</pallas_src>

<mosaic_0001>
module attributes {stable_mosaic.version = 11 : i64} {
  func.func @_fused_lenet_kernel(%arg0: i32, %arg1: memref<112x128xf32, #tpu.memory_space<vmem>>, %arg2: memref<128x32xf32, #tpu.memory_space<vmem>>, %arg3: memref<1x32xf32, #tpu.memory_space<vmem>>, %arg4: memref<1152x128xf32, #tpu.memory_space<vmem>>, %arg5: memref<1x128xf32, #tpu.memory_space<vmem>>, %arg6: memref<3200x128xf32, #tpu.memory_space<vmem>>, %arg7: memref<1x128xf32, #tpu.memory_space<vmem>>, %arg8: memref<2x4x7x128xf32, #tpu.memory_space<vmem>>, %arg9: memref<1x128xf32, #tpu.memory_space<vmem>>, %arg10: memref<1x1x128xf32, #tpu.memory_space<vmem>>, %arg11: memref<6x9x128xf32, #tpu.memory_space<vmem>>, %arg12: memref<8x11x128xf32, #tpu.memory_space<vmem>>) attributes {dimension_semantics = [#tpu.dimension_semantics<parallel>], iteration_bounds = array<i64: 2>, scalar_prefetch = 0 : i64, scratch_operands = 2 : i64, tpu.core_type = #tpu.core_type<tc>, window_params = [{transform_indices = @transform_0, window_bounds = array<i64: 112, 128>}, {pipeline_mode = #tpu.pipeline_mode<synchronous>, transform_indices = @transform_1, window_bounds = array<i64: 128, 32>}, {pipeline_mode = #tpu.pipeline_mode<synchronous>, transform_indices = @transform_2, window_bounds = array<i64: 1, 32>}, {pipeline_mode = #tpu.pipeline_mode<synchronous>, transform_indices = @transform_3, window_bounds = array<i64: 1152, 128>}, {pipeline_mode = #tpu.pipeline_mode<synchronous>, transform_indices = @transform_4, window_bounds = array<i64: 1, 128>}, {pipeline_mode = #tpu.pipeline_mode<synchronous>, transform_indices = @transform_5, window_bounds = array<i64: 3200, 128>}, {pipeline_mode = #tpu.pipeline_mode<synchronous>, transform_indices = @transform_6, window_bounds = array<i64: 1, 128>}, {pipeline_mode = #tpu.pipeline_mode<synchronous>, transform_indices = @transform_7, window_bounds = array<i64: 2, 4, 7, 128>}, {pipeline_mode = #tpu.pipeline_mode<synchronous>, transform_indices = @transform_8, window_bounds = array<i64: 1, 128>}, {transform_indices = @transform_9, window_bounds = array<i64: 1, 1, 128>}]} {
    %cst = arith.constant 0.000000e+00 : f32
    %0 = vector.broadcast %cst : f32 to vector<6x9x128xf32>
    %c0 = arith.constant 0 : index
    %c0_0 = arith.constant 0 : index
    %c0_1 = arith.constant 0 : index
    %1 = vector.load %arg11[%c0, %c0_0, %c0_1] : memref<6x9x128xf32, #tpu.memory_space<vmem>>, vector<6x9x128xf32>
    tpu.vector_store %arg11[%c0, %c0_0, %c0_1], %0 {strides = array<i32>} : memref<6x9x128xf32, #tpu.memory_space<vmem>>, vector<6x9x128xf32>,
    %cst_2 = arith.constant 0.000000e+00 : f32
    %2 = vector.broadcast %cst_2 : f32 to vector<8x11x128xf32>
    %c0_3 = arith.constant 0 : index
    %c0_4 = arith.constant 0 : index
    %c0_5 = arith.constant 0 : index
    %3 = vector.load %arg12[%c0_3, %c0_4, %c0_5] : memref<8x11x128xf32, #tpu.memory_space<vmem>>, vector<8x11x128xf32>
    tpu.vector_store %arg12[%c0_3, %c0_4, %c0_5], %2 {strides = array<i32>} : memref<8x11x128xf32, #tpu.memory_space<vmem>>, vector<8x11x128xf32>,
    %c0_6 = arith.constant 0 : index
    %c0_7 = arith.constant 0 : index
    %4 = vector.load %arg1[%c0_6, %c0_7] : memref<112x128xf32, #tpu.memory_space<vmem>>, vector<112x128xf32>
    %c0_8 = arith.constant 0 : index
    %c0_9 = arith.constant 0 : index
    %5 = vector.load %arg2[%c0_8, %c0_9] : memref<128x32xf32, #tpu.memory_space<vmem>>, vector<128x32xf32>
    %cst_10 = arith.constant dense<0.000000e+00> : vector<112x32xf32>
    %6 = tpu.matmul %4, %5, %cst_10 {dimension_numbers = #tpu.dot_dimension_numbers<[1], [0], [0], [1], [0, 0, 1, 1], [], []>} : vector<112x128xf32>, vector<128x32xf32>, vector<112x32xf32> -> vector<112x32xf32>
    %c0_11 = arith.constant 0 : index
    %c0_12 = arith.constant 0 : index
    %7 = vector.load %arg3[%c0_11, %c0_12] : memref<1x32xf32, #tpu.memory_space<vmem>>, vector<1x32xf32>
    %8 = vector.broadcast %7 : vector<1x32xf32> to vector<112x32xf32>
    %9 = arith.addf %6, %8 : vector<112x32xf32>
    %cst_13 = arith.constant 0.000000e+00 : f32
    %10 = vector.broadcast %cst_13 : f32 to vector<112x32xf32>
    %11 = arith.maximumf %9, %10 : vector<112x32xf32>
    %12 = vector.extract_strided_slice %11 {offsets = [0, 0], sizes = [7, 32], strides = [1, 1]} : vector<112x32xf32> to vector<7x32xf32>
    %13 = vector.extract_strided_slice %11 {offsets = [28, 0], sizes = [7, 32], strides = [1, 1]} : vector<112x32xf32> to vector<7x32xf32>
    %14 = vector.extract_strided_slice %11 {offsets = [56, 0], sizes = [7, 32], strides = [1, 1]} : vector<112x32xf32> to vector<7x32xf32>
    %15 = vector.extract_strided_slice %11 {offsets = [84, 0], sizes = [7, 32], strides = [1, 1]} : vector<112x32xf32> to vector<7x32xf32>
    %16 = tpu.concatenate %12, %13, %14, %15 in 1 : vector<7x32xf32>, vector<7x32xf32>, vector<7x32xf32>, vector<7x32xf32> -> vector<7x128xf32>
    %c1 = arith.constant 1 : index
    %c1_14 = arith.constant 1 : index
    %c0_15 = arith.constant 0 : index
    %17 = vector.load %arg11[%c1, %c1_14, %c0_15] : memref<6x9x128xf32, #tpu.memory_space<vmem>>, vector<1x7x128xf32>
    %18 = vector.shape_cast %17 : vector<1x7x128xf32> to vector<7x128xf32>
    %19 = vector.shape_cast %16 : vector<7x128xf32> to vector<1x7x128xf32>
    tpu.vector_store %arg11[%c1, %c1_14, %c0_15], %19 {strides = array<i32>} : memref<6x9x128xf32, #tpu.memory_space<vmem>>, vector<1x7x128xf32>,
    %20 = vector.extract_strided_slice %11 {offsets = [7, 0], sizes = [7, 32], strides = [1, 1]} : vector<112x32xf32> to vector<7x32xf32>
    %21 = vector.extract_strided_slice %11 {offsets = [35, 0], sizes = [7, 32], strides = [1, 1]} : vector<112x32xf32> to vector<7x32xf32>
    %22 = vector.extract_strided_slice %11 {offsets = [63, 0], sizes = [7, 32], strides = [1, 1]} : vector<112x32xf32> to vector<7x32xf32>
    %23 = vector.extract_strided_slice %11 {offsets = [91, 0], sizes = [7, 32], strides = [1, 1]} : vector<112x32xf32> to vector<7x32xf32>
    %24 = tpu.concatenate %20, %21, %22, %23 in 1 : vector<7x32xf32>, vector<7x32xf32>, vector<7x32xf32>, vector<7x32xf32> -> vector<7x128xf32>
    %c2 = arith.constant 2 : index
    %c1_16 = arith.constant 1 : index
    %c0_17 = arith.constant 0 : index
    %25 = vector.load %arg11[%c2, %c1_16, %c0_17] : memref<6x9x128xf32, #tpu.memory_space<vmem>>, vector<1x7x128xf32>
    %26 = vector.shape_cast %25 : vector<1x7x128xf32> to vector<7x128xf32>
    %27 = vector.shape_cast %24 : vector<7x128xf32> to vector<1x7x128xf32>
    tpu.vector_store %arg11[%c2, %c1_16, %c0_17], %27 {strides = array<i32>} : memref<6x9x128xf32, #tpu.memory_space<vmem>>, vector<1x7x128xf32>,
    %28 = vector.extract_strided_slice %11 {offsets = [14, 0], sizes = [7, 32], strides = [1, 1]} : vector<112x32xf32> to vector<7x32xf32>
    %29 = vector.extract_strided_slice %11 {offsets = [42, 0], sizes = [7, 32], strides = [1, 1]} : vector<112x32xf32> to vector<7x32xf32>
    %30 = vector.extract_strided_slice %11 {offsets = [70, 0], sizes = [7, 32], strides = [1, 1]} : vector<112x32xf32> to vector<7x32xf32>
    %31 = vector.extract_strided_slice %11 {offsets = [98, 0], sizes = [7, 32], strides = [1, 1]} : vector<112x32xf32> to vector<7x32xf32>
    %32 = tpu.concatenate %28, %29, %30, %31 in 1 : vector<7x32xf32>, vector<7x32xf32>, vector<7x32xf32>, vector<7x32xf32> -> vector<7x128xf32>
    %c3 = arith.constant 3 : index
    %c1_18 = arith.constant 1 : index
    %c0_19 = arith.constant 0 : index
    %33 = vector.load %arg11[%c3, %c1_18, %c0_19] : memref<6x9x128xf32, #tpu.memory_space<vmem>>, vector<1x7x128xf32>
    %34 = vector.shape_cast %33 : vector<1x7x128xf32> to vector<7x128xf32>
    %35 = vector.shape_cast %32 : vector<7x128xf32> to vector<1x7x128xf32>
    tpu.vector_store %arg11[%c3, %c1_18, %c0_19], %35 {strides = array<i32>} : memref<6x9x128xf32, #tpu.memory_space<vmem>>, vector<1x7x128xf32>,
    %36 = vector.extract_strided_slice %11 {offsets = [21, 0], sizes = [7, 32], strides = [1, 1]} : vector<112x32xf32> to vector<7x32xf32>
    %37 = vector.extract_strided_slice %11 {offsets = [49, 0], sizes = [7, 32], strides = [1, 1]} : vector<112x32xf32> to vector<7x32xf32>
    %cst_20 = arith.constant 0.000000e+00 : f32
    %38 = vector.broadcast %cst_20 : f32 to vector<7x32xf32>
    %cst_21 = arith.constant 0.000000e+00 : f32
    %39 = vector.broadcast %cst_21 : f32 to vector<7x32xf32>
    %40 = tpu.concatenate %36, %37, %38, %39 in 1 : vector<7x32xf32>, vector<7x32xf32>, vector<7x32xf32>, vector<7x32xf32> -> vector<7x128xf32>
    %c4 = arith.constant 4 : index
    %c1_22 = arith.constant 1 : index
    %c0_23 = arith.constant 0 : index
    %41 = vector.load %arg11[%c4, %c1_22, %c0_23] : memref<6x9x128xf32, #tpu.memory_space<vmem>>, vector<1x7x128xf32>
    %42 = vector.shape_cast %41 : vector<1x7x128xf32> to vector<7x128xf32>
    %43 = vector.shape_cast %40 : vector<7x128xf32> to vector<1x7x128xf32>
    tpu.vector_store %arg11[%c4, %c1_22, %c0_23], %43 {strides = array<i32>} : memref<6x9x128xf32, #tpu.memory_space<vmem>>, vector<1x7x128xf32>,
    %c0_24 = arith.constant 0 : index
    %c0_25 = arith.constant 0 : index
    %c0_26 = arith.constant 0 : index
    %44 = vector.load %arg11[%c0_24, %c0_25, %c0_26] : memref<6x9x128xf32, #tpu.memory_space<vmem>>, vector<1x7x128xf32>
    %45 = vector.shape_cast %44 : vector<1x7x128xf32> to vector<7x128xf32>
    %c0_27 = arith.constant 0 : index
    %c1_28 = arith.constant 1 : index
    %c0_29 = arith.constant 0 : index
    %46 = vector.load %arg11[%c0_27, %c1_28, %c0_29] : memref<6x9x128xf32, #tpu.memory_space<vmem>>, vector<1x7x128xf32>
    %47 = vector.shape_cast %46 : vector<1x7x128xf32> to vector<7x128xf32>
    %c0_30 = arith.constant 0 : index
    %c2_31 = arith.constant 2 : index
    %c0_32 = arith.constant 0 : index
    %48 = vector.load %arg11[%c0_30, %c2_31, %c0_32] : memref<6x9x128xf32, #tpu.memory_space<vmem>>, vector<1x7x128xf32>
    %49 = vector.shape_cast %48 : vector<1x7x128xf32> to vector<7x128xf32>
    %c1_33 = arith.constant 1 : index
    %c0_34 = arith.constant 0 : index
    %c0_35 = arith.constant 0 : index
    %50 = vector.load %arg11[%c1_33, %c0_34, %c0_35] : memref<6x9x128xf32, #tpu.memory_space<vmem>>, vector<1x7x128xf32>
    %51 = vector.shape_cast %50 : vector<1x7x128xf32> to vector<7x128xf32>
    %c1_36 = arith.constant 1 : index
    %c1_37 = arith.constant 1 : index
    %c0_38 = arith.constant 0 : index
    %52 = vector.load %arg11[%c1_36, %c1_37, %c0_38] : memref<6x9x128xf32, #tpu.memory_space<vmem>>, vector<1x7x128xf32>
    %53 = vector.shape_cast %52 : vector<1x7x128xf32> to vector<7x128xf32>
    %c1_39 = arith.constant 1 : index
    %c2_40 = arith.constant 2 : index
    %c0_41 = arith.constant 0 : index
    %54 = vector.load %arg11[%c1_39, %c2_40, %c0_41] : memref<6x9x128xf32, #tpu.memory_space<vmem>>, vector<1x7x128xf32>
    %55 = vector.shape_cast %54 : vector<1x7x128xf32> to vector<7x128xf32>
    %c2_42 = arith.constant 2 : index
    %c0_43 = arith.constant 0 : index
    %c0_44 = arith.constant 0 : index
    %56 = vector.load %arg11[%c2_42, %c0_43, %c0_44] : memref<6x9x128xf32, #tpu.memory_space<vmem>>, vector<1x7x128xf32>
    %57 = vector.shape_cast %56 : vector<1x7x128xf32> to vector<7x128xf32>
    %c2_45 = arith.constant 2 : index
    %c1_46 = arith.constant 1 : index
    %c0_47 = arith.constant 0 : index
    %58 = vector.load %arg11[%c2_45, %c1_46, %c0_47] : memref<6x9x128xf32, #tpu.memory_space<vmem>>, vector<1x7x128xf32>
    %59 = vector.shape_cast %58 : vector<1x7x128xf32> to vector<7x128xf32>
    %c2_48 = arith.constant 2 : index
    %c2_49 = arith.constant 2 : index
    %c0_50 = arith.constant 0 : index
    %60 = vector.load %arg11[%c2_48, %c2_49, %c0_50] : memref<6x9x128xf32, #tpu.memory_space<vmem>>, vector<1x7x128xf32>
    %61 = vector.shape_cast %60 : vector<1x7x128xf32> to vector<7x128xf32>
    %62 = tpu.concatenate %45, %47, %49, %51, %53, %55, %57, %59, %61 in 1 : vector<7x128xf32>, vector<7x128xf32>, vector<7x128xf32>, vector<7x128xf32>, vector<7x128xf32>, vector<7x128xf32>, vector<7x128xf32>, vector<7x128xf32>, vector<7x128xf32> -> vector<7x1152xf32>
    %c0_51 = arith.constant 0 : index
    %c0_52 = arith.constant 0 : index
    %63 = vector.load %arg4[%c0_51, %c0_52] : memref<1152x128xf32, #tpu.memory_space<vmem>>, vector<1152x128xf32>
    %cst_53 = arith.constant dense<0.000000e+00> : vector<7x128xf32>
    %64 = tpu.matmul %62, %63, %cst_53 {dimension_numbers = #tpu.dot_dimension_numbers<[1], [0], [0], [1], [0, 0, 1, 1], [], []>} : vector<7x1152xf32>, vector<1152x128xf32>, vector<7x128xf32> -> vector<7x128xf32>
    %c0_54 = arith.constant 0 : index
    %c0_55 = arith.constant 0 : index
    %65 = vector.load %arg5[%c0_54, %c0_55] : memref<1x128xf32, #tpu.memory_space<vmem>>, vector<1x128xf32>
    %66 = vector.broadcast %65 : vector<1x128xf32> to vector<7x128xf32>
    %67 = arith.addf %64, %66 : vector<7x128xf32>
    %cst_56 = arith.constant 0.000000e+00 : f32
    %68 = vector.broadcast %cst_56 : f32 to vector<7x128xf32>
    %69 = arith.maximumf %67, %68 : vector<7x128xf32>
    %c2_57 = arith.constant 2 : index
    %c2_58 = arith.constant 2 : index
    %c0_59 = arith.constant 0 : index
    %70 = vector.load %arg12[%c2_57, %c2_58, %c0_59] : memref<8x11x128xf32, #tpu.memory_space<vmem>>, vector<1x7x128xf32>
    %71 = vector.shape_cast %70 : vector<1x7x128xf32> to vector<7x128xf32>
    %72 = vector.shape_cast %69 : vector<7x128xf32> to vector<1x7x128xf32>
    tpu.vector_store %arg12[%c2_57, %c2_58, %c0_59], %72 {strides = array<i32>} : memref<8x11x128xf32, #tpu.memory_space<vmem>>, vector<1x7x128xf32>,
    %c1_60 = arith.constant 1 : index
    %c0_61 = arith.constant 0 : index
    %c0_62 = arith.constant 0 : index
    %73 = vector.load %arg11[%c1_60, %c0_61, %c0_62] : memref<6x9x128xf32, #tpu.memory_space<vmem>>, vector<1x7x128xf32>
    %74 = vector.shape_cast %73 : vector<1x7x128xf32> to vector<7x128xf32>
    %c1_63 = arith.constant 1 : index
    %c1_64 = arith.constant 1 : index
    %c0_65 = arith.constant 0 : index
    %75 = vector.load %arg11[%c1_63, %c1_64, %c0_65] : memref<6x9x128xf32, #tpu.memory_space<vmem>>, vector<1x7x128xf32>
    %76 = vector.shape_cast %75 : vector<1x7x128xf32> to vector<7x128xf32>
    %c1_66 = arith.constant 1 : index
    %c2_67 = arith.constant 2 : index
    %c0_68 = arith.constant 0 : index
    %77 = vector.load %arg11[%c1_66, %c2_67, %c0_68] : memref<6x9x128xf32, #tpu.memory_space<vmem>>, vector<1x7x128xf32>
    %78 = vector.shape_cast %77 : vector<1x7x128xf32> to vector<7x128xf32>
    %c2_69 = arith.constant 2 : index
    %c0_70 = arith.constant 0 : index
    %c0_71 = arith.constant 0 : index
    %79 = vector.load %arg11[%c2_69, %c0_70, %c0_71] : memref<6x9x128xf32, #tpu.memory_space<vmem>>, vector<1x7x128xf32>
    %80 = vector.shape_cast %79 : vector<1x7x128xf32> to vector<7x128xf32>
    %c2_72 = arith.constant 2 : index
    %c1_73 = arith.constant 1 : index
    %c0_74 = arith.constant 0 : index
    %81 = vector.load %arg11[%c2_72, %c1_73, %c0_74] : memref<6x9x128xf32, #tpu.memory_space<vmem>>, vector<1x7x128xf32>
    %82 = vector.shape_cast %81 : vector<1x7x128xf32> to vector<7x128xf32>
    %c2_75 = arith.constant 2 : index
    %c2_76 = arith.constant 2 : index
    %c0_77 = arith.constant 0 : index
    %83 = vector.load %arg11[%c2_75, %c2_76, %c0_77] : memref<6x9x128xf32, #tpu.memory_space<vmem>>, vector<1x7x128xf32>
    %84 = vector.shape_cast %83 : vector<1x7x128xf32> to vector<7x128xf32>
    %c3_78 = arith.constant 3 : index
    %c0_79 = arith.constant 0 : index
    %c0_80 = arith.constant 0 : index
    %85 = vector.load %arg11[%c3_78, %c0_79, %c0_80] : memref<6x9x128xf32, #tpu.memory_space<vmem>>, vector<1x7x128xf32>
    %86 = vector.shape_cast %85 : vector<1x7x128xf32> to vector<7x128xf32>
    %c3_81 = arith.constant 3 : index
    %c1_82 = arith.constant 1 : index
    %c0_83 = arith.constant 0 : index
    %87 = vector.load %arg11[%c3_81, %c1_82, %c0_83] : memref<6x9x128xf32, #tpu.memory_space<vmem>>, vector<1x7x128xf32>
    %88 = vector.shape_cast %87 : vector<1x7x128xf32> to vector<7x128xf32>
    %c3_84 = arith.constant 3 : index
    %c2_85 = arith.constant 2 : index
    %c0_86 = arith.constant 0 : index
    %89 = vector.load %arg11[%c3_84, %c2_85, %c0_86] : memref<6x9x128xf32, #tpu.memory_space<vmem>>, vector<1x7x128xf32>
    %90 = vector.shape_cast %89 : vector<1x7x128xf32> to vector<7x128xf32>
    %91 = tpu.concatenate %74, %76, %78, %80, %82, %84, %86, %88, %90 in 1 : vector<7x128xf32>, vector<7x128xf32>, vector<7x128xf32>, vector<7x128xf32>, vector<7x128xf32>, vector<7x128xf32>, vector<7x128xf32>, vector<7x128xf32>, vector<7x128xf32> -> vector<7x1152xf32>
    %c0_87 = arith.constant 0 : index
    %c0_88 = arith.constant 0 : index
    %92 = vector.load %arg4[%c0_87, %c0_88] : memref<1152x128xf32, #tpu.memory_space<vmem>>, vector<1152x128xf32>
    %cst_89 = arith.constant dense<0.000000e+00> : vector<7x128xf32>
    %93 = tpu.matmul %91, %92, %cst_89 {dimension_numbers = #tpu.dot_dimension_numbers<[1], [0], [0], [1], [0, 0, 1, 1], [], []>} : vector<7x1152xf32>, vector<1152x128xf32>, vector<7x128xf32> -> vector<7x128xf32>
    %c0_90 = arith.constant 0 : index
    %c0_91 = arith.constant 0 : index
    %94 = vector.load %arg5[%c0_90, %c0_91] : memref<1x128xf32, #tpu.memory_space<vmem>>, vector<1x128xf32>
    %95 = vector.broadcast %94 : vector<1x128xf32> to vector<7x128xf32>
    %96 = arith.addf %93, %95 : vector<7x128xf32>
    %cst_92 = arith.constant 0.000000e+00 : f32
    %97 = vector.broadcast %cst_92 : f32 to vector<7x128xf32>
    %98 = arith.maximumf %96, %97 : vector<7x128xf32>
    %c3_93 = arith.constant 3 : index
    %c2_94 = arith.constant 2 : index
    %c0_95 = arith.constant 0 : index
    %99 = vector.load %arg12[%c3_93, %c2_94, %c0_95] : memref<8x11x128xf32, #tpu.memory_space<vmem>>, vector<1x7x128xf32>
    %100 = vector.shape_cast %99 : vector<1x7x128xf32> to vector<7x128xf32>
    %101 = vector.shape_cast %98 : vector<7x128xf32> to vector<1x7x128xf32>
    tpu.vector_store %arg12[%c3_93, %c2_94, %c0_95], %101 {strides = array<i32>} : memref<8x11x128xf32, #tpu.memory_space<vmem>>, vector<1x7x128xf32>,
    %c2_96 = arith.constant 2 : index
    %c0_97 = arith.constant 0 : index
    %c0_98 = arith.constant 0 : index
    %102 = vector.load %arg11[%c2_96, %c0_97, %c0_98] : memref<6x9x128xf32, #tpu.memory_space<vmem>>, vector<1x7x128xf32>
    %103 = vector.shape_cast %102 : vector<1x7x128xf32> to vector<7x128xf32>
    %c2_99 = arith.constant 2 : index
    %c1_100 = arith.constant 1 : index
    %c0_101 = arith.constant 0 : index
    %104 = vector.load %arg11[%c2_99, %c1_100, %c0_101] : memref<6x9x128xf32, #tpu.memory_space<vmem>>, vector<1x7x128xf32>
    %105 = vector.shape_cast %104 : vector<1x7x128xf32> to vector<7x128xf32>
    %c2_102 = arith.constant 2 : index
    %c2_103 = arith.constant 2 : index
    %c0_104 = arith.constant 0 : index
    %106 = vector.load %arg11[%c2_102, %c2_103, %c0_104] : memref<6x9x128xf32, #tpu.memory_space<vmem>>, vector<1x7x128xf32>
    %107 = vector.shape_cast %106 : vector<1x7x128xf32> to vector<7x128xf32>
    %c3_105 = arith.constant 3 : index
    %c0_106 = arith.constant 0 : index
    %c0_107 = arith.constant 0 : index
    %108 = vector.load %arg11[%c3_105, %c0_106, %c0_107] : memref<6x9x128xf32, #tpu.memory_space<vmem>>, vector<1x7x128xf32>
    %109 = vector.shape_cast %108 : vector<1x7x128xf32> to vector<7x128xf32>
    %c3_108 = arith.constant 3 : index
    %c1_109 = arith.constant 1 : index
    %c0_110 = arith.constant 0 : index
    %110 = vector.load %arg11[%c3_108, %c1_109, %c0_110] : memref<6x9x128xf32, #tpu.memory_space<vmem>>, vector<1x7x128xf32>
    %111 = vector.shape_cast %110 : vector<1x7x128xf32> to vector<7x128xf32>
    %c3_111 = arith.constant 3 : index
    %c2_112 = arith.constant 2 : index
    %c0_113 = arith.constant 0 : index
    %112 = vector.load %arg11[%c3_111, %c2_112, %c0_113] : memref<6x9x128xf32, #tpu.memory_space<vmem>>, vector<1x7x128xf32>
    %113 = vector.shape_cast %112 : vector<1x7x128xf32> to vector<7x128xf32>
    %c4_114 = arith.constant 4 : index
    %c0_115 = arith.constant 0 : index
    %c0_116 = arith.constant 0 : index
    %114 = vector.load %arg11[%c4_114, %c0_115, %c0_116] : memref<6x9x128xf32, #tpu.memory_space<vmem>>, vector<1x7x128xf32>
    %115 = vector.shape_cast %114 : vector<1x7x128xf32> to vector<7x128xf32>
    %c4_117 = arith.constant 4 : index
    %c1_118 = arith.constant 1 : index
    %c0_119 = arith.constant 0 : index
    %116 = vector.load %arg11[%c4_117, %c1_118, %c0_119] : memref<6x9x128xf32, #tpu.memory_space<vmem>>, vector<1x7x128xf32>
    %117 = vector.shape_cast %116 : vector<1x7x128xf32> to vector<7x128xf32>
    %c4_120 = arith.constant 4 : index
    %c2_121 = arith.constant 2 : index
    %c0_122 = arith.constant 0 : index
    %118 = vector.load %arg11[%c4_120, %c2_121, %c0_122] : memref<6x9x128xf32, #tpu.memory_space<vmem>>, vector<1x7x128xf32>
    %119 = vector.shape_cast %118 : vector<1x7x128xf32> to vector<7x128xf32>
    %120 = tpu.concatenate %103, %105, %107, %109, %111, %113, %115, %117, %119 in 1 : vector<7x128xf32>, vector<7x128xf32>, vector<7x128xf32>, vector<7x128xf32>, vector<7x128xf32>, vector<7x128xf32>, vector<7x128xf32>, vector<7x128xf32>, vector<7x128xf32> -> vector<7x1152xf32>
    %c0_123 = arith.constant 0 : index
    %c0_124 = arith.constant 0 : index
    %121 = vector.load %arg4[%c0_123, %c0_124] : memref<1152x128xf32, #tpu.memory_space<vmem>>, vector<1152x128xf32>
    %cst_125 = arith.constant dense<0.000000e+00> : vector<7x128xf32>
    %122 = tpu.matmul %120, %121, %cst_125 {dimension_numbers = #tpu.dot_dimension_numbers<[1], [0], [0], [1], [0, 0, 1, 1], [], []>} : vector<7x1152xf32>, vector<1152x128xf32>, vector<7x128xf32> -> vector<7x128xf32>
    %c0_126 = arith.constant 0 : index
    %c0_127 = arith.constant 0 : index
    %123 = vector.load %arg5[%c0_126, %c0_127] : memref<1x128xf32, #tpu.memory_space<vmem>>, vector<1x128xf32>
    %124 = vector.broadcast %123 : vector<1x128xf32> to vector<7x128xf32>
    %125 = arith.addf %122, %124 : vector<7x128xf32>
    %cst_128 = arith.constant 0.000000e+00 : f32
    %126 = vector.broadcast %cst_128 : f32 to vector<7x128xf32>
    %127 = arith.maximumf %125, %126 : vector<7x128xf32>
    %c4_129 = arith.constant 4 : index
    %c2_130 = arith.constant 2 : index
    %c0_131 = arith.constant 0 : index
    %128 = vector.load %arg12[%c4_129, %c2_130, %c0_131] : memref<8x11x128xf32, #tpu.memory_space<vmem>>, vector<1x7x128xf32>
    %129 = vector.shape_cast %128 : vector<1x7x128xf32> to vector<7x128xf32>
    %130 = vector.shape_cast %127 : vector<7x128xf32> to vector<1x7x128xf32>
    tpu.vector_store %arg12[%c4_129, %c2_130, %c0_131], %130 {strides = array<i32>} : memref<8x11x128xf32, #tpu.memory_space<vmem>>, vector<1x7x128xf32>,
    %c3_132 = arith.constant 3 : index
    %c0_133 = arith.constant 0 : index
    %c0_134 = arith.constant 0 : index
    %131 = vector.load %arg11[%c3_132, %c0_133, %c0_134] : memref<6x9x128xf32, #tpu.memory_space<vmem>>, vector<1x7x128xf32>
    %132 = vector.shape_cast %131 : vector<1x7x128xf32> to vector<7x128xf32>
    %c3_135 = arith.constant 3 : index
    %c1_136 = arith.constant 1 : index
    %c0_137 = arith.constant 0 : index
    %133 = vector.load %arg11[%c3_135, %c1_136, %c0_137] : memref<6x9x128xf32, #tpu.memory_space<vmem>>, vector<1x7x128xf32>
    %134 = vector.shape_cast %133 : vector<1x7x128xf32> to vector<7x128xf32>
    %c3_138 = arith.constant 3 : index
    %c2_139 = arith.constant 2 : index
    %c0_140 = arith.constant 0 : index
    %135 = vector.load %arg11[%c3_138, %c2_139, %c0_140] : memref<6x9x128xf32, #tpu.memory_space<vmem>>, vector<1x7x128xf32>
    %136 = vector.shape_cast %135 : vector<1x7x128xf32> to vector<7x128xf32>
    %c4_141 = arith.constant 4 : index
    %c0_142 = arith.constant 0 : index
    %c0_143 = arith.constant 0 : index
    %137 = vector.load %arg11[%c4_141, %c0_142, %c0_143] : memref<6x9x128xf32, #tpu.memory_space<vmem>>, vector<1x7x128xf32>
    %138 = vector.shape_cast %137 : vector<1x7x128xf32> to vector<7x128xf32>
    %c4_144 = arith.constant 4 : index
    %c1_145 = arith.constant 1 : index
    %c0_146 = arith.constant 0 : index
    %139 = vector.load %arg11[%c4_144, %c1_145, %c0_146] : memref<6x9x128xf32, #tpu.memory_space<vmem>>, vector<1x7x128xf32>
    %140 = vector.shape_cast %139 : vector<1x7x128xf32> to vector<7x128xf32>
    %c4_147 = arith.constant 4 : index
    %c2_148 = arith.constant 2 : index
    %c0_149 = arith.constant 0 : index
    %141 = vector.load %arg11[%c4_147, %c2_148, %c0_149] : memref<6x9x128xf32, #tpu.memory_space<vmem>>, vector<1x7x128xf32>
    %142 = vector.shape_cast %141 : vector<1x7x128xf32> to vector<7x128xf32>
    %c5 = arith.constant 5 : index
    %c0_150 = arith.constant 0 : index
    %c0_151 = arith.constant 0 : index
    %143 = vector.load %arg11[%c5, %c0_150, %c0_151] : memref<6x9x128xf32, #tpu.memory_space<vmem>>, vector<1x7x128xf32>
    %144 = vector.shape_cast %143 : vector<1x7x128xf32> to vector<7x128xf32>
    %c5_152 = arith.constant 5 : index
    %c1_153 = arith.constant 1 : index
    %c0_154 = arith.constant 0 : index
    %145 = vector.load %arg11[%c5_152, %c1_153, %c0_154] : memref<6x9x128xf32, #tpu.memory_space<vmem>>, vector<1x7x128xf32>
    %146 = vector.shape_cast %145 : vector<1x7x128xf32> to vector<7x128xf32>
    %c5_155 = arith.constant 5 : index
    %c2_156 = arith.constant 2 : index
    %c0_157 = arith.constant 0 : index
    %147 = vector.load %arg11[%c5_155, %c2_156, %c0_157] : memref<6x9x128xf32, #tpu.memory_space<vmem>>, vector<1x7x128xf32>
    %148 = vector.shape_cast %147 : vector<1x7x128xf32> to vector<7x128xf32>
    %149 = tpu.concatenate %132, %134, %136, %138, %140, %142, %144, %146, %148 in 1 : vector<7x128xf32>, vector<7x128xf32>, vector<7x128xf32>, vector<7x128xf32>, vector<7x128xf32>, vector<7x128xf32>, vector<7x128xf32>, vector<7x128xf32>, vector<7x128xf32> -> vector<7x1152xf32>
    %c0_158 = arith.constant 0 : index
    %c0_159 = arith.constant 0 : index
    %150 = vector.load %arg4[%c0_158, %c0_159] : memref<1152x128xf32, #tpu.memory_space<vmem>>, vector<1152x128xf32>
    %cst_160 = arith.constant dense<0.000000e+00> : vector<7x128xf32>
    %151 = tpu.matmul %149, %150, %cst_160 {dimension_numbers = #tpu.dot_dimension_numbers<[1], [0], [0], [1], [0, 0, 1, 1], [], []>} : vector<7x1152xf32>, vector<1152x128xf32>, vector<7x128xf32> -> vector<7x128xf32>
    %c0_161 = arith.constant 0 : index
    %c0_162 = arith.constant 0 : index
    %152 = vector.load %arg5[%c0_161, %c0_162] : memref<1x128xf32, #tpu.memory_space<vmem>>, vector<1x128xf32>
    %153 = vector.broadcast %152 : vector<1x128xf32> to vector<7x128xf32>
    %154 = arith.addf %151, %153 : vector<7x128xf32>
    %cst_163 = arith.constant 0.000000e+00 : f32
    %155 = vector.broadcast %cst_163 : f32 to vector<7x128xf32>
    %156 = arith.maximumf %154, %155 : vector<7x128xf32>
    %c5_164 = arith.constant 5 : index
    %c2_165 = arith.constant 2 : index
    %c0_166 = arith.constant 0 : index
    %157 = vector.load %arg12[%c5_164, %c2_165, %c0_166] : memref<8x11x128xf32, #tpu.memory_space<vmem>>, vector<1x7x128xf32>
    %158 = vector.shape_cast %157 : vector<1x7x128xf32> to vector<7x128xf32>
    %159 = vector.shape_cast %156 : vector<7x128xf32> to vector<1x7x128xf32>
    tpu.vector_store %arg12[%c5_164, %c2_165, %c0_166], %159 {strides = array<i32>} : memref<8x11x128xf32, #tpu.memory_space<vmem>>, vector<1x7x128xf32>,
    %c0_167 = arith.constant 0 : index
    %c0_168 = arith.constant 0 : index
    %c0_169 = arith.constant 0 : index
    %160 = vector.load %arg12[%c0_167, %c0_168, %c0_169] : memref<8x11x128xf32, #tpu.memory_space<vmem>>, vector<1x7x128xf32>
    %161 = vector.shape_cast %160 : vector<1x7x128xf32> to vector<7x128xf32>
    %c0_170 = arith.constant 0 : index
    %c1_171 = arith.constant 1 : index
    %c0_172 = arith.constant 0 : index
    %162 = vector.load %arg12[%c0_170, %c1_171, %c0_172] : memref<8x11x128xf32, #tpu.memory_space<vmem>>, vector<1x7x128xf32>
    %163 = vector.shape_cast %162 : vector<1x7x128xf32> to vector<7x128xf32>
    %c0_173 = arith.constant 0 : index
    %c2_174 = arith.constant 2 : index
    %c0_175 = arith.constant 0 : index
    %164 = vector.load %arg12[%c0_173, %c2_174, %c0_175] : memref<8x11x128xf32, #tpu.memory_space<vmem>>, vector<1x7x128xf32>
    %165 = vector.shape_cast %164 : vector<1x7x128xf32> to vector<7x128xf32>
    %c0_176 = arith.constant 0 : index
    %c3_177 = arith.constant 3 : index
    %c0_178 = arith.constant 0 : index
    %166 = vector.load %arg12[%c0_176, %c3_177, %c0_178] : memref<8x11x128xf32, #tpu.memory_space<vmem>>, vector<1x7x128xf32>
    %167 = vector.shape_cast %166 : vector<1x7x128xf32> to vector<7x128xf32>
    %c0_179 = arith.constant 0 : index
    %c4_180 = arith.constant 4 : index
    %c0_181 = arith.constant 0 : index
    %168 = vector.load %arg12[%c0_179, %c4_180, %c0_181] : memref<8x11x128xf32, #tpu.memory_space<vmem>>, vector<1x7x128xf32>
    %169 = vector.shape_cast %168 : vector<1x7x128xf32> to vector<7x128xf32>
    %c1_182 = arith.constant 1 : index
    %c0_183 = arith.constant 0 : index
    %c0_184 = arith.constant 0 : index
    %170 = vector.load %arg12[%c1_182, %c0_183, %c0_184] : memref<8x11x128xf32, #tpu.memory_space<vmem>>, vector<1x7x128xf32>
    %171 = vector.shape_cast %170 : vector<1x7x128xf32> to vector<7x128xf32>
    %c1_185 = arith.constant 1 : index
    %c1_186 = arith.constant 1 : index
    %c0_187 = arith.constant 0 : index
    %172 = vector.load %arg12[%c1_185, %c1_186, %c0_187] : memref<8x11x128xf32, #tpu.memory_space<vmem>>, vector<1x7x128xf32>
    %173 = vector.shape_cast %172 : vector<1x7x128xf32> to vector<7x128xf32>
    %c1_188 = arith.constant 1 : index
    %c2_189 = arith.constant 2 : index
    %c0_190 = arith.constant 0 : index
    %174 = vector.load %arg12[%c1_188, %c2_189, %c0_190] : memref<8x11x128xf32, #tpu.memory_space<vmem>>, vector<1x7x128xf32>
    %175 = vector.shape_cast %174 : vector<1x7x128xf32> to vector<7x128xf32>
    %c1_191 = arith.constant 1 : index
    %c3_192 = arith.constant 3 : index
    %c0_193 = arith.constant 0 : index
    %176 = vector.load %arg12[%c1_191, %c3_192, %c0_193] : memref<8x11x128xf32, #tpu.memory_space<vmem>>, vector<1x7x128xf32>
    %177 = vector.shape_cast %176 : vector<1x7x128xf32> to vector<7x128xf32>
    %c1_194 = arith.constant 1 : index
    %c4_195 = arith.constant 4 : index
    %c0_196 = arith.constant 0 : index
    %178 = vector.load %arg12[%c1_194, %c4_195, %c0_196] : memref<8x11x128xf32, #tpu.memory_space<vmem>>, vector<1x7x128xf32>
    %179 = vector.shape_cast %178 : vector<1x7x128xf32> to vector<7x128xf32>
    %c2_197 = arith.constant 2 : index
    %c0_198 = arith.constant 0 : index
    %c0_199 = arith.constant 0 : index
    %180 = vector.load %arg12[%c2_197, %c0_198, %c0_199] : memref<8x11x128xf32, #tpu.memory_space<vmem>>, vector<1x7x128xf32>
    %181 = vector.shape_cast %180 : vector<1x7x128xf32> to vector<7x128xf32>
    %c2_200 = arith.constant 2 : index
    %c1_201 = arith.constant 1 : index
    %c0_202 = arith.constant 0 : index
    %182 = vector.load %arg12[%c2_200, %c1_201, %c0_202] : memref<8x11x128xf32, #tpu.memory_space<vmem>>, vector<1x7x128xf32>
    %183 = vector.shape_cast %182 : vector<1x7x128xf32> to vector<7x128xf32>
    %c2_203 = arith.constant 2 : index
    %c2_204 = arith.constant 2 : index
    %c0_205 = arith.constant 0 : index
    %184 = vector.load %arg12[%c2_203, %c2_204, %c0_205] : memref<8x11x128xf32, #tpu.memory_space<vmem>>, vector<1x7x128xf32>
    %185 = vector.shape_cast %184 : vector<1x7x128xf32> to vector<7x128xf32>
    %c2_206 = arith.constant 2 : index
    %c3_207 = arith.constant 3 : index
    %c0_208 = arith.constant 0 : index
    %186 = vector.load %arg12[%c2_206, %c3_207, %c0_208] : memref<8x11x128xf32, #tpu.memory_space<vmem>>, vector<1x7x128xf32>
    %187 = vector.shape_cast %186 : vector<1x7x128xf32> to vector<7x128xf32>
    %c2_209 = arith.constant 2 : index
    %c4_210 = arith.constant 4 : index
    %c0_211 = arith.constant 0 : index
    %188 = vector.load %arg12[%c2_209, %c4_210, %c0_211] : memref<8x11x128xf32, #tpu.memory_space<vmem>>, vector<1x7x128xf32>
    %189 = vector.shape_cast %188 : vector<1x7x128xf32> to vector<7x128xf32>
    %c3_212 = arith.constant 3 : index
    %c0_213 = arith.constant 0 : index
    %c0_214 = arith.constant 0 : index
    %190 = vector.load %arg12[%c3_212, %c0_213, %c0_214] : memref<8x11x128xf32, #tpu.memory_space<vmem>>, vector<1x7x128xf32>
    %191 = vector.shape_cast %190 : vector<1x7x128xf32> to vector<7x128xf32>
    %c3_215 = arith.constant 3 : index
    %c1_216 = arith.constant 1 : index
    %c0_217 = arith.constant 0 : index
    %192 = vector.load %arg12[%c3_215, %c1_216, %c0_217] : memref<8x11x128xf32, #tpu.memory_space<vmem>>, vector<1x7x128xf32>
    %193 = vector.shape_cast %192 : vector<1x7x128xf32> to vector<7x128xf32>
    %c3_218 = arith.constant 3 : index
    %c2_219 = arith.constant 2 : index
    %c0_220 = arith.constant 0 : index
    %194 = vector.load %arg12[%c3_218, %c2_219, %c0_220] : memref<8x11x128xf32, #tpu.memory_space<vmem>>, vector<1x7x128xf32>
    %195 = vector.shape_cast %194 : vector<1x7x128xf32> to vector<7x128xf32>
    %c3_221 = arith.constant 3 : index
    %c3_222 = arith.constant 3 : index
    %c0_223 = arith.constant 0 : index
    %196 = vector.load %arg12[%c3_221, %c3_222, %c0_223] : memref<8x11x128xf32, #tpu.memory_space<vmem>>, vector<1x7x128xf32>
    %197 = vector.shape_cast %196 : vector<1x7x128xf32> to vector<7x128xf32>
    %c3_224 = arith.constant 3 : index
    %c4_225 = arith.constant 4 : index
    %c0_226 = arith.constant 0 : index
    %198 = vector.load %arg12[%c3_224, %c4_225, %c0_226] : memref<8x11x128xf32, #tpu.memory_space<vmem>>, vector<1x7x128xf32>
    %199 = vector.shape_cast %198 : vector<1x7x128xf32> to vector<7x128xf32>
    %c4_227 = arith.constant 4 : index
    %c0_228 = arith.constant 0 : index
    %c0_229 = arith.constant 0 : index
    %200 = vector.load %arg12[%c4_227, %c0_228, %c0_229] : memref<8x11x128xf32, #tpu.memory_space<vmem>>, vector<1x7x128xf32>
    %201 = vector.shape_cast %200 : vector<1x7x128xf32> to vector<7x128xf32>
    %c4_230 = arith.constant 4 : index
    %c1_231 = arith.constant 1 : index
    %c0_232 = arith.constant 0 : index
    %202 = vector.load %arg12[%c4_230, %c1_231, %c0_232] : memref<8x11x128xf32, #tpu.memory_space<vmem>>, vector<1x7x128xf32>
    %203 = vector.shape_cast %202 : vector<1x7x128xf32> to vector<7x128xf32>
    %c4_233 = arith.constant 4 : index
    %c2_234 = arith.constant 2 : index
    %c0_235 = arith.constant 0 : index
    %204 = vector.load %arg12[%c4_233, %c2_234, %c0_235] : memref<8x11x128xf32, #tpu.memory_space<vmem>>, vector<1x7x128xf32>
    %205 = vector.shape_cast %204 : vector<1x7x128xf32> to vector<7x128xf32>
    %c4_236 = arith.constant 4 : index
    %c3_237 = arith.constant 3 : index
    %c0_238 = arith.constant 0 : index
    %206 = vector.load %arg12[%c4_236, %c3_237, %c0_238] : memref<8x11x128xf32, #tpu.memory_space<vmem>>, vector<1x7x128xf32>
    %207 = vector.shape_cast %206 : vector<1x7x128xf32> to vector<7x128xf32>
    %c4_239 = arith.constant 4 : index
    %c4_240 = arith.constant 4 : index
    %c0_241 = arith.constant 0 : index
    %208 = vector.load %arg12[%c4_239, %c4_240, %c0_241] : memref<8x11x128xf32, #tpu.memory_space<vmem>>, vector<1x7x128xf32>
    %209 = vector.shape_cast %208 : vector<1x7x128xf32> to vector<7x128xf32>
    %210 = tpu.concatenate %161, %163, %165, %167, %169, %171, %173, %175, %177, %179, %181, %183, %185, %187, %189, %191 in 1 : vector<7x128xf32>, vector<7x128xf32>, vector<7x128xf32>, vector<7x128xf32>, vector<7x128xf32>, vector<7x128xf32>, vector<7x128xf32>, vector<7x128xf32>, vector<7x128xf32>, vector<7x128xf32>, vector<7x128xf32>, vector<7x128xf32>, vector<7x128xf32>, vector<7x128xf32>, vector<7x128xf32>, vector<7x128xf32> -> vector<7x2048xf32>
    %211 = tpu.concatenate %193, %195, %197, %199, %201, %203, %205, %207, %209 in 1 : vector<7x128xf32>, vector<7x128xf32>, vector<7x128xf32>, vector<7x128xf32>, vector<7x128xf32>, vector<7x128xf32>, vector<7x128xf32>, vector<7x128xf32>, vector<7x128xf32> -> vector<7x1152xf32>
    %212 = tpu.concatenate %210, %211 in 1 : vector<7x2048xf32>, vector<7x1152xf32> -> vector<7x3200xf32>
    %c0_242 = arith.constant 0 : index
    %c0_243 = arith.constant 0 : index
    %213 = vector.load %arg6[%c0_242, %c0_243] : memref<3200x128xf32, #tpu.memory_space<vmem>>, vector<3200x128xf32>
    %cst_244 = arith.constant dense<0.000000e+00> : vector<7x128xf32>
    %214 = tpu.matmul %212, %213, %cst_244 {dimension_numbers = #tpu.dot_dimension_numbers<[1], [0], [0], [1], [0, 0, 1, 1], [], []>} : vector<7x3200xf32>, vector<3200x128xf32>, vector<7x128xf32> -> vector<7x128xf32>
    %c0_245 = arith.constant 0 : index
    %c0_246 = arith.constant 0 : index
    %215 = vector.load %arg7[%c0_245, %c0_246] : memref<1x128xf32, #tpu.memory_space<vmem>>, vector<1x128xf32>
    %216 = vector.broadcast %215 : vector<1x128xf32> to vector<7x128xf32>
    %217 = arith.addf %214, %216 : vector<7x128xf32>
    %cst_247 = arith.constant 0.000000e+00 : f32
    %218 = vector.broadcast %cst_247 : f32 to vector<7x128xf32>
    %219 = arith.maximumf %217, %218 : vector<7x128xf32>
    %c0_248 = arith.constant 0 : index
    %c0_249 = arith.constant 0 : index
    %c0_250 = arith.constant 0 : index
    %c0_251 = arith.constant 0 : index
    %220 = vector.load %arg8[%c0_248, %c0_249, %c0_250, %c0_251] : memref<2x4x7x128xf32, #tpu.memory_space<vmem>>, vector<1x1x7x128xf32>
    %221 = vector.shape_cast %220 : vector<1x1x7x128xf32> to vector<7x128xf32>
    %222 = arith.mulf %219, %221 : vector<7x128xf32>
    %223 = vector.shape_cast %222 : vector<7x128xf32> to vector<1x7x128xf32>
    %cst_252 = arith.constant dense<0.000000e+00> : vector<1xf32>
    %224 = vector.multi_reduction <add>, %223, %cst_252 [1, 2] : vector<1x7x128xf32> to vector<1xf32>
    %225 = vector.shape_cast %224 : vector<1xf32> to vector<1x1x1xf32>
    %226 = vector.extract %225[0, 0, 0] : f32 from vector<1x1x1xf32>
    %cst_253 = arith.constant 0.000000e+00 : f32
    %227 = arith.addf %cst_253, %226 : f32
    %c1_254 = arith.constant 1 : index
    %c0_255 = arith.constant 0 : index
    %c0_256 = arith.constant 0 : index
    %c0_257 = arith.constant 0 : index
    %228 = vector.load %arg8[%c1_254, %c0_255, %c0_256, %c0_257] : memref<2x4x7x128xf32, #tpu.memory_space<vmem>>, vector<1x1x7x128xf32>
    %229 = vector.shape_cast %228 : vector<1x1x7x128xf32> to vector<7x128xf32>
    %230 = arith.mulf %219, %229 : vector<7x128xf32>
    %231 = vector.shape_cast %230 : vector<7x128xf32> to vector<1x7x128xf32>
    %cst_258 = arith.constant dense<0.000000e+00> : vector<1xf32>
    %232 = vector.multi_reduction <add>, %231, %cst_258 [1, 2] : vector<1x7x128xf32> to vector<1xf32>
    %233 = vector.shape_cast %232 : vector<1xf32> to vector<1x1x1xf32>
    %234 = vector.extract %233[0, 0, 0] : f32 from vector<1x1x1xf32>
    %cst_259 = arith.constant 0.000000e+00 : f32
    %235 = arith.addf %cst_259, %234 : f32
    %c1_260 = arith.constant 1 : index
    %c0_261 = arith.constant 0 : index
    %c0_262 = arith.constant 0 : index
    %236 = vector.load %arg12[%c1_260, %c0_261, %c0_262] : memref<8x11x128xf32, #tpu.memory_space<vmem>>, vector<1x7x128xf32>
    %237 = vector.shape_cast %236 : vector<1x7x128xf32> to vector<7x128xf32>
    %c1_263 = arith.constant 1 : index
    %c1_264 = arith.constant 1 : index
    %c0_265 = arith.constant 0 : index
    %238 = vector.load %arg12[%c1_263, %c1_264, %c0_265] : memref<8x11x128xf32, #tpu.memory_space<vmem>>, vector<1x7x128xf32>
    %239 = vector.shape_cast %238 : vector<1x7x128xf32> to vector<7x128xf32>
    %c1_266 = arith.constant 1 : index
    %c2_267 = arith.constant 2 : index
    %c0_268 = arith.constant 0 : index
    %240 = vector.load %arg12[%c1_266, %c2_267, %c0_268] : memref<8x11x128xf32, #tpu.memory_space<vmem>>, vector<1x7x128xf32>
    %241 = vector.shape_cast %240 : vector<1x7x128xf32> to vector<7x128xf32>
    %c1_269 = arith.constant 1 : index
    %c3_270 = arith.constant 3 : index
    %c0_271 = arith.constant 0 : index
    %242 = vector.load %arg12[%c1_269, %c3_270, %c0_271] : memref<8x11x128xf32, #tpu.memory_space<vmem>>, vector<1x7x128xf32>
    %243 = vector.shape_cast %242 : vector<1x7x128xf32> to vector<7x128xf32>
    %c1_272 = arith.constant 1 : index
    %c4_273 = arith.constant 4 : index
    %c0_274 = arith.constant 0 : index
    %244 = vector.load %arg12[%c1_272, %c4_273, %c0_274] : memref<8x11x128xf32, #tpu.memory_space<vmem>>, vector<1x7x128xf32>
    %245 = vector.shape_cast %244 : vector<1x7x128xf32> to vector<7x128xf32>
    %c2_275 = arith.constant 2 : index
    %c0_276 = arith.constant 0 : index
    %c0_277 = arith.constant 0 : index
    %246 = vector.load %arg12[%c2_275, %c0_276, %c0_277] : memref<8x11x128xf32, #tpu.memory_space<vmem>>, vector<1x7x128xf32>
    %247 = vector.shape_cast %246 : vector<1x7x128xf32> to vector<7x128xf32>
    %c2_278 = arith.constant 2 : index
    %c1_279 = arith.constant 1 : index
    %c0_280 = arith.constant 0 : index
    %248 = vector.load %arg12[%c2_278, %c1_279, %c0_280] : memref<8x11x128xf32, #tpu.memory_space<vmem>>, vector<1x7x128xf32>
    %249 = vector.shape_cast %248 : vector<1x7x128xf32> to vector<7x128xf32>
    %c2_281 = arith.constant 2 : index
    %c2_282 = arith.constant 2 : index
    %c0_283 = arith.constant 0 : index
    %250 = vector.load %arg12[%c2_281, %c2_282, %c0_283] : memref<8x11x128xf32, #tpu.memory_space<vmem>>, vector<1x7x128xf32>
    %251 = vector.shape_cast %250 : vector<1x7x128xf32> to vector<7x128xf32>
    %c2_284 = arith.constant 2 : index
    %c3_285 = arith.constant 3 : index
    %c0_286 = arith.constant 0 : index
    %252 = vector.load %arg12[%c2_284, %c3_285, %c0_286] : memref<8x11x128xf32, #tpu.memory_space<vmem>>, vector<1x7x128xf32>
    %253 = vector.shape_cast %252 : vector<1x7x128xf32> to vector<7x128xf32>
    %c2_287 = arith.constant 2 : index
    %c4_288 = arith.constant 4 : index
    %c0_289 = arith.constant 0 : index
    %254 = vector.load %arg12[%c2_287, %c4_288, %c0_289] : memref<8x11x128xf32, #tpu.memory_space<vmem>>, vector<1x7x128xf32>
    %255 = vector.shape_cast %254 : vector<1x7x128xf32> to vector<7x128xf32>
    %c3_290 = arith.constant 3 : index
    %c0_291 = arith.constant 0 : index
    %c0_292 = arith.constant 0 : index
    %256 = vector.load %arg12[%c3_290, %c0_291, %c0_292] : memref<8x11x128xf32, #tpu.memory_space<vmem>>, vector<1x7x128xf32>
    %257 = vector.shape_cast %256 : vector<1x7x128xf32> to vector<7x128xf32>
    %c3_293 = arith.constant 3 : index
    %c1_294 = arith.constant 1 : index
    %c0_295 = arith.constant 0 : index
    %258 = vector.load %arg12[%c3_293, %c1_294, %c0_295] : memref<8x11x128xf32, #tpu.memory_space<vmem>>, vector<1x7x128xf32>
    %259 = vector.shape_cast %258 : vector<1x7x128xf32> to vector<7x128xf32>
    %c3_296 = arith.constant 3 : index
    %c2_297 = arith.constant 2 : index
    %c0_298 = arith.constant 0 : index
    %260 = vector.load %arg12[%c3_296, %c2_297, %c0_298] : memref<8x11x128xf32, #tpu.memory_space<vmem>>, vector<1x7x128xf32>
    %261 = vector.shape_cast %260 : vector<1x7x128xf32> to vector<7x128xf32>
    %c3_299 = arith.constant 3 : index
    %c3_300 = arith.constant 3 : index
    %c0_301 = arith.constant 0 : index
    %262 = vector.load %arg12[%c3_299, %c3_300, %c0_301] : memref<8x11x128xf32, #tpu.memory_space<vmem>>, vector<1x7x128xf32>
    %263 = vector.shape_cast %262 : vector<1x7x128xf32> to vector<7x128xf32>
    %c3_302 = arith.constant 3 : index
    %c4_303 = arith.constant 4 : index
    %c0_304 = arith.constant 0 : index
    %264 = vector.load %arg12[%c3_302, %c4_303, %c0_304] : memref<8x11x128xf32, #tpu.memory_space<vmem>>, vector<1x7x128xf32>
    %265 = vector.shape_cast %264 : vector<1x7x128xf32> to vector<7x128xf32>
    %c4_305 = arith.constant 4 : index
    %c0_306 = arith.constant 0 : index
    %c0_307 = arith.constant 0 : index
    %266 = vector.load %arg12[%c4_305, %c0_306, %c0_307] : memref<8x11x128xf32, #tpu.memory_space<vmem>>, vector<1x7x128xf32>
    %267 = vector.shape_cast %266 : vector<1x7x128xf32> to vector<7x128xf32>
    %c4_308 = arith.constant 4 : index
    %c1_309 = arith.constant 1 : index
    %c0_310 = arith.constant 0 : index
    %268 = vector.load %arg12[%c4_308, %c1_309, %c0_310] : memref<8x11x128xf32, #tpu.memory_space<vmem>>, vector<1x7x128xf32>
    %269 = vector.shape_cast %268 : vector<1x7x128xf32> to vector<7x128xf32>
    %c4_311 = arith.constant 4 : index
    %c2_312 = arith.constant 2 : index
    %c0_313 = arith.constant 0 : index
    %270 = vector.load %arg12[%c4_311, %c2_312, %c0_313] : memref<8x11x128xf32, #tpu.memory_space<vmem>>, vector<1x7x128xf32>
    %271 = vector.shape_cast %270 : vector<1x7x128xf32> to vector<7x128xf32>
    %c4_314 = arith.constant 4 : index
    %c3_315 = arith.constant 3 : index
    %c0_316 = arith.constant 0 : index
    %272 = vector.load %arg12[%c4_314, %c3_315, %c0_316] : memref<8x11x128xf32, #tpu.memory_space<vmem>>, vector<1x7x128xf32>
    %273 = vector.shape_cast %272 : vector<1x7x128xf32> to vector<7x128xf32>
    %c4_317 = arith.constant 4 : index
    %c4_318 = arith.constant 4 : index
    %c0_319 = arith.constant 0 : index
    %274 = vector.load %arg12[%c4_317, %c4_318, %c0_319] : memref<8x11x128xf32, #tpu.memory_space<vmem>>, vector<1x7x128xf32>
    %275 = vector.shape_cast %274 : vector<1x7x128xf32> to vector<7x128xf32>
    %c5_320 = arith.constant 5 : index
    %c0_321 = arith.constant 0 : index
    %c0_322 = arith.constant 0 : index
    %276 = vector.load %arg12[%c5_320, %c0_321, %c0_322] : memref<8x11x128xf32, #tpu.memory_space<vmem>>, vector<1x7x128xf32>
    %277 = vector.shape_cast %276 : vector<1x7x128xf32> to vector<7x128xf32>
    %c5_323 = arith.constant 5 : index
    %c1_324 = arith.constant 1 : index
    %c0_325 = arith.constant 0 : index
    %278 = vector.load %arg12[%c5_323, %c1_324, %c0_325] : memref<8x11x128xf32, #tpu.memory_space<vmem>>, vector<1x7x128xf32>
    %279 = vector.shape_cast %278 : vector<1x7x128xf32> to vector<7x128xf32>
    %c5_326 = arith.constant 5 : index
    %c2_327 = arith.constant 2 : index
    %c0_328 = arith.constant 0 : index
    %280 = vector.load %arg12[%c5_326, %c2_327, %c0_328] : memref<8x11x128xf32, #tpu.memory_space<vmem>>, vector<1x7x128xf32>
    %281 = vector.shape_cast %280 : vector<1x7x128xf32> to vector<7x128xf32>
    %c5_329 = arith.constant 5 : index
    %c3_330 = arith.constant 3 : index
    %c0_331 = arith.constant 0 : index
    %282 = vector.load %arg12[%c5_329, %c3_330, %c0_331] : memref<8x11x128xf32, #tpu.memory_space<vmem>>, vector<1x7x128xf32>
    %283 = vector.shape_cast %282 : vector<1x7x128xf32> to vector<7x128xf32>
    %c5_332 = arith.constant 5 : index
    %c4_333 = arith.constant 4 : index
    %c0_334 = arith.constant 0 : index
    %284 = vector.load %arg12[%c5_332, %c4_333, %c0_334] : memref<8x11x128xf32, #tpu.memory_space<vmem>>, vector<1x7x128xf32>
    %285 = vector.shape_cast %284 : vector<1x7x128xf32> to vector<7x128xf32>
    %286 = tpu.concatenate %237, %239, %241, %243, %245, %247, %249, %251, %253, %255, %257, %259, %261, %263, %265, %267 in 1 : vector<7x128xf32>, vector<7x128xf32>, vector<7x128xf32>, vector<7x128xf32>, vector<7x128xf32>, vector<7x128xf32>, vector<7x128xf32>, vector<7x128xf32>, vector<7x128xf32>, vector<7x128xf32>, vector<7x128xf32>, vector<7x128xf32>, vector<7x128xf32>, vector<7x128xf32>, vector<7x128xf32>, vector<7x128xf32> -> vector<7x2048xf32>
    %287 = tpu.concatenate %269, %271, %273, %275, %277, %279, %281, %283, %285 in 1 : vector<7x128xf32>, vector<7x128xf32>, vector<7x128xf32>, vector<7x128xf32>, vector<7x128xf32>, vector<7x128xf32>, vector<7x128xf32>, vector<7x128xf32>, vector<7x128xf32> -> vector<7x1152xf32>
    %288 = tpu.concatenate %286, %287 in 1 : vector<7x2048xf32>, vector<7x1152xf32> -> vector<7x3200xf32>
    %c0_335 = arith.constant 0 : index
    %c0_336 = arith.constant 0 : index
    %289 = vector.load %arg6[%c0_335, %c0_336] : memref<3200x128xf32, #tpu.memory_space<vmem>>, vector<3200x128xf32>
    %cst_337 = arith.constant dense<0.000000e+00> : vector<7x128xf32>
    %290 = tpu.matmul %288, %289, %cst_337 {dimension_numbers = #tpu.dot_dimension_numbers<[1], [0], [0], [1], [0, 0, 1, 1], [], []>} : vector<7x3200xf32>, vector<3200x128xf32>, vector<7x128xf32> -> vector<7x128xf32>
    %c0_338 = arith.constant 0 : index
    %c0_339 = arith.constant 0 : index
    %291 = vector.load %arg7[%c0_338, %c0_339] : memref<1x128xf32, #tpu.memory_space<vmem>>, vector<1x128xf32>
    %292 = vector.broadcast %291 : vector<1x128xf32> to vector<7x128xf32>
    %293 = arith.addf %290, %292 : vector<7x128xf32>
    %cst_340 = arith.constant 0.000000e+00 : f32
    %294 = vector.broadcast %cst_340 : f32 to vector<7x128xf32>
    %295 = arith.maximumf %293, %294 : vector<7x128xf32>
    %c0_341 = arith.constant 0 : index
    %c1_342 = arith.constant 1 : index
    %c0_343 = arith.constant 0 : index
    %c0_344 = arith.constant 0 : index
    %296 = vector.load %arg8[%c0_341, %c1_342, %c0_343, %c0_344] : memref<2x4x7x128xf32, #tpu.memory_space<vmem>>, vector<1x1x7x128xf32>
    %297 = vector.shape_cast %296 : vector<1x1x7x128xf32> to vector<7x128xf32>
    %298 = arith.mulf %295, %297 : vector<7x128xf32>
    %299 = vector.shape_cast %298 : vector<7x128xf32> to vector<1x7x128xf32>
    %cst_345 = arith.constant dense<0.000000e+00> : vector<1xf32>
    %300 = vector.multi_reduction <add>, %299, %cst_345 [1, 2] : vector<1x7x128xf32> to vector<1xf32>
    %301 = vector.shape_cast %300 : vector<1xf32> to vector<1x1x1xf32>
    %302 = vector.extract %301[0, 0, 0] : f32 from vector<1x1x1xf32>
    %303 = arith.addf %227, %302 : f32
    %c1_346 = arith.constant 1 : index
    %c1_347 = arith.constant 1 : index
    %c0_348 = arith.constant 0 : index
    %c0_349 = arith.constant 0 : index
    %304 = vector.load %arg8[%c1_346, %c1_347, %c0_348, %c0_349] : memref<2x4x7x128xf32, #tpu.memory_space<vmem>>, vector<1x1x7x128xf32>
    %305 = vector.shape_cast %304 : vector<1x1x7x128xf32> to vector<7x128xf32>
    %306 = arith.mulf %295, %305 : vector<7x128xf32>
    %307 = vector.shape_cast %306 : vector<7x128xf32> to vector<1x7x128xf32>
    %cst_350 = arith.constant dense<0.000000e+00> : vector<1xf32>
    %308 = vector.multi_reduction <add>, %307, %cst_350 [1, 2] : vector<1x7x128xf32> to vector<1xf32>
    %309 = vector.shape_cast %308 : vector<1xf32> to vector<1x1x1xf32>
    %310 = vector.extract %309[0, 0, 0] : f32 from vector<1x1x1xf32>
    %311 = arith.addf %235, %310 : f32
    %c2_351 = arith.constant 2 : index
    %c0_352 = arith.constant 0 : index
    %c0_353 = arith.constant 0 : index
    %312 = vector.load %arg12[%c2_351, %c0_352, %c0_353] : memref<8x11x128xf32, #tpu.memory_space<vmem>>, vector<1x7x128xf32>
    %313 = vector.shape_cast %312 : vector<1x7x128xf32> to vector<7x128xf32>
    %c2_354 = arith.constant 2 : index
    %c1_355 = arith.constant 1 : index
    %c0_356 = arith.constant 0 : index
    %314 = vector.load %arg12[%c2_354, %c1_355, %c0_356] : memref<8x11x128xf32, #tpu.memory_space<vmem>>, vector<1x7x128xf32>
    %315 = vector.shape_cast %314 : vector<1x7x128xf32> to vector<7x128xf32>
    %c2_357 = arith.constant 2 : index
    %c2_358 = arith.constant 2 : index
    %c0_359 = arith.constant 0 : index
    %316 = vector.load %arg12[%c2_357, %c2_358, %c0_359] : memref<8x11x128xf32, #tpu.memory_space<vmem>>, vector<1x7x128xf32>
    %317 = vector.shape_cast %316 : vector<1x7x128xf32> to vector<7x128xf32>
    %c2_360 = arith.constant 2 : index
    %c3_361 = arith.constant 3 : index
    %c0_362 = arith.constant 0 : index
    %318 = vector.load %arg12[%c2_360, %c3_361, %c0_362] : memref<8x11x128xf32, #tpu.memory_space<vmem>>, vector<1x7x128xf32>
    %319 = vector.shape_cast %318 : vector<1x7x128xf32> to vector<7x128xf32>
    %c2_363 = arith.constant 2 : index
    %c4_364 = arith.constant 4 : index
    %c0_365 = arith.constant 0 : index
    %320 = vector.load %arg12[%c2_363, %c4_364, %c0_365] : memref<8x11x128xf32, #tpu.memory_space<vmem>>, vector<1x7x128xf32>
    %321 = vector.shape_cast %320 : vector<1x7x128xf32> to vector<7x128xf32>
    %c3_366 = arith.constant 3 : index
    %c0_367 = arith.constant 0 : index
    %c0_368 = arith.constant 0 : index
    %322 = vector.load %arg12[%c3_366, %c0_367, %c0_368] : memref<8x11x128xf32, #tpu.memory_space<vmem>>, vector<1x7x128xf32>
    %323 = vector.shape_cast %322 : vector<1x7x128xf32> to vector<7x128xf32>
    %c3_369 = arith.constant 3 : index
    %c1_370 = arith.constant 1 : index
    %c0_371 = arith.constant 0 : index
    %324 = vector.load %arg12[%c3_369, %c1_370, %c0_371] : memref<8x11x128xf32, #tpu.memory_space<vmem>>, vector<1x7x128xf32>
    %325 = vector.shape_cast %324 : vector<1x7x128xf32> to vector<7x128xf32>
    %c3_372 = arith.constant 3 : index
    %c2_373 = arith.constant 2 : index
    %c0_374 = arith.constant 0 : index
    %326 = vector.load %arg12[%c3_372, %c2_373, %c0_374] : memref<8x11x128xf32, #tpu.memory_space<vmem>>, vector<1x7x128xf32>
    %327 = vector.shape_cast %326 : vector<1x7x128xf32> to vector<7x128xf32>
    %c3_375 = arith.constant 3 : index
    %c3_376 = arith.constant 3 : index
    %c0_377 = arith.constant 0 : index
    %328 = vector.load %arg12[%c3_375, %c3_376, %c0_377] : memref<8x11x128xf32, #tpu.memory_space<vmem>>, vector<1x7x128xf32>
    %329 = vector.shape_cast %328 : vector<1x7x128xf32> to vector<7x128xf32>
    %c3_378 = arith.constant 3 : index
    %c4_379 = arith.constant 4 : index
    %c0_380 = arith.constant 0 : index
    %330 = vector.load %arg12[%c3_378, %c4_379, %c0_380] : memref<8x11x128xf32, #tpu.memory_space<vmem>>, vector<1x7x128xf32>
    %331 = vector.shape_cast %330 : vector<1x7x128xf32> to vector<7x128xf32>
    %c4_381 = arith.constant 4 : index
    %c0_382 = arith.constant 0 : index
    %c0_383 = arith.constant 0 : index
    %332 = vector.load %arg12[%c4_381, %c0_382, %c0_383] : memref<8x11x128xf32, #tpu.memory_space<vmem>>, vector<1x7x128xf32>
    %333 = vector.shape_cast %332 : vector<1x7x128xf32> to vector<7x128xf32>
    %c4_384 = arith.constant 4 : index
    %c1_385 = arith.constant 1 : index
    %c0_386 = arith.constant 0 : index
    %334 = vector.load %arg12[%c4_384, %c1_385, %c0_386] : memref<8x11x128xf32, #tpu.memory_space<vmem>>, vector<1x7x128xf32>
    %335 = vector.shape_cast %334 : vector<1x7x128xf32> to vector<7x128xf32>
    %c4_387 = arith.constant 4 : index
    %c2_388 = arith.constant 2 : index
    %c0_389 = arith.constant 0 : index
    %336 = vector.load %arg12[%c4_387, %c2_388, %c0_389] : memref<8x11x128xf32, #tpu.memory_space<vmem>>, vector<1x7x128xf32>
    %337 = vector.shape_cast %336 : vector<1x7x128xf32> to vector<7x128xf32>
    %c4_390 = arith.constant 4 : index
    %c3_391 = arith.constant 3 : index
    %c0_392 = arith.constant 0 : index
    %338 = vector.load %arg12[%c4_390, %c3_391, %c0_392] : memref<8x11x128xf32, #tpu.memory_space<vmem>>, vector<1x7x128xf32>
    %339 = vector.shape_cast %338 : vector<1x7x128xf32> to vector<7x128xf32>
    %c4_393 = arith.constant 4 : index
    %c4_394 = arith.constant 4 : index
    %c0_395 = arith.constant 0 : index
    %340 = vector.load %arg12[%c4_393, %c4_394, %c0_395] : memref<8x11x128xf32, #tpu.memory_space<vmem>>, vector<1x7x128xf32>
    %341 = vector.shape_cast %340 : vector<1x7x128xf32> to vector<7x128xf32>
    %c5_396 = arith.constant 5 : index
    %c0_397 = arith.constant 0 : index
    %c0_398 = arith.constant 0 : index
    %342 = vector.load %arg12[%c5_396, %c0_397, %c0_398] : memref<8x11x128xf32, #tpu.memory_space<vmem>>, vector<1x7x128xf32>
    %343 = vector.shape_cast %342 : vector<1x7x128xf32> to vector<7x128xf32>
    %c5_399 = arith.constant 5 : index
    %c1_400 = arith.constant 1 : index
    %c0_401 = arith.constant 0 : index
    %344 = vector.load %arg12[%c5_399, %c1_400, %c0_401] : memref<8x11x128xf32, #tpu.memory_space<vmem>>, vector<1x7x128xf32>
    %345 = vector.shape_cast %344 : vector<1x7x128xf32> to vector<7x128xf32>
    %c5_402 = arith.constant 5 : index
    %c2_403 = arith.constant 2 : index
    %c0_404 = arith.constant 0 : index
    %346 = vector.load %arg12[%c5_402, %c2_403, %c0_404] : memref<8x11x128xf32, #tpu.memory_space<vmem>>, vector<1x7x128xf32>
    %347 = vector.shape_cast %346 : vector<1x7x128xf32> to vector<7x128xf32>
    %c5_405 = arith.constant 5 : index
    %c3_406 = arith.constant 3 : index
    %c0_407 = arith.constant 0 : index
    %348 = vector.load %arg12[%c5_405, %c3_406, %c0_407] : memref<8x11x128xf32, #tpu.memory_space<vmem>>, vector<1x7x128xf32>
    %349 = vector.shape_cast %348 : vector<1x7x128xf32> to vector<7x128xf32>
    %c5_408 = arith.constant 5 : index
    %c4_409 = arith.constant 4 : index
    %c0_410 = arith.constant 0 : index
    %350 = vector.load %arg12[%c5_408, %c4_409, %c0_410] : memref<8x11x128xf32, #tpu.memory_space<vmem>>, vector<1x7x128xf32>
    %351 = vector.shape_cast %350 : vector<1x7x128xf32> to vector<7x128xf32>
    %c6 = arith.constant 6 : index
    %c0_411 = arith.constant 0 : index
    %c0_412 = arith.constant 0 : index
    %352 = vector.load %arg12[%c6, %c0_411, %c0_412] : memref<8x11x128xf32, #tpu.memory_space<vmem>>, vector<1x7x128xf32>
    %353 = vector.shape_cast %352 : vector<1x7x128xf32> to vector<7x128xf32>
    %c6_413 = arith.constant 6 : index
    %c1_414 = arith.constant 1 : index
    %c0_415 = arith.constant 0 : index
    %354 = vector.load %arg12[%c6_413, %c1_414, %c0_415] : memref<8x11x128xf32, #tpu.memory_space<vmem>>, vector<1x7x128xf32>
    %355 = vector.shape_cast %354 : vector<1x7x128xf32> to vector<7x128xf32>
    %c6_416 = arith.constant 6 : index
    %c2_417 = arith.constant 2 : index
    %c0_418 = arith.constant 0 : index
    %356 = vector.load %arg12[%c6_416, %c2_417, %c0_418] : memref<8x11x128xf32, #tpu.memory_space<vmem>>, vector<1x7x128xf32>
    %357 = vector.shape_cast %356 : vector<1x7x128xf32> to vector<7x128xf32>
    %c6_419 = arith.constant 6 : index
    %c3_420 = arith.constant 3 : index
    %c0_421 = arith.constant 0 : index
    %358 = vector.load %arg12[%c6_419, %c3_420, %c0_421] : memref<8x11x128xf32, #tpu.memory_space<vmem>>, vector<1x7x128xf32>
    %359 = vector.shape_cast %358 : vector<1x7x128xf32> to vector<7x128xf32>
    %c6_422 = arith.constant 6 : index
    %c4_423 = arith.constant 4 : index
    %c0_424 = arith.constant 0 : index
    %360 = vector.load %arg12[%c6_422, %c4_423, %c0_424] : memref<8x11x128xf32, #tpu.memory_space<vmem>>, vector<1x7x128xf32>
    %361 = vector.shape_cast %360 : vector<1x7x128xf32> to vector<7x128xf32>
    %362 = tpu.concatenate %313, %315, %317, %319, %321, %323, %325, %327, %329, %331, %333, %335, %337, %339, %341, %343 in 1 : vector<7x128xf32>, vector<7x128xf32>, vector<7x128xf32>, vector<7x128xf32>, vector<7x128xf32>, vector<7x128xf32>, vector<7x128xf32>, vector<7x128xf32>, vector<7x128xf32>, vector<7x128xf32>, vector<7x128xf32>, vector<7x128xf32>, vector<7x128xf32>, vector<7x128xf32>, vector<7x128xf32>, vector<7x128xf32> -> vector<7x2048xf32>
    %363 = tpu.concatenate %345, %347, %349, %351, %353, %355, %357, %359, %361 in 1 : vector<7x128xf32>, vector<7x128xf32>, vector<7x128xf32>, vector<7x128xf32>, vector<7x128xf32>, vector<7x128xf32>, vector<7x128xf32>, vector<7x128xf32>, vector<7x128xf32> -> vector<7x1152xf32>
    %364 = tpu.concatenate %362, %363 in 1 : vector<7x2048xf32>, vector<7x1152xf32> -> vector<7x3200xf32>
    %c0_425 = arith.constant 0 : index
    %c0_426 = arith.constant 0 : index
    %365 = vector.load %arg6[%c0_425, %c0_426] : memref<3200x128xf32, #tpu.memory_space<vmem>>, vector<3200x128xf32>
    %cst_427 = arith.constant dense<0.000000e+00> : vector<7x128xf32>
    %366 = tpu.matmul %364, %365, %cst_427 {dimension_numbers = #tpu.dot_dimension_numbers<[1], [0], [0], [1], [0, 0, 1, 1], [], []>} : vector<7x3200xf32>, vector<3200x128xf32>, vector<7x128xf32> -> vector<7x128xf32>
    %c0_428 = arith.constant 0 : index
    %c0_429 = arith.constant 0 : index
    %367 = vector.load %arg7[%c0_428, %c0_429] : memref<1x128xf32, #tpu.memory_space<vmem>>, vector<1x128xf32>
    %368 = vector.broadcast %367 : vector<1x128xf32> to vector<7x128xf32>
    %369 = arith.addf %366, %368 : vector<7x128xf32>
    %cst_430 = arith.constant 0.000000e+00 : f32
    %370 = vector.broadcast %cst_430 : f32 to vector<7x128xf32>
    %371 = arith.maximumf %369, %370 : vector<7x128xf32>
    %c0_431 = arith.constant 0 : index
    %c2_432 = arith.constant 2 : index
    %c0_433 = arith.constant 0 : index
    %c0_434 = arith.constant 0 : index
    %372 = vector.load %arg8[%c0_431, %c2_432, %c0_433, %c0_434] : memref<2x4x7x128xf32, #tpu.memory_space<vmem>>, vector<1x1x7x128xf32>
    %373 = vector.shape_cast %372 : vector<1x1x7x128xf32> to vector<7x128xf32>
    %374 = arith.mulf %371, %373 : vector<7x128xf32>
    %375 = vector.shape_cast %374 : vector<7x128xf32> to vector<1x7x128xf32>
    %cst_435 = arith.constant dense<0.000000e+00> : vector<1xf32>
    %376 = vector.multi_reduction <add>, %375, %cst_435 [1, 2] : vector<1x7x128xf32> to vector<1xf32>
    %377 = vector.shape_cast %376 : vector<1xf32> to vector<1x1x1xf32>
    %378 = vector.extract %377[0, 0, 0] : f32 from vector<1x1x1xf32>
    %379 = arith.addf %303, %378 : f32
    %c1_436 = arith.constant 1 : index
    %c2_437 = arith.constant 2 : index
    %c0_438 = arith.constant 0 : index
    %c0_439 = arith.constant 0 : index
    %380 = vector.load %arg8[%c1_436, %c2_437, %c0_438, %c0_439] : memref<2x4x7x128xf32, #tpu.memory_space<vmem>>, vector<1x1x7x128xf32>
    %381 = vector.shape_cast %380 : vector<1x1x7x128xf32> to vector<7x128xf32>
    %382 = arith.mulf %371, %381 : vector<7x128xf32>
    %383 = vector.shape_cast %382 : vector<7x128xf32> to vector<1x7x128xf32>
    %cst_440 = arith.constant dense<0.000000e+00> : vector<1xf32>
    %384 = vector.multi_reduction <add>, %383, %cst_440 [1, 2] : vector<1x7x128xf32> to vector<1xf32>
    %385 = vector.shape_cast %384 : vector<1xf32> to vector<1x1x1xf32>
    %386 = vector.extract %385[0, 0, 0] : f32 from vector<1x1x1xf32>
    %387 = arith.addf %311, %386 : f32
    %c3_441 = arith.constant 3 : index
    %c0_442 = arith.constant 0 : index
    %c0_443 = arith.constant 0 : index
    %388 = vector.load %arg12[%c3_441, %c0_442, %c0_443] : memref<8x11x128xf32, #tpu.memory_space<vmem>>, vector<1x7x128xf32>
    %389 = vector.shape_cast %388 : vector<1x7x128xf32> to vector<7x128xf32>
    %c3_444 = arith.constant 3 : index
    %c1_445 = arith.constant 1 : index
    %c0_446 = arith.constant 0 : index
    %390 = vector.load %arg12[%c3_444, %c1_445, %c0_446] : memref<8x11x128xf32, #tpu.memory_space<vmem>>, vector<1x7x128xf32>
    %391 = vector.shape_cast %390 : vector<1x7x128xf32> to vector<7x128xf32>
    %c3_447 = arith.constant 3 : index
    %c2_448 = arith.constant 2 : index
    %c0_449 = arith.constant 0 : index
    %392 = vector.load %arg12[%c3_447, %c2_448, %c0_449] : memref<8x11x128xf32, #tpu.memory_space<vmem>>, vector<1x7x128xf32>
    %393 = vector.shape_cast %392 : vector<1x7x128xf32> to vector<7x128xf32>
    %c3_450 = arith.constant 3 : index
    %c3_451 = arith.constant 3 : index
    %c0_452 = arith.constant 0 : index
    %394 = vector.load %arg12[%c3_450, %c3_451, %c0_452] : memref<8x11x128xf32, #tpu.memory_space<vmem>>, vector<1x7x128xf32>
    %395 = vector.shape_cast %394 : vector<1x7x128xf32> to vector<7x128xf32>
    %c3_453 = arith.constant 3 : index
    %c4_454 = arith.constant 4 : index
    %c0_455 = arith.constant 0 : index
    %396 = vector.load %arg12[%c3_453, %c4_454, %c0_455] : memref<8x11x128xf32, #tpu.memory_space<vmem>>, vector<1x7x128xf32>
    %397 = vector.shape_cast %396 : vector<1x7x128xf32> to vector<7x128xf32>
    %c4_456 = arith.constant 4 : index
    %c0_457 = arith.constant 0 : index
    %c0_458 = arith.constant 0 : index
    %398 = vector.load %arg12[%c4_456, %c0_457, %c0_458] : memref<8x11x128xf32, #tpu.memory_space<vmem>>, vector<1x7x128xf32>
    %399 = vector.shape_cast %398 : vector<1x7x128xf32> to vector<7x128xf32>
    %c4_459 = arith.constant 4 : index
    %c1_460 = arith.constant 1 : index
    %c0_461 = arith.constant 0 : index
    %400 = vector.load %arg12[%c4_459, %c1_460, %c0_461] : memref<8x11x128xf32, #tpu.memory_space<vmem>>, vector<1x7x128xf32>
    %401 = vector.shape_cast %400 : vector<1x7x128xf32> to vector<7x128xf32>
    %c4_462 = arith.constant 4 : index
    %c2_463 = arith.constant 2 : index
    %c0_464 = arith.constant 0 : index
    %402 = vector.load %arg12[%c4_462, %c2_463, %c0_464] : memref<8x11x128xf32, #tpu.memory_space<vmem>>, vector<1x7x128xf32>
    %403 = vector.shape_cast %402 : vector<1x7x128xf32> to vector<7x128xf32>
    %c4_465 = arith.constant 4 : index
    %c3_466 = arith.constant 3 : index
    %c0_467 = arith.constant 0 : index
    %404 = vector.load %arg12[%c4_465, %c3_466, %c0_467] : memref<8x11x128xf32, #tpu.memory_space<vmem>>, vector<1x7x128xf32>
    %405 = vector.shape_cast %404 : vector<1x7x128xf32> to vector<7x128xf32>
    %c4_468 = arith.constant 4 : index
    %c4_469 = arith.constant 4 : index
    %c0_470 = arith.constant 0 : index
    %406 = vector.load %arg12[%c4_468, %c4_469, %c0_470] : memref<8x11x128xf32, #tpu.memory_space<vmem>>, vector<1x7x128xf32>
    %407 = vector.shape_cast %406 : vector<1x7x128xf32> to vector<7x128xf32>
    %c5_471 = arith.constant 5 : index
    %c0_472 = arith.constant 0 : index
    %c0_473 = arith.constant 0 : index
    %408 = vector.load %arg12[%c5_471, %c0_472, %c0_473] : memref<8x11x128xf32, #tpu.memory_space<vmem>>, vector<1x7x128xf32>
    %409 = vector.shape_cast %408 : vector<1x7x128xf32> to vector<7x128xf32>
    %c5_474 = arith.constant 5 : index
    %c1_475 = arith.constant 1 : index
    %c0_476 = arith.constant 0 : index
    %410 = vector.load %arg12[%c5_474, %c1_475, %c0_476] : memref<8x11x128xf32, #tpu.memory_space<vmem>>, vector<1x7x128xf32>
    %411 = vector.shape_cast %410 : vector<1x7x128xf32> to vector<7x128xf32>
    %c5_477 = arith.constant 5 : index
    %c2_478 = arith.constant 2 : index
    %c0_479 = arith.constant 0 : index
    %412 = vector.load %arg12[%c5_477, %c2_478, %c0_479] : memref<8x11x128xf32, #tpu.memory_space<vmem>>, vector<1x7x128xf32>
    %413 = vector.shape_cast %412 : vector<1x7x128xf32> to vector<7x128xf32>
    %c5_480 = arith.constant 5 : index
    %c3_481 = arith.constant 3 : index
    %c0_482 = arith.constant 0 : index
    %414 = vector.load %arg12[%c5_480, %c3_481, %c0_482] : memref<8x11x128xf32, #tpu.memory_space<vmem>>, vector<1x7x128xf32>
    %415 = vector.shape_cast %414 : vector<1x7x128xf32> to vector<7x128xf32>
    %c5_483 = arith.constant 5 : index
    %c4_484 = arith.constant 4 : index
    %c0_485 = arith.constant 0 : index
    %416 = vector.load %arg12[%c5_483, %c4_484, %c0_485] : memref<8x11x128xf32, #tpu.memory_space<vmem>>, vector<1x7x128xf32>
    %417 = vector.shape_cast %416 : vector<1x7x128xf32> to vector<7x128xf32>
    %c6_486 = arith.constant 6 : index
    %c0_487 = arith.constant 0 : index
    %c0_488 = arith.constant 0 : index
    %418 = vector.load %arg12[%c6_486, %c0_487, %c0_488] : memref<8x11x128xf32, #tpu.memory_space<vmem>>, vector<1x7x128xf32>
    %419 = vector.shape_cast %418 : vector<1x7x128xf32> to vector<7x128xf32>
    %c6_489 = arith.constant 6 : index
    %c1_490 = arith.constant 1 : index
    %c0_491 = arith.constant 0 : index
    %420 = vector.load %arg12[%c6_489, %c1_490, %c0_491] : memref<8x11x128xf32, #tpu.memory_space<vmem>>, vector<1x7x128xf32>
    %421 = vector.shape_cast %420 : vector<1x7x128xf32> to vector<7x128xf32>
    %c6_492 = arith.constant 6 : index
    %c2_493 = arith.constant 2 : index
    %c0_494 = arith.constant 0 : index
    %422 = vector.load %arg12[%c6_492, %c2_493, %c0_494] : memref<8x11x128xf32, #tpu.memory_space<vmem>>, vector<1x7x128xf32>
    %423 = vector.shape_cast %422 : vector<1x7x128xf32> to vector<7x128xf32>
    %c6_495 = arith.constant 6 : index
    %c3_496 = arith.constant 3 : index
    %c0_497 = arith.constant 0 : index
    %424 = vector.load %arg12[%c6_495, %c3_496, %c0_497] : memref<8x11x128xf32, #tpu.memory_space<vmem>>, vector<1x7x128xf32>
    %425 = vector.shape_cast %424 : vector<1x7x128xf32> to vector<7x128xf32>
    %c6_498 = arith.constant 6 : index
    %c4_499 = arith.constant 4 : index
    %c0_500 = arith.constant 0 : index
    %426 = vector.load %arg12[%c6_498, %c4_499, %c0_500] : memref<8x11x128xf32, #tpu.memory_space<vmem>>, vector<1x7x128xf32>
    %427 = vector.shape_cast %426 : vector<1x7x128xf32> to vector<7x128xf32>
    %c7 = arith.constant 7 : index
    %c0_501 = arith.constant 0 : index
    %c0_502 = arith.constant 0 : index
    %428 = vector.load %arg12[%c7, %c0_501, %c0_502] : memref<8x11x128xf32, #tpu.memory_space<vmem>>, vector<1x7x128xf32>
    %429 = vector.shape_cast %428 : vector<1x7x128xf32> to vector<7x128xf32>
    %c7_503 = arith.constant 7 : index
    %c1_504 = arith.constant 1 : index
    %c0_505 = arith.constant 0 : index
    %430 = vector.load %arg12[%c7_503, %c1_504, %c0_505] : memref<8x11x128xf32, #tpu.memory_space<vmem>>, vector<1x7x128xf32>
    %431 = vector.shape_cast %430 : vector<1x7x128xf32> to vector<7x128xf32>
    %c7_506 = arith.constant 7 : index
    %c2_507 = arith.constant 2 : index
    %c0_508 = arith.constant 0 : index
    %432 = vector.load %arg12[%c7_506, %c2_507, %c0_508] : memref<8x11x128xf32, #tpu.memory_space<vmem>>, vector<1x7x128xf32>
    %433 = vector.shape_cast %432 : vector<1x7x128xf32> to vector<7x128xf32>
    %c7_509 = arith.constant 7 : index
    %c3_510 = arith.constant 3 : index
    %c0_511 = arith.constant 0 : index
    %434 = vector.load %arg12[%c7_509, %c3_510, %c0_511] : memref<8x11x128xf32, #tpu.memory_space<vmem>>, vector<1x7x128xf32>
    %435 = vector.shape_cast %434 : vector<1x7x128xf32> to vector<7x128xf32>
    %c7_512 = arith.constant 7 : index
    %c4_513 = arith.constant 4 : index
    %c0_514 = arith.constant 0 : index
    %436 = vector.load %arg12[%c7_512, %c4_513, %c0_514] : memref<8x11x128xf32, #tpu.memory_space<vmem>>, vector<1x7x128xf32>
    %437 = vector.shape_cast %436 : vector<1x7x128xf32> to vector<7x128xf32>
    %438 = tpu.concatenate %389, %391, %393, %395, %397, %399, %401, %403, %405, %407, %409, %411, %413, %415, %417, %419 in 1 : vector<7x128xf32>, vector<7x128xf32>, vector<7x128xf32>, vector<7x128xf32>, vector<7x128xf32>, vector<7x128xf32>, vector<7x128xf32>, vector<7x128xf32>, vector<7x128xf32>, vector<7x128xf32>, vector<7x128xf32>, vector<7x128xf32>, vector<7x128xf32>, vector<7x128xf32>, vector<7x128xf32>, vector<7x128xf32> -> vector<7x2048xf32>
    %439 = tpu.concatenate %421, %423, %425, %427, %429, %431, %433, %435, %437 in 1 : vector<7x128xf32>, vector<7x128xf32>, vector<7x128xf32>, vector<7x128xf32>, vector<7x128xf32>, vector<7x128xf32>, vector<7x128xf32>, vector<7x128xf32>, vector<7x128xf32> -> vector<7x1152xf32>
    %440 = tpu.concatenate %438, %439 in 1 : vector<7x2048xf32>, vector<7x1152xf32> -> vector<7x3200xf32>
    %c0_515 = arith.constant 0 : index
    %c0_516 = arith.constant 0 : index
    %441 = vector.load %arg6[%c0_515, %c0_516] : memref<3200x128xf32, #tpu.memory_space<vmem>>, vector<3200x128xf32>
    %cst_517 = arith.constant dense<0.000000e+00> : vector<7x128xf32>
    %442 = tpu.matmul %440, %441, %cst_517 {dimension_numbers = #tpu.dot_dimension_numbers<[1], [0], [0], [1], [0, 0, 1, 1], [], []>} : vector<7x3200xf32>, vector<3200x128xf32>, vector<7x128xf32> -> vector<7x128xf32>
    %c0_518 = arith.constant 0 : index
    %c0_519 = arith.constant 0 : index
    %443 = vector.load %arg7[%c0_518, %c0_519] : memref<1x128xf32, #tpu.memory_space<vmem>>, vector<1x128xf32>
    %444 = vector.broadcast %443 : vector<1x128xf32> to vector<7x128xf32>
    %445 = arith.addf %442, %444 : vector<7x128xf32>
    %cst_520 = arith.constant 0.000000e+00 : f32
    %446 = vector.broadcast %cst_520 : f32 to vector<7x128xf32>
    %447 = arith.maximumf %445, %446 : vector<7x128xf32>
    %c0_521 = arith.constant 0 : index
    %c3_522 = arith.constant 3 : index
    %c0_523 = arith.constant 0 : index
    %c0_524 = arith.constant 0 : index
    %448 = vector.load %arg8[%c0_521, %c3_522, %c0_523, %c0_524] : memref<2x4x7x128xf32, #tpu.memory_space<vmem>>, vector<1x1x7x128xf32>
    %449 = vector.shape_cast %448 : vector<1x1x7x128xf32> to vector<7x128xf32>
    %450 = arith.mulf %447, %449 : vector<7x128xf32>
    %451 = vector.shape_cast %450 : vector<7x128xf32> to vector<1x7x128xf32>
    %cst_525 = arith.constant dense<0.000000e+00> : vector<1xf32>
    %452 = vector.multi_reduction <add>, %451, %cst_525 [1, 2] : vector<1x7x128xf32> to vector<1xf32>
    %453 = vector.shape_cast %452 : vector<1xf32> to vector<1x1x1xf32>
    %454 = vector.extract %453[0, 0, 0] : f32 from vector<1x1x1xf32>
    %455 = arith.addf %379, %454 : f32
    %c1_526 = arith.constant 1 : index
    %c3_527 = arith.constant 3 : index
    %c0_528 = arith.constant 0 : index
    %c0_529 = arith.constant 0 : index
    %456 = vector.load %arg8[%c1_526, %c3_527, %c0_528, %c0_529] : memref<2x4x7x128xf32, #tpu.memory_space<vmem>>, vector<1x1x7x128xf32>
    %457 = vector.shape_cast %456 : vector<1x1x7x128xf32> to vector<7x128xf32>
    %458 = arith.mulf %447, %457 : vector<7x128xf32>
    %459 = vector.shape_cast %458 : vector<7x128xf32> to vector<1x7x128xf32>
    %cst_530 = arith.constant dense<0.000000e+00> : vector<1xf32>
    %460 = vector.multi_reduction <add>, %459, %cst_530 [1, 2] : vector<1x7x128xf32> to vector<1xf32>
    %461 = vector.shape_cast %460 : vector<1xf32> to vector<1x1x1xf32>
    %462 = vector.extract %461[0, 0, 0] : f32 from vector<1x1x1xf32>
    %463 = arith.addf %387, %462 : f32
    %464 = tpu.iota {dimensions = array<i32: 1>} : vector<1x128xi32>
    %c0_531 = arith.constant 0 : index
    %c0_532 = arith.constant 0 : index
    %465 = vector.load %arg9[%c0_531, %c0_532] : memref<1x128xf32, #tpu.memory_space<vmem>>, vector<1x128xf32>
    %c0_i32 = arith.constant 0 : i32
    %466 = vector.broadcast %c0_i32 : i32 to vector<1x128xi32>
    %467 = arith.cmpi eq, %464, %466 : vector<1x128xi32>
    %cst_533 = arith.constant 0.000000e+00 : f32
    %468 = vector.broadcast %455 : f32 to vector<1x128xf32>
    %469 = vector.broadcast %cst_533 : f32 to vector<1x128xf32>
    %470 = arith.select %467, %468, %469 : vector<1x128xi1>, vector<1x128xf32>
    %471 = arith.addf %465, %470 : vector<1x128xf32>
    %c1_i32 = arith.constant 1 : i32
    %472 = vector.broadcast %c1_i32 : i32 to vector<1x128xi32>
    %473 = arith.cmpi eq, %464, %472 : vector<1x128xi32>
    %cst_534 = arith.constant 0.000000e+00 : f32
    %474 = vector.broadcast %463 : f32 to vector<1x128xf32>
    %475 = vector.broadcast %cst_534 : f32 to vector<1x128xf32>
    %476 = arith.select %473, %474, %475 : vector<1x128xi1>, vector<1x128xf32>
    %477 = arith.addf %471, %476 : vector<1x128xf32>
    %c0_535 = arith.constant 0 : index
    %c0_536 = arith.constant 0 : index
    %c0_537 = arith.constant 0 : index
    %478 = vector.load %arg10[%c0_535, %c0_536, %c0_537] : memref<1x1x128xf32, #tpu.memory_space<vmem>>, vector<1x1x128xf32>
    %479 = vector.shape_cast %478 : vector<1x1x128xf32> to vector<1x128xf32>
    %480 = vector.shape_cast %477 : vector<1x128xf32> to vector<1x1x128xf32>
    tpu.vector_store %arg10[%c0_535, %c0_536, %c0_537], %480 {strides = array<i32>} : memref<1x1x128xf32, #tpu.memory_space<vmem>>, vector<1x1x128xf32>,
    return
  }
  func.func @transform_0(%arg0: i32) -> (i32, i32) {
    %c0_i32 = arith.constant 0 : i32
    %c0_i32_0 = arith.constant 0 : i32
    return %arg0, %c0_i32 : i32, i32
  }
  func.func @transform_1(%arg0: i32) -> (i32, i32) {
    %c0_i32 = arith.constant 0 : i32
    %c0_i32_0 = arith.constant 0 : i32
    %c0_i32_1 = arith.constant 0 : i32
    return %c0_i32, %c0_i32_0 : i32, i32
  }
  func.func @transform_2(%arg0: i32) -> (i32, i32) {
    %c0_i32 = arith.constant 0 : i32
    %c0_i32_0 = arith.constant 0 : i32
    %c0_i32_1 = arith.constant 0 : i32
    return %c0_i32, %c0_i32_0 : i32, i32
  }
  func.func @transform_3(%arg0: i32) -> (i32, i32) {
    %c0_i32 = arith.constant 0 : i32
    %c0_i32_0 = arith.constant 0 : i32
    %c0_i32_1 = arith.constant 0 : i32
    return %c0_i32, %c0_i32_0 : i32, i32
  }
  func.func @transform_4(%arg0: i32) -> (i32, i32) {
    %c0_i32 = arith.constant 0 : i32
    %c0_i32_0 = arith.constant 0 : i32
    %c0_i32_1 = arith.constant 0 : i32
    return %c0_i32, %c0_i32_0 : i32, i32
  }
  func.func @transform_5(%arg0: i32) -> (i32, i32) {
    %c0_i32 = arith.constant 0 : i32
    %c0_i32_0 = arith.constant 0 : i32
    %c0_i32_1 = arith.constant 0 : i32
    return %c0_i32, %c0_i32_0 : i32, i32
  }
  func.func @transform_6(%arg0: i32) -> (i32, i32) {
    %c0_i32 = arith.constant 0 : i32
    %c0_i32_0 = arith.constant 0 : i32
    %c0_i32_1 = arith.constant 0 : i32
    return %c0_i32, %c0_i32_0 : i32, i32
  }
  func.func @transform_7(%arg0: i32) -> (i32, i32, i32, i32) {
    %c0_i32 = arith.constant 0 : i32
    %c0_i32_0 = arith.constant 0 : i32
    %c0_i32_1 = arith.constant 0 : i32
    %c0_i32_2 = arith.constant 0 : i32
    %c0_i32_3 = arith.constant 0 : i32
    return %c0_i32, %c0_i32_0, %c0_i32_1, %c0_i32_2 : i32, i32, i32, i32
  }
  func.func @transform_8(%arg0: i32) -> (i32, i32) {
    %c0_i32 = arith.constant 0 : i32
    %c0_i32_0 = arith.constant 0 : i32
    %c0_i32_1 = arith.constant 0 : i32
    return %c0_i32, %c0_i32_0 : i32, i32
  }
  func.func @transform_9(%arg0: i32) -> (i32, i32, i32) {
    %c0_i32 = arith.constant 0 : i32
    %c0_i32_0 = arith.constant 0 : i32
    %c0_i32_1 = arith.constant 0 : i32
    return %arg0, %c0_i32, %c0_i32_0 : i32, i32, i32
  }
}

</mosaic_0001>

<llo_original>
// kernel: lenet_mnist_forward.1
$region0: #{lenet_mnist_forward.1}
  #allocation0 [shape = 'u32[]', space=smem, size = 0x4, offset = 0x4, fixed_abs, tag = 'smem constant byte address 0x4 - core index']
  #allocation1 [shape = 'u32[144,128]{1,0:T(1,128)}', space=vmem, size = 0x12000, scoped, tag = 'internal scratch']
  #allocation2 [shape = 'f32[6,9,128]{2,1,0:T(8,128)}', space=vmem, size = 0xc000, scoped, tag = 'scratch operand']
  #allocation3 [shape = 'f32[8,11,128]{2,1,0:T(8,128)}', space=vmem, size = 0x10000, scoped, tag = 'scratch operand']
  %s0 = inlined_call_operand.vmem [shape: f32[224,128], index: 0, kind: input, shape index: {}]
  %s1 = inlined_call_operand.vmem [shape: f32[128,32], index: 1, kind: input, shape index: {}]
  %s2 = inlined_call_operand.vmem [shape: f32[1,32], index: 2, kind: input, shape index: {}]
  %s3 = inlined_call_operand.vmem [shape: f32[1152,128], index: 3, kind: input, shape index: {}]
  %s4 = inlined_call_operand.vmem [shape: f32[1,128], index: 4, kind: input, shape index: {}]
  %s5 = inlined_call_operand.vmem [shape: f32[3200,128], index: 5, kind: input, shape index: {}]
  %s6 = inlined_call_operand.vmem [shape: f32[1,128], index: 6, kind: input, shape index: {}]
  %s7 = inlined_call_operand.vmem [shape: f32[2,4,7,128], index: 7, kind: input, shape index: {}]
  %s8 = inlined_call_operand.vmem [shape: f32[1,128], index: 8, kind: input, shape index: {}]
  %s9 = inlined_call_operand.hbm [shape: f32[2,1,128], index: 9, kind: output, shape index: {}]
  %s10 = sld [smem:[#allocation0]]
  $region69: #{lenet_mnist_forward.1} parent=0
    _
  %s12 = ssub.s32 1, %s10
  %s13 = scalar_select 0, %s12, %s10
  $region1: #{lenet_mnist_forward.1} parent=0
    #allocation4 [shape = 'u8[1024]{0}', space=vmem, size = 0x400, scoped, tag = 'output window, operand 0']
    #allocation5 [shape = 's32[2]{0}', space=sflag, size = 0x8, scoped, tag = 'scoped memory for lenet_mnist_forward.1']
    %14 = vsyncpa [#allocation5], 0
    %s15 = scalar_lea.sflag [#allocation5], 1
    %16 = vsyncpa %s15, 0
    loop: start=0, step=1, limit=4
    $region2: #{lenet_mnist_forward.1} parent=1 // loop_pre_header
      _
    $region3: #{lenet_mnist_forward.1} parent=1 // loop_header
      %s18 = sphi 0, %s22
      %p19 = scmp.ge.s32.totalorder %s18, 4
      %s28 = sphi 0, %s30
      %s31 = sphi 0, %s28
      %s32 = sphi 0, %s31
      %s48 = sphi 0, %s32
      %s52 = sphi 0, %s52
      %s54 = sphi 0, %s52
      %s55 = sphi 0, %s54
      %s69 = sphi 0, %s55
      %s73 = sphi 0, %s73
      %s75 = sphi 0, %s73
      %s76 = sphi 0, %s75
      %s90 = sphi 0, %s76
      %s94 = sphi 0, %s94
      %s96 = sphi 0, %s94
      %s97 = sphi 0, %s96
      %s111 = sphi 0, %s97
      %s115 = sphi 0, %s115
      %s117 = sphi 0, %s115
      %s118 = sphi 0, %s117
      %s132 = sphi 0, %s118
      %s136 = sphi 0, %s136
      %s138 = sphi 0, %s136
      %s139 = sphi 0, %s138
      %s153 = sphi 0, %s139
      %s157 = sphi 0, %s157
      %s159 = sphi 0, %s157
      %s160 = sphi 0, %s159
      %s174 = sphi 0, %s160
      %s178 = sphi 0, %s178
      %s180 = sphi 0, %s178
      %s181 = sphi 0, %s180
      %s195 = sphi 0, %s181
      %s199 = sphi 0, %s199
      %s201 = sphi 0, %s199
      %s202 = sphi 0, %s201
      %s216 = sphi 0, %s202
      %s222 = sphi 0, %s224
      %s225 = sphi 0, %s222
      %s226 = sphi 0, %s225
      %s242 = sphi 0, %s226
    $region4: #{lenet_mnist_forward.1} parent=1 // loop_header_branch
      %21 = sbr.rel (%p19) target = $region8
    $region5: #{lenet_mnist_forward.1} parent=1 // loop_body
      %s23 = ssub.s32 %s18, 1
      %s24 = ssub.s32 %s18, 2
      %s25 = sadd.s32 %s18, 1
      %s26 = ssub.s32 %s18, %s25
      %p27 = scmp.eq.s32.totalorder %s26, 0
      %s29 = sadd.s32 %s28, 1
      %s30 = scalar_select %p27, %s28, %s29
      %p33 = pneg %p27
      %p34 = scmp.eq.s32.totalorder %s18, 1
      %p35 = por %p33, %p34
      %p36 = scmp.ne.s32.totalorder %s28, %s31
      %p37 = scmp.eq.s32.totalorder %s18, 0
      %p38 = por %p36, %p37
      %p39 = scmp.ne.s32.totalorder %s28, %s31
      %p40 = scmp.eq.s32.totalorder %s23, 1
      %p41 = por %p39, %p40
      %p42 = scmp.ne.s32.totalorder %s31, %s32
      %p43 = scmp.eq.s32.totalorder %s23, 0
      %p44 = por %p42, %p43
      %p45 = scmp.ne.s32.totalorder %s31, %s32
      %p46 = scmp.eq.s32.totalorder %s24, 1
      %p47 = por %p45, %p46
      %p49 = scmp.ne.s32.totalorder %s32, %s48
      %p50 = scmp.eq.s32.totalorder %s24, 0
      %p51 = por %p49, %p50
      %s53 = sadd.s32 %s52, 1
      %p56 = scmp.eq.s32.totalorder %s18, 1
      %p57 = scmp.ne.s32.totalorder %s52, %s54
      %p58 = scmp.eq.s32.totalorder %s18, 0
      %p59 = por %p57, %p58
      %p60 = scmp.ne.s32.totalorder %s52, %s54
      %p61 = scmp.eq.s32.totalorder %s23, 1
      %p62 = por %p60, %p61
      %p63 = scmp.ne.s32.totalorder %s54, %s55
      %p64 = scmp.eq.s32.totalorder %s23, 0
      %p65 = por %p63, %p64
      %p66 = scmp.ne.s32.totalorder %s54, %s55
      %p67 = scmp.eq.s32.totalorder %s24, 1
      %p68 = por %p66, %p67
      %p70 = scmp.ne.s32.totalorder %s55, %s69
      %p71 = scmp.eq.s32.totalorder %s24, 0
      %p72 = por %p70, %p71
      %s74 = sadd.s32 %s73, 1
      %p77 = scmp.eq.s32.totalorder %s18, 1
      %p78 = scmp.ne.s32.totalorder %s73, %s75
      %p79 = scmp.eq.s32.totalorder %s18, 0
      %p80 = por %p78, %p79
      %p81 = scmp.ne.s32.totalorder %s73, %s75
      %p82 = scmp.eq.s32.totalorder %s23, 1
      %p83 = por %p81, %p82
      %p84 = scmp.ne.s32.totalorder %s75, %s76
      %p85 = scmp.eq.s32.totalorder %s23, 0
      %p86 = por %p84, %p85
      %p87 = scmp.ne.s32.totalorder %s75, %s76
      %p88 = scmp.eq.s32.totalorder %s24, 1
      %p89 = por %p87, %p88
      %p91 = scmp.ne.s32.totalorder %s76, %s90
      %p92 = scmp.eq.s32.totalorder %s24, 0
      %p93 = por %p91, %p92
      %s95 = sadd.s32 %s94, 1
      %p98 = scmp.eq.s32.totalorder %s18, 1
      %p99 = scmp.ne.s32.totalorder %s94, %s96
      %p100 = scmp.eq.s32.totalorder %s18, 0
      %p101 = por %p99, %p100
      %p102 = scmp.ne.s32.totalorder %s94, %s96
      %p103 = scmp.eq.s32.totalorder %s23, 1
      %p104 = por %p102, %p103
      %p105 = scmp.ne.s32.totalorder %s96, %s97
      %p106 = scmp.eq.s32.totalorder %s23, 0
      %p107 = por %p105, %p106
      %p108 = scmp.ne.s32.totalorder %s96, %s97
      %p109 = scmp.eq.s32.totalorder %s24, 1
      %p110 = por %p108, %p109
      %p112 = scmp.ne.s32.totalorder %s97, %s111
      %p113 = scmp.eq.s32.totalorder %s24, 0
      %p114 = por %p112, %p113
      %s116 = sadd.s32 %s115, 1
      %p119 = scmp.eq.s32.totalorder %s18, 1
      %p120 = scmp.ne.s32.totalorder %s115, %s117
      %p121 = scmp.eq.s32.totalorder %s18, 0
      %p122 = por %p120, %p121
      %p123 = scmp.ne.s32.totalorder %s115, %s117
      %p124 = scmp.eq.s32.totalorder %s23, 1
      %p125 = por %p123, %p124
      %p126 = scmp.ne.s32.totalorder %s117, %s118
      %p127 = scmp.eq.s32.totalorder %s23, 0
      %p128 = por %p126, %p127
      %p129 = scmp.ne.s32.totalorder %s117, %s118
      %p130 = scmp.eq.s32.totalorder %s24, 1
      %p131 = por %p129, %p130
      %p133 = scmp.ne.s32.totalorder %s118, %s132
      %p134 = scmp.eq.s32.totalorder %s24, 0
      %p135 = por %p133, %p134
      %s137 = sadd.s32 %s136, 1
      %p140 = scmp.eq.s32.totalorder %s18, 1
      %p141 = scmp.ne.s32.totalorder %s136, %s138
      %p142 = scmp.eq.s32.totalorder %s18, 0
      %p143 = por %p141, %p142
      %p144 = scmp.ne.s32.totalorder %s136, %s138
      %p145 = scmp.eq.s32.totalorder %s23, 1
      %p146 = por %p144, %p145
      %p147 = scmp.ne.s32.totalorder %s138, %s139
      %p148 = scmp.eq.s32.totalorder %s23, 0
      %p149 = por %p147, %p148
      %p150 = scmp.ne.s32.totalorder %s138, %s139
      %p151 = scmp.eq.s32.totalorder %s24, 1
      %p152 = por %p150, %p151
      %p154 = scmp.ne.s32.totalorder %s139, %s153
      %p155 = scmp.eq.s32.totalorder %s24, 0
      %p156 = por %p154, %p155
      %s158 = sadd.s32 %s157, 1
      %p161 = scmp.eq.s32.totalorder %s18, 1
      %p162 = scmp.ne.s32.totalorder %s157, %s159
      %p163 = scmp.eq.s32.totalorder %s18, 0
      %p164 = por %p162, %p163
      %p165 = scmp.ne.s32.totalorder %s157, %s159
      %p166 = scmp.eq.s32.totalorder %s23, 1
      %p167 = por %p165, %p166
      %p168 = scmp.ne.s32.totalorder %s159, %s160
      %p169 = scmp.eq.s32.totalorder %s23, 0
      %p170 = por %p168, %p169
      %p171 = scmp.ne.s32.totalorder %s159, %s160
      %p172 = scmp.eq.s32.totalorder %s24, 1
      %p173 = por %p171, %p172
      %p175 = scmp.ne.s32.totalorder %s160, %s174
      %p176 = scmp.eq.s32.totalorder %s24, 0
      %p177 = por %p175, %p176
      %s179 = sadd.s32 %s178, 1
      %p182 = scmp.eq.s32.totalorder %s18, 1
      %p183 = scmp.ne.s32.totalorder %s178, %s180
      %p184 = scmp.eq.s32.totalorder %s18, 0
      %p185 = por %p183, %p184
      %p186 = scmp.ne.s32.totalorder %s178, %s180
      %p187 = scmp.eq.s32.totalorder %s23, 1
      %p188 = por %p186, %p187
      %p189 = scmp.ne.s32.totalorder %s180, %s181
      %p190 = scmp.eq.s32.totalorder %s23, 0
      %p191 = por %p189, %p190
      %p192 = scmp.ne.s32.totalorder %s180, %s181
      %p193 = scmp.eq.s32.totalorder %s24, 1
      %p194 = por %p192, %p193
      %p196 = scmp.ne.s32.totalorder %s181, %s195
      %p197 = scmp.eq.s32.totalorder %s24, 0
      %p198 = por %p196, %p197
      %s200 = sadd.s32 %s199, 1
      %p203 = scmp.eq.s32.totalorder %s18, 1
      %p204 = scmp.ne.s32.totalorder %s199, %s201
      %p205 = scmp.eq.s32.totalorder %s18, 0
      %p206 = por %p204, %p205
      %p207 = scmp.ne.s32.totalorder %s199, %s201
      %p208 = scmp.eq.s32.totalorder %s23, 1
      %p209 = por %p207, %p208
      %p210 = scmp.ne.s32.totalorder %s201, %s202
      %p211 = scmp.eq.s32.totalorder %s23, 0
      %p212 = por %p210, %p211
      %p213 = scmp.ne.s32.totalorder %s201, %s202
      %p214 = scmp.eq.s32.totalorder %s24, 1
      %p215 = por %p213, %p214
      %p217 = scmp.ne.s32.totalorder %s202, %s216
      %p218 = scmp.eq.s32.totalorder %s24, 0
      %p219 = por %p217, %p218
      %s220 = ssub.s32 %s18, %s25
      %p221 = scmp.eq.s32.totalorder %s220, 0
      %s223 = sadd.s32 %s222, 1
      %s224 = scalar_select %p221, %s222, %s223
      %p227 = pneg %p221
      %p228 = scmp.eq.s32.totalorder %s18, 1
      %p229 = por %p227, %p228
      %p230 = scmp.ne.s32.totalorder %s222, %s225
      %p231 = scmp.eq.s32.totalorder %s18, 0
      %p232 = por %p230, %p231
      %p233 = scmp.ne.s32.totalorder %s222, %s225
      %p234 = scmp.eq.s32.totalorder %s23, 1
      %p235 = por %p233, %p234
      %p236 = scmp.ne.s32.totalorder %s225, %s226
      %p237 = scmp.eq.s32.totalorder %s23, 0
      %p238 = por %p236, %p237
      %p239 = scmp.ne.s32.totalorder %s225, %s226
      %p240 = scmp.eq.s32.totalorder %s24, 1
      %p241 = por %p239, %p240
      %p243 = scmp.ne.s32.totalorder %s226, %s242
      %p244 = scmp.eq.s32.totalorder %s24, 0
      %p245 = por %p243, %p244
      %p246 = scmp.le.s32.totalorder 1, %s18
      %p247 = scmp.lt.s32.totalorder %s18, 3
      %p248 = pnand %p246, %p247
      %p249 = pneg %p248
      // Predicated region
      $region9: #{lenet_mnist_forward.1} parent=5 // pred_check
        _
      $region10: #{lenet_mnist_forward.1} parent=5 // pred_check_branch
        %251 = sbr.rel (%p248) target = $region12
      $region11: #{lenet_mnist_forward.1} parent=5 // pred_region
        %s252 = ssub.s32 %s18, 1
        // Predicated region
        $region13: #{lenet_mnist_forward.1} parent=11 // pred_check
          %p253 = pneg %p65
        $region14: #{lenet_mnist_forward.1} parent=11 // pred_check_branch
          %255 = sbr.rel (%p253) target = $region16
        $region15: #{lenet_mnist_forward.1} parent=11 // pred_region
          _
        $region16: #{lenet_mnist_forward.1} parent=11 // pred_fallthru
          _
        // Predicated region
        $region17: #{lenet_mnist_forward.1} parent=11 // pred_check
          %p256 = pneg %p86
        $region18: #{lenet_mnist_forward.1} parent=11 // pred_check_branch
          %258 = sbr.rel (%p256) target = $region20
        $region19: #{lenet_mnist_forward.1} parent=11 // pred_region
          _
        $region20: #{lenet_mnist_forward.1} parent=11 // pred_fallthru
          _
        // Predicated region
        $region21: #{lenet_mnist_forward.1} parent=11 // pred_check
          %p259 = pneg %p107
        $region22: #{lenet_mnist_forward.1} parent=11 // pred_check_branch
          %261 = sbr.rel (%p259) target = $region24
        $region23: #{lenet_mnist_forward.1} parent=11 // pred_region
          _
        $region24: #{lenet_mnist_forward.1} parent=11 // pred_fallthru
          _
        // Predicated region
        $region25: #{lenet_mnist_forward.1} parent=11 // pred_check
          %p262 = pneg %p128
        $region26: #{lenet_mnist_forward.1} parent=11 // pred_check_branch
          %264 = sbr.rel (%p262) target = $region28
        $region27: #{lenet_mnist_forward.1} parent=11 // pred_region
          _
        $region28: #{lenet_mnist_forward.1} parent=11 // pred_fallthru
          _
        // Predicated region
        $region29: #{lenet_mnist_forward.1} parent=11 // pred_check
          %p265 = pneg %p149
        $region30: #{lenet_mnist_forward.1} parent=11 // pred_check_branch
          %267 = sbr.rel (%p265) target = $region32
        $region31: #{lenet_mnist_forward.1} parent=11 // pred_region
          _
        $region32: #{lenet_mnist_forward.1} parent=11 // pred_fallthru
          _
        // Predicated region
        $region33: #{lenet_mnist_forward.1} parent=11 // pred_check
          %p268 = pneg %p170
        $region34: #{lenet_mnist_forward.1} parent=11 // pred_check_branch
          %270 = sbr.rel (%p268) target = $region36
        $region35: #{lenet_mnist_forward.1} parent=11 // pred_region
          _
        $region36: #{lenet_mnist_forward.1} parent=11 // pred_fallthru
          _
        // Predicated region
        $region37: #{lenet_mnist_forward.1} parent=11 // pred_check
          %p271 = pneg %p191
        $region38: #{lenet_mnist_forward.1} parent=11 // pred_check_branch
          %273 = sbr.rel (%p271) target = $region40
        $region39: #{lenet_mnist_forward.1} parent=11 // pred_region
          _
        $region40: #{lenet_mnist_forward.1} parent=11 // pred_fallthru
          _
        // Predicated region
        $region41: #{lenet_mnist_forward.1} parent=11 // pred_check
          %p274 = pneg %p212
        $region42: #{lenet_mnist_forward.1} parent=11 // pred_check_branch
          %276 = sbr.rel (%p274) target = $region44
        $region43: #{lenet_mnist_forward.1} parent=11 // pred_region
          _
        $region44: #{lenet_mnist_forward.1} parent=11 // pred_fallthru
          _
      $region12: #{lenet_mnist_forward.1} parent=5 // pred_fallthru
        _
      %p277 = scmp.lt.s32.totalorder %s18, 2
      // Predicated region
      $region45: #{lenet_mnist_forward.1} parent=5 // pred_check
        %p278 = pneg %p277
      $region46: #{lenet_mnist_forward.1} parent=5 // pred_check_branch
        %280 = sbr.rel (%p278) target = $region48
      $region47: #{lenet_mnist_forward.1} parent=5 // pred_region
        // Predicated region
        $region49: #{lenet_mnist_forward.1} parent=47 // pred_check
          %p281 = pneg %p38
        $region50: #{lenet_mnist_forward.1} parent=47 // pred_check_branch
          %283 = sbr.rel (%p281) target = $region52
        $region51: #{lenet_mnist_forward.1} parent=47 // pred_region
          %s284 = smul.u32 14, %s18
          %p285 = scmp.lt.s32.totalorder %s284, 27
          %s286 = scalar_select %p285, %s284, 27
          %s287 = smul.addr %s286, 8
          %s288 = scalar_lea.vmem %s0, %s287
          %s289 = smul.u32 14, %s18
        $region52: #{lenet_mnist_forward.1} parent=47 // pred_fallthru
          _
      $region48: #{lenet_mnist_forward.1} parent=5 // pred_fallthru
        _
      %p290 = scmp.le.s32.totalorder 1, %s18
      %p291 = scmp.lt.s32.totalorder %s18, 3
      %p292 = pnand %p290, %p291
      %p293 = pneg %p292
      // Predicated region
      $region53: #{lenet_mnist_forward.1} parent=5 // pred_check
        _
      $region54: #{lenet_mnist_forward.1} parent=5 // pred_check_branch
        %295 = sbr.rel (%p292) target = $region56
      $region55: #{lenet_mnist_forward.1} parent=5 // pred_region
        %s296 = ssub.s32 %s18, 1
        %s297 = smul.u32 14, %s23
        %p298 = scmp.lt.s32.totalorder %s297, 27
        %s299 = scalar_select %p298, %s297, 27
        %s300 = smul.addr %s299, 8
        %s301 = scalar_lea.vmem %s0, %s300
        %p302 = pneg %p44
        %p303 = pneg %p41
        %p304 = pneg %p65
        %p305 = pneg %p62
        %p306 = pneg %p86
        %p307 = pneg %p83
        %p308 = pneg %p107
        %p309 = pneg %p104
        %p310 = pneg %p128
        %p311 = pneg %p125
        %p312 = pneg %p149
        %p313 = pneg %p146
        %p314 = pneg %p170
        %p315 = pneg %p167
        %p316 = pneg %p191
        %p317 = pneg %p188
        %p318 = pneg %p212
        %p319 = pneg %p209
        %p320 = pneg %p238
        %p321 = pneg %p235
        %s322 = sand.u32 %s225, 1
        %s323 = scalar_lea.sflag [#allocation5], %s322
        %s324 = sand.u32 %s225, 1
        %s325 = scalar_lea.vmem [#allocation4], %s324
        %s326 = smul.u32 14, %s23
        %p327 = scmp.lt.s32.totalorder %s326, 27
        %s328 = scalar_select %p327, %s326, 27
        %s329 = smul.addr %s328, 8
        %s330 = scalar_lea.vmem %s0, %s329
        %s331 = smul.u32 14, %s23
        %332 = vst [vmem:[#allocation2] sm:$0xff] 0.0
        %333 = vst [vmem:[#allocation2 + $0x8] sm:$0x1] 0.0
        %334 = vst [vmem:[#allocation2 + $0x10] sm:$0xff] 0.0
        %335 = vst [vmem:[#allocation2 + $0x18] sm:$0x1] 0.0
        %336 = vst [vmem:[#allocation2 + $0x20] sm:$0xff] 0.0
        %337 = vst [vmem:[#allocation2 + $0x28] sm:$0x1] 0.0
        %338 = vst [vmem:[#allocation2 + $0x30] sm:$0xff] 0.0
        %339 = vst [vmem:[#allocation2 + $0x38] sm:$0x1] 0.0
        %340 = vst [vmem:[#allocation2 + $0x40] sm:$0xff] 0.0
        %341 = vst [vmem:[#allocation2 + $0x48] sm:$0x1] 0.0
        %342 = vst [vmem:[#allocation2 + $0x50] sm:$0xff] 0.0
        %343 = vst [vmem:[#allocation2 + $0x58] sm:$0x1] 0.0
        %344 = vst [vmem:[#allocation3] sm:$0xff] 0.0
        %345 = vst [vmem:[#allocation3 + $0x8] sm:$0x7] 0.0
        %346 = vst [vmem:[#allocation3 + $0x10] sm:$0xff] 0.0
        %347 = vst [vmem:[#allocation3 + $0x18] sm:$0x7] 0.0
        %348 = vst [vmem:[#allocation3 + $0x20] sm:$0xff] 0.0
        %349 = vst [vmem:[#allocation3 + $0x28] sm:$0x7] 0.0
        %350 = vst [vmem:[#allocation3 + $0x30] sm:$0xff] 0.0
        %351 = vst [vmem:[#allocation3 + $0x38] sm:$0x7] 0.0
        %352 = vst [vmem:[#allocation3 + $0x40] sm:$0xff] 0.0
        %353 = vst [vmem:[#allocation3 + $0x48] sm:$0x7] 0.0
        %354 = vst [vmem:[#allocation3 + $0x50] sm:$0xff] 0.0
        %355 = vst [vmem:[#allocation3 + $0x58] sm:$0x7] 0.0
        %356 = vst [vmem:[#allocation3 + $0x60] sm:$0xff] 0.0
        %357 = vst [vmem:[#allocation3 + $0x68] sm:$0x7] 0.0
        %358 = vst [vmem:[#allocation3 + $0x70] sm:$0xff] 0.0
        %359 = vst [vmem:[#allocation3 + $0x78] sm:$0x7] 0.0
        %v360 = vld [vmem:[%s330] sm:$0xff]
        %v361 = vld [vmem:[%s330 + $0x8] sm:$0xff]
        %v362 = vld [vmem:[%s330 + $0x10] sm:$0xff]
        %v363 = vld [vmem:[%s330 + $0x18] sm:$0xff]
        %v364 = vld [vmem:[%s330 + $0x20] sm:$0xff]
        %v365 = vld [vmem:[%s330 + $0x28] sm:$0xff]
        %v366 = vld [vmem:[%s330 + $0x30] sm:$0xff]
        %v367 = vld [vmem:[%s330 + $0x38] sm:$0xff]
        %v368 = vld [vmem:[%s330 + $0x40] sm:$0xff]
        %v369 = vld [vmem:[%s330 + $0x48] sm:$0xff]
        %v370 = vld [vmem:[%s330 + $0x50] sm:$0xff]
        %v371 = vld [vmem:[%s330 + $0x58] sm:$0xff]
        %v372 = vld [vmem:[%s330 + $0x60] sm:$0xff]
        %v373 = vld [vmem:[%s330 + $0x68] sm:$0xff]
        %v374 = vld [vmem:[%s1] sm:$0xff]
        %v375 = vld [vmem:[%s1 + $0x8] sm:$0xff]
        %v376 = vld [vmem:[%s1 + $0x10] sm:$0xff]
        %v377 = vld [vmem:[%s1 + $0x18] sm:$0xff]
        %v378 = vld [vmem:[%s1 + $0x20] sm:$0xff]
        %v379 = vld [vmem:[%s1 + $0x28] sm:$0xff]
        %v380 = vld [vmem:[%s1 + $0x30] sm:$0xff]
        %v381 = vld [vmem:[%s1 + $0x38] sm:$0xff]
        %v382 = vld [vmem:[%s1 + $0x40] sm:$0xff]
        %v383 = vld [vmem:[%s1 + $0x48] sm:$0xff]
        %v384 = vld [vmem:[%s1 + $0x50] sm:$0xff]
        %v385 = vld [vmem:[%s1 + $0x58] sm:$0xff]
        %v386 = vld [vmem:[%s1 + $0x60] sm:$0xff]
        %v387 = vld [vmem:[%s1 + $0x68] sm:$0xff]
        %v388 = vld [vmem:[%s1 + $0x70] sm:$0xff]
        %v389 = vld [vmem:[%s1 + $0x78] sm:$0xff]
        %v390 = vld [vmem:[%s2] sm:$0x1]
        %v392 = vlaneseq
        %v393 = vshrl.u32 %v392, 7
        %v394 = vsub.s32 0, %v393
        %v395 = vrot.slane %v390, %v394
        %397 = vmatprep.subr.mxu0 0.0
        %398 = vmatpush1.msra.mxu0 %v389
        %399 = vmatprep.subr.mxu0 0.0
        %400 = vmatpush1.msra.mxu0 %v388
        %401 = vmatprep.subr.mxu0 0.0
        %402 = vmatpush1.msra.mxu0 %v387
        %403 = vmatprep.subr.mxu0 0.0
        %404 = vmatpush1.msra.mxu0 %v386
        %405 = vmatprep.subr.mxu0 0.0
        %406 = vmatpush1.msra.mxu0 %v385
        %407 = vmatprep.subr.mxu0 0.0
        %408 = vmatpush1.msra.mxu0 %v384
        %409 = vmatprep.subr.mxu0 0.0
        %410 = vmatpush1.msra.mxu0 %v383
        %411 = vmatprep.subr.mxu0 0.0
        %412 = vmatpush1.msra.mxu0 %v382
        %413 = vmatprep.subr.mxu0 0.0
        %414 = vmatpush1.msra.mxu0 %v381
        %415 = vmatprep.subr.mxu0 0.0
        %416 = vmatpush1.msra.mxu0 %v380
        %417 = vmatprep.subr.mxu0 0.0
        %418 = vmatpush1.msra.mxu0 %v379
        %419 = vmatprep.subr.mxu0 0.0
        %420 = vmatpush1.msra.mxu0 %v378
        %421 = vmatprep.subr.mxu0 0.0
        %422 = vmatpush1.msra.mxu0 %v377
        %423 = vmatprep.subr.mxu0 0.0
        %424 = vmatpush1.msra.mxu0 %v376
        %425 = vmatprep.subr.mxu0 0.0
        %426 = vmatpush1.msra.mxu0 %v375
        %427 = vmatprep.subr.mxu0 0.0
        %428 = vmatpush1.msra.mxu0 %v374
        %429 = vmatprep.subr.mxu0 0.0
        %430 = vmatpush2.msra.mxu0 0.0
        %431 = vmatprep.subr.mxu0 0.0
        %432 = vmatpush2.msra.mxu0 0.0
        %433 = vmatprep.subr.mxu0 0.0
        %434 = vmatpush2.msra.mxu0 0.0
        %435 = vmatprep.subr.mxu0 0.0
        %436 = vmatpush2.msra.mxu0 0.0
        %437 = vmatprep.subr.mxu0 0.0
        %438 = vmatpush2.msra.mxu0 0.0
        %439 = vmatprep.subr.mxu0 0.0
        %440 = vmatpush2.msra.mxu0 0.0
        %441 = vmatprep.subr.mxu0 0.0
        %442 = vmatpush2.msra.mxu0 0.0
        %443 = vmatprep.subr.mxu0 0.0
        %444 = vmatpush2.msra.mxu0 0.0
        %445 = vmatprep.subr.mxu0 0.0
        %446 = vmatpush2.msra.mxu0 0.0
        %447 = vmatprep.subr.mxu0 0.0
        %448 = vmatpush2.msra.mxu0 0.0
        %449 = vmatprep.subr.mxu0 0.0
        %450 = vmatpush2.msra.mxu0 0.0
        %451 = vmatprep.subr.mxu0 0.0
        %452 = vmatpush2.msra.mxu0 0.0
        %453 = vmatprep.subr.mxu0 0.0
        %454 = vmatpush2.msra.mxu0 0.0
        %455 = vmatprep.subr.mxu0 0.0
        %456 = vmatpush2.msra.mxu0 0.0
        %457 = vmatprep.subr.mxu0 0.0
        %458 = vmatpush2.msra.mxu0 0.0
        %459 = vmatprep.subr.mxu0 0.0
        %460 = vmatpush2.msra.mxu0 0.0
        %461 = vmatprep.mubr.f32.mxu0 0.0
        %462 = vmatmul.mubr.f32.gmra.mxu0 %v360
        %v463 = vpop.f32.mrf.mxu0
        %v464 = vadd.f32 %v395, %v463
        %v465 = vpop.f32.mrf.mxu0
        %466 = vmatprep.mubr.f32.mxu0 0.0
        %467 = vmatmul.mubr.f32.gmra.mxu0 %v361
        %v468 = vpop.f32.mrf.mxu0
        %v469 = vadd.f32 %v395, %v468
        %v470 = vpop.f32.mrf.mxu0
        %471 = vmatprep.mubr.f32.mxu0 0.0
        %472 = vmatmul.mubr.f32.gmra.mxu0 %v362
        %v473 = vpop.f32.mrf.mxu0
        %v474 = vadd.f32 %v395, %v473
        %v475 = vpop.f32.mrf.mxu0
        %476 = vmatprep.mubr.f32.mxu0 0.0
        %477 = vmatmul.mubr.f32.gmra.mxu0 %v363
        %v478 = vpop.f32.mrf.mxu0
        %v479 = vadd.f32 %v395, %v478
        %v480 = vpop.f32.mrf.mxu0
        %481 = vmatprep.mubr.f32.mxu0 0.0
        %482 = vmatmul.mubr.f32.gmra.mxu0 %v364
        %v483 = vpop.f32.mrf.mxu0
        %v484 = vadd.f32 %v395, %v483
        %v485 = vpop.f32.mrf.mxu0
        %486 = vmatprep.mubr.f32.mxu0 0.0
        %487 = vmatmul.mubr.f32.gmra.mxu0 %v365
        %v488 = vpop.f32.mrf.mxu0
        %v489 = vadd.f32 %v395, %v488
        %v490 = vpop.f32.mrf.mxu0
        %491 = vmatprep.mubr.f32.mxu0 0.0
        %492 = vmatmul.mubr.f32.gmra.mxu0 %v366
        %v493 = vpop.f32.mrf.mxu0
        %v494 = vadd.f32 %v395, %v493
        %v495 = vpop.f32.mrf.mxu0
        %496 = vmatprep.mubr.f32.mxu0 0.0
        %497 = vmatmul.mubr.f32.gmra.mxu0 %v367
        %v498 = vpop.f32.mrf.mxu0
        %v499 = vadd.f32 %v395, %v498
        %v500 = vpop.f32.mrf.mxu0
        %501 = vmatprep.mubr.f32.mxu0 0.0
        %502 = vmatmul.mubr.f32.gmra.mxu0 %v368
        %v503 = vpop.f32.mrf.mxu0
        %v504 = vadd.f32 %v395, %v503
        %v505 = vpop.f32.mrf.mxu0
        %506 = vmatprep.mubr.f32.mxu0 0.0
        %507 = vmatmul.mubr.f32.gmra.mxu0 %v369
        %v508 = vpop.f32.mrf.mxu0
        %v509 = vadd.f32 %v395, %v508
        %v510 = vpop.f32.mrf.mxu0
        %511 = vmatprep.mubr.f32.mxu0 0.0
        %512 = vmatmul.mubr.f32.gmra.mxu0 %v370
        %v513 = vpop.f32.mrf.mxu0
        %v514 = vadd.f32 %v395, %v513
        %v515 = vpop.f32.mrf.mxu0
        %516 = vmatprep.mubr.f32.mxu0 0.0
        %517 = vmatmul.mubr.f32.gmra.mxu0 %v371
        %v518 = vpop.f32.mrf.mxu0
        %v519 = vadd.f32 %v395, %v518
        %v520 = vpop.f32.mrf.mxu0
        %521 = vmatprep.mubr.f32.mxu0 0.0
        %522 = vmatmul.mubr.f32.gmra.mxu0 %v372
        %v523 = vpop.f32.mrf.mxu0
        %v524 = vadd.f32 %v395, %v523
        %v525 = vpop.f32.mrf.mxu0
        %526 = vmatprep.mubr.f32.mxu0 0.0
        %527 = vmatmul.mubr.f32.gmra.mxu0 %v373
        %v528 = vpop.f32.mrf.mxu0
        %v529 = vadd.f32 %v395, %v528
        %v530 = vpop.f32.mrf.mxu0
        %531 = vdwg.mxu0
        %v532 = vmax.f32 %v464, 0.0
        %v533 = vmax.f32 %v469, 0.0
        %v534 = vmax.f32 %v474, 0.0
        %v535 = vmax.f32 %v479, 0.0
        %v536 = vmax.f32 %v484, 0.0
        %v537 = vmax.f32 %v489, 0.0
        %v538 = vmax.f32 %v494, 0.0
        %v539 = vmax.f32 %v499, 0.0
        %v540 = vmax.f32 %v504, 0.0
        %v541 = vmax.f32 %v509, 0.0
        %v542 = vmax.f32 %v514, 0.0
        %v543 = vmax.f32 %v519, 0.0
        %v544 = vmax.f32 %v524, 0.0
        %v545 = vmax.f32 %v529, 0.0
        %vm548 = vcmask 1043456
        %v549 = vrot.slane %v535, 4
        %v550 = vrot.slane %v536, 4
        %v551 = vsel %vm548, %v549, %v550
        %552 = vrot.lane.b32.xlu0 %v551, 32
        %v553 = vpop.permute.xlu0 %552
        %556 = vrot.lane.b32.xlu0 %v539, 64
        %v557 = vpop.permute.xlu0 %556
        %v561 = vrot.slane %v542, 4
        %v562 = vrot.slane %v543, 4
        %v563 = vsel %vm548, %v561, %v562
        %564 = vrot.lane.b32.xlu0 %v563, 96
        %v565 = vpop.permute.xlu0 %564
        %vm567 = vcmask 261120
        %v568 = vsel %vm567, %v532, %v553
        %vm569 = vcmask 523264
        %v570 = vsel %vm569, %v568, %v557
        %vm571 = vcmask 785408
        %v572 = vsel %vm571, %v570, %v565
        %s573 = scalar_lea.vmem [#allocation2], 16
        %574 = vst [vmem:[%s573 + $0x1] sm:$0x7f] %v572
        %v576 = vrot.slane %v537, 4
        %v577 = vsel %vm548, %v550, %v576
        %578 = vrot.lane.b32.xlu0 %v550, 32
        %v579 = vpop.permute.xlu0 %578
        %580 = vrot.lane.b32.xlu0 %v577, 32
        %v581 = vpop.permute.xlu0 %580
        %585 = vrot.lane.b32.xlu0 %v540, 64
        %v586 = vpop.permute.xlu0 %585
        %v589 = vrot.slane %v544, 4
        %v590 = vsel %vm548, %v562, %v589
        %591 = vrot.lane.b32.xlu0 %v562, 96
        %v592 = vpop.permute.xlu0 %591
        %593 = vrot.lane.b32.xlu0 %v590, 96
        %v594 = vpop.permute.xlu0 %593
        %v597 = vsel %vm567, %v532, %v579
        %v598 = vsel %vm567, %v533, %v581
        %v599 = vsel %vm569, %v597, %v557
        %v600 = vsel %vm569, %v598, %v586
        %v601 = vsel %vm571, %v599, %v592
        %v602 = vsel %vm571, %v600, %v594
        %s603 = scalar_lea.vmem [#allocation2], 32
        %604 = vst [vmem:[%s603 - $0x6] sm:$0x80] %v601
        %605 = vst [vmem:[%s603 + $0x2] sm:$0x3f] %v602
        %v607 = vrot.slane %v538, 4
        %v608 = vsel %vm548, %v576, %v607
        %609 = vrot.lane.b32.xlu0 %v576, 32
        %v610 = vpop.permute.xlu0 %609
        %611 = vrot.lane.b32.xlu0 %v608, 32
        %v612 = vpop.permute.xlu0 %611
        %616 = vrot.lane.b32.xlu0 %v541, 64
        %v617 = vpop.permute.xlu0 %616
        %v620 = vrot.slane %v545, 4
        %v621 = vsel %vm548, %v589, %v620
        %622 = vrot.lane.b32.xlu0 %v589, 96
        %v623 = vpop.permute.xlu0 %622
        %624 = vrot.lane.b32.xlu0 %v621, 96
        %v625 = vpop.permute.xlu0 %624
        %v628 = vsel %vm567, %v533, %v610
        %v629 = vsel %vm567, %v534, %v612
        %v630 = vsel %vm569, %v628, %v586
        %v631 = vsel %vm569, %v629, %v617
        %v632 = vsel %vm571, %v630, %v623
        %v633 = vsel %vm571, %v631, %v625
        %s634 = scalar_lea.vmem [#allocation2], 48
        %635 = vst [vmem:[%s634 - $0x5] sm:$0xc0] %v632
        %636 = vst [vmem:[%s634 + $0x3] sm:$0x1f] %v633
        %637 = vrot.lane.b32.xlu0 %v607, 32
        %v638 = vpop.permute.xlu0 %637
        %v640 = vsel %vm567, %v534, %v638
        %v641 = vsel %vm567, %v535, %v638
        %v642 = vsel %vm569, %v640, 0.0
        %v643 = vsel %vm569, %v641, 0.0
        %v644 = vsel %vm571, %v642, 0.0
        %v645 = vsel %vm571, %v643, 0.0
        %s646 = scalar_lea.vmem [#allocation2], 64
        %647 = vst [vmem:[%s646 - $0x4] sm:$0xe0] %v644
        %648 = vst [vmem:[%s646 + $0x4] sm:$0xf] %v645
        %v649 = vld [vmem:[#allocation2] sm:$0x7f]
        %v650 = vld [vmem:[#allocation2 + $0x1] sm:$0x7f]
        %v651 = vld [vmem:[#allocation2 + $0x2] sm:$0x7f]
        %v652 = vld [vmem:[%s573] sm:$0x7f]
        %v653 = vld [vmem:[%s573 + $0x1] sm:$0x7f]
        %v654 = vld [vmem:[%s573 + $0x2] sm:$0x7f]
        %v655 = vld [vmem:[%s603] sm:$0x7f]
        %v656 = vld [vmem:[%s603 + $0x1] sm:$0x7f]
        %v657 = vld [vmem:[%s603 + $0x2] sm:$0x7f]
        %v658 = vld [vmem:[%s3] sm:$0xff]
        %v659 = vld [vmem:[%s3 + $0x8] sm:$0xff]
        %v660 = vld [vmem:[%s3 + $0x10] sm:$0xff]
        %v661 = vld [vmem:[%s3 + $0x18] sm:$0xff]
        %v662 = vld [vmem:[%s3 + $0x20] sm:$0xff]
        %v663 = vld [vmem:[%s3 + $0x28] sm:$0xff]
        %v664 = vld [vmem:[%s3 + $0x30] sm:$0xff]
        %v665 = vld [vmem:[%s3 + $0x38] sm:$0xff]
        %v666 = vld [vmem:[%s3 + $0x40] sm:$0xff]
        %v667 = vld [vmem:[%s3 + $0x48] sm:$0xff]
        %v668 = vld [vmem:[%s3 + $0x50] sm:$0xff]
        %v669 = vld [vmem:[%s3 + $0x58] sm:$0xff]
        %v670 = vld [vmem:[%s3 + $0x60] sm:$0xff]
        %v671 = vld [vmem:[%s3 + $0x68] sm:$0xff]
        %v672 = vld [vmem:[%s3 + $0x70] sm:$0xff]
        %v673 = vld [vmem:[%s3 + $0x78] sm:$0xff]
        %v674 = vld [vmem:[%s3 + $0x80] sm:$0xff]
        %v675 = vld [vmem:[%s3 + $0x88] sm:$0xff]
        %v676 = vld [vmem:[%s3 + $0x90] sm:$0xff]
        %v677 = vld [vmem:[%s3 + $0x98] sm:$0xff]
        %v678 = vld [vmem:[%s3 + $0xa0] sm:$0xff]
        %v679 = vld [vmem:[%s3 + $0xa8] sm:$0xff]
        %v680 = vld [vmem:[%s3 + $0xb0] sm:$0xff]
        %v681 = vld [vmem:[%s3 + $0xb8] sm:$0xff]
        %v682 = vld [vmem:[%s3 + $0xc0] sm:$0xff]
        %v683 = vld [vmem:[%s3 + $0xc8] sm:$0xff]
        %v684 = vld [vmem:[%s3 + $0xd0] sm:$0xff]
        %v685 = vld [vmem:[%s3 + $0xd8] sm:$0xff]
        %v686 = vld [vmem:[%s3 + $0xe0] sm:$0xff]
        %v687 = vld [vmem:[%s3 + $0xe8] sm:$0xff]
        %v688 = vld [vmem:[%s3 + $0xf0] sm:$0xff]
        %v689 = vld [vmem:[%s3 + $0xf8] sm:$0xff]
        %v690 = vld [vmem:[%s3 + $0x100] sm:$0xff]
        %v691 = vld [vmem:[%s3 + $0x108] sm:$0xff]
        %v692 = vld [vmem:[%s3 + $0x110] sm:$0xff]
        %v693 = vld [vmem:[%s3 + $0x118] sm:$0xff]
        %v694 = vld [vmem:[%s3 + $0x120] sm:$0xff]
        %v695 = vld [vmem:[%s3 + $0x128] sm:$0xff]
        %v696 = vld [vmem:[%s3 + $0x130] sm:$0xff]
        %v697 = vld [vmem:[%s3 + $0x138] sm:$0xff]
        %v698 = vld [vmem:[%s3 + $0x140] sm:$0xff]
        %v699 = vld [vmem:[%s3 + $0x148] sm:$0xff]
        %v700 = vld [vmem:[%s3 + $0x150] sm:$0xff]
        %v701 = vld [vmem:[%s3 + $0x158] sm:$0xff]
        %v702 = vld [vmem:[%s3 + $0x160] sm:$0xff]
        %v703 = vld [vmem:[%s3 + $0x168] sm:$0xff]
        %v704 = vld [vmem:[%s3 + $0x170] sm:$0xff]
        %v705 = vld [vmem:[%s3 + $0x178] sm:$0xff]
        %v706 = vld [vmem:[%s3 + $0x180] sm:$0xff]
        %v707 = vld [vmem:[%s3 + $0x188] sm:$0xff]
        %v708 = vld [vmem:[%s3 + $0x190] sm:$0xff]
        %v709 = vld [vmem:[%s3 + $0x198] sm:$0xff]
        %v710 = vld [vmem:[%s3 + $0x1a0] sm:$0xff]
        %v711 = vld [vmem:[%s3 + $0x1a8] sm:$0xff]
        %v712 = vld [vmem:[%s3 + $0x1b0] sm:$0xff]
        %v713 = vld [vmem:[%s3 + $0x1b8] sm:$0xff]
        %v714 = vld [vmem:[%s3 + $0x1c0] sm:$0xff]
        %v715 = vld [vmem:[%s3 + $0x1c8] sm:$0xff]
        %v716 = vld [vmem:[%s3 + $0x1d0] sm:$0xff]
        %v717 = vld [vmem:[%s3 + $0x1d8] sm:$0xff]
        %v718 = vld [vmem:[%s3 + $0x1e0] sm:$0xff]
        %v719 = vld [vmem:[%s3 + $0x1e8] sm:$0xff]
        %v720 = vld [vmem:[%s3 + $0x1f0] sm:$0xff]
        %v721 = vld [vmem:[%s3 + $0x1f8] sm:$0xff]
        %v722 = vld [vmem:[%s3 + $0x200] sm:$0xff]
        %v723 = vld [vmem:[%s3 + $0x208] sm:$0xff]
        %v724 = vld [vmem:[%s3 + $0x210] sm:$0xff]
        %v725 = vld [vmem:[%s3 + $0x218] sm:$0xff]
        %v726 = vld [vmem:[%s3 + $0x220] sm:$0xff]
        %v727 = vld [vmem:[%s3 + $0x228] sm:$0xff]
        %v728 = vld [vmem:[%s3 + $0x230] sm:$0xff]
        %v729 = vld [vmem:[%s3 + $0x238] sm:$0xff]
        %v730 = vld [vmem:[%s3 + $0x240] sm:$0xff]
        %v731 = vld [vmem:[%s3 + $0x248] sm:$0xff]
        %v732 = vld [vmem:[%s3 + $0x250] sm:$0xff]
        %v733 = vld [vmem:[%s3 + $0x258] sm:$0xff]
        %v734 = vld [vmem:[%s3 + $0x260] sm:$0xff]
        %v735 = vld [vmem:[%s3 + $0x268] sm:$0xff]
        %v736 = vld [vmem:[%s3 + $0x270] sm:$0xff]
        %v737 = vld [vmem:[%s3 + $0x278] sm:$0xff]
        %v738 = vld [vmem:[%s3 + $0x280] sm:$0xff]
        %v739 = vld [vmem:[%s3 + $0x288] sm:$0xff]
        %v740 = vld [vmem:[%s3 + $0x290] sm:$0xff]
        %v741 = vld [vmem:[%s3 + $0x298] sm:$0xff]
        %v742 = vld [vmem:[%s3 + $0x2a0] sm:$0xff]
        %v743 = vld [vmem:[%s3 + $0x2a8] sm:$0xff]
        %v744 = vld [vmem:[%s3 + $0x2b0] sm:$0xff]
        %v745 = vld [vmem:[%s3 + $0x2b8] sm:$0xff]
        %v746 = vld [vmem:[%s3 + $0x2c0] sm:$0xff]
        %v747 = vld [vmem:[%s3 + $0x2c8] sm:$0xff]
        %v748 = vld [vmem:[%s3 + $0x2d0] sm:$0xff]
        %v749 = vld [vmem:[%s3 + $0x2d8] sm:$0xff]
        %v750 = vld [vmem:[%s3 + $0x2e0] sm:$0xff]
        %v751 = vld [vmem:[%s3 + $0x2e8] sm:$0xff]
        %v752 = vld [vmem:[%s3 + $0x2f0] sm:$0xff]
        %v753 = vld [vmem:[%s3 + $0x2f8] sm:$0xff]
        %v754 = vld [vmem:[%s3 + $0x300] sm:$0xff]
        %v755 = vld [vmem:[%s3 + $0x308] sm:$0xff]
        %v756 = vld [vmem:[%s3 + $0x310] sm:$0xff]
        %v757 = vld [vmem:[%s3 + $0x318] sm:$0xff]
        %v758 = vld [vmem:[%s3 + $0x320] sm:$0xff]
        %v759 = vld [vmem:[%s3 + $0x328] sm:$0xff]
        %v760 = vld [vmem:[%s3 + $0x330] sm:$0xff]
        %v761 = vld [vmem:[%s3 + $0x338] sm:$0xff]
        %v762 = vld [vmem:[%s3 + $0x340] sm:$0xff]
        %v763 = vld [vmem:[%s3 + $0x348] sm:$0xff]
        %v764 = vld [vmem:[%s3 + $0x350] sm:$0xff]
        %v765 = vld [vmem:[%s3 + $0x358] sm:$0xff]
        %v766 = vld [vmem:[%s3 + $0x360] sm:$0xff]
        %v767 = vld [vmem:[%s3 + $0x368] sm:$0xff]
        %v768 = vld [vmem:[%s3 + $0x370] sm:$0xff]
        %v769 = vld [vmem:[%s3 + $0x378] sm:$0xff]
        %v770 = vld [vmem:[%s3 + $0x380] sm:$0xff]
        %v771 = vld [vmem:[%s3 + $0x388] sm:$0xff]
        %v772 = vld [vmem:[%s3 + $0x390] sm:$0xff]
        %v773 = vld [vmem:[%s3 + $0x398] sm:$0xff]
        %v774 = vld [vmem:[%s3 + $0x3a0] sm:$0xff]
        %v775 = vld [vmem:[%s3 + $0x3a8] sm:$0xff]
        %v776 = vld [vmem:[%s3 + $0x3b0] sm:$0xff]
        %v777 = vld [vmem:[%s3 + $0x3b8] sm:$0xff]
        %v778 = vld [vmem:[%s3 + $0x3c0] sm:$0xff]
        %v779 = vld [vmem:[%s3 + $0x3c8] sm:$0xff]
        %v780 = vld [vmem:[%s3 + $0x3d0] sm:$0xff]
        %v781 = vld [vmem:[%s3 + $0x3d8] sm:$0xff]
        %v782 = vld [vmem:[%s3 + $0x3e0] sm:$0xff]
        %v783 = vld [vmem:[%s3 + $0x3e8] sm:$0xff]
        %v784 = vld [vmem:[%s3 + $0x3f0] sm:$0xff]
        %v785 = vld [vmem:[%s3 + $0x3f8] sm:$0xff]
        %v786 = vld [vmem:[%s3 + $0x400] sm:$0xff]
        %v787 = vld [vmem:[%s3 + $0x408] sm:$0xff]
        %v788 = vld [vmem:[%s3 + $0x410] sm:$0xff]
        %v789 = vld [vmem:[%s3 + $0x418] sm:$0xff]
        %v790 = vld [vmem:[%s3 + $0x420] sm:$0xff]
        %v791 = vld [vmem:[%s3 + $0x428] sm:$0xff]
        %v792 = vld [vmem:[%s3 + $0x430] sm:$0xff]
        %v793 = vld [vmem:[%s3 + $0x438] sm:$0xff]
        %v794 = vld [vmem:[%s3 + $0x440] sm:$0xff]
        %v795 = vld [vmem:[%s3 + $0x448] sm:$0xff]
        %v796 = vld [vmem:[%s3 + $0x450] sm:$0xff]
        %v797 = vld [vmem:[%s3 + $0x458] sm:$0xff]
        %v798 = vld [vmem:[%s3 + $0x460] sm:$0xff]
        %v799 = vld [vmem:[%s3 + $0x468] sm:$0xff]
        %v800 = vld [vmem:[%s3 + $0x470] sm:$0xff]
        %v801 = vld [vmem:[%s3 + $0x478] sm:$0xff]
        %v802 = vld [vmem:[%s4] sm:$0x1]
        %v804 = vlaneseq
        %v805 = vshrl.u32 %v804, 7
        %v806 = vsub.s32 0, %v805
        %v807 = vrot.slane %v802, %v806
        %809 = vmatprep.subr.mxu0 0.0
        %810 = vmatpush1.msra.mxu0 %v673
        %811 = vmatprep.subr.mxu0 0.0
        %812 = vmatpush1.msra.mxu0 %v672
        %813 = vmatprep.subr.mxu0 0.0
        %814 = vmatpush1.msra.mxu0 %v671
        %815 = vmatprep.subr.mxu0 0.0
        %816 = vmatpush1.msra.mxu0 %v670
        %817 = vmatprep.subr.mxu0 0.0
        %818 = vmatpush1.msra.mxu0 %v669
        %819 = vmatprep.subr.mxu0 0.0
        %820 = vmatpush1.msra.mxu0 %v668
        %821 = vmatprep.subr.mxu0 0.0
        %822 = vmatpush1.msra.mxu0 %v667
        %823 = vmatprep.subr.mxu0 0.0
        %824 = vmatpush1.msra.mxu0 %v666
        %825 = vmatprep.subr.mxu0 0.0
        %826 = vmatpush1.msra.mxu0 %v665
        %827 = vmatprep.subr.mxu0 0.0
        %828 = vmatpush1.msra.mxu0 %v664
        %829 = vmatprep.subr.mxu0 0.0
        %830 = vmatpush1.msra.mxu0 %v663
        %831 = vmatprep.subr.mxu0 0.0
        %832 = vmatpush1.msra.mxu0 %v662
        %833 = vmatprep.subr.mxu0 0.0
        %834 = vmatpush1.msra.mxu0 %v661
        %835 = vmatprep.subr.mxu0 0.0
        %836 = vmatpush1.msra.mxu0 %v660
        %837 = vmatprep.subr.mxu0 0.0
        %838 = vmatpush1.msra.mxu0 %v659
        %839 = vmatprep.subr.mxu0 0.0
        %840 = vmatpush1.msra.mxu0 %v658
        %841 = vmatprep.subr.mxu0 0.0
        %842 = vmatpush2.msra.mxu0 %v689
        %843 = vmatprep.subr.mxu0 0.0
        %844 = vmatpush2.msra.mxu0 %v688
        %845 = vmatprep.subr.mxu0 0.0
        %846 = vmatpush2.msra.mxu0 %v687
        %847 = vmatprep.subr.mxu0 0.0
        %848 = vmatpush2.msra.mxu0 %v686
        %849 = vmatprep.subr.mxu0 0.0
        %850 = vmatpush2.msra.mxu0 %v685
        %851 = vmatprep.subr.mxu0 0.0
        %852 = vmatpush2.msra.mxu0 %v684
        %853 = vmatprep.subr.mxu0 0.0
        %854 = vmatpush2.msra.mxu0 %v683
        %855 = vmatprep.subr.mxu0 0.0
        %856 = vmatpush2.msra.mxu0 %v682
        %857 = vmatprep.subr.mxu0 0.0
        %858 = vmatpush2.msra.mxu0 %v681
        %859 = vmatprep.subr.mxu0 0.0
        %860 = vmatpush2.msra.mxu0 %v680
        %861 = vmatprep.subr.mxu0 0.0
        %862 = vmatpush2.msra.mxu0 %v679
        %863 = vmatprep.subr.mxu0 0.0
        %864 = vmatpush2.msra.mxu0 %v678
        %865 = vmatprep.subr.mxu0 0.0
        %866 = vmatpush2.msra.mxu0 %v677
        %867 = vmatprep.subr.mxu0 0.0
        %868 = vmatpush2.msra.mxu0 %v676
        %869 = vmatprep.subr.mxu0 0.0
        %870 = vmatpush2.msra.mxu0 %v675
        %871 = vmatprep.subr.mxu0 0.0
        %872 = vmatpush2.msra.mxu0 %v674
        %873 = vmatprep.mubr.f32.mxu0 %v650
        %874 = vmatmul.mubr.f32.gmra.mxu0 %v649
        %v875 = vpop.f32.mrf.mxu0
        %v876 = vadd.f32 %v807, %v875
        %v877 = vpop.f32.mrf.mxu0
        %878 = vdwg.mxu0
        %879 = vmatprep.subr.mxu0 0.0
        %880 = vmatpush1.msra.mxu0 %v705
        %881 = vmatprep.subr.mxu0 0.0
        %882 = vmatpush1.msra.mxu0 %v704
        %883 = vmatprep.subr.mxu0 0.0
        %884 = vmatpush1.msra.mxu0 %v703
        %885 = vmatprep.subr.mxu0 0.0
        %886 = vmatpush1.msra.mxu0 %v702
        %887 = vmatprep.subr.mxu0 0.0
        %888 = vmatpush1.msra.mxu0 %v701
        %889 = vmatprep.subr.mxu0 0.0
        %890 = vmatpush1.msra.mxu0 %v700
        %891 = vmatprep.subr.mxu0 0.0
        %892 = vmatpush1.msra.mxu0 %v699
        %893 = vmatprep.subr.mxu0 0.0
        %894 = vmatpush1.msra.mxu0 %v698
        %895 = vmatprep.subr.mxu0 0.0
        %896 = vmatpush1.msra.mxu0 %v697
        %897 = vmatprep.subr.mxu0 0.0
        %898 = vmatpush1.msra.mxu0 %v696
        %899 = vmatprep.subr.mxu0 0.0
        %900 = vmatpush1.msra.mxu0 %v695
        %901 = vmatprep.subr.mxu0 0.0
        %902 = vmatpush1.msra.mxu0 %v694
        %903 = vmatprep.subr.mxu0 0.0
        %904 = vmatpush1.msra.mxu0 %v693
        %905 = vmatprep.subr.mxu0 0.0
        %906 = vmatpush1.msra.mxu0 %v692
        %907 = vmatprep.subr.mxu0 0.0
        %908 = vmatpush1.msra.mxu0 %v691
        %909 = vmatprep.subr.mxu0 0.0
        %910 = vmatpush1.msra.mxu0 %v690
        %911 = vmatprep.subr.mxu0 0.0
        %912 = vmatpush2.msra.mxu0 %v721
        %913 = vmatprep.subr.mxu0 0.0
        %914 = vmatpush2.msra.mxu0 %v720
        %915 = vmatprep.subr.mxu0 0.0
        %916 = vmatpush2.msra.mxu0 %v719
        %917 = vmatprep.subr.mxu0 0.0
        %918 = vmatpush2.msra.mxu0 %v718
        %919 = vmatprep.subr.mxu0 0.0
        %920 = vmatpush2.msra.mxu0 %v717
        %921 = vmatprep.subr.mxu0 0.0
        %922 = vmatpush2.msra.mxu0 %v716
        %923 = vmatprep.subr.mxu0 0.0
        %924 = vmatpush2.msra.mxu0 %v715
        %925 = vmatprep.subr.mxu0 0.0
        %926 = vmatpush2.msra.mxu0 %v714
        %927 = vmatprep.subr.mxu0 0.0
        %928 = vmatpush2.msra.mxu0 %v713
        %929 = vmatprep.subr.mxu0 0.0
        %930 = vmatpush2.msra.mxu0 %v712
        %931 = vmatprep.subr.mxu0 0.0
        %932 = vmatpush2.msra.mxu0 %v711
        %933 = vmatprep.subr.mxu0 0.0
        %934 = vmatpush2.msra.mxu0 %v710
        %935 = vmatprep.subr.mxu0 0.0
        %936 = vmatpush2.msra.mxu0 %v709
        %937 = vmatprep.subr.mxu0 0.0
        %938 = vmatpush2.msra.mxu0 %v708
        %939 = vmatprep.subr.mxu0 0.0
        %940 = vmatpush2.msra.mxu0 %v707
        %941 = vmatprep.subr.mxu0 0.0
        %942 = vmatpush2.msra.mxu0 %v706
        %943 = vmatprep.mubr.f32.mxu0 %v652
        %944 = vmatmul.mubr.f32.gmra.mxu0 %v651
        %v945 = vpop.f32.mrf.mxu0
        %v946 = vadd.f32 %v876, %v945
        %v947 = vpop.f32.mrf.mxu0
        %948 = vdwg.mxu0
        %949 = vmatprep.subr.mxu0 0.0
        %950 = vmatpush1.msra.mxu0 %v737
        %951 = vmatprep.subr.mxu0 0.0
        %952 = vmatpush1.msra.mxu0 %v736
        %953 = vmatprep.subr.mxu0 0.0
        %954 = vmatpush1.msra.mxu0 %v735
        %955 = vmatprep.subr.mxu0 0.0
        %956 = vmatpush1.msra.mxu0 %v734
        %957 = vmatprep.subr.mxu0 0.0
        %958 = vmatpush1.msra.mxu0 %v733
        %959 = vmatprep.subr.mxu0 0.0
        %960 = vmatpush1.msra.mxu0 %v732
        %961 = vmatprep.subr.mxu0 0.0
        %962 = vmatpush1.msra.mxu0 %v731
        %963 = vmatprep.subr.mxu0 0.0
        %964 = vmatpush1.msra.mxu0 %v730
        %965 = vmatprep.subr.mxu0 0.0
        %966 = vmatpush1.msra.mxu0 %v729
        %967 = vmatprep.subr.mxu0 0.0
        %968 = vmatpush1.msra.mxu0 %v728
        %969 = vmatprep.subr.mxu0 0.0
        %970 = vmatpush1.msra.mxu0 %v727
        %971 = vmatprep.subr.mxu0 0.0
        %972 = vmatpush1.msra.mxu0 %v726
        %973 = vmatprep.subr.mxu0 0.0
        %974 = vmatpush1.msra.mxu0 %v725
        %975 = vmatprep.subr.mxu0 0.0
        %976 = vmatpush1.msra.mxu0 %v724
        %977 = vmatprep.subr.mxu0 0.0
        %978 = vmatpush1.msra.mxu0 %v723
        %979 = vmatprep.subr.mxu0 0.0
        %980 = vmatpush1.msra.mxu0 %v722
        %981 = vmatprep.subr.mxu0 0.0
        %982 = vmatpush2.msra.mxu0 %v753
        %983 = vmatprep.subr.mxu0 0.0
        %984 = vmatpush2.msra.mxu0 %v752
        %985 = vmatprep.subr.mxu0 0.0
        %986 = vmatpush2.msra.mxu0 %v751
        %987 = vmatprep.subr.mxu0 0.0
        %988 = vmatpush2.msra.mxu0 %v750
        %989 = vmatprep.subr.mxu0 0.0
        %990 = vmatpush2.msra.mxu0 %v749
        %991 = vmatprep.subr.mxu0 0.0
        %992 = vmatpush2.msra.mxu0 %v748
        %993 = vmatprep.subr.mxu0 0.0
        %994 = vmatpush2.msra.mxu0 %v747
        %995 = vmatprep.subr.mxu0 0.0
        %996 = vmatpush2.msra.mxu0 %v746
        %997 = vmatprep.subr.mxu0 0.0
        %998 = vmatpush2.msra.mxu0 %v745
        %999 = vmatprep.subr.mxu0 0.0
        %1000 = vmatpush2.msra.mxu0 %v744
        %1001 = vmatprep.subr.mxu0 0.0
        %1002 = vmatpush2.msra.mxu0 %v743
        %1003 = vmatprep.subr.mxu0 0.0
        %1004 = vmatpush2.msra.mxu0 %v742
        %1005 = vmatprep.subr.mxu0 0.0
        %1006 = vmatpush2.msra.mxu0 %v741
        %1007 = vmatprep.subr.mxu0 0.0
        %1008 = vmatpush2.msra.mxu0 %v740
        %1009 = vmatprep.subr.mxu0 0.0
        %1010 = vmatpush2.msra.mxu0 %v739
        %1011 = vmatprep.subr.mxu0 0.0
        %1012 = vmatpush2.msra.mxu0 %v738
        %1013 = vmatprep.mubr.f32.mxu0 %v654
        %1014 = vmatmul.mubr.f32.gmra.mxu0 %v653
        %v1015 = vpop.f32.mrf.mxu0
        %v1016 = vadd.f32 %v946, %v1015
        %v1017 = vpop.f32.mrf.mxu0
        %1018 = vdwg.mxu0
        %1019 = vmatprep.subr.mxu0 0.0
        %1020 = vmatpush1.msra.mxu0 %v769
        %1021 = vmatprep.subr.mxu0 0.0
        %1022 = vmatpush1.msra.mxu0 %v768
        %1023 = vmatprep.subr.mxu0 0.0
        %1024 = vmatpush1.msra.mxu0 %v767
        %1025 = vmatprep.subr.mxu0 0.0
        %1026 = vmatpush1.msra.mxu0 %v766
        %1027 = vmatprep.subr.mxu0 0.0
        %1028 = vmatpush1.msra.mxu0 %v765
        %1029 = vmatprep.subr.mxu0 0.0
        %1030 = vmatpush1.msra.mxu0 %v764
        %1031 = vmatprep.subr.mxu0 0.0
        %1032 = vmatpush1.msra.mxu0 %v763
        %1033 = vmatprep.subr.mxu0 0.0
        %1034 = vmatpush1.msra.mxu0 %v762
        %1035 = vmatprep.subr.mxu0 0.0
        %1036 = vmatpush1.msra.mxu0 %v761
        %1037 = vmatprep.subr.mxu0 0.0
        %1038 = vmatpush1.msra.mxu0 %v760
        %1039 = vmatprep.subr.mxu0 0.0
        %1040 = vmatpush1.msra.mxu0 %v759
        %1041 = vmatprep.subr.mxu0 0.0
        %1042 = vmatpush1.msra.mxu0 %v758
        %1043 = vmatprep.subr.mxu0 0.0
        %1044 = vmatpush1.msra.mxu0 %v757
        %1045 = vmatprep.subr.mxu0 0.0
        %1046 = vmatpush1.msra.mxu0 %v756
        %1047 = vmatprep.subr.mxu0 0.0
        %1048 = vmatpush1.msra.mxu0 %v755
        %1049 = vmatprep.subr.mxu0 0.0
        %1050 = vmatpush1.msra.mxu0 %v754
        %1051 = vmatprep.subr.mxu0 0.0
        %1052 = vmatpush2.msra.mxu0 %v785
        %1053 = vmatprep.subr.mxu0 0.0
        %1054 = vmatpush2.msra.mxu0 %v784
        %1055 = vmatprep.subr.mxu0 0.0
        %1056 = vmatpush2.msra.mxu0 %v783
        %1057 = vmatprep.subr.mxu0 0.0
        %1058 = vmatpush2.msra.mxu0 %v782
        %1059 = vmatprep.subr.mxu0 0.0
        %1060 = vmatpush2.msra.mxu0 %v781
        %1061 = vmatprep.subr.mxu0 0.0
        %1062 = vmatpush2.msra.mxu0 %v780
        %1063 = vmatprep.subr.mxu0 0.0
        %1064 = vmatpush2.msra.mxu0 %v779
        %1065 = vmatprep.subr.mxu0 0.0
        %1066 = vmatpush2.msra.mxu0 %v778
        %1067 = vmatprep.subr.mxu0 0.0
        %1068 = vmatpush2.msra.mxu0 %v777
        %1069 = vmatprep.subr.mxu0 0.0
        %1070 = vmatpush2.msra.mxu0 %v776
        %1071 = vmatprep.subr.mxu0 0.0
        %1072 = vmatpush2.msra.mxu0 %v775
        %1073 = vmatprep.subr.mxu0 0.0
        %1074 = vmatpush2.msra.mxu0 %v774
        %1075 = vmatprep.subr.mxu0 0.0
        %1076 = vmatpush2.msra.mxu0 %v773
        %1077 = vmatprep.subr.mxu0 0.0
        %1078 = vmatpush2.msra.mxu0 %v772
        %1079 = vmatprep.subr.mxu0 0.0
        %1080 = vmatpush2.msra.mxu0 %v771
        %1081 = vmatprep.subr.mxu0 0.0
        %1082 = vmatpush2.msra.mxu0 %v770
        %1083 = vmatprep.mubr.f32.mxu0 %v656
        %1084 = vmatmul.mubr.f32.gmra.mxu0 %v655
        %v1085 = vpop.f32.mrf.mxu0
        %v1086 = vadd.f32 %v1016, %v1085
        %v1087 = vpop.f32.mrf.mxu0
        %1088 = vdwg.mxu0
        %1089 = vmatprep.subr.mxu0 0.0
        %1090 = vmatpush1.msra.mxu0 %v801
        %1091 = vmatprep.subr.mxu0 0.0
        %1092 = vmatpush1.msra.mxu0 %v800
        %1093 = vmatprep.subr.mxu0 0.0
        %1094 = vmatpush1.msra.mxu0 %v799
        %1095 = vmatprep.subr.mxu0 0.0
        %1096 = vmatpush1.msra.mxu0 %v798
        %1097 = vmatprep.subr.mxu0 0.0
        %1098 = vmatpush1.msra.mxu0 %v797
        %1099 = vmatprep.subr.mxu0 0.0
        %1100 = vmatpush1.msra.mxu0 %v796
        %1101 = vmatprep.subr.mxu0 0.0
        %1102 = vmatpush1.msra.mxu0 %v795
        %1103 = vmatprep.subr.mxu0 0.0
        %1104 = vmatpush1.msra.mxu0 %v794
        %1105 = vmatprep.subr.mxu0 0.0
        %1106 = vmatpush1.msra.mxu0 %v793
        %1107 = vmatprep.subr.mxu0 0.0
        %1108 = vmatpush1.msra.mxu0 %v792
        %1109 = vmatprep.subr.mxu0 0.0
        %1110 = vmatpush1.msra.mxu0 %v791
        %1111 = vmatprep.subr.mxu0 0.0
        %1112 = vmatpush1.msra.mxu0 %v790
        %1113 = vmatprep.subr.mxu0 0.0
        %1114 = vmatpush1.msra.mxu0 %v789
        %1115 = vmatprep.subr.mxu0 0.0
        %1116 = vmatpush1.msra.mxu0 %v788
        %1117 = vmatprep.subr.mxu0 0.0
        %1118 = vmatpush1.msra.mxu0 %v787
        %1119 = vmatprep.subr.mxu0 0.0
        %1120 = vmatpush1.msra.mxu0 %v786
        %1121 = vmatprep.subr.mxu0 0.0
        %1122 = vmatpush2.msra.mxu0 0.0
        %1123 = vmatprep.subr.mxu0 0.0
        %1124 = vmatpush2.msra.mxu0 0.0
        %1125 = vmatprep.subr.mxu0 0.0
        %1126 = vmatpush2.msra.mxu0 0.0
        %1127 = vmatprep.subr.mxu0 0.0
        %1128 = vmatpush2.msra.mxu0 0.0
        %1129 = vmatprep.subr.mxu0 0.0
        %1130 = vmatpush2.msra.mxu0 0.0
        %1131 = vmatprep.subr.mxu0 0.0
        %1132 = vmatpush2.msra.mxu0 0.0
        %1133 = vmatprep.subr.mxu0 0.0
        %1134 = vmatpush2.msra.mxu0 0.0
        %1135 = vmatprep.subr.mxu0 0.0
        %1136 = vmatpush2.msra.mxu0 0.0
        %1137 = vmatprep.subr.mxu0 0.0
        %1138 = vmatpush2.msra.mxu0 0.0
        %1139 = vmatprep.subr.mxu0 0.0
        %1140 = vmatpush2.msra.mxu0 0.0
        %1141 = vmatprep.subr.mxu0 0.0
        %1142 = vmatpush2.msra.mxu0 0.0
        %1143 = vmatprep.subr.mxu0 0.0
        %1144 = vmatpush2.msra.mxu0 0.0
        %1145 = vmatprep.subr.mxu0 0.0
        %1146 = vmatpush2.msra.mxu0 0.0
        %1147 = vmatprep.subr.mxu0 0.0
        %1148 = vmatpush2.msra.mxu0 0.0
        %1149 = vmatprep.subr.mxu0 0.0
        %1150 = vmatpush2.msra.mxu0 0.0
        %1151 = vmatprep.subr.mxu0 0.0
        %1152 = vmatpush2.msra.mxu0 0.0
        %1153 = vmatprep.mubr.f32.mxu0 0.0
        %1154 = vmatmul.mubr.f32.gmra.mxu0 %v657
        %v1155 = vpop.f32.mrf.mxu0
        %v1156 = vadd.f32 %v1086, %v1155
        %v1157 = vpop.f32.mrf.mxu0
        %1158 = vdwg.mxu0
        %v1159 = vmax.f32 %v1156, 0.0
        %s1160 = scalar_lea.vmem [#allocation3], 32
        %1161 = vst [vmem:[%s1160 + $0x2] sm:$0x7f] %v1159
        %v1162 = vld [vmem:[%s573] sm:$0x7f]
        %v1163 = vld [vmem:[%s573 + $0x1] sm:$0x7f]
        %v1164 = vld [vmem:[%s573 + $0x2] sm:$0x7f]
        %v1165 = vld [vmem:[%s603] sm:$0x7f]
        %v1166 = vld [vmem:[%s603 + $0x1] sm:$0x7f]
        %v1167 = vld [vmem:[%s603 + $0x2] sm:$0x7f]
        %v1168 = vld [vmem:[%s634] sm:$0x7f]
        %v1169 = vld [vmem:[%s634 + $0x1] sm:$0x7f]
        %v1170 = vld [vmem:[%s634 + $0x2] sm:$0x7f]
        %v1171 = vld [vmem:[%s3] sm:$0xff]
        %v1172 = vld [vmem:[%s3 + $0x8] sm:$0xff]
        %v1173 = vld [vmem:[%s3 + $0x10] sm:$0xff]
        %v1174 = vld [vmem:[%s3 + $0x18] sm:$0xff]
        %v1175 = vld [vmem:[%s3 + $0x20] sm:$0xff]
        %v1176 = vld [vmem:[%s3 + $0x28] sm:$0xff]
        %v1177 = vld [vmem:[%s3 + $0x30] sm:$0xff]
        %v1178 = vld [vmem:[%s3 + $0x38] sm:$0xff]
        %v1179 = vld [vmem:[%s3 + $0x40] sm:$0xff]
        %v1180 = vld [vmem:[%s3 + $0x48] sm:$0xff]
        %v1181 = vld [vmem:[%s3 + $0x50] sm:$0xff]
        %v1182 = vld [vmem:[%s3 + $0x58] sm:$0xff]
        %v1183 = vld [vmem:[%s3 + $0x60] sm:$0xff]
        %v1184 = vld [vmem:[%s3 + $0x68] sm:$0xff]
        %v1185 = vld [vmem:[%s3 + $0x70] sm:$0xff]
        %v1186 = vld [vmem:[%s3 + $0x78] sm:$0xff]
        %v1187 = vld [vmem:[%s3 + $0x80] sm:$0xff]
        %v1188 = vld [vmem:[%s3 + $0x88] sm:$0xff]
        %v1189 = vld [vmem:[%s3 + $0x90] sm:$0xff]
        %v1190 = vld [vmem:[%s3 + $0x98] sm:$0xff]
        %v1191 = vld [vmem:[%s3 + $0xa0] sm:$0xff]
        %v1192 = vld [vmem:[%s3 + $0xa8] sm:$0xff]
        %v1193 = vld [vmem:[%s3 + $0xb0] sm:$0xff]
        %v1194 = vld [vmem:[%s3 + $0xb8] sm:$0xff]
        %v1195 = vld [vmem:[%s3 + $0xc0] sm:$0xff]
        %v1196 = vld [vmem:[%s3 + $0xc8] sm:$0xff]
        %v1197 = vld [vmem:[%s3 + $0xd0] sm:$0xff]
        %v1198 = vld [vmem:[%s3 + $0xd8] sm:$0xff]
        %v1199 = vld [vmem:[%s3 + $0xe0] sm:$0xff]
        %v1200 = vld [vmem:[%s3 + $0xe8] sm:$0xff]
        %v1201 = vld [vmem:[%s3 + $0xf0] sm:$0xff]
        %v1202 = vld [vmem:[%s3 + $0xf8] sm:$0xff]
        %v1203 = vld [vmem:[%s3 + $0x100] sm:$0xff]
        %v1204 = vld [vmem:[%s3 + $0x108] sm:$0xff]
        %v1205 = vld [vmem:[%s3 + $0x110] sm:$0xff]
        %v1206 = vld [vmem:[%s3 + $0x118] sm:$0xff]
        %v1207 = vld [vmem:[%s3 + $0x120] sm:$0xff]
        %v1208 = vld [vmem:[%s3 + $0x128] sm:$0xff]
        %v1209 = vld [vmem:[%s3 + $0x130] sm:$0xff]
        %v1210 = vld [vmem:[%s3 + $0x138] sm:$0xff]
        %v1211 = vld [vmem:[%s3 + $0x140] sm:$0xff]
        %v1212 = vld [vmem:[%s3 + $0x148] sm:$0xff]
        %v1213 = vld [vmem:[%s3 + $0x150] sm:$0xff]
        %v1214 = vld [vmem:[%s3 + $0x158] sm:$0xff]
        %v1215 = vld [vmem:[%s3 + $0x160] sm:$0xff]
        %v1216 = vld [vmem:[%s3 + $0x168] sm:$0xff]
        %v1217 = vld [vmem:[%s3 + $0x170] sm:$0xff]
        %v1218 = vld [vmem:[%s3 + $0x178] sm:$0xff]
        %v1219 = vld [vmem:[%s3 + $0x180] sm:$0xff]
        %v1220 = vld [vmem:[%s3 + $0x188] sm:$0xff]
        %v1221 = vld [vmem:[%s3 + $0x190] sm:$0xff]
        %v1222 = vld [vmem:[%s3 + $0x198] sm:$0xff]
        %v1223 = vld [vmem:[%s3 + $0x1a0] sm:$0xff]
        %v1224 = vld [vmem:[%s3 + $0x1a8] sm:$0xff]
        %v1225 = vld [vmem:[%s3 + $0x1b0] sm:$0xff]
        %v1226 = vld [vmem:[%s3 + $0x1b8] sm:$0xff]
        %v1227 = vld [vmem:[%s3 + $0x1c0] sm:$0xff]
        %v1228 = vld [vmem:[%s3 + $0x1c8] sm:$0xff]
        %v1229 = vld [vmem:[%s3 + $0x1d0] sm:$0xff]
        %v1230 = vld [vmem:[%s3 + $0x1d8] sm:$0xff]
        %v1231 = vld [vmem:[%s3 + $0x1e0] sm:$0xff]
        %v1232 = vld [vmem:[%s3 + $0x1e8] sm:$0xff]
        %v1233 = vld [vmem:[%s3 + $0x1f0] sm:$0xff]
        %v1234 = vld [vmem:[%s3 + $0x1f8] sm:$0xff]
        %v1235 = vld [vmem:[%s3 + $0x200] sm:$0xff]
        %v1236 = vld [vmem:[%s3 + $0x208] sm:$0xff]
        %v1237 = vld [vmem:[%s3 + $0x210] sm:$0xff]
        %v1238 = vld [vmem:[%s3 + $0x218] sm:$0xff]
        %v1239 = vld [vmem:[%s3 + $0x220] sm:$0xff]
        %v1240 = vld [vmem:[%s3 + $0x228] sm:$0xff]
        %v1241 = vld [vmem:[%s3 + $0x230] sm:$0xff]
        %v1242 = vld [vmem:[%s3 + $0x238] sm:$0xff]
        %v1243 = vld [vmem:[%s3 + $0x240] sm:$0xff]
        %v1244 = vld [vmem:[%s3 + $0x248] sm:$0xff]
        %v1245 = vld [vmem:[%s3 + $0x250] sm:$0xff]
        %v1246 = vld [vmem:[%s3 + $0x258] sm:$0xff]
        %v1247 = vld [vmem:[%s3 + $0x260] sm:$0xff]
        %v1248 = vld [vmem:[%s3 + $0x268] sm:$0xff]
        %v1249 = vld [vmem:[%s3 + $0x270] sm:$0xff]
        %v1250 = vld [vmem:[%s3 + $0x278] sm:$0xff]
        %v1251 = vld [vmem:[%s3 + $0x280] sm:$0xff]
        %v1252 = vld [vmem:[%s3 + $0x288] sm:$0xff]
        %v1253 = vld [vmem:[%s3 + $0x290] sm:$0xff]
        %v1254 = vld [vmem:[%s3 + $0x298] sm:$0xff]
        %v1255 = vld [vmem:[%s3 + $0x2a0] sm:$0xff]
        %v1256 = vld [vmem:[%s3 + $0x2a8] sm:$0xff]
        %v1257 = vld [vmem:[%s3 + $0x2b0] sm:$0xff]
        %v1258 = vld [vmem:[%s3 + $0x2b8] sm:$0xff]
        %v1259 = vld [vmem:[%s3 + $0x2c0] sm:$0xff]
        %v1260 = vld [vmem:[%s3 + $0x2c8] sm:$0xff]
        %v1261 = vld [vmem:[%s3 + $0x2d0] sm:$0xff]
        %v1262 = vld [vmem:[%s3 + $0x2d8] sm:$0xff]
        %v1263 = vld [vmem:[%s3 + $0x2e0] sm:$0xff]
        %v1264 = vld [vmem:[%s3 + $0x2e8] sm:$0xff]
        %v1265 = vld [vmem:[%s3 + $0x2f0] sm:$0xff]
        %v1266 = vld [vmem:[%s3 + $0x2f8] sm:$0xff]
        %v1267 = vld [vmem:[%s3 + $0x300] sm:$0xff]
        %v1268 = vld [vmem:[%s3 + $0x308] sm:$0xff]
        %v1269 = vld [vmem:[%s3 + $0x310] sm:$0xff]
        %v1270 = vld [vmem:[%s3 + $0x318] sm:$0xff]
        %v1271 = vld [vmem:[%s3 + $0x320] sm:$0xff]
        %v1272 = vld [vmem:[%s3 + $0x328] sm:$0xff]
        %v1273 = vld [vmem:[%s3 + $0x330] sm:$0xff]
        %v1274 = vld [vmem:[%s3 + $0x338] sm:$0xff]
        %v1275 = vld [vmem:[%s3 + $0x340] sm:$0xff]
        %v1276 = vld [vmem:[%s3 + $0x348] sm:$0xff]
        %v1277 = vld [vmem:[%s3 + $0x350] sm:$0xff]
        %v1278 = vld [vmem:[%s3 + $0x358] sm:$0xff]
        %v1279 = vld [vmem:[%s3 + $0x360] sm:$0xff]
        %v1280 = vld [vmem:[%s3 + $0x368] sm:$0xff]
        %v1281 = vld [vmem:[%s3 + $0x370] sm:$0xff]
        %v1282 = vld [vmem:[%s3 + $0x378] sm:$0xff]
        %v1283 = vld [vmem:[%s3 + $0x380] sm:$0xff]
        %v1284 = vld [vmem:[%s3 + $0x388] sm:$0xff]
        %v1285 = vld [vmem:[%s3 + $0x390] sm:$0xff]
        %v1286 = vld [vmem:[%s3 + $0x398] sm:$0xff]
        %v1287 = vld [vmem:[%s3 + $0x3a0] sm:$0xff]
        %v1288 = vld [vmem:[%s3 + $0x3a8] sm:$0xff]
        %v1289 = vld [vmem:[%s3 + $0x3b0] sm:$0xff]
        %v1290 = vld [vmem:[%s3 + $0x3b8] sm:$0xff]
        %v1291 = vld [vmem:[%s3 + $0x3c0] sm:$0xff]
        %v1292 = vld [vmem:[%s3 + $0x3c8] sm:$0xff]
        %v1293 = vld [vmem:[%s3 + $0x3d0] sm:$0xff]
        %v1294 = vld [vmem:[%s3 + $0x3d8] sm:$0xff]
        %v1295 = vld [vmem:[%s3 + $0x3e0] sm:$0xff]
        %v1296 = vld [vmem:[%s3 + $0x3e8] sm:$0xff]
        %v1297 = vld [vmem:[%s3 + $0x3f0] sm:$0xff]
        %v1298 = vld [vmem:[%s3 + $0x3f8] sm:$0xff]
        %v1299 = vld [vmem:[%s3 + $0x400] sm:$0xff]
        %v1300 = vld [vmem:[%s3 + $0x408] sm:$0xff]
        %v1301 = vld [vmem:[%s3 + $0x410] sm:$0xff]
        %v1302 = vld [vmem:[%s3 + $0x418] sm:$0xff]
        %v1303 = vld [vmem:[%s3 + $0x420] sm:$0xff]
        %v1304 = vld [vmem:[%s3 + $0x428] sm:$0xff]
        %v1305 = vld [vmem:[%s3 + $0x430] sm:$0xff]
        %v1306 = vld [vmem:[%s3 + $0x438] sm:$0xff]
        %v1307 = vld [vmem:[%s3 + $0x440] sm:$0xff]
        %v1308 = vld [vmem:[%s3 + $0x448] sm:$0xff]
        %v1309 = vld [vmem:[%s3 + $0x450] sm:$0xff]
        %v1310 = vld [vmem:[%s3 + $0x458] sm:$0xff]
        %v1311 = vld [vmem:[%s3 + $0x460] sm:$0xff]
        %v1312 = vld [vmem:[%s3 + $0x468] sm:$0xff]
        %v1313 = vld [vmem:[%s3 + $0x470] sm:$0xff]
        %v1314 = vld [vmem:[%s3 + $0x478] sm:$0xff]
        %v1315 = vld [vmem:[%s4] sm:$0x1]
        %v1317 = vlaneseq
        %v1318 = vshrl.u32 %v1317, 7
        %v1319 = vsub.s32 0, %v1318
        %v1320 = vrot.slane %v1315, %v1319
        %1322 = vmatprep.subr.mxu0 0.0
        %1323 = vmatpush1.msra.mxu0 %v1186
        %1324 = vmatprep.subr.mxu0 0.0
        %1325 = vmatpush1.msra.mxu0 %v1185
        %1326 = vmatprep.subr.mxu0 0.0
        %1327 = vmatpush1.msra.mxu0 %v1184
        %1328 = vmatprep.subr.mxu0 0.0
        %1329 = vmatpush1.msra.mxu0 %v1183
        %1330 = vmatprep.subr.mxu0 0.0
        %1331 = vmatpush1.msra.mxu0 %v1182
        %1332 = vmatprep.subr.mxu0 0.0
        %1333 = vmatpush1.msra.mxu0 %v1181
        %1334 = vmatprep.subr.mxu0 0.0
        %1335 = vmatpush1.msra.mxu0 %v1180
        %1336 = vmatprep.subr.mxu0 0.0
        %1337 = vmatpush1.msra.mxu0 %v1179
        %1338 = vmatprep.subr.mxu0 0.0
        %1339 = vmatpush1.msra.mxu0 %v1178
        %1340 = vmatprep.subr.mxu0 0.0
        %1341 = vmatpush1.msra.mxu0 %v1177
        %1342 = vmatprep.subr.mxu0 0.0
        %1343 = vmatpush1.msra.mxu0 %v1176
        %1344 = vmatprep.subr.mxu0 0.0
        %1345 = vmatpush1.msra.mxu0 %v1175
        %1346 = vmatprep.subr.mxu0 0.0
        %1347 = vmatpush1.msra.mxu0 %v1174
        %1348 = vmatprep.subr.mxu0 0.0
        %1349 = vmatpush1.msra.mxu0 %v1173
        %1350 = vmatprep.subr.mxu0 0.0
        %1351 = vmatpush1.msra.mxu0 %v1172
        %1352 = vmatprep.subr.mxu0 0.0
        %1353 = vmatpush1.msra.mxu0 %v1171
        %1354 = vmatprep.subr.mxu0 0.0
        %1355 = vmatpush2.msra.mxu0 %v1202
        %1356 = vmatprep.subr.mxu0 0.0
        %1357 = vmatpush2.msra.mxu0 %v1201
        %1358 = vmatprep.subr.mxu0 0.0
        %1359 = vmatpush2.msra.mxu0 %v1200
        %1360 = vmatprep.subr.mxu0 0.0
        %1361 = vmatpush2.msra.mxu0 %v1199
        %1362 = vmatprep.subr.mxu0 0.0
        %1363 = vmatpush2.msra.mxu0 %v1198
        %1364 = vmatprep.subr.mxu0 0.0
        %1365 = vmatpush2.msra.mxu0 %v1197
        %1366 = vmatprep.subr.mxu0 0.0
        %1367 = vmatpush2.msra.mxu0 %v1196
        %1368 = vmatprep.subr.mxu0 0.0
        %1369 = vmatpush2.msra.mxu0 %v1195
        %1370 = vmatprep.subr.mxu0 0.0
        %1371 = vmatpush2.msra.mxu0 %v1194
        %1372 = vmatprep.subr.mxu0 0.0
        %1373 = vmatpush2.msra.mxu0 %v1193
        %1374 = vmatprep.subr.mxu0 0.0
        %1375 = vmatpush2.msra.mxu0 %v1192
        %1376 = vmatprep.subr.mxu0 0.0
        %1377 = vmatpush2.msra.mxu0 %v1191
        %1378 = vmatprep.subr.mxu0 0.0
        %1379 = vmatpush2.msra.mxu0 %v1190
        %1380 = vmatprep.subr.mxu0 0.0
        %1381 = vmatpush2.msra.mxu0 %v1189
        %1382 = vmatprep.subr.mxu0 0.0
        %1383 = vmatpush2.msra.mxu0 %v1188
        %1384 = vmatprep.subr.mxu0 0.0
        %1385 = vmatpush2.msra.mxu0 %v1187
        %1386 = vmatprep.mubr.f32.mxu0 %v1163
        %1387 = vmatmul.mubr.f32.gmra.mxu0 %v1162
        %v1388 = vpop.f32.mrf.mxu0
        %v1389 = vadd.f32 %v1320, %v1388
        %v1390 = vpop.f32.mrf.mxu0
        %1391 = vdwg.mxu0
        %1392 = vmatprep.subr.mxu0 0.0
        %1393 = vmatpush1.msra.mxu0 %v1218
        %1394 = vmatprep.subr.mxu0 0.0
        %1395 = vmatpush1.msra.mxu0 %v1217
        %1396 = vmatprep.subr.mxu0 0.0
        %1397 = vmatpush1.msra.mxu0 %v1216
        %1398 = vmatprep.subr.mxu0 0.0
        %1399 = vmatpush1.msra.mxu0 %v1215
        %1400 = vmatprep.subr.mxu0 0.0
        %1401 = vmatpush1.msra.mxu0 %v1214
        %1402 = vmatprep.subr.mxu0 0.0
        %1403 = vmatpush1.msra.mxu0 %v1213
        %1404 = vmatprep.subr.mxu0 0.0
        %1405 = vmatpush1.msra.mxu0 %v1212
        %1406 = vmatprep.subr.mxu0 0.0
        %1407 = vmatpush1.msra.mxu0 %v1211
        %1408 = vmatprep.subr.mxu0 0.0
        %1409 = vmatpush1.msra.mxu0 %v1210
        %1410 = vmatprep.subr.mxu0 0.0
        %1411 = vmatpush1.msra.mxu0 %v1209
        %1412 = vmatprep.subr.mxu0 0.0
        %1413 = vmatpush1.msra.mxu0 %v1208
        %1414 = vmatprep.subr.mxu0 0.0
        %1415 = vmatpush1.msra.mxu0 %v1207
        %1416 = vmatprep.subr.mxu0 0.0
        %1417 = vmatpush1.msra.mxu0 %v1206
        %1418 = vmatprep.subr.mxu0 0.0
        %1419 = vmatpush1.msra.mxu0 %v1205
        %1420 = vmatprep.subr.mxu0 0.0
        %1421 = vmatpush1.msra.mxu0 %v1204
        %1422 = vmatprep.subr.mxu0 0.0
        %1423 = vmatpush1.msra.mxu0 %v1203
        %1424 = vmatprep.subr.mxu0 0.0
        %1425 = vmatpush2.msra.mxu0 %v1234
        %1426 = vmatprep.subr.mxu0 0.0
        %1427 = vmatpush2.msra.mxu0 %v1233
        %1428 = vmatprep.subr.mxu0 0.0
        %1429 = vmatpush2.msra.mxu0 %v1232
        %1430 = vmatprep.subr.mxu0 0.0
        %1431 = vmatpush2.msra.mxu0 %v1231
        %1432 = vmatprep.subr.mxu0 0.0
        %1433 = vmatpush2.msra.mxu0 %v1230
        %1434 = vmatprep.subr.mxu0 0.0
        %1435 = vmatpush2.msra.mxu0 %v1229
        %1436 = vmatprep.subr.mxu0 0.0
        %1437 = vmatpush2.msra.mxu0 %v1228
        %1438 = vmatprep.subr.mxu0 0.0
        %1439 = vmatpush2.msra.mxu0 %v1227
        %1440 = vmatprep.subr.mxu0 0.0
        %1441 = vmatpush2.msra.mxu0 %v1226
        %1442 = vmatprep.subr.mxu0 0.0
        %1443 = vmatpush2.msra.mxu0 %v1225
        %1444 = vmatprep.subr.mxu0 0.0
        %1445 = vmatpush2.msra.mxu0 %v1224
        %1446 = vmatprep.subr.mxu0 0.0
        %1447 = vmatpush2.msra.mxu0 %v1223
        %1448 = vmatprep.subr.mxu0 0.0
        %1449 = vmatpush2.msra.mxu0 %v1222
        %1450 = vmatprep.subr.mxu0 0.0
        %1451 = vmatpush2.msra.mxu0 %v1221
        %1452 = vmatprep.subr.mxu0 0.0
        %1453 = vmatpush2.msra.mxu0 %v1220
        %1454 = vmatprep.subr.mxu0 0.0
        %1455 = vmatpush2.msra.mxu0 %v1219
        %1456 = vmatprep.mubr.f32.mxu0 %v1165
        %1457 = vmatmul.mubr.f32.gmra.mxu0 %v1164
        %v1458 = vpop.f32.mrf.mxu0
        %v1459 = vadd.f32 %v1389, %v1458
        %v1460 = vpop.f32.mrf.mxu0
        %1461 = vdwg.mxu0
        %1462 = vmatprep.subr.mxu0 0.0
        %1463 = vmatpush1.msra.mxu0 %v1250
        %1464 = vmatprep.subr.mxu0 0.0
        %1465 = vmatpush1.msra.mxu0 %v1249
        %1466 = vmatprep.subr.mxu0 0.0
        %1467 = vmatpush1.msra.mxu0 %v1248
        %1468 = vmatprep.subr.mxu0 0.0
        %1469 = vmatpush1.msra.mxu0 %v1247
        %1470 = vmatprep.subr.mxu0 0.0
        %1471 = vmatpush1.msra.mxu0 %v1246
        %1472 = vmatprep.subr.mxu0 0.0
        %1473 = vmatpush1.msra.mxu0 %v1245
        %1474 = vmatprep.subr.mxu0 0.0
        %1475 = vmatpush1.msra.mxu0 %v1244
        %1476 = vmatprep.subr.mxu0 0.0
        %1477 = vmatpush1.msra.mxu0 %v1243
        %1478 = vmatprep.subr.mxu0 0.0
        %1479 = vmatpush1.msra.mxu0 %v1242
        %1480 = vmatprep.subr.mxu0 0.0
        %1481 = vmatpush1.msra.mxu0 %v1241
        %1482 = vmatprep.subr.mxu0 0.0
        %1483 = vmatpush1.msra.mxu0 %v1240
        %1484 = vmatprep.subr.mxu0 0.0
        %1485 = vmatpush1.msra.mxu0 %v1239
        %1486 = vmatprep.subr.mxu0 0.0
        %1487 = vmatpush1.msra.mxu0 %v1238
        %1488 = vmatprep.subr.mxu0 0.0
        %1489 = vmatpush1.msra.mxu0 %v1237
        %1490 = vmatprep.subr.mxu0 0.0
        %1491 = vmatpush1.msra.mxu0 %v1236
        %1492 = vmatprep.subr.mxu0 0.0
        %1493 = vmatpush1.msra.mxu0 %v1235
        %1494 = vmatprep.subr.mxu0 0.0
        %1495 = vmatpush2.msra.mxu0 %v1266
        %1496 = vmatprep.subr.mxu0 0.0
        %1497 = vmatpush2.msra.mxu0 %v1265
        %1498 = vmatprep.subr.mxu0 0.0
        %1499 = vmatpush2.msra.mxu0 %v1264
        %1500 = vmatprep.subr.mxu0 0.0
        %1501 = vmatpush2.msra.mxu0 %v1263
        %1502 = vmatprep.subr.mxu0 0.0
        %1503 = vmatpush2.msra.mxu0 %v1262
        %1504 = vmatprep.subr.mxu0 0.0
        %1505 = vmatpush2.msra.mxu0 %v1261
        %1506 = vmatprep.subr.mxu0 0.0
        %1507 = vmatpush2.msra.mxu0 %v1260
        %1508 = vmatprep.subr.mxu0 0.0
        %1509 = vmatpush2.msra.mxu0 %v1259
        %1510 = vmatprep.subr.mxu0 0.0
        %1511 = vmatpush2.msra.mxu0 %v1258
        %1512 = vmatprep.subr.mxu0 0.0
        %1513 = vmatpush2.msra.mxu0 %v1257
        %1514 = vmatprep.subr.mxu0 0.0
        %1515 = vmatpush2.msra.mxu0 %v1256
        %1516 = vmatprep.subr.mxu0 0.0
        %1517 = vmatpush2.msra.mxu0 %v1255
        %1518 = vmatprep.subr.mxu0 0.0
        %1519 = vmatpush2.msra.mxu0 %v1254
        %1520 = vmatprep.subr.mxu0 0.0
        %1521 = vmatpush2.msra.mxu0 %v1253
        %1522 = vmatprep.subr.mxu0 0.0
        %1523 = vmatpush2.msra.mxu0 %v1252
        %1524 = vmatprep.subr.mxu0 0.0
        %1525 = vmatpush2.msra.mxu0 %v1251
        %1526 = vmatprep.mubr.f32.mxu0 %v1167
        %1527 = vmatmul.mubr.f32.gmra.mxu0 %v1166
        %v1528 = vpop.f32.mrf.mxu0
        %v1529 = vadd.f32 %v1459, %v1528
        %v1530 = vpop.f32.mrf.mxu0
        %1531 = vdwg.mxu0
        %1532 = vmatprep.subr.mxu0 0.0
        %1533 = vmatpush1.msra.mxu0 %v1282
        %1534 = vmatprep.subr.mxu0 0.0
        %1535 = vmatpush1.msra.mxu0 %v1281
        %1536 = vmatprep.subr.mxu0 0.0
        %1537 = vmatpush1.msra.mxu0 %v1280
        %1538 = vmatprep.subr.mxu0 0.0
        %1539 = vmatpush1.msra.mxu0 %v1279
        %1540 = vmatprep.subr.mxu0 0.0
        %1541 = vmatpush1.msra.mxu0 %v1278
        %1542 = vmatprep.subr.mxu0 0.0
        %1543 = vmatpush1.msra.mxu0 %v1277
        %1544 = vmatprep.subr.mxu0 0.0
        %1545 = vmatpush1.msra.mxu0 %v1276
        %1546 = vmatprep.subr.mxu0 0.0
        %1547 = vmatpush1.msra.mxu0 %v1275
        %1548 = vmatprep.subr.mxu0 0.0
        %1549 = vmatpush1.msra.mxu0 %v1274
        %1550 = vmatprep.subr.mxu0 0.0
        %1551 = vmatpush1.msra.mxu0 %v1273
        %1552 = vmatprep.subr.mxu0 0.0
        %1553 = vmatpush1.msra.mxu0 %v1272
        %1554 = vmatprep.subr.mxu0 0.0
        %1555 = vmatpush1.msra.mxu0 %v1271
        %1556 = vmatprep.subr.mxu0 0.0
        %1557 = vmatpush1.msra.mxu0 %v1270
        %1558 = vmatprep.subr.mxu0 0.0
        %1559 = vmatpush1.msra.mxu0 %v1269
        %1560 = vmatprep.subr.mxu0 0.0
        %1561 = vmatpush1.msra.mxu0 %v1268
        %1562 = vmatprep.subr.mxu0 0.0
        %1563 = vmatpush1.msra.mxu0 %v1267
        %1564 = vmatprep.subr.mxu0 0.0
        %1565 = vmatpush2.msra.mxu0 %v1298
        %1566 = vmatprep.subr.mxu0 0.0
        %1567 = vmatpush2.msra.mxu0 %v1297
        %1568 = vmatprep.subr.mxu0 0.0
        %1569 = vmatpush2.msra.mxu0 %v1296
        %1570 = vmatprep.subr.mxu0 0.0
        %1571 = vmatpush2.msra.mxu0 %v1295
        %1572 = vmatprep.subr.mxu0 0.0
        %1573 = vmatpush2.msra.mxu0 %v1294
        %1574 = vmatprep.subr.mxu0 0.0
        %1575 = vmatpush2.msra.mxu0 %v1293
        %1576 = vmatprep.subr.mxu0 0.0
        %1577 = vmatpush2.msra.mxu0 %v1292
        %1578 = vmatprep.subr.mxu0 0.0
        %1579 = vmatpush2.msra.mxu0 %v1291
        %1580 = vmatprep.subr.mxu0 0.0
        %1581 = vmatpush2.msra.mxu0 %v1290
        %1582 = vmatprep.subr.mxu0 0.0
        %1583 = vmatpush2.msra.mxu0 %v1289
        %1584 = vmatprep.subr.mxu0 0.0
        %1585 = vmatpush2.msra.mxu0 %v1288
        %1586 = vmatprep.subr.mxu0 0.0
        %1587 = vmatpush2.msra.mxu0 %v1287
        %1588 = vmatprep.subr.mxu0 0.0
        %1589 = vmatpush2.msra.mxu0 %v1286
        %1590 = vmatprep.subr.mxu0 0.0
        %1591 = vmatpush2.msra.mxu0 %v1285
        %1592 = vmatprep.subr.mxu0 0.0
        %1593 = vmatpush2.msra.mxu0 %v1284
        %1594 = vmatprep.subr.mxu0 0.0
        %1595 = vmatpush2.msra.mxu0 %v1283
        %1596 = vmatprep.mubr.f32.mxu0 %v1169
        %1597 = vmatmul.mubr.f32.gmra.mxu0 %v1168
        %v1598 = vpop.f32.mrf.mxu0
        %v1599 = vadd.f32 %v1529, %v1598
        %v1600 = vpop.f32.mrf.mxu0
        %1601 = vdwg.mxu0
        %1602 = vmatprep.subr.mxu0 0.0
        %1603 = vmatpush1.msra.mxu0 %v1314
        %1604 = vmatprep.subr.mxu0 0.0
        %1605 = vmatpush1.msra.mxu0 %v1313
        %1606 = vmatprep.subr.mxu0 0.0
        %1607 = vmatpush1.msra.mxu0 %v1312
        %1608 = vmatprep.subr.mxu0 0.0
        %1609 = vmatpush1.msra.mxu0 %v1311
        %1610 = vmatprep.subr.mxu0 0.0
        %1611 = vmatpush1.msra.mxu0 %v1310
        %1612 = vmatprep.subr.mxu0 0.0
        %1613 = vmatpush1.msra.mxu0 %v1309
        %1614 = vmatprep.subr.mxu0 0.0
        %1615 = vmatpush1.msra.mxu0 %v1308
        %1616 = vmatprep.subr.mxu0 0.0
        %1617 = vmatpush1.msra.mxu0 %v1307
        %1618 = vmatprep.subr.mxu0 0.0
        %1619 = vmatpush1.msra.mxu0 %v1306
        %1620 = vmatprep.subr.mxu0 0.0
        %1621 = vmatpush1.msra.mxu0 %v1305
        %1622 = vmatprep.subr.mxu0 0.0
        %1623 = vmatpush1.msra.mxu0 %v1304
        %1624 = vmatprep.subr.mxu0 0.0
        %1625 = vmatpush1.msra.mxu0 %v1303
        %1626 = vmatprep.subr.mxu0 0.0
        %1627 = vmatpush1.msra.mxu0 %v1302
        %1628 = vmatprep.subr.mxu0 0.0
        %1629 = vmatpush1.msra.mxu0 %v1301
        %1630 = vmatprep.subr.mxu0 0.0
        %1631 = vmatpush1.msra.mxu0 %v1300
        %1632 = vmatprep.subr.mxu0 0.0
        %1633 = vmatpush1.msra.mxu0 %v1299
        %1634 = vmatprep.subr.mxu0 0.0
        %1635 = vmatpush2.msra.mxu0 0.0
        %1636 = vmatprep.subr.mxu0 0.0
        %1637 = vmatpush2.msra.mxu0 0.0
        %1638 = vmatprep.subr.mxu0 0.0
        %1639 = vmatpush2.msra.mxu0 0.0
        %1640 = vmatprep.subr.mxu0 0.0
        %1641 = vmatpush2.msra.mxu0 0.0
        %1642 = vmatprep.subr.mxu0 0.0
        %1643 = vmatpush2.msra.mxu0 0.0
        %1644 = vmatprep.subr.mxu0 0.0
        %1645 = vmatpush2.msra.mxu0 0.0
        %1646 = vmatprep.subr.mxu0 0.0
        %1647 = vmatpush2.msra.mxu0 0.0
        %1648 = vmatprep.subr.mxu0 0.0
        %1649 = vmatpush2.msra.mxu0 0.0
        %1650 = vmatprep.subr.mxu0 0.0
        %1651 = vmatpush2.msra.mxu0 0.0
        %1652 = vmatprep.subr.mxu0 0.0
        %1653 = vmatpush2.msra.mxu0 0.0
        %1654 = vmatprep.subr.mxu0 0.0
        %1655 = vmatpush2.msra.mxu0 0.0
        %1656 = vmatprep.subr.mxu0 0.0
        %1657 = vmatpush2.msra.mxu0 0.0
        %1658 = vmatprep.subr.mxu0 0.0
        %1659 = vmatpush2.msra.mxu0 0.0
        %1660 = vmatprep.subr.mxu0 0.0
        %1661 = vmatpush2.msra.mxu0 0.0
        %1662 = vmatprep.subr.mxu0 0.0
        %1663 = vmatpush2.msra.mxu0 0.0
        %1664 = vmatprep.subr.mxu0 0.0
        %1665 = vmatpush2.msra.mxu0 0.0
        %1666 = vmatprep.mubr.f32.mxu0 0.0
        %1667 = vmatmul.mubr.f32.gmra.mxu0 %v1170
        %v1668 = vpop.f32.mrf.mxu0
        %v1669 = vadd.f32 %v1599, %v1668
        %v1670 = vpop.f32.mrf.mxu0
        %1671 = vdwg.mxu0
        %v1672 = vmax.f32 %v1669, 0.0
        %s1673 = scalar_lea.vmem [#allocation3], 48
        %1674 = vst [vmem:[%s1673 + $0x2] sm:$0x7f] %v1672
        %v1675 = vld [vmem:[%s603] sm:$0x7f]
        %v1676 = vld [vmem:[%s603 + $0x1] sm:$0x7f]
        %v1677 = vld [vmem:[%s603 + $0x2] sm:$0x7f]
        %v1678 = vld [vmem:[%s634] sm:$0x7f]
        %v1679 = vld [vmem:[%s634 + $0x1] sm:$0x7f]
        %v1680 = vld [vmem:[%s634 + $0x2] sm:$0x7f]
        %v1681 = vld [vmem:[%s646] sm:$0x7f]
        %v1682 = vld [vmem:[%s646 + $0x1] sm:$0x7f]
        %v1683 = vld [vmem:[%s646 + $0x2] sm:$0x7f]
        %v1684 = vld [vmem:[%s3] sm:$0xff]
        %v1685 = vld [vmem:[%s3 + $0x8] sm:$0xff]
        %v1686 = vld [vmem:[%s3 + $0x10] sm:$0xff]
        %v1687 = vld [vmem:[%s3 + $0x18] sm:$0xff]
        %v1688 = vld [vmem:[%s3 + $0x20] sm:$0xff]
        %v1689 = vld [vmem:[%s3 + $0x28] sm:$0xff]
        %v1690 = vld [vmem:[%s3 + $0x30] sm:$0xff]
        %v1691 = vld [vmem:[%s3 + $0x38] sm:$0xff]
        %v1692 = vld [vmem:[%s3 + $0x40] sm:$0xff]
        %v1693 = vld [vmem:[%s3 + $0x48] sm:$0xff]
        %v1694 = vld [vmem:[%s3 + $0x50] sm:$0xff]
        %v1695 = vld [vmem:[%s3 + $0x58] sm:$0xff]
        %v1696 = vld [vmem:[%s3 + $0x60] sm:$0xff]
        %v1697 = vld [vmem:[%s3 + $0x68] sm:$0xff]
        %v1698 = vld [vmem:[%s3 + $0x70] sm:$0xff]
        %v1699 = vld [vmem:[%s3 + $0x78] sm:$0xff]
        %v1700 = vld [vmem:[%s3 + $0x80] sm:$0xff]
        %v1701 = vld [vmem:[%s3 + $0x88] sm:$0xff]
        %v1702 = vld [vmem:[%s3 + $0x90] sm:$0xff]
        %v1703 = vld [vmem:[%s3 + $0x98] sm:$0xff]
        %v1704 = vld [vmem:[%s3 + $0xa0] sm:$0xff]
        %v1705 = vld [vmem:[%s3 + $0xa8] sm:$0xff]
        %v1706 = vld [vmem:[%s3 + $0xb0] sm:$0xff]
        %v1707 = vld [vmem:[%s3 + $0xb8] sm:$0xff]
        %v1708 = vld [vmem:[%s3 + $0xc0] sm:$0xff]
        %v1709 = vld [vmem:[%s3 + $0xc8] sm:$0xff]
        %v1710 = vld [vmem:[%s3 + $0xd0] sm:$0xff]
        %v1711 = vld [vmem:[%s3 + $0xd8] sm:$0xff]
        %v1712 = vld [vmem:[%s3 + $0xe0] sm:$0xff]
        %v1713 = vld [vmem:[%s3 + $0xe8] sm:$0xff]
        %v1714 = vld [vmem:[%s3 + $0xf0] sm:$0xff]
        %v1715 = vld [vmem:[%s3 + $0xf8] sm:$0xff]
        %v1716 = vld [vmem:[%s3 + $0x100] sm:$0xff]
        %v1717 = vld [vmem:[%s3 + $0x108] sm:$0xff]
        %v1718 = vld [vmem:[%s3 + $0x110] sm:$0xff]
        %v1719 = vld [vmem:[%s3 + $0x118] sm:$0xff]
        %v1720 = vld [vmem:[%s3 + $0x120] sm:$0xff]
        %v1721 = vld [vmem:[%s3 + $0x128] sm:$0xff]
        %v1722 = vld [vmem:[%s3 + $0x130] sm:$0xff]
        %v1723 = vld [vmem:[%s3 + $0x138] sm:$0xff]
        %v1724 = vld [vmem:[%s3 + $0x140] sm:$0xff]
        %v1725 = vld [vmem:[%s3 + $0x148] sm:$0xff]
        %v1726 = vld [vmem:[%s3 + $0x150] sm:$0xff]
        %v1727 = vld [vmem:[%s3 + $0x158] sm:$0xff]
        %v1728 = vld [vmem:[%s3 + $0x160] sm:$0xff]
        %v1729 = vld [vmem:[%s3 + $0x168] sm:$0xff]
        %v1730 = vld [vmem:[%s3 + $0x170] sm:$0xff]
        %v1731 = vld [vmem:[%s3 + $0x178] sm:$0xff]
        %v1732 = vld [vmem:[%s3 + $0x180] sm:$0xff]
        %v1733 = vld [vmem:[%s3 + $0x188] sm:$0xff]
        %v1734 = vld [vmem:[%s3 + $0x190] sm:$0xff]
        %v1735 = vld [vmem:[%s3 + $0x198] sm:$0xff]
        %v1736 = vld [vmem:[%s3 + $0x1a0] sm:$0xff]
        %v1737 = vld [vmem:[%s3 + $0x1a8] sm:$0xff]
        %v1738 = vld [vmem:[%s3 + $0x1b0] sm:$0xff]
        %v1739 = vld [vmem:[%s3 + $0x1b8] sm:$0xff]
        %v1740 = vld [vmem:[%s3 + $0x1c0] sm:$0xff]
        %v1741 = vld [vmem:[%s3 + $0x1c8] sm:$0xff]
        %v1742 = vld [vmem:[%s3 + $0x1d0] sm:$0xff]
        %v1743 = vld [vmem:[%s3 + $0x1d8] sm:$0xff]
        %v1744 = vld [vmem:[%s3 + $0x1e0] sm:$0xff]
        %v1745 = vld [vmem:[%s3 + $0x1e8] sm:$0xff]
        %v1746 = vld [vmem:[%s3 + $0x1f0] sm:$0xff]
        %v1747 = vld [vmem:[%s3 + $0x1f8] sm:$0xff]
        %v1748 = vld [vmem:[%s3 + $0x200] sm:$0xff]
        %v1749 = vld [vmem:[%s3 + $0x208] sm:$0xff]
        %v1750 = vld [vmem:[%s3 + $0x210] sm:$0xff]
        %v1751 = vld [vmem:[%s3 + $0x218] sm:$0xff]
        %v1752 = vld [vmem:[%s3 + $0x220] sm:$0xff]
        %v1753 = vld [vmem:[%s3 + $0x228] sm:$0xff]
        %v1754 = vld [vmem:[%s3 + $0x230] sm:$0xff]
        %v1755 = vld [vmem:[%s3 + $0x238] sm:$0xff]
        %v1756 = vld [vmem:[%s3 + $0x240] sm:$0xff]
        %v1757 = vld [vmem:[%s3 + $0x248] sm:$0xff]
        %v1758 = vld [vmem:[%s3 + $0x250] sm:$0xff]
        %v1759 = vld [vmem:[%s3 + $0x258] sm:$0xff]
        %v1760 = vld [vmem:[%s3 + $0x260] sm:$0xff]
        %v1761 = vld [vmem:[%s3 + $0x268] sm:$0xff]
        %v1762 = vld [vmem:[%s3 + $0x270] sm:$0xff]
        %v1763 = vld [vmem:[%s3 + $0x278] sm:$0xff]
        %v1764 = vld [vmem:[%s3 + $0x280] sm:$0xff]
        %v1765 = vld [vmem:[%s3 + $0x288] sm:$0xff]
        %v1766 = vld [vmem:[%s3 + $0x290] sm:$0xff]
        %v1767 = vld [vmem:[%s3 + $0x298] sm:$0xff]
        %v1768 = vld [vmem:[%s3 + $0x2a0] sm:$0xff]
        %v1769 = vld [vmem:[%s3 + $0x2a8] sm:$0xff]
        %v1770 = vld [vmem:[%s3 + $0x2b0] sm:$0xff]
        %v1771 = vld [vmem:[%s3 + $0x2b8] sm:$0xff]
        %v1772 = vld [vmem:[%s3 + $0x2c0] sm:$0xff]
        %v1773 = vld [vmem:[%s3 + $0x2c8] sm:$0xff]
        %v1774 = vld [vmem:[%s3 + $0x2d0] sm:$0xff]
        %v1775 = vld [vmem:[%s3 + $0x2d8] sm:$0xff]
        %v1776 = vld [vmem:[%s3 + $0x2e0] sm:$0xff]
        %v1777 = vld [vmem:[%s3 + $0x2e8] sm:$0xff]
        %v1778 = vld [vmem:[%s3 + $0x2f0] sm:$0xff]
        %v1779 = vld [vmem:[%s3 + $0x2f8] sm:$0xff]
        %v1780 = vld [vmem:[%s3 + $0x300] sm:$0xff]
        %v1781 = vld [vmem:[%s3 + $0x308] sm:$0xff]
        %v1782 = vld [vmem:[%s3 + $0x310] sm:$0xff]
        %v1783 = vld [vmem:[%s3 + $0x318] sm:$0xff]
        %v1784 = vld [vmem:[%s3 + $0x320] sm:$0xff]
        %v1785 = vld [vmem:[%s3 + $0x328] sm:$0xff]
        %v1786 = vld [vmem:[%s3 + $0x330] sm:$0xff]
        %v1787 = vld [vmem:[%s3 + $0x338] sm:$0xff]
        %v1788 = vld [vmem:[%s3 + $0x340] sm:$0xff]
        %v1789 = vld [vmem:[%s3 + $0x348] sm:$0xff]
        %v1790 = vld [vmem:[%s3 + $0x350] sm:$0xff]
        %v1791 = vld [vmem:[%s3 + $0x358] sm:$0xff]
        %v1792 = vld [vmem:[%s3 + $0x360] sm:$0xff]
        %v1793 = vld [vmem:[%s3 + $0x368] sm:$0xff]
        %v1794 = vld [vmem:[%s3 + $0x370] sm:$0xff]
        %v1795 = vld [vmem:[%s3 + $0x378] sm:$0xff]
        %v1796 = vld [vmem:[%s3 + $0x380] sm:$0xff]
        %v1797 = vld [vmem:[%s3 + $0x388] sm:$0xff]
        %v1798 = vld [vmem:[%s3 + $0x390] sm:$0xff]
        %v1799 = vld [vmem:[%s3 + $0x398] sm:$0xff]
        %v1800 = vld [vmem:[%s3 + $0x3a0] sm:$0xff]
        %v1801 = vld [vmem:[%s3 + $0x3a8] sm:$0xff]
        %v1802 = vld [vmem:[%s3 + $0x3b0] sm:$0xff]
        %v1803 = vld [vmem:[%s3 + $0x3b8] sm:$0xff]
        %v1804 = vld [vmem:[%s3 + $0x3c0] sm:$0xff]
        %v1805 = vld [vmem:[%s3 + $0x3c8] sm:$0xff]
        %v1806 = vld [vmem:[%s3 + $0x3d0] sm:$0xff]
        %v1807 = vld [vmem:[%s3 + $0x3d8] sm:$0xff]
        %v1808 = vld [vmem:[%s3 + $0x3e0] sm:$0xff]
        %v1809 = vld [vmem:[%s3 + $0x3e8] sm:$0xff]
        %v1810 = vld [vmem:[%s3 + $0x3f0] sm:$0xff]
        %v1811 = vld [vmem:[%s3 + $0x3f8] sm:$0xff]
        %v1812 = vld [vmem:[%s3 + $0x400] sm:$0xff]
        %v1813 = vld [vmem:[%s3 + $0x408] sm:$0xff]
        %v1814 = vld [vmem:[%s3 + $0x410] sm:$0xff]
        %v1815 = vld [vmem:[%s3 + $0x418] sm:$0xff]
        %v1816 = vld [vmem:[%s3 + $0x420] sm:$0xff]
        %v1817 = vld [vmem:[%s3 + $0x428] sm:$0xff]
        %v1818 = vld [vmem:[%s3 + $0x430] sm:$0xff]
        %v1819 = vld [vmem:[%s3 + $0x438] sm:$0xff]
        %v1820 = vld [vmem:[%s3 + $0x440] sm:$0xff]
        %v1821 = vld [vmem:[%s3 + $0x448] sm:$0xff]
        %v1822 = vld [vmem:[%s3 + $0x450] sm:$0xff]
        %v1823 = vld [vmem:[%s3 + $0x458] sm:$0xff]
        %v1824 = vld [vmem:[%s3 + $0x460] sm:$0xff]
        %v1825 = vld [vmem:[%s3 + $0x468] sm:$0xff]
        %v1826 = vld [vmem:[%s3 + $0x470] sm:$0xff]
        %v1827 = vld [vmem:[%s3 + $0x478] sm:$0xff]
        %v1828 = vld [vmem:[%s4] sm:$0x1]
        %v1830 = vlaneseq
        %v1831 = vshrl.u32 %v1830, 7
        %v1832 = vsub.s32 0, %v1831
        %v1833 = vrot.slane %v1828, %v1832
        %1835 = vmatprep.subr.mxu0 0.0
        %1836 = vmatpush1.msra.mxu0 %v1699
        %1837 = vmatprep.subr.mxu0 0.0
        %1838 = vmatpush1.msra.mxu0 %v1698
        %1839 = vmatprep.subr.mxu0 0.0
        %1840 = vmatpush1.msra.mxu0 %v1697
        %1841 = vmatprep.subr.mxu0 0.0
        %1842 = vmatpush1.msra.mxu0 %v1696
        %1843 = vmatprep.subr.mxu0 0.0
        %1844 = vmatpush1.msra.mxu0 %v1695
        %1845 = vmatprep.subr.mxu0 0.0
        %1846 = vmatpush1.msra.mxu0 %v1694
        %1847 = vmatprep.subr.mxu0 0.0
        %1848 = vmatpush1.msra.mxu0 %v1693
        %1849 = vmatprep.subr.mxu0 0.0
        %1850 = vmatpush1.msra.mxu0 %v1692
        %1851 = vmatprep.subr.mxu0 0.0
        %1852 = vmatpush1.msra.mxu0 %v1691
        %1853 = vmatprep.subr.mxu0 0.0
        %1854 = vmatpush1.msra.mxu0 %v1690
        %1855 = vmatprep.subr.mxu0 0.0
        %1856 = vmatpush1.msra.mxu0 %v1689
        %1857 = vmatprep.subr.mxu0 0.0
        %1858 = vmatpush1.msra.mxu0 %v1688
        %1859 = vmatprep.subr.mxu0 0.0
        %1860 = vmatpush1.msra.mxu0 %v1687
        %1861 = vmatprep.subr.mxu0 0.0
        %1862 = vmatpush1.msra.mxu0 %v1686
        %1863 = vmatprep.subr.mxu0 0.0
        %1864 = vmatpush1.msra.mxu0 %v1685
        %1865 = vmatprep.subr.mxu0 0.0
        %1866 = vmatpush1.msra.mxu0 %v1684
        %1867 = vmatprep.subr.mxu0 0.0
        %1868 = vmatpush2.msra.mxu0 %v1715
        %1869 = vmatprep.subr.mxu0 0.0
        %1870 = vmatpush2.msra.mxu0 %v1714
        %1871 = vmatprep.subr.mxu0 0.0
        %1872 = vmatpush2.msra.mxu0 %v1713
        %1873 = vmatprep.subr.mxu0 0.0
        %1874 = vmatpush2.msra.mxu0 %v1712
        %1875 = vmatprep.subr.mxu0 0.0
        %1876 = vmatpush2.msra.mxu0 %v1711
        %1877 = vmatprep.subr.mxu0 0.0
        %1878 = vmatpush2.msra.mxu0 %v1710
        %1879 = vmatprep.subr.mxu0 0.0
        %1880 = vmatpush2.msra.mxu0 %v1709
        %1881 = vmatprep.subr.mxu0 0.0
        %1882 = vmatpush2.msra.mxu0 %v1708
        %1883 = vmatprep.subr.mxu0 0.0
        %1884 = vmatpush2.msra.mxu0 %v1707
        %1885 = vmatprep.subr.mxu0 0.0
        %1886 = vmatpush2.msra.mxu0 %v1706
        %1887 = vmatprep.subr.mxu0 0.0
        %1888 = vmatpush2.msra.mxu0 %v1705
        %1889 = vmatprep.subr.mxu0 0.0
        %1890 = vmatpush2.msra.mxu0 %v1704
        %1891 = vmatprep.subr.mxu0 0.0
        %1892 = vmatpush2.msra.mxu0 %v1703
        %1893 = vmatprep.subr.mxu0 0.0
        %1894 = vmatpush2.msra.mxu0 %v1702
        %1895 = vmatprep.subr.mxu0 0.0
        %1896 = vmatpush2.msra.mxu0 %v1701
        %1897 = vmatprep.subr.mxu0 0.0
        %1898 = vmatpush2.msra.mxu0 %v1700
        %1899 = vmatprep.mubr.f32.mxu0 %v1676
        %1900 = vmatmul.mubr.f32.gmra.mxu0 %v1675
        %v1901 = vpop.f32.mrf.mxu0
        %v1902 = vadd.f32 %v1833, %v1901
        %v1903 = vpop.f32.mrf.mxu0
        %1904 = vdwg.mxu0
        %1905 = vmatprep.subr.mxu0 0.0
        %1906 = vmatpush1.msra.mxu0 %v1731
        %1907 = vmatprep.subr.mxu0 0.0
        %1908 = vmatpush1.msra.mxu0 %v1730
        %1909 = vmatprep.subr.mxu0 0.0
        %1910 = vmatpush1.msra.mxu0 %v1729
        %1911 = vmatprep.subr.mxu0 0.0
        %1912 = vmatpush1.msra.mxu0 %v1728
        %1913 = vmatprep.subr.mxu0 0.0
        %1914 = vmatpush1.msra.mxu0 %v1727
        %1915 = vmatprep.subr.mxu0 0.0
        %1916 = vmatpush1.msra.mxu0 %v1726
        %1917 = vmatprep.subr.mxu0 0.0
        %1918 = vmatpush1.msra.mxu0 %v1725
        %1919 = vmatprep.subr.mxu0 0.0
        %1920 = vmatpush1.msra.mxu0 %v1724
        %1921 = vmatprep.subr.mxu0 0.0
        %1922 = vmatpush1.msra.mxu0 %v1723
        %1923 = vmatprep.subr.mxu0 0.0
        %1924 = vmatpush1.msra.mxu0 %v1722
        %1925 = vmatprep.subr.mxu0 0.0
        %1926 = vmatpush1.msra.mxu0 %v1721
        %1927 = vmatprep.subr.mxu0 0.0
        %1928 = vmatpush1.msra.mxu0 %v1720
        %1929 = vmatprep.subr.mxu0 0.0
        %1930 = vmatpush1.msra.mxu0 %v1719
        %1931 = vmatprep.subr.mxu0 0.0
        %1932 = vmatpush1.msra.mxu0 %v1718
        %1933 = vmatprep.subr.mxu0 0.0
        %1934 = vmatpush1.msra.mxu0 %v1717
        %1935 = vmatprep.subr.mxu0 0.0
        %1936 = vmatpush1.msra.mxu0 %v1716
        %1937 = vmatprep.subr.mxu0 0.0
        %1938 = vmatpush2.msra.mxu0 %v1747
        %1939 = vmatprep.subr.mxu0 0.0
        %1940 = vmatpush2.msra.mxu0 %v1746
        %1941 = vmatprep.subr.mxu0 0.0
        %1942 = vmatpush2.msra.mxu0 %v1745
        %1943 = vmatprep.subr.mxu0 0.0
        %1944 = vmatpush2.msra.mxu0 %v1744
        %1945 = vmatprep.subr.mxu0 0.0
        %1946 = vmatpush2.msra.mxu0 %v1743
        %1947 = vmatprep.subr.mxu0 0.0
        %1948 = vmatpush2.msra.mxu0 %v1742
        %1949 = vmatprep.subr.mxu0 0.0
        %1950 = vmatpush2.msra.mxu0 %v1741
        %1951 = vmatprep.subr.mxu0 0.0
        %1952 = vmatpush2.msra.mxu0 %v1740
        %1953 = vmatprep.subr.mxu0 0.0
        %1954 = vmatpush2.msra.mxu0 %v1739
        %1955 = vmatprep.subr.mxu0 0.0
        %1956 = vmatpush2.msra.mxu0 %v1738
        %1957 = vmatprep.subr.mxu0 0.0
        %1958 = vmatpush2.msra.mxu0 %v1737
        %1959 = vmatprep.subr.mxu0 0.0
        %1960 = vmatpush2.msra.mxu0 %v1736
        %1961 = vmatprep.subr.mxu0 0.0
        %1962 = vmatpush2.msra.mxu0 %v1735
        %1963 = vmatprep.subr.mxu0 0.0
        %1964 = vmatpush2.msra.mxu0 %v1734
        %1965 = vmatprep.subr.mxu0 0.0
        %1966 = vmatpush2.msra.mxu0 %v1733
        %1967 = vmatprep.subr.mxu0 0.0
        %1968 = vmatpush2.msra.mxu0 %v1732
        %1969 = vmatprep.mubr.f32.mxu0 %v1678
        %1970 = vmatmul.mubr.f32.gmra.mxu0 %v1677
        %v1971 = vpop.f32.mrf.mxu0
        %v1972 = vadd.f32 %v1902, %v1971
        %v1973 = vpop.f32.mrf.mxu0
        %1974 = vdwg.mxu0
        %1975 = vmatprep.subr.mxu0 0.0
        %1976 = vmatpush1.msra.mxu0 %v1763
        %1977 = vmatprep.subr.mxu0 0.0
        %1978 = vmatpush1.msra.mxu0 %v1762
        %1979 = vmatprep.subr.mxu0 0.0
        %1980 = vmatpush1.msra.mxu0 %v1761
        %1981 = vmatprep.subr.mxu0 0.0
        %1982 = vmatpush1.msra.mxu0 %v1760
        %1983 = vmatprep.subr.mxu0 0.0
        %1984 = vmatpush1.msra.mxu0 %v1759
        %1985 = vmatprep.subr.mxu0 0.0
        %1986 = vmatpush1.msra.mxu0 %v1758
        %1987 = vmatprep.subr.mxu0 0.0
        %1988 = vmatpush1.msra.mxu0 %v1757
        %1989 = vmatprep.subr.mxu0 0.0
        %1990 = vmatpush1.msra.mxu0 %v1756
        %1991 = vmatprep.subr.mxu0 0.0
        %1992 = vmatpush1.msra.mxu0 %v1755
        %1993 = vmatprep.subr.mxu0 0.0
        %1994 = vmatpush1.msra.mxu0 %v1754
        %1995 = vmatprep.subr.mxu0 0.0
        %1996 = vmatpush1.msra.mxu0 %v1753
        %1997 = vmatprep.subr.mxu0 0.0
        %1998 = vmatpush1.msra.mxu0 %v1752
        %1999 = vmatprep.subr.mxu0 0.0
        %2000 = vmatpush1.msra.mxu0 %v1751
        %2001 = vmatprep.subr.mxu0 0.0
        %2002 = vmatpush1.msra.mxu0 %v1750
        %2003 = vmatprep.subr.mxu0 0.0
        %2004 = vmatpush1.msra.mxu0 %v1749
        %2005 = vmatprep.subr.mxu0 0.0
        %2006 = vmatpush1.msra.mxu0 %v1748
        %2007 = vmatprep.subr.mxu0 0.0
        %2008 = vmatpush2.msra.mxu0 %v1779
        %2009 = vmatprep.subr.mxu0 0.0
        %2010 = vmatpush2.msra.mxu0 %v1778
        %2011 = vmatprep.subr.mxu0 0.0
        %2012 = vmatpush2.msra.mxu0 %v1777
        %2013 = vmatprep.subr.mxu0 0.0
        %2014 = vmatpush2.msra.mxu0 %v1776
        %2015 = vmatprep.subr.mxu0 0.0
        %2016 = vmatpush2.msra.mxu0 %v1775
        %2017 = vmatprep.subr.mxu0 0.0
        %2018 = vmatpush2.msra.mxu0 %v1774
        %2019 = vmatprep.subr.mxu0 0.0
        %2020 = vmatpush2.msra.mxu0 %v1773
        %2021 = vmatprep.subr.mxu0 0.0
        %2022 = vmatpush2.msra.mxu0 %v1772
        %2023 = vmatprep.subr.mxu0 0.0
        %2024 = vmatpush2.msra.mxu0 %v1771
        %2025 = vmatprep.subr.mxu0 0.0
        %2026 = vmatpush2.msra.mxu0 %v1770
        %2027 = vmatprep.subr.mxu0 0.0
        %2028 = vmatpush2.msra.mxu0 %v1769
        %2029 = vmatprep.subr.mxu0 0.0
        %2030 = vmatpush2.msra.mxu0 %v1768
        %2031 = vmatprep.subr.mxu0 0.0
        %2032 = vmatpush2.msra.mxu0 %v1767
        %2033 = vmatprep.subr.mxu0 0.0
        %2034 = vmatpush2.msra.mxu0 %v1766
        %2035 = vmatprep.subr.mxu0 0.0
        %2036 = vmatpush2.msra.mxu0 %v1765
        %2037 = vmatprep.subr.mxu0 0.0
        %2038 = vmatpush2.msra.mxu0 %v1764
        %2039 = vmatprep.mubr.f32.mxu0 %v1680
        %2040 = vmatmul.mubr.f32.gmra.mxu0 %v1679
        %v2041 = vpop.f32.mrf.mxu0
        %v2042 = vadd.f32 %v1972, %v2041
        %v2043 = vpop.f32.mrf.mxu0
        %2044 = vdwg.mxu0
        %2045 = vmatprep.subr.mxu0 0.0
        %2046 = vmatpush1.msra.mxu0 %v1795
        %2047 = vmatprep.subr.mxu0 0.0
        %2048 = vmatpush1.msra.mxu0 %v1794
        %2049 = vmatprep.subr.mxu0 0.0
        %2050 = vmatpush1.msra.mxu0 %v1793
        %2051 = vmatprep.subr.mxu0 0.0
        %2052 = vmatpush1.msra.mxu0 %v1792
        %2053 = vmatprep.subr.mxu0 0.0
        %2054 = vmatpush1.msra.mxu0 %v1791
        %2055 = vmatprep.subr.mxu0 0.0
        %2056 = vmatpush1.msra.mxu0 %v1790
        %2057 = vmatprep.subr.mxu0 0.0
        %2058 = vmatpush1.msra.mxu0 %v1789
        %2059 = vmatprep.subr.mxu0 0.0
        %2060 = vmatpush1.msra.mxu0 %v1788
        %2061 = vmatprep.subr.mxu0 0.0
        %2062 = vmatpush1.msra.mxu0 %v1787
        %2063 = vmatprep.subr.mxu0 0.0
        %2064 = vmatpush1.msra.mxu0 %v1786
        %2065 = vmatprep.subr.mxu0 0.0
        %2066 = vmatpush1.msra.mxu0 %v1785
        %2067 = vmatprep.subr.mxu0 0.0
        %2068 = vmatpush1.msra.mxu0 %v1784
        %2069 = vmatprep.subr.mxu0 0.0
        %2070 = vmatpush1.msra.mxu0 %v1783
        %2071 = vmatprep.subr.mxu0 0.0
        %2072 = vmatpush1.msra.mxu0 %v1782
        %2073 = vmatprep.subr.mxu0 0.0
        %2074 = vmatpush1.msra.mxu0 %v1781
        %2075 = vmatprep.subr.mxu0 0.0
        %2076 = vmatpush1.msra.mxu0 %v1780
        %2077 = vmatprep.subr.mxu0 0.0
        %2078 = vmatpush2.msra.mxu0 %v1811
        %2079 = vmatprep.subr.mxu0 0.0
        %2080 = vmatpush2.msra.mxu0 %v1810
        %2081 = vmatprep.subr.mxu0 0.0
        %2082 = vmatpush2.msra.mxu0 %v1809
        %2083 = vmatprep.subr.mxu0 0.0
        %2084 = vmatpush2.msra.mxu0 %v1808
        %2085 = vmatprep.subr.mxu0 0.0
        %2086 = vmatpush2.msra.mxu0 %v1807
        %2087 = vmatprep.subr.mxu0 0.0
        %2088 = vmatpush2.msra.mxu0 %v1806
        %2089 = vmatprep.subr.mxu0 0.0
        %2090 = vmatpush2.msra.mxu0 %v1805
        %2091 = vmatprep.subr.mxu0 0.0
        %2092 = vmatpush2.msra.mxu0 %v1804
        %2093 = vmatprep.subr.mxu0 0.0
        %2094 = vmatpush2.msra.mxu0 %v1803
        %2095 = vmatprep.subr.mxu0 0.0
        %2096 = vmatpush2.msra.mxu0 %v1802
        %2097 = vmatprep.subr.mxu0 0.0
        %2098 = vmatpush2.msra.mxu0 %v1801
        %2099 = vmatprep.subr.mxu0 0.0
        %2100 = vmatpush2.msra.mxu0 %v1800
        %2101 = vmatprep.subr.mxu0 0.0
        %2102 = vmatpush2.msra.mxu0 %v1799
        %2103 = vmatprep.subr.mxu0 0.0
        %2104 = vmatpush2.msra.mxu0 %v1798
        %2105 = vmatprep.subr.mxu0 0.0
        %2106 = vmatpush2.msra.mxu0 %v1797
        %2107 = vmatprep.subr.mxu0 0.0
        %2108 = vmatpush2.msra.mxu0 %v1796
        %2109 = vmatprep.mubr.f32.mxu0 %v1682
        %2110 = vmatmul.mubr.f32.gmra.mxu0 %v1681
        %v2111 = vpop.f32.mrf.mxu0
        %v2112 = vadd.f32 %v2042, %v2111
        %v2113 = vpop.f32.mrf.mxu0
        %2114 = vdwg.mxu0
        %2115 = vmatprep.subr.mxu0 0.0
        %2116 = vmatpush1.msra.mxu0 %v1827
        %2117 = vmatprep.subr.mxu0 0.0
        %2118 = vmatpush1.msra.mxu0 %v1826
        %2119 = vmatprep.subr.mxu0 0.0
        %2120 = vmatpush1.msra.mxu0 %v1825
        %2121 = vmatprep.subr.mxu0 0.0
        %2122 = vmatpush1.msra.mxu0 %v1824
        %2123 = vmatprep.subr.mxu0 0.0
        %2124 = vmatpush1.msra.mxu0 %v1823
        %2125 = vmatprep.subr.mxu0 0.0
        %2126 = vmatpush1.msra.mxu0 %v1822
        %2127 = vmatprep.subr.mxu0 0.0
        %2128 = vmatpush1.msra.mxu0 %v1821
        %2129 = vmatprep.subr.mxu0 0.0
        %2130 = vmatpush1.msra.mxu0 %v1820
        %2131 = vmatprep.subr.mxu0 0.0
        %2132 = vmatpush1.msra.mxu0 %v1819
        %2133 = vmatprep.subr.mxu0 0.0
        %2134 = vmatpush1.msra.mxu0 %v1818
        %2135 = vmatprep.subr.mxu0 0.0
        %2136 = vmatpush1.msra.mxu0 %v1817
        %2137 = vmatprep.subr.mxu0 0.0
        %2138 = vmatpush1.msra.mxu0 %v1816
        %2139 = vmatprep.subr.mxu0 0.0
        %2140 = vmatpush1.msra.mxu0 %v1815
        %2141 = vmatprep.subr.mxu0 0.0
        %2142 = vmatpush1.msra.mxu0 %v1814
        %2143 = vmatprep.subr.mxu0 0.0
        %2144 = vmatpush1.msra.mxu0 %v1813
        %2145 = vmatprep.subr.mxu0 0.0
        %2146 = vmatpush1.msra.mxu0 %v1812
        %2147 = vmatprep.subr.mxu0 0.0
        %2148 = vmatpush2.msra.mxu0 0.0
        %2149 = vmatprep.subr.mxu0 0.0
        %2150 = vmatpush2.msra.mxu0 0.0
        %2151 = vmatprep.subr.mxu0 0.0
        %2152 = vmatpush2.msra.mxu0 0.0
        %2153 = vmatprep.subr.mxu0 0.0
        %2154 = vmatpush2.msra.mxu0 0.0
        %2155 = vmatprep.subr.mxu0 0.0
        %2156 = vmatpush2.msra.mxu0 0.0
        %2157 = vmatprep.subr.mxu0 0.0
        %2158 = vmatpush2.msra.mxu0 0.0
        %2159 = vmatprep.subr.mxu0 0.0
        %2160 = vmatpush2.msra.mxu0 0.0
        %2161 = vmatprep.subr.mxu0 0.0
        %2162 = vmatpush2.msra.mxu0 0.0
        %2163 = vmatprep.subr.mxu0 0.0
        %2164 = vmatpush2.msra.mxu0 0.0
        %2165 = vmatprep.subr.mxu0 0.0
        %2166 = vmatpush2.msra.mxu0 0.0
        %2167 = vmatprep.subr.mxu0 0.0
        %2168 = vmatpush2.msra.mxu0 0.0
        %2169 = vmatprep.subr.mxu0 0.0
        %2170 = vmatpush2.msra.mxu0 0.0
        %2171 = vmatprep.subr.mxu0 0.0
        %2172 = vmatpush2.msra.mxu0 0.0
        %2173 = vmatprep.subr.mxu0 0.0
        %2174 = vmatpush2.msra.mxu0 0.0
        %2175 = vmatprep.subr.mxu0 0.0
        %2176 = vmatpush2.msra.mxu0 0.0
        %2177 = vmatprep.subr.mxu0 0.0
        %2178 = vmatpush2.msra.mxu0 0.0
        %2179 = vmatprep.mubr.f32.mxu0 0.0
        %2180 = vmatmul.mubr.f32.gmra.mxu0 %v1683
        %v2181 = vpop.f32.mrf.mxu0
        %v2182 = vadd.f32 %v2112, %v2181
        %v2183 = vpop.f32.mrf.mxu0
        %2184 = vdwg.mxu0
        %v2185 = vmax.f32 %v2182, 0.0
        %s2186 = scalar_lea.vmem [#allocation3], 64
        %2187 = vst [vmem:[%s2186 + $0x2] sm:$0x7f] %v2185
        %v2188 = vld [vmem:[%s634] sm:$0x7f]
        %v2189 = vld [vmem:[%s634 + $0x1] sm:$0x7f]
        %v2190 = vld [vmem:[%s634 + $0x2] sm:$0x7f]
        %v2191 = vld [vmem:[%s646] sm:$0x7f]
        %v2192 = vld [vmem:[%s646 + $0x1] sm:$0x7f]
        %v2193 = vld [vmem:[%s646 + $0x2] sm:$0x7f]
        %s2194 = scalar_lea.vmem [#allocation2], 80
        %v2195 = vld [vmem:[%s2194] sm:$0x7f]
        %v2196 = vld [vmem:[%s2194 + $0x1] sm:$0x7f]
        %v2197 = vld [vmem:[%s2194 + $0x2] sm:$0x7f]
        %v2198 = vld [vmem:[%s3] sm:$0xff]
        %v2199 = vld [vmem:[%s3 + $0x8] sm:$0xff]
        %v2200 = vld [vmem:[%s3 + $0x10] sm:$0xff]
        %v2201 = vld [vmem:[%s3 + $0x18] sm:$0xff]
        %v2202 = vld [vmem:[%s3 + $0x20] sm:$0xff]
        %v2203 = vld [vmem:[%s3 + $0x28] sm:$0xff]
        %v2204 = vld [vmem:[%s3 + $0x30] sm:$0xff]
        %v2205 = vld [vmem:[%s3 + $0x38] sm:$0xff]
        %v2206 = vld [vmem:[%s3 + $0x40] sm:$0xff]
        %v2207 = vld [vmem:[%s3 + $0x48] sm:$0xff]
        %v2208 = vld [vmem:[%s3 + $0x50] sm:$0xff]
        %v2209 = vld [vmem:[%s3 + $0x58] sm:$0xff]
        %v2210 = vld [vmem:[%s3 + $0x60] sm:$0xff]
        %v2211 = vld [vmem:[%s3 + $0x68] sm:$0xff]
        %v2212 = vld [vmem:[%s3 + $0x70] sm:$0xff]
        %v2213 = vld [vmem:[%s3 + $0x78] sm:$0xff]
        %v2214 = vld [vmem:[%s3 + $0x80] sm:$0xff]
        %v2215 = vld [vmem:[%s3 + $0x88] sm:$0xff]
        %v2216 = vld [vmem:[%s3 + $0x90] sm:$0xff]
        %v2217 = vld [vmem:[%s3 + $0x98] sm:$0xff]
        %v2218 = vld [vmem:[%s3 + $0xa0] sm:$0xff]
        %v2219 = vld [vmem:[%s3 + $0xa8] sm:$0xff]
        %v2220 = vld [vmem:[%s3 + $0xb0] sm:$0xff]
        %v2221 = vld [vmem:[%s3 + $0xb8] sm:$0xff]
        %v2222 = vld [vmem:[%s3 + $0xc0] sm:$0xff]
        %v2223 = vld [vmem:[%s3 + $0xc8] sm:$0xff]
        %v2224 = vld [vmem:[%s3 + $0xd0] sm:$0xff]
        %v2225 = vld [vmem:[%s3 + $0xd8] sm:$0xff]
        %v2226 = vld [vmem:[%s3 + $0xe0] sm:$0xff]
        %v2227 = vld [vmem:[%s3 + $0xe8] sm:$0xff]
        %v2228 = vld [vmem:[%s3 + $0xf0] sm:$0xff]
        %v2229 = vld [vmem:[%s3 + $0xf8] sm:$0xff]
        %v2230 = vld [vmem:[%s3 + $0x100] sm:$0xff]
        %v2231 = vld [vmem:[%s3 + $0x108] sm:$0xff]
        %v2232 = vld [vmem:[%s3 + $0x110] sm:$0xff]
        %v2233 = vld [vmem:[%s3 + $0x118] sm:$0xff]
        %v2234 = vld [vmem:[%s3 + $0x120] sm:$0xff]
        %v2235 = vld [vmem:[%s3 + $0x128] sm:$0xff]
        %v2236 = vld [vmem:[%s3 + $0x130] sm:$0xff]
        %v2237 = vld [vmem:[%s3 + $0x138] sm:$0xff]
        %v2238 = vld [vmem:[%s3 + $0x140] sm:$0xff]
        %v2239 = vld [vmem:[%s3 + $0x148] sm:$0xff]
        %v2240 = vld [vmem:[%s3 + $0x150] sm:$0xff]
        %v2241 = vld [vmem:[%s3 + $0x158] sm:$0xff]
        %v2242 = vld [vmem:[%s3 + $0x160] sm:$0xff]
        %v2243 = vld [vmem:[%s3 + $0x168] sm:$0xff]
        %v2244 = vld [vmem:[%s3 + $0x170] sm:$0xff]
        %v2245 = vld [vmem:[%s3 + $0x178] sm:$0xff]
        %v2246 = vld [vmem:[%s3 + $0x180] sm:$0xff]
        %v2247 = vld [vmem:[%s3 + $0x188] sm:$0xff]
        %v2248 = vld [vmem:[%s3 + $0x190] sm:$0xff]
        %v2249 = vld [vmem:[%s3 + $0x198] sm:$0xff]
        %v2250 = vld [vmem:[%s3 + $0x1a0] sm:$0xff]
        %v2251 = vld [vmem:[%s3 + $0x1a8] sm:$0xff]
        %v2252 = vld [vmem:[%s3 + $0x1b0] sm:$0xff]
        %v2253 = vld [vmem:[%s3 + $0x1b8] sm:$0xff]
        %v2254 = vld [vmem:[%s3 + $0x1c0] sm:$0xff]
        %v2255 = vld [vmem:[%s3 + $0x1c8] sm:$0xff]
        %v2256 = vld [vmem:[%s3 + $0x1d0] sm:$0xff]
        %v2257 = vld [vmem:[%s3 + $0x1d8] sm:$0xff]
        %v2258 = vld [vmem:[%s3 + $0x1e0] sm:$0xff]
        %v2259 = vld [vmem:[%s3 + $0x1e8] sm:$0xff]
        %v2260 = vld [vmem:[%s3 + $0x1f0] sm:$0xff]
        %v2261 = vld [vmem:[%s3 + $0x1f8] sm:$0xff]
        %v2262 = vld [vmem:[%s3 + $0x200] sm:$0xff]
        %v2263 = vld [vmem:[%s3 + $0x208] sm:$0xff]
        %v2264 = vld [vmem:[%s3 + $0x210] sm:$0xff]
        %v2265 = vld [vmem:[%s3 + $0x218] sm:$0xff]
        %v2266 = vld [vmem:[%s3 + $0x220] sm:$0xff]
        %v2267 = vld [vmem:[%s3 + $0x228] sm:$0xff]
        %v2268 = vld [vmem:[%s3 + $0x230] sm:$0xff]
        %v2269 = vld [vmem:[%s3 + $0x238] sm:$0xff]
        %v2270 = vld [vmem:[%s3 + $0x240] sm:$0xff]
        %v2271 = vld [vmem:[%s3 + $0x248] sm:$0xff]
        %v2272 = vld [vmem:[%s3 + $0x250] sm:$0xff]
        %v2273 = vld [vmem:[%s3 + $0x258] sm:$0xff]
        %v2274 = vld [vmem:[%s3 + $0x260] sm:$0xff]
        %v2275 = vld [vmem:[%s3 + $0x268] sm:$0xff]
        %v2276 = vld [vmem:[%s3 + $0x270] sm:$0xff]
        %v2277 = vld [vmem:[%s3 + $0x278] sm:$0xff]
        %v2278 = vld [vmem:[%s3 + $0x280] sm:$0xff]
        %v2279 = vld [vmem:[%s3 + $0x288] sm:$0xff]
        %v2280 = vld [vmem:[%s3 + $0x290] sm:$0xff]
        %v2281 = vld [vmem:[%s3 + $0x298] sm:$0xff]
        %v2282 = vld [vmem:[%s3 + $0x2a0] sm:$0xff]
        %v2283 = vld [vmem:[%s3 + $0x2a8] sm:$0xff]
        %v2284 = vld [vmem:[%s3 + $0x2b0] sm:$0xff]
        %v2285 = vld [vmem:[%s3 + $0x2b8] sm:$0xff]
        %v2286 = vld [vmem:[%s3 + $0x2c0] sm:$0xff]
        %v2287 = vld [vmem:[%s3 + $0x2c8] sm:$0xff]
        %v2288 = vld [vmem:[%s3 + $0x2d0] sm:$0xff]
        %v2289 = vld [vmem:[%s3 + $0x2d8] sm:$0xff]
        %v2290 = vld [vmem:[%s3 + $0x2e0] sm:$0xff]
        %v2291 = vld [vmem:[%s3 + $0x2e8] sm:$0xff]
        %v2292 = vld [vmem:[%s3 + $0x2f0] sm:$0xff]
        %v2293 = vld [vmem:[%s3 + $0x2f8] sm:$0xff]
        %v2294 = vld [vmem:[%s3 + $0x300] sm:$0xff]
        %v2295 = vld [vmem:[%s3 + $0x308] sm:$0xff]
        %v2296 = vld [vmem:[%s3 + $0x310] sm:$0xff]
        %v2297 = vld [vmem:[%s3 + $0x318] sm:$0xff]
        %v2298 = vld [vmem:[%s3 + $0x320] sm:$0xff]
        %v2299 = vld [vmem:[%s3 + $0x328] sm:$0xff]
        %v2300 = vld [vmem:[%s3 + $0x330] sm:$0xff]
        %v2301 = vld [vmem:[%s3 + $0x338] sm:$0xff]
        %v2302 = vld [vmem:[%s3 + $0x340] sm:$0xff]
        %v2303 = vld [vmem:[%s3 + $0x348] sm:$0xff]
        %v2304 = vld [vmem:[%s3 + $0x350] sm:$0xff]
        %v2305 = vld [vmem:[%s3 + $0x358] sm:$0xff]
        %v2306 = vld [vmem:[%s3 + $0x360] sm:$0xff]
        %v2307 = vld [vmem:[%s3 + $0x368] sm:$0xff]
        %v2308 = vld [vmem:[%s3 + $0x370] sm:$0xff]
        %v2309 = vld [vmem:[%s3 + $0x378] sm:$0xff]
        %v2310 = vld [vmem:[%s3 + $0x380] sm:$0xff]
        %v2311 = vld [vmem:[%s3 + $0x388] sm:$0xff]
        %v2312 = vld [vmem:[%s3 + $0x390] sm:$0xff]
        %v2313 = vld [vmem:[%s3 + $0x398] sm:$0xff]
        %v2314 = vld [vmem:[%s3 + $0x3a0] sm:$0xff]
        %v2315 = vld [vmem:[%s3 + $0x3a8] sm:$0xff]
        %v2316 = vld [vmem:[%s3 + $0x3b0] sm:$0xff]
        %v2317 = vld [vmem:[%s3 + $0x3b8] sm:$0xff]
        %v2318 = vld [vmem:[%s3 + $0x3c0] sm:$0xff]
        %v2319 = vld [vmem:[%s3 + $0x3c8] sm:$0xff]
        %v2320 = vld [vmem:[%s3 + $0x3d0] sm:$0xff]
        %v2321 = vld [vmem:[%s3 + $0x3d8] sm:$0xff]
        %v2322 = vld [vmem:[%s3 + $0x3e0] sm:$0xff]
        %v2323 = vld [vmem:[%s3 + $0x3e8] sm:$0xff]
        %v2324 = vld [vmem:[%s3 + $0x3f0] sm:$0xff]
        %v2325 = vld [vmem:[%s3 + $0x3f8] sm:$0xff]
        %v2326 = vld [vmem:[%s3 + $0x400] sm:$0xff]
        %v2327 = vld [vmem:[%s3 + $0x408] sm:$0xff]
        %v2328 = vld [vmem:[%s3 + $0x410] sm:$0xff]
        %v2329 = vld [vmem:[%s3 + $0x418] sm:$0xff]
        %v2330 = vld [vmem:[%s3 + $0x420] sm:$0xff]
        %v2331 = vld [vmem:[%s3 + $0x428] sm:$0xff]
        %v2332 = vld [vmem:[%s3 + $0x430] sm:$0xff]
        %v2333 = vld [vmem:[%s3 + $0x438] sm:$0xff]
        %v2334 = vld [vmem:[%s3 + $0x440] sm:$0xff]
        %v2335 = vld [vmem:[%s3 + $0x448] sm:$0xff]
        %v2336 = vld [vmem:[%s3 + $0x450] sm:$0xff]
        %v2337 = vld [vmem:[%s3 + $0x458] sm:$0xff]
        %v2338 = vld [vmem:[%s3 + $0x460] sm:$0xff]
        %v2339 = vld [vmem:[%s3 + $0x468] sm:$0xff]
        %v2340 = vld [vmem:[%s3 + $0x470] sm:$0xff]
        %v2341 = vld [vmem:[%s3 + $0x478] sm:$0xff]
        %v2342 = vld [vmem:[%s4] sm:$0x1]
        %v2344 = vlaneseq
        %v2345 = vshrl.u32 %v2344, 7
        %v2346 = vsub.s32 0, %v2345
        %v2347 = vrot.slane %v2342, %v2346
        %2349 = vmatprep.subr.mxu0 0.0
        %2350 = vmatpush1.msra.mxu0 %v2213
        %2351 = vmatprep.subr.mxu0 0.0
        %2352 = vmatpush1.msra.mxu0 %v2212
        %2353 = vmatprep.subr.mxu0 0.0
        %2354 = vmatpush1.msra.mxu0 %v2211
        %2355 = vmatprep.subr.mxu0 0.0
        %2356 = vmatpush1.msra.mxu0 %v2210
        %2357 = vmatprep.subr.mxu0 0.0
        %2358 = vmatpush1.msra.mxu0 %v2209
        %2359 = vmatprep.subr.mxu0 0.0
        %2360 = vmatpush1.msra.mxu0 %v2208
        %2361 = vmatprep.subr.mxu0 0.0
        %2362 = vmatpush1.msra.mxu0 %v2207
        %2363 = vmatprep.subr.mxu0 0.0
        %2364 = vmatpush1.msra.mxu0 %v2206
        %2365 = vmatprep.subr.mxu0 0.0
        %2366 = vmatpush1.msra.mxu0 %v2205
        %2367 = vmatprep.subr.mxu0 0.0
        %2368 = vmatpush1.msra.mxu0 %v2204
        %2369 = vmatprep.subr.mxu0 0.0
        %2370 = vmatpush1.msra.mxu0 %v2203
        %2371 = vmatprep.subr.mxu0 0.0
        %2372 = vmatpush1.msra.mxu0 %v2202
        %2373 = vmatprep.subr.mxu0 0.0
        %2374 = vmatpush1.msra.mxu0 %v2201
        %2375 = vmatprep.subr.mxu0 0.0
        %2376 = vmatpush1.msra.mxu0 %v2200
        %2377 = vmatprep.subr.mxu0 0.0
        %2378 = vmatpush1.msra.mxu0 %v2199
        %2379 = vmatprep.subr.mxu0 0.0
        %2380 = vmatpush1.msra.mxu0 %v2198
        %2381 = vmatprep.subr.mxu0 0.0
        %2382 = vmatpush2.msra.mxu0 %v2229
        %2383 = vmatprep.subr.mxu0 0.0
        %2384 = vmatpush2.msra.mxu0 %v2228
        %2385 = vmatprep.subr.mxu0 0.0
        %2386 = vmatpush2.msra.mxu0 %v2227
        %2387 = vmatprep.subr.mxu0 0.0
        %2388 = vmatpush2.msra.mxu0 %v2226
        %2389 = vmatprep.subr.mxu0 0.0
        %2390 = vmatpush2.msra.mxu0 %v2225
        %2391 = vmatprep.subr.mxu0 0.0
        %2392 = vmatpush2.msra.mxu0 %v2224
        %2393 = vmatprep.subr.mxu0 0.0
        %2394 = vmatpush2.msra.mxu0 %v2223
        %2395 = vmatprep.subr.mxu0 0.0
        %2396 = vmatpush2.msra.mxu0 %v2222
        %2397 = vmatprep.subr.mxu0 0.0
        %2398 = vmatpush2.msra.mxu0 %v2221
        %2399 = vmatprep.subr.mxu0 0.0
        %2400 = vmatpush2.msra.mxu0 %v2220
        %2401 = vmatprep.subr.mxu0 0.0
        %2402 = vmatpush2.msra.mxu0 %v2219
        %2403 = vmatprep.subr.mxu0 0.0
        %2404 = vmatpush2.msra.mxu0 %v2218
        %2405 = vmatprep.subr.mxu0 0.0
        %2406 = vmatpush2.msra.mxu0 %v2217
        %2407 = vmatprep.subr.mxu0 0.0
        %2408 = vmatpush2.msra.mxu0 %v2216
        %2409 = vmatprep.subr.mxu0 0.0
        %2410 = vmatpush2.msra.mxu0 %v2215
        %2411 = vmatprep.subr.mxu0 0.0
        %2412 = vmatpush2.msra.mxu0 %v2214
        %2413 = vmatprep.mubr.f32.mxu0 %v2189
        %2414 = vmatmul.mubr.f32.gmra.mxu0 %v2188
        %v2415 = vpop.f32.mrf.mxu0
        %v2416 = vadd.f32 %v2347, %v2415
        %v2417 = vpop.f32.mrf.mxu0
        %2418 = vdwg.mxu0
        %2419 = vmatprep.subr.mxu0 0.0
        %2420 = vmatpush1.msra.mxu0 %v2245
        %2421 = vmatprep.subr.mxu0 0.0
        %2422 = vmatpush1.msra.mxu0 %v2244
        %2423 = vmatprep.subr.mxu0 0.0
        %2424 = vmatpush1.msra.mxu0 %v2243
        %2425 = vmatprep.subr.mxu0 0.0
        %2426 = vmatpush1.msra.mxu0 %v2242
        %2427 = vmatprep.subr.mxu0 0.0
        %2428 = vmatpush1.msra.mxu0 %v2241
        %2429 = vmatprep.subr.mxu0 0.0
        %2430 = vmatpush1.msra.mxu0 %v2240
        %2431 = vmatprep.subr.mxu0 0.0
        %2432 = vmatpush1.msra.mxu0 %v2239
        %2433 = vmatprep.subr.mxu0 0.0
        %2434 = vmatpush1.msra.mxu0 %v2238
        %2435 = vmatprep.subr.mxu0 0.0
        %2436 = vmatpush1.msra.mxu0 %v2237
        %2437 = vmatprep.subr.mxu0 0.0
        %2438 = vmatpush1.msra.mxu0 %v2236
        %2439 = vmatprep.subr.mxu0 0.0
        %2440 = vmatpush1.msra.mxu0 %v2235
        %2441 = vmatprep.subr.mxu0 0.0
        %2442 = vmatpush1.msra.mxu0 %v2234
        %2443 = vmatprep.subr.mxu0 0.0
        %2444 = vmatpush1.msra.mxu0 %v2233
        %2445 = vmatprep.subr.mxu0 0.0
        %2446 = vmatpush1.msra.mxu0 %v2232
        %2447 = vmatprep.subr.mxu0 0.0
        %2448 = vmatpush1.msra.mxu0 %v2231
        %2449 = vmatprep.subr.mxu0 0.0
        %2450 = vmatpush1.msra.mxu0 %v2230
        %2451 = vmatprep.subr.mxu0 0.0
        %2452 = vmatpush2.msra.mxu0 %v2261
        %2453 = vmatprep.subr.mxu0 0.0
        %2454 = vmatpush2.msra.mxu0 %v2260
        %2455 = vmatprep.subr.mxu0 0.0
        %2456 = vmatpush2.msra.mxu0 %v2259
        %2457 = vmatprep.subr.mxu0 0.0
        %2458 = vmatpush2.msra.mxu0 %v2258
        %2459 = vmatprep.subr.mxu0 0.0
        %2460 = vmatpush2.msra.mxu0 %v2257
        %2461 = vmatprep.subr.mxu0 0.0
        %2462 = vmatpush2.msra.mxu0 %v2256
        %2463 = vmatprep.subr.mxu0 0.0
        %2464 = vmatpush2.msra.mxu0 %v2255
        %2465 = vmatprep.subr.mxu0 0.0
        %2466 = vmatpush2.msra.mxu0 %v2254
        %2467 = vmatprep.subr.mxu0 0.0
        %2468 = vmatpush2.msra.mxu0 %v2253
        %2469 = vmatprep.subr.mxu0 0.0
        %2470 = vmatpush2.msra.mxu0 %v2252
        %2471 = vmatprep.subr.mxu0 0.0
        %2472 = vmatpush2.msra.mxu0 %v2251
        %2473 = vmatprep.subr.mxu0 0.0
        %2474 = vmatpush2.msra.mxu0 %v2250
        %2475 = vmatprep.subr.mxu0 0.0
        %2476 = vmatpush2.msra.mxu0 %v2249
        %2477 = vmatprep.subr.mxu0 0.0
        %2478 = vmatpush2.msra.mxu0 %v2248
        %2479 = vmatprep.subr.mxu0 0.0
        %2480 = vmatpush2.msra.mxu0 %v2247
        %2481 = vmatprep.subr.mxu0 0.0
        %2482 = vmatpush2.msra.mxu0 %v2246
        %2483 = vmatprep.mubr.f32.mxu0 %v2191
        %2484 = vmatmul.mubr.f32.gmra.mxu0 %v2190
        %v2485 = vpop.f32.mrf.mxu0
        %v2486 = vadd.f32 %v2416, %v2485
        %v2487 = vpop.f32.mrf.mxu0
        %2488 = vdwg.mxu0
        %2489 = vmatprep.subr.mxu0 0.0
        %2490 = vmatpush1.msra.mxu0 %v2277
        %2491 = vmatprep.subr.mxu0 0.0
        %2492 = vmatpush1.msra.mxu0 %v2276
        %2493 = vmatprep.subr.mxu0 0.0
        %2494 = vmatpush1.msra.mxu0 %v2275
        %2495 = vmatprep.subr.mxu0 0.0
        %2496 = vmatpush1.msra.mxu0 %v2274
        %2497 = vmatprep.subr.mxu0 0.0
        %2498 = vmatpush1.msra.mxu0 %v2273
        %2499 = vmatprep.subr.mxu0 0.0
        %2500 = vmatpush1.msra.mxu0 %v2272
        %2501 = vmatprep.subr.mxu0 0.0
        %2502 = vmatpush1.msra.mxu0 %v2271
        %2503 = vmatprep.subr.mxu0 0.0
        %2504 = vmatpush1.msra.mxu0 %v2270
        %2505 = vmatprep.subr.mxu0 0.0
        %2506 = vmatpush1.msra.mxu0 %v2269
        %2507 = vmatprep.subr.mxu0 0.0
        %2508 = vmatpush1.msra.mxu0 %v2268
        %2509 = vmatprep.subr.mxu0 0.0
        %2510 = vmatpush1.msra.mxu0 %v2267
        %2511 = vmatprep.subr.mxu0 0.0
        %2512 = vmatpush1.msra.mxu0 %v2266
        %2513 = vmatprep.subr.mxu0 0.0
        %2514 = vmatpush1.msra.mxu0 %v2265
        %2515 = vmatprep.subr.mxu0 0.0
        %2516 = vmatpush1.msra.mxu0 %v2264
        %2517 = vmatprep.subr.mxu0 0.0
        %2518 = vmatpush1.msra.mxu0 %v2263
        %2519 = vmatprep.subr.mxu0 0.0
        %2520 = vmatpush1.msra.mxu0 %v2262
        %2521 = vmatprep.subr.mxu0 0.0
        %2522 = vmatpush2.msra.mxu0 %v2293
        %2523 = vmatprep.subr.mxu0 0.0
        %2524 = vmatpush2.msra.mxu0 %v2292
        %2525 = vmatprep.subr.mxu0 0.0
        %2526 = vmatpush2.msra.mxu0 %v2291
        %2527 = vmatprep.subr.mxu0 0.0
        %2528 = vmatpush2.msra.mxu0 %v2290
        %2529 = vmatprep.subr.mxu0 0.0
        %2530 = vmatpush2.msra.mxu0 %v2289
        %2531 = vmatprep.subr.mxu0 0.0
        %2532 = vmatpush2.msra.mxu0 %v2288
        %2533 = vmatprep.subr.mxu0 0.0
        %2534 = vmatpush2.msra.mxu0 %v2287
        %2535 = vmatprep.subr.mxu0 0.0
        %2536 = vmatpush2.msra.mxu0 %v2286
        %2537 = vmatprep.subr.mxu0 0.0
        %2538 = vmatpush2.msra.mxu0 %v2285
        %2539 = vmatprep.subr.mxu0 0.0
        %2540 = vmatpush2.msra.mxu0 %v2284
        %2541 = vmatprep.subr.mxu0 0.0
        %2542 = vmatpush2.msra.mxu0 %v2283
        %2543 = vmatprep.subr.mxu0 0.0
        %2544 = vmatpush2.msra.mxu0 %v2282
        %2545 = vmatprep.subr.mxu0 0.0
        %2546 = vmatpush2.msra.mxu0 %v2281
        %2547 = vmatprep.subr.mxu0 0.0
        %2548 = vmatpush2.msra.mxu0 %v2280
        %2549 = vmatprep.subr.mxu0 0.0
        %2550 = vmatpush2.msra.mxu0 %v2279
        %2551 = vmatprep.subr.mxu0 0.0
        %2552 = vmatpush2.msra.mxu0 %v2278
        %2553 = vmatprep.mubr.f32.mxu0 %v2193
        %2554 = vmatmul.mubr.f32.gmra.mxu0 %v2192
        %v2555 = vpop.f32.mrf.mxu0
        %v2556 = vadd.f32 %v2486, %v2555
        %v2557 = vpop.f32.mrf.mxu0
        %2558 = vdwg.mxu0
        %2559 = vmatprep.subr.mxu0 0.0
        %2560 = vmatpush1.msra.mxu0 %v2309
        %2561 = vmatprep.subr.mxu0 0.0
        %2562 = vmatpush1.msra.mxu0 %v2308
        %2563 = vmatprep.subr.mxu0 0.0
        %2564 = vmatpush1.msra.mxu0 %v2307
        %2565 = vmatprep.subr.mxu0 0.0
        %2566 = vmatpush1.msra.mxu0 %v2306
        %2567 = vmatprep.subr.mxu0 0.0
        %2568 = vmatpush1.msra.mxu0 %v2305
        %2569 = vmatprep.subr.mxu0 0.0
        %2570 = vmatpush1.msra.mxu0 %v2304
        %2571 = vmatprep.subr.mxu0 0.0
        %2572 = vmatpush1.msra.mxu0 %v2303
        %2573 = vmatprep.subr.mxu0 0.0
        %2574 = vmatpush1.msra.mxu0 %v2302
        %2575 = vmatprep.subr.mxu0 0.0
        %2576 = vmatpush1.msra.mxu0 %v2301
        %2577 = vmatprep.subr.mxu0 0.0
        %2578 = vmatpush1.msra.mxu0 %v2300
        %2579 = vmatprep.subr.mxu0 0.0
        %2580 = vmatpush1.msra.mxu0 %v2299
        %2581 = vmatprep.subr.mxu0 0.0
        %2582 = vmatpush1.msra.mxu0 %v2298
        %2583 = vmatprep.subr.mxu0 0.0
        %2584 = vmatpush1.msra.mxu0 %v2297
        %2585 = vmatprep.subr.mxu0 0.0
        %2586 = vmatpush1.msra.mxu0 %v2296
        %2587 = vmatprep.subr.mxu0 0.0
        %2588 = vmatpush1.msra.mxu0 %v2295
        %2589 = vmatprep.subr.mxu0 0.0
        %2590 = vmatpush1.msra.mxu0 %v2294
        %2591 = vmatprep.subr.mxu0 0.0
        %2592 = vmatpush2.msra.mxu0 %v2325
        %2593 = vmatprep.subr.mxu0 0.0
        %2594 = vmatpush2.msra.mxu0 %v2324
        %2595 = vmatprep.subr.mxu0 0.0
        %2596 = vmatpush2.msra.mxu0 %v2323
        %2597 = vmatprep.subr.mxu0 0.0
        %2598 = vmatpush2.msra.mxu0 %v2322
        %2599 = vmatprep.subr.mxu0 0.0
        %2600 = vmatpush2.msra.mxu0 %v2321
        %2601 = vmatprep.subr.mxu0 0.0
        %2602 = vmatpush2.msra.mxu0 %v2320
        %2603 = vmatprep.subr.mxu0 0.0
        %2604 = vmatpush2.msra.mxu0 %v2319
        %2605 = vmatprep.subr.mxu0 0.0
        %2606 = vmatpush2.msra.mxu0 %v2318
        %2607 = vmatprep.subr.mxu0 0.0
        %2608 = vmatpush2.msra.mxu0 %v2317
        %2609 = vmatprep.subr.mxu0 0.0
        %2610 = vmatpush2.msra.mxu0 %v2316
        %2611 = vmatprep.subr.mxu0 0.0
        %2612 = vmatpush2.msra.mxu0 %v2315
        %2613 = vmatprep.subr.mxu0 0.0
        %2614 = vmatpush2.msra.mxu0 %v2314
        %2615 = vmatprep.subr.mxu0 0.0
        %2616 = vmatpush2.msra.mxu0 %v2313
        %2617 = vmatprep.subr.mxu0 0.0
        %2618 = vmatpush2.msra.mxu0 %v2312
        %2619 = vmatprep.subr.mxu0 0.0
        %2620 = vmatpush2.msra.mxu0 %v2311
        %2621 = vmatprep.subr.mxu0 0.0
        %2622 = vmatpush2.msra.mxu0 %v2310
        %2623 = vmatprep.mubr.f32.mxu0 %v2196
        %2624 = vmatmul.mubr.f32.gmra.mxu0 %v2195
        %v2625 = vpop.f32.mrf.mxu0
        %v2626 = vadd.f32 %v2556, %v2625
        %v2627 = vpop.f32.mrf.mxu0
        %2628 = vdwg.mxu0
        %2629 = vmatprep.subr.mxu0 0.0
        %2630 = vmatpush1.msra.mxu0 %v2341
        %2631 = vmatprep.subr.mxu0 0.0
        %2632 = vmatpush1.msra.mxu0 %v2340
        %2633 = vmatprep.subr.mxu0 0.0
        %2634 = vmatpush1.msra.mxu0 %v2339
        %2635 = vmatprep.subr.mxu0 0.0
        %2636 = vmatpush1.msra.mxu0 %v2338
        %2637 = vmatprep.subr.mxu0 0.0
        %2638 = vmatpush1.msra.mxu0 %v2337
        %2639 = vmatprep.subr.mxu0 0.0
        %2640 = vmatpush1.msra.mxu0 %v2336
        %2641 = vmatprep.subr.mxu0 0.0
        %2642 = vmatpush1.msra.mxu0 %v2335
        %2643 = vmatprep.subr.mxu0 0.0
        %2644 = vmatpush1.msra.mxu0 %v2334
        %2645 = vmatprep.subr.mxu0 0.0
        %2646 = vmatpush1.msra.mxu0 %v2333
        %2647 = vmatprep.subr.mxu0 0.0
        %2648 = vmatpush1.msra.mxu0 %v2332
        %2649 = vmatprep.subr.mxu0 0.0
        %2650 = vmatpush1.msra.mxu0 %v2331
        %2651 = vmatprep.subr.mxu0 0.0
        %2652 = vmatpush1.msra.mxu0 %v2330
        %2653 = vmatprep.subr.mxu0 0.0
        %2654 = vmatpush1.msra.mxu0 %v2329
        %2655 = vmatprep.subr.mxu0 0.0
        %2656 = vmatpush1.msra.mxu0 %v2328
        %2657 = vmatprep.subr.mxu0 0.0
        %2658 = vmatpush1.msra.mxu0 %v2327
        %2659 = vmatprep.subr.mxu0 0.0
        %2660 = vmatpush1.msra.mxu0 %v2326
        %2661 = vmatprep.subr.mxu0 0.0
        %2662 = vmatpush2.msra.mxu0 0.0
        %2663 = vmatprep.subr.mxu0 0.0
        %2664 = vmatpush2.msra.mxu0 0.0
        %2665 = vmatprep.subr.mxu0 0.0
        %2666 = vmatpush2.msra.mxu0 0.0
        %2667 = vmatprep.subr.mxu0 0.0
        %2668 = vmatpush2.msra.mxu0 0.0
        %2669 = vmatprep.subr.mxu0 0.0
        %2670 = vmatpush2.msra.mxu0 0.0
        %2671 = vmatprep.subr.mxu0 0.0
        %2672 = vmatpush2.msra.mxu0 0.0
        %2673 = vmatprep.subr.mxu0 0.0
        %2674 = vmatpush2.msra.mxu0 0.0
        %2675 = vmatprep.subr.mxu0 0.0
        %2676 = vmatpush2.msra.mxu0 0.0
        %2677 = vmatprep.subr.mxu0 0.0
        %2678 = vmatpush2.msra.mxu0 0.0
        %2679 = vmatprep.subr.mxu0 0.0
        %2680 = vmatpush2.msra.mxu0 0.0
        %2681 = vmatprep.subr.mxu0 0.0
        %2682 = vmatpush2.msra.mxu0 0.0
        %2683 = vmatprep.subr.mxu0 0.0
        %2684 = vmatpush2.msra.mxu0 0.0
        %2685 = vmatprep.subr.mxu0 0.0
        %2686 = vmatpush2.msra.mxu0 0.0
        %2687 = vmatprep.subr.mxu0 0.0
        %2688 = vmatpush2.msra.mxu0 0.0
        %2689 = vmatprep.subr.mxu0 0.0
        %2690 = vmatpush2.msra.mxu0 0.0
        %2691 = vmatprep.subr.mxu0 0.0
        %2692 = vmatpush2.msra.mxu0 0.0
        %2693 = vmatprep.mubr.f32.mxu0 0.0
        %2694 = vmatmul.mubr.f32.gmra.mxu0 %v2197
        %v2695 = vpop.f32.mrf.mxu0
        %v2696 = vadd.f32 %v2626, %v2695
        %v2697 = vpop.f32.mrf.mxu0
        %2698 = vdwg.mxu0
        %v2699 = vmax.f32 %v2696, 0.0
        %s2700 = scalar_lea.vmem [#allocation3], 80
        %2701 = vst [vmem:[%s2700 + $0x2] sm:$0x7f] %v2699
        %v2702 = vld [vmem:[#allocation3] sm:$0x7f]
        %v2703 = vld [vmem:[#allocation3 + $0x1] sm:$0x7f]
        %v2704 = vld [vmem:[#allocation3 + $0x2] sm:$0x7f]
        %v2705 = vld [vmem:[#allocation3 + $0x3] sm:$0x7f]
        %v2706 = vld [vmem:[#allocation3 + $0x4] sm:$0x7f]
        %s2707 = scalar_lea.vmem [#allocation3], 16
        %v2708 = vld [vmem:[%s2707] sm:$0x7f]
        %v2709 = vld [vmem:[%s2707 + $0x1] sm:$0x7f]
        %v2710 = vld [vmem:[%s2707 + $0x2] sm:$0x7f]
        %v2711 = vld [vmem:[%s2707 + $0x3] sm:$0x7f]
        %v2712 = vld [vmem:[%s2707 + $0x4] sm:$0x7f]
        %v2713 = vld [vmem:[%s1160] sm:$0x7f]
        %v2714 = vld [vmem:[%s1160 + $0x1] sm:$0x7f]
        %v2715 = vld [vmem:[%s1160 + $0x2] sm:$0x7f]
        %v2716 = vld [vmem:[%s1160 + $0x3] sm:$0x7f]
        %v2717 = vld [vmem:[%s1160 + $0x4] sm:$0x7f]
        %v2718 = vld [vmem:[%s1673] sm:$0x7f]
        %v2719 = vld [vmem:[%s1673 + $0x1] sm:$0x7f]
        %v2720 = vld [vmem:[%s1673 + $0x2] sm:$0x7f]
        %v2721 = vld [vmem:[%s1673 + $0x3] sm:$0x7f]
        %v2722 = vld [vmem:[%s1673 + $0x4] sm:$0x7f]
        %v2723 = vld [vmem:[%s2186] sm:$0x7f]
        %v2724 = vld [vmem:[%s2186 + $0x1] sm:$0x7f]
        %v2725 = vld [vmem:[%s2186 + $0x2] sm:$0x7f]
        %v2726 = vld [vmem:[%s2186 + $0x3] sm:$0x7f]
        %v2727 = vld [vmem:[%s2186 + $0x4] sm:$0x7f]
        %v2728 = vld [vmem:[%s5] sm:$0xff]
        %v2729 = vld [vmem:[%s5 + $0x8] sm:$0xff]
        %v2730 = vld [vmem:[%s5 + $0x10] sm:$0xff]
        %v2731 = vld [vmem:[%s5 + $0x18] sm:$0xff]
        %v2732 = vld [vmem:[%s5 + $0x20] sm:$0xff]
        %v2733 = vld [vmem:[%s5 + $0x28] sm:$0xff]
        %v2734 = vld [vmem:[%s5 + $0x30] sm:$0xff]
        %v2735 = vld [vmem:[%s5 + $0x38] sm:$0xff]
        %v2736 = vld [vmem:[%s5 + $0x40] sm:$0xff]
        %v2737 = vld [vmem:[%s5 + $0x48] sm:$0xff]
        %v2738 = vld [vmem:[%s5 + $0x50] sm:$0xff]
        %v2739 = vld [vmem:[%s5 + $0x58] sm:$0xff]
        %v2740 = vld [vmem:[%s5 + $0x60] sm:$0xff]
        %v2741 = vld [vmem:[%s5 + $0x68] sm:$0xff]
        %v2742 = vld [vmem:[%s5 + $0x70] sm:$0xff]
        %v2743 = vld [vmem:[%s5 + $0x78] sm:$0xff]
        %v2744 = vld [vmem:[%s5 + $0x80] sm:$0xff]
        %v2745 = vld [vmem:[%s5 + $0x88] sm:$0xff]
        %v2746 = vld [vmem:[%s5 + $0x90] sm:$0xff]
        %v2747 = vld [vmem:[%s5 + $0x98] sm:$0xff]
        %v2748 = vld [vmem:[%s5 + $0xa0] sm:$0xff]
        %v2749 = vld [vmem:[%s5 + $0xa8] sm:$0xff]
        %v2750 = vld [vmem:[%s5 + $0xb0] sm:$0xff]
        %v2751 = vld [vmem:[%s5 + $0xb8] sm:$0xff]
        %v2752 = vld [vmem:[%s5 + $0xc0] sm:$0xff]
        %v2753 = vld [vmem:[%s5 + $0xc8] sm:$0xff]
        %v2754 = vld [vmem:[%s5 + $0xd0] sm:$0xff]
        %v2755 = vld [vmem:[%s5 + $0xd8] sm:$0xff]
        %v2756 = vld [vmem:[%s5 + $0xe0] sm:$0xff]
        %v2757 = vld [vmem:[%s5 + $0xe8] sm:$0xff]
        %v2758 = vld [vmem:[%s5 + $0xf0] sm:$0xff]
        %v2759 = vld [vmem:[%s5 + $0xf8] sm:$0xff]
        %v2760 = vld [vmem:[%s5 + $0x100] sm:$0xff]
        %v2761 = vld [vmem:[%s5 + $0x108] sm:$0xff]
        %v2762 = vld [vmem:[%s5 + $0x110] sm:$0xff]
        %v2763 = vld [vmem:[%s5 + $0x118] sm:$0xff]
        %v2764 = vld [vmem:[%s5 + $0x120] sm:$0xff]
        %v2765 = vld [vmem:[%s5 + $0x128] sm:$0xff]
        %v2766 = vld [vmem:[%s5 + $0x130] sm:$0xff]
        %v2767 = vld [vmem:[%s5 + $0x138] sm:$0xff]
        %v2768 = vld [vmem:[%s5 + $0x140] sm:$0xff]
        %v2769 = vld [vmem:[%s5 + $0x148] sm:$0xff]
        %v2770 = vld [vmem:[%s5 + $0x150] sm:$0xff]
        %v2771 = vld [vmem:[%s5 + $0x158] sm:$0xff]
        %v2772 = vld [vmem:[%s5 + $0x160] sm:$0xff]
        %v2773 = vld [vmem:[%s5 + $0x168] sm:$0xff]
        %v2774 = vld [vmem:[%s5 + $0x170] sm:$0xff]
        %v2775 = vld [vmem:[%s5 + $0x178] sm:$0xff]
        %v2776 = vld [vmem:[%s5 + $0x180] sm:$0xff]
        %v2777 = vld [vmem:[%s5 + $0x188] sm:$0xff]
        %v2778 = vld [vmem:[%s5 + $0x190] sm:$0xff]
        %v2779 = vld [vmem:[%s5 + $0x198] sm:$0xff]
        %v2780 = vld [vmem:[%s5 + $0x1a0] sm:$0xff]
        %v2781 = vld [vmem:[%s5 + $0x1a8] sm:$0xff]
        %v2782 = vld [vmem:[%s5 + $0x1b0] sm:$0xff]
        %v2783 = vld [vmem:[%s5 + $0x1b8] sm:$0xff]
        %v2784 = vld [vmem:[%s5 + $0x1c0] sm:$0xff]
        %v2785 = vld [vmem:[%s5 + $0x1c8] sm:$0xff]
        %v2786 = vld [vmem:[%s5 + $0x1d0] sm:$0xff]
        %v2787 = vld [vmem:[%s5 + $0x1d8] sm:$0xff]
        %v2788 = vld [vmem:[%s5 + $0x1e0] sm:$0xff]
        %v2789 = vld [vmem:[%s5 + $0x1e8] sm:$0xff]
        %v2790 = vld [vmem:[%s5 + $0x1f0] sm:$0xff]
        %v2791 = vld [vmem:[%s5 + $0x1f8] sm:$0xff]
        %v2792 = vld [vmem:[%s5 + $0x200] sm:$0xff]
        %v2793 = vld [vmem:[%s5 + $0x208] sm:$0xff]
        %v2794 = vld [vmem:[%s5 + $0x210] sm:$0xff]
        %v2795 = vld [vmem:[%s5 + $0x218] sm:$0xff]
        %v2796 = vld [vmem:[%s5 + $0x220] sm:$0xff]
        %v2797 = vld [vmem:[%s5 + $0x228] sm:$0xff]
        %v2798 = vld [vmem:[%s5 + $0x230] sm:$0xff]
        %v2799 = vld [vmem:[%s5 + $0x238] sm:$0xff]
        %v2800 = vld [vmem:[%s5 + $0x240] sm:$0xff]
        %v2801 = vld [vmem:[%s5 + $0x248] sm:$0xff]
        %v2802 = vld [vmem:[%s5 + $0x250] sm:$0xff]
        %v2803 = vld [vmem:[%s5 + $0x258] sm:$0xff]
        %v2804 = vld [vmem:[%s5 + $0x260] sm:$0xff]
        %v2805 = vld [vmem:[%s5 + $0x268] sm:$0xff]
        %v2806 = vld [vmem:[%s5 + $0x270] sm:$0xff]
        %v2807 = vld [vmem:[%s5 + $0x278] sm:$0xff]
        %v2808 = vld [vmem:[%s5 + $0x280] sm:$0xff]
        %v2809 = vld [vmem:[%s5 + $0x288] sm:$0xff]
        %v2810 = vld [vmem:[%s5 + $0x290] sm:$0xff]
        %v2811 = vld [vmem:[%s5 + $0x298] sm:$0xff]
        %v2812 = vld [vmem:[%s5 + $0x2a0] sm:$0xff]
        %v2813 = vld [vmem:[%s5 + $0x2a8] sm:$0xff]
        %v2814 = vld [vmem:[%s5 + $0x2b0] sm:$0xff]
        %v2815 = vld [vmem:[%s5 + $0x2b8] sm:$0xff]
        %v2816 = vld [vmem:[%s5 + $0x2c0] sm:$0xff]
        %v2817 = vld [vmem:[%s5 + $0x2c8] sm:$0xff]
        %v2818 = vld [vmem:[%s5 + $0x2d0] sm:$0xff]
        %v2819 = vld [vmem:[%s5 + $0x2d8] sm:$0xff]
        %v2820 = vld [vmem:[%s5 + $0x2e0] sm:$0xff]
        %v2821 = vld [vmem:[%s5 + $0x2e8] sm:$0xff]
        %v2822 = vld [vmem:[%s5 + $0x2f0] sm:$0xff]
        %v2823 = vld [vmem:[%s5 + $0x2f8] sm:$0xff]
        %v2824 = vld [vmem:[%s5 + $0x300] sm:$0xff]
        %v2825 = vld [vmem:[%s5 + $0x308] sm:$0xff]
        %v2826 = vld [vmem:[%s5 + $0x310] sm:$0xff]
        %v2827 = vld [vmem:[%s5 + $0x318] sm:$0xff]
        %v2828 = vld [vmem:[%s5 + $0x320] sm:$0xff]
        %v2829 = vld [vmem:[%s5 + $0x328] sm:$0xff]
        %v2830 = vld [vmem:[%s5 + $0x330] sm:$0xff]
        %v2831 = vld [vmem:[%s5 + $0x338] sm:$0xff]
        %v2832 = vld [vmem:[%s5 + $0x340] sm:$0xff]
        %v2833 = vld [vmem:[%s5 + $0x348] sm:$0xff]
        %v2834 = vld [vmem:[%s5 + $0x350] sm:$0xff]
        %v2835 = vld [vmem:[%s5 + $0x358] sm:$0xff]
        %v2836 = vld [vmem:[%s5 + $0x360] sm:$0xff]
        %v2837 = vld [vmem:[%s5 + $0x368] sm:$0xff]
        %v2838 = vld [vmem:[%s5 + $0x370] sm:$0xff]
        %v2839 = vld [vmem:[%s5 + $0x378] sm:$0xff]
        %v2840 = vld [vmem:[%s5 + $0x380] sm:$0xff]
        %v2841 = vld [vmem:[%s5 + $0x388] sm:$0xff]
        %v2842 = vld [vmem:[%s5 + $0x390] sm:$0xff]
        %v2843 = vld [vmem:[%s5 + $0x398] sm:$0xff]
        %v2844 = vld [vmem:[%s5 + $0x3a0] sm:$0xff]
        %v2845 = vld [vmem:[%s5 + $0x3a8] sm:$0xff]
        %v2846 = vld [vmem:[%s5 + $0x3b0] sm:$0xff]
        %v2847 = vld [vmem:[%s5 + $0x3b8] sm:$0xff]
        %v2848 = vld [vmem:[%s5 + $0x3c0] sm:$0xff]
        %v2849 = vld [vmem:[%s5 + $0x3c8] sm:$0xff]
        %v2850 = vld [vmem:[%s5 + $0x3d0] sm:$0xff]
        %v2851 = vld [vmem:[%s5 + $0x3d8] sm:$0xff]
        %v2852 = vld [vmem:[%s5 + $0x3e0] sm:$0xff]
        %v2853 = vld [vmem:[%s5 + $0x3e8] sm:$0xff]
        %v2854 = vld [vmem:[%s5 + $0x3f0] sm:$0xff]
        %v2855 = vld [vmem:[%s5 + $0x3f8] sm:$0xff]
        %v2856 = vld [vmem:[%s5 + $0x400] sm:$0xff]
        %v2857 = vld [vmem:[%s5 + $0x408] sm:$0xff]
        %v2858 = vld [vmem:[%s5 + $0x410] sm:$0xff]
        %v2859 = vld [vmem:[%s5 + $0x418] sm:$0xff]
        %v2860 = vld [vmem:[%s5 + $0x420] sm:$0xff]
        %v2861 = vld [vmem:[%s5 + $0x428] sm:$0xff]
        %v2862 = vld [vmem:[%s5 + $0x430] sm:$0xff]
        %v2863 = vld [vmem:[%s5 + $0x438] sm:$0xff]
        %v2864 = vld [vmem:[%s5 + $0x440] sm:$0xff]
        %v2865 = vld [vmem:[%s5 + $0x448] sm:$0xff]
        %v2866 = vld [vmem:[%s5 + $0x450] sm:$0xff]
        %v2867 = vld [vmem:[%s5 + $0x458] sm:$0xff]
        %v2868 = vld [vmem:[%s5 + $0x460] sm:$0xff]
        %v2869 = vld [vmem:[%s5 + $0x468] sm:$0xff]
        %v2870 = vld [vmem:[%s5 + $0x470] sm:$0xff]
        %v2871 = vld [vmem:[%s5 + $0x478] sm:$0xff]
        %v2872 = vld [vmem:[%s5 + $0x480] sm:$0xff]
        %v2873 = vld [vmem:[%s5 + $0x488] sm:$0xff]
        %v2874 = vld [vmem:[%s5 + $0x490] sm:$0xff]
        %v2875 = vld [vmem:[%s5 + $0x498] sm:$0xff]
        %v2876 = vld [vmem:[%s5 + $0x4a0] sm:$0xff]
        %v2877 = vld [vmem:[%s5 + $0x4a8] sm:$0xff]
        %v2878 = vld [vmem:[%s5 + $0x4b0] sm:$0xff]
        %v2879 = vld [vmem:[%s5 + $0x4b8] sm:$0xff]
        %v2880 = vld [vmem:[%s5 + $0x4c0] sm:$0xff]
        %v2881 = vld [vmem:[%s5 + $0x4c8] sm:$0xff]
        %v2882 = vld [vmem:[%s5 + $0x4d0] sm:$0xff]
        %v2883 = vld [vmem:[%s5 + $0x4d8] sm:$0xff]
        %v2884 = vld [vmem:[%s5 + $0x4e0] sm:$0xff]
        %v2885 = vld [vmem:[%s5 + $0x4e8] sm:$0xff]
        %v2886 = vld [vmem:[%s5 + $0x4f0] sm:$0xff]
        %v2887 = vld [vmem:[%s5 + $0x4f8] sm:$0xff]
        %v2888 = vld [vmem:[%s5 + $0x500] sm:$0xff]
        %v2889 = vld [vmem:[%s5 + $0x508] sm:$0xff]
        %v2890 = vld [vmem:[%s5 + $0x510] sm:$0xff]
        %v2891 = vld [vmem:[%s5 + $0x518] sm:$0xff]
        %v2892 = vld [vmem:[%s5 + $0x520] sm:$0xff]
        %v2893 = vld [vmem:[%s5 + $0x528] sm:$0xff]
        %v2894 = vld [vmem:[%s5 + $0x530] sm:$0xff]
        %v2895 = vld [vmem:[%s5 + $0x538] sm:$0xff]
        %v2896 = vld [vmem:[%s5 + $0x540] sm:$0xff]
        %v2897 = vld [vmem:[%s5 + $0x548] sm:$0xff]
        %v2898 = vld [vmem:[%s5 + $0x550] sm:$0xff]
        %v2899 = vld [vmem:[%s5 + $0x558] sm:$0xff]
        %v2900 = vld [vmem:[%s5 + $0x560] sm:$0xff]
        %v2901 = vld [vmem:[%s5 + $0x568] sm:$0xff]
        %v2902 = vld [vmem:[%s5 + $0x570] sm:$0xff]
        %v2903 = vld [vmem:[%s5 + $0x578] sm:$0xff]
        %v2904 = vld [vmem:[%s5 + $0x580] sm:$0xff]
        %v2905 = vld [vmem:[%s5 + $0x588] sm:$0xff]
        %v2906 = vld [vmem:[%s5 + $0x590] sm:$0xff]
        %v2907 = vld [vmem:[%s5 + $0x598] sm:$0xff]
        %v2908 = vld [vmem:[%s5 + $0x5a0] sm:$0xff]
        %v2909 = vld [vmem:[%s5 + $0x5a8] sm:$0xff]
        %v2910 = vld [vmem:[%s5 + $0x5b0] sm:$0xff]
        %v2911 = vld [vmem:[%s5 + $0x5b8] sm:$0xff]
        %v2912 = vld [vmem:[%s5 + $0x5c0] sm:$0xff]
        %v2913 = vld [vmem:[%s5 + $0x5c8] sm:$0xff]
        %v2914 = vld [vmem:[%s5 + $0x5d0] sm:$0xff]
        %v2915 = vld [vmem:[%s5 + $0x5d8] sm:$0xff]
        %v2916 = vld [vmem:[%s5 + $0x5e0] sm:$0xff]
        %v2917 = vld [vmem:[%s5 + $0x5e8] sm:$0xff]
        %v2918 = vld [vmem:[%s5 + $0x5f0] sm:$0xff]
        %v2919 = vld [vmem:[%s5 + $0x5f8] sm:$0xff]
        %v2920 = vld [vmem:[%s5 + $0x600] sm:$0xff]
        %v2921 = vld [vmem:[%s5 + $0x608] sm:$0xff]
        %v2922 = vld [vmem:[%s5 + $0x610] sm:$0xff]
        %v2923 = vld [vmem:[%s5 + $0x618] sm:$0xff]
        %v2924 = vld [vmem:[%s5 + $0x620] sm:$0xff]
        %v2925 = vld [vmem:[%s5 + $0x628] sm:$0xff]
        %v2926 = vld [vmem:[%s5 + $0x630] sm:$0xff]
        %v2927 = vld [vmem:[%s5 + $0x638] sm:$0xff]
        %v2928 = vld [vmem:[%s5 + $0x640] sm:$0xff]
        %v2929 = vld [vmem:[%s5 + $0x648] sm:$0xff]
        %v2930 = vld [vmem:[%s5 + $0x650] sm:$0xff]
        %v2931 = vld [vmem:[%s5 + $0x658] sm:$0xff]
        %v2932 = vld [vmem:[%s5 + $0x660] sm:$0xff]
        %v2933 = vld [vmem:[%s5 + $0x668] sm:$0xff]
        %v2934 = vld [vmem:[%s5 + $0x670] sm:$0xff]
        %v2935 = vld [vmem:[%s5 + $0x678] sm:$0xff]
        %v2936 = vld [vmem:[%s5 + $0x680] sm:$0xff]
        %v2937 = vld [vmem:[%s5 + $0x688] sm:$0xff]
        %v2938 = vld [vmem:[%s5 + $0x690] sm:$0xff]
        %v2939 = vld [vmem:[%s5 + $0x698] sm:$0xff]
        %v2940 = vld [vmem:[%s5 + $0x6a0] sm:$0xff]
        %v2941 = vld [vmem:[%s5 + $0x6a8] sm:$0xff]
        %v2942 = vld [vmem:[%s5 + $0x6b0] sm:$0xff]
        %v2943 = vld [vmem:[%s5 + $0x6b8] sm:$0xff]
        %v2944 = vld [vmem:[%s5 + $0x6c0] sm:$0xff]
        %v2945 = vld [vmem:[%s5 + $0x6c8] sm:$0xff]
        %v2946 = vld [vmem:[%s5 + $0x6d0] sm:$0xff]
        %v2947 = vld [vmem:[%s5 + $0x6d8] sm:$0xff]
        %v2948 = vld [vmem:[%s5 + $0x6e0] sm:$0xff]
        %v2949 = vld [vmem:[%s5 + $0x6e8] sm:$0xff]
        %v2950 = vld [vmem:[%s5 + $0x6f0] sm:$0xff]
        %v2951 = vld [vmem:[%s5 + $0x6f8] sm:$0xff]
        %v2952 = vld [vmem:[%s5 + $0x700] sm:$0xff]
        %v2953 = vld [vmem:[%s5 + $0x708] sm:$0xff]
        %v2954 = vld [vmem:[%s5 + $0x710] sm:$0xff]
        %v2955 = vld [vmem:[%s5 + $0x718] sm:$0xff]
        %v2956 = vld [vmem:[%s5 + $0x720] sm:$0xff]
        %v2957 = vld [vmem:[%s5 + $0x728] sm:$0xff]
        %v2958 = vld [vmem:[%s5 + $0x730] sm:$0xff]
        %v2959 = vld [vmem:[%s5 + $0x738] sm:$0xff]
        %v2960 = vld [vmem:[%s5 + $0x740] sm:$0xff]
        %v2961 = vld [vmem:[%s5 + $0x748] sm:$0xff]
        %v2962 = vld [vmem:[%s5 + $0x750] sm:$0xff]
        %v2963 = vld [vmem:[%s5 + $0x758] sm:$0xff]
        %v2964 = vld [vmem:[%s5 + $0x760] sm:$0xff]
        %v2965 = vld [vmem:[%s5 + $0x768] sm:$0xff]
        %v2966 = vld [vmem:[%s5 + $0x770] sm:$0xff]
        %v2967 = vld [vmem:[%s5 + $0x778] sm:$0xff]
        %v2968 = vld [vmem:[%s5 + $0x780] sm:$0xff]
        %v2969 = vld [vmem:[%s5 + $0x788] sm:$0xff]
        %v2970 = vld [vmem:[%s5 + $0x790] sm:$0xff]
        %v2971 = vld [vmem:[%s5 + $0x798] sm:$0xff]
        %v2972 = vld [vmem:[%s5 + $0x7a0] sm:$0xff]
        %v2973 = vld [vmem:[%s5 + $0x7a8] sm:$0xff]
        %v2974 = vld [vmem:[%s5 + $0x7b0] sm:$0xff]
        %v2975 = vld [vmem:[%s5 + $0x7b8] sm:$0xff]
        %v2976 = vld [vmem:[%s5 + $0x7c0] sm:$0xff]
        %v2977 = vld [vmem:[%s5 + $0x7c8] sm:$0xff]
        %v2978 = vld [vmem:[%s5 + $0x7d0] sm:$0xff]
        %v2979 = vld [vmem:[%s5 + $0x7d8] sm:$0xff]
        %v2980 = vld [vmem:[%s5 + $0x7e0] sm:$0xff]
        %v2981 = vld [vmem:[%s5 + $0x7e8] sm:$0xff]
        %v2982 = vld [vmem:[%s5 + $0x7f0] sm:$0xff]
        %v2983 = vld [vmem:[%s5 + $0x7f8] sm:$0xff]
        %v2984 = vld [vmem:[%s5 + $0x800] sm:$0xff]
        %v2985 = vld [vmem:[%s5 + $0x808] sm:$0xff]
        %v2986 = vld [vmem:[%s5 + $0x810] sm:$0xff]
        %v2987 = vld [vmem:[%s5 + $0x818] sm:$0xff]
        %v2988 = vld [vmem:[%s5 + $0x820] sm:$0xff]
        %v2989 = vld [vmem:[%s5 + $0x828] sm:$0xff]
        %v2990 = vld [vmem:[%s5 + $0x830] sm:$0xff]
        %v2991 = vld [vmem:[%s5 + $0x838] sm:$0xff]
        %v2992 = vld [vmem:[%s5 + $0x840] sm:$0xff]
        %v2993 = vld [vmem:[%s5 + $0x848] sm:$0xff]
        %v2994 = vld [vmem:[%s5 + $0x850] sm:$0xff]
        %v2995 = vld [vmem:[%s5 + $0x858] sm:$0xff]
        %v2996 = vld [vmem:[%s5 + $0x860] sm:$0xff]
        %v2997 = vld [vmem:[%s5 + $0x868] sm:$0xff]
        %v2998 = vld [vmem:[%s5 + $0x870] sm:$0xff]
        %v2999 = vld [vmem:[%s5 + $0x878] sm:$0xff]
        %v3000 = vld [vmem:[%s5 + $0x880] sm:$0xff]
        %v3001 = vld [vmem:[%s5 + $0x888] sm:$0xff]
        %v3002 = vld [vmem:[%s5 + $0x890] sm:$0xff]
        %v3003 = vld [vmem:[%s5 + $0x898] sm:$0xff]
        %v3004 = vld [vmem:[%s5 + $0x8a0] sm:$0xff]
        %v3005 = vld [vmem:[%s5 + $0x8a8] sm:$0xff]
        %v3006 = vld [vmem:[%s5 + $0x8b0] sm:$0xff]
        %v3007 = vld [vmem:[%s5 + $0x8b8] sm:$0xff]
        %v3008 = vld [vmem:[%s5 + $0x8c0] sm:$0xff]
        %v3009 = vld [vmem:[%s5 + $0x8c8] sm:$0xff]
        %v3010 = vld [vmem:[%s5 + $0x8d0] sm:$0xff]
        %v3011 = vld [vmem:[%s5 + $0x8d8] sm:$0xff]
        %v3012 = vld [vmem:[%s5 + $0x8e0] sm:$0xff]
        %v3013 = vld [vmem:[%s5 + $0x8e8] sm:$0xff]
        %v3014 = vld [vmem:[%s5 + $0x8f0] sm:$0xff]
        %v3015 = vld [vmem:[%s5 + $0x8f8] sm:$0xff]
        %v3016 = vld [vmem:[%s5 + $0x900] sm:$0xff]
        %v3017 = vld [vmem:[%s5 + $0x908] sm:$0xff]
        %v3018 = vld [vmem:[%s5 + $0x910] sm:$0xff]
        %v3019 = vld [vmem:[%s5 + $0x918] sm:$0xff]
        %v3020 = vld [vmem:[%s5 + $0x920] sm:$0xff]
        %v3021 = vld [vmem:[%s5 + $0x928] sm:$0xff]
        %v3022 = vld [vmem:[%s5 + $0x930] sm:$0xff]
        %v3023 = vld [vmem:[%s5 + $0x938] sm:$0xff]
        %v3024 = vld [vmem:[%s5 + $0x940] sm:$0xff]
        %v3025 = vld [vmem:[%s5 + $0x948] sm:$0xff]
        %v3026 = vld [vmem:[%s5 + $0x950] sm:$0xff]
        %v3027 = vld [vmem:[%s5 + $0x958] sm:$0xff]
        %v3028 = vld [vmem:[%s5 + $0x960] sm:$0xff]
        %v3029 = vld [vmem:[%s5 + $0x968] sm:$0xff]
        %v3030 = vld [vmem:[%s5 + $0x970] sm:$0xff]
        %v3031 = vld [vmem:[%s5 + $0x978] sm:$0xff]
        %v3032 = vld [vmem:[%s5 + $0x980] sm:$0xff]
        %v3033 = vld [vmem:[%s5 + $0x988] sm:$0xff]
        %v3034 = vld [vmem:[%s5 + $0x990] sm:$0xff]
        %v3035 = vld [vmem:[%s5 + $0x998] sm:$0xff]
        %v3036 = vld [vmem:[%s5 + $0x9a0] sm:$0xff]
        %v3037 = vld [vmem:[%s5 + $0x9a8] sm:$0xff]
        %v3038 = vld [vmem:[%s5 + $0x9b0] sm:$0xff]
        %v3039 = vld [vmem:[%s5 + $0x9b8] sm:$0xff]
        %v3040 = vld [vmem:[%s5 + $0x9c0] sm:$0xff]
        %v3041 = vld [vmem:[%s5 + $0x9c8] sm:$0xff]
        %v3042 = vld [vmem:[%s5 + $0x9d0] sm:$0xff]
        %v3043 = vld [vmem:[%s5 + $0x9d8] sm:$0xff]
        %v3044 = vld [vmem:[%s5 + $0x9e0] sm:$0xff]
        %v3045 = vld [vmem:[%s5 + $0x9e8] sm:$0xff]
        %v3046 = vld [vmem:[%s5 + $0x9f0] sm:$0xff]
        %v3047 = vld [vmem:[%s5 + $0x9f8] sm:$0xff]
        %v3048 = vld [vmem:[%s5 + $0xa00] sm:$0xff]
        %v3049 = vld [vmem:[%s5 + $0xa08] sm:$0xff]
        %v3050 = vld [vmem:[%s5 + $0xa10] sm:$0xff]
        %v3051 = vld [vmem:[%s5 + $0xa18] sm:$0xff]
        %v3052 = vld [vmem:[%s5 + $0xa20] sm:$0xff]
        %v3053 = vld [vmem:[%s5 + $0xa28] sm:$0xff]
        %v3054 = vld [vmem:[%s5 + $0xa30] sm:$0xff]
        %v3055 = vld [vmem:[%s5 + $0xa38] sm:$0xff]
        %v3056 = vld [vmem:[%s5 + $0xa40] sm:$0xff]
        %v3057 = vld [vmem:[%s5 + $0xa48] sm:$0xff]
        %v3058 = vld [vmem:[%s5 + $0xa50] sm:$0xff]
        %v3059 = vld [vmem:[%s5 + $0xa58] sm:$0xff]
        %v3060 = vld [vmem:[%s5 + $0xa60] sm:$0xff]
        %v3061 = vld [vmem:[%s5 + $0xa68] sm:$0xff]
        %v3062 = vld [vmem:[%s5 + $0xa70] sm:$0xff]
        %v3063 = vld [vmem:[%s5 + $0xa78] sm:$0xff]
        %v3064 = vld [vmem:[%s5 + $0xa80] sm:$0xff]
        %v3065 = vld [vmem:[%s5 + $0xa88] sm:$0xff]
        %v3066 = vld [vmem:[%s5 + $0xa90] sm:$0xff]
        %v3067 = vld [vmem:[%s5 + $0xa98] sm:$0xff]
        %v3068 = vld [vmem:[%s5 + $0xaa0] sm:$0xff]
        %v3069 = vld [vmem:[%s5 + $0xaa8] sm:$0xff]
        %v3070 = vld [vmem:[%s5 + $0xab0] sm:$0xff]
        %v3071 = vld [vmem:[%s5 + $0xab8] sm:$0xff]
        %v3072 = vld [vmem:[%s5 + $0xac0] sm:$0xff]
        %v3073 = vld [vmem:[%s5 + $0xac8] sm:$0xff]
        %v3074 = vld [vmem:[%s5 + $0xad0] sm:$0xff]
        %v3075 = vld [vmem:[%s5 + $0xad8] sm:$0xff]
        %v3076 = vld [vmem:[%s5 + $0xae0] sm:$0xff]
        %v3077 = vld [vmem:[%s5 + $0xae8] sm:$0xff]
        %v3078 = vld [vmem:[%s5 + $0xaf0] sm:$0xff]
        %v3079 = vld [vmem:[%s5 + $0xaf8] sm:$0xff]
        %v3080 = vld [vmem:[%s5 + $0xb00] sm:$0xff]
        %v3081 = vld [vmem:[%s5 + $0xb08] sm:$0xff]
        %v3082 = vld [vmem:[%s5 + $0xb10] sm:$0xff]
        %v3083 = vld [vmem:[%s5 + $0xb18] sm:$0xff]
        %v3084 = vld [vmem:[%s5 + $0xb20] sm:$0xff]
        %v3085 = vld [vmem:[%s5 + $0xb28] sm:$0xff]
        %v3086 = vld [vmem:[%s5 + $0xb30] sm:$0xff]
        %v3087 = vld [vmem:[%s5 + $0xb38] sm:$0xff]
        %v3088 = vld [vmem:[%s5 + $0xb40] sm:$0xff]
        %v3089 = vld [vmem:[%s5 + $0xb48] sm:$0xff]
        %v3090 = vld [vmem:[%s5 + $0xb50] sm:$0xff]
        %v3091 = vld [vmem:[%s5 + $0xb58] sm:$0xff]
        %v3092 = vld [vmem:[%s5 + $0xb60] sm:$0xff]
        %v3093 = vld [vmem:[%s5 + $0xb68] sm:$0xff]
        %v3094 = vld [vmem:[%s5 + $0xb70] sm:$0xff]
        %v3095 = vld [vmem:[%s5 + $0xb78] sm:$0xff]
        %v3096 = vld [vmem:[%s5 + $0xb80] sm:$0xff]
        %v3097 = vld [vmem:[%s5 + $0xb88] sm:$0xff]
        %v3098 = vld [vmem:[%s5 + $0xb90] sm:$0xff]
        %v3099 = vld [vmem:[%s5 + $0xb98] sm:$0xff]
        %v3100 = vld [vmem:[%s5 + $0xba0] sm:$0xff]
        %v3101 = vld [vmem:[%s5 + $0xba8] sm:$0xff]
        %v3102 = vld [vmem:[%s5 + $0xbb0] sm:$0xff]
        %v3103 = vld [vmem:[%s5 + $0xbb8] sm:$0xff]
        %v3104 = vld [vmem:[%s5 + $0xbc0] sm:$0xff]
        %v3105 = vld [vmem:[%s5 + $0xbc8] sm:$0xff]
        %v3106 = vld [vmem:[%s5 + $0xbd0] sm:$0xff]
        %v3107 = vld [vmem:[%s5 + $0xbd8] sm:$0xff]
        %v3108 = vld [vmem:[%s5 + $0xbe0] sm:$0xff]
        %v3109 = vld [vmem:[%s5 + $0xbe8] sm:$0xff]
        %v3110 = vld [vmem:[%s5 + $0xbf0] sm:$0xff]
        %v3111 = vld [vmem:[%s5 + $0xbf8] sm:$0xff]
        %v3112 = vld [vmem:[%s5 + $0xc00] sm:$0xff]
        %v3113 = vld [vmem:[%s5 + $0xc08] sm:$0xff]
        %v3114 = vld [vmem:[%s5 + $0xc10] sm:$0xff]
        %v3115 = vld [vmem:[%s5 + $0xc18] sm:$0xff]
        %v3116 = vld [vmem:[%s5 + $0xc20] sm:$0xff]
        %v3117 = vld [vmem:[%s5 + $0xc28] sm:$0xff]
        %v3118 = vld [vmem:[%s5 + $0xc30] sm:$0xff]
        %v3119 = vld [vmem:[%s5 + $0xc38] sm:$0xff]
        %v3120 = vld [vmem:[%s5 + $0xc40] sm:$0xff]
        %v3121 = vld [vmem:[%s5 + $0xc48] sm:$0xff]
        %v3122 = vld [vmem:[%s5 + $0xc50] sm:$0xff]
        %v3123 = vld [vmem:[%s5 + $0xc58] sm:$0xff]
        %v3124 = vld [vmem:[%s5 + $0xc60] sm:$0xff]
        %v3125 = vld [vmem:[%s5 + $0xc68] sm:$0xff]
        %v3126 = vld [vmem:[%s5 + $0xc70] sm:$0xff]
        %v3127 = vld [vmem:[%s5 + $0xc78] sm:$0xff]
        %v3128 = vld [vmem:[%s6] sm:$0x1]
        %v3130 = vlaneseq
        %v3131 = vshrl.u32 %v3130, 7
        %v3132 = vsub.s32 0, %v3131
        %v3133 = vrot.slane %v3128, %v3132
        %3135 = vmatprep.subr.mxu0 0.0
        %3136 = vmatpush1.msra.mxu0 %v2743
        %3137 = vmatprep.subr.mxu0 0.0
        %3138 = vmatpush1.msra.mxu0 %v2742
        %3139 = vmatprep.subr.mxu0 0.0
        %3140 = vmatpush1.msra.mxu0 %v2741
        %3141 = vmatprep.subr.mxu0 0.0
        %3142 = vmatpush1.msra.mxu0 %v2740
        %3143 = vmatprep.subr.mxu0 0.0
        %3144 = vmatpush1.msra.mxu0 %v2739
        %3145 = vmatprep.subr.mxu0 0.0
        %3146 = vmatpush1.msra.mxu0 %v2738
        %3147 = vmatprep.subr.mxu0 0.0
        %3148 = vmatpush1.msra.mxu0 %v2737
        %3149 = vmatprep.subr.mxu0 0.0
        %3150 = vmatpush1.msra.mxu0 %v2736
        %3151 = vmatprep.subr.mxu0 0.0
        %3152 = vmatpush1.msra.mxu0 %v2735
        %3153 = vmatprep.subr.mxu0 0.0
        %3154 = vmatpush1.msra.mxu0 %v2734
        %3155 = vmatprep.subr.mxu0 0.0
        %3156 = vmatpush1.msra.mxu0 %v2733
        %3157 = vmatprep.subr.mxu0 0.0
        %3158 = vmatpush1.msra.mxu0 %v2732
        %3159 = vmatprep.subr.mxu0 0.0
        %3160 = vmatpush1.msra.mxu0 %v2731
        %3161 = vmatprep.subr.mxu0 0.0
        %3162 = vmatpush1.msra.mxu0 %v2730
        %3163 = vmatprep.subr.mxu0 0.0
        %3164 = vmatpush1.msra.mxu0 %v2729
        %3165 = vmatprep.subr.mxu0 0.0
        %3166 = vmatpush1.msra.mxu0 %v2728
        %3167 = vmatprep.subr.mxu0 0.0
        %3168 = vmatpush2.msra.mxu0 %v2759
        %3169 = vmatprep.subr.mxu0 0.0
        %3170 = vmatpush2.msra.mxu0 %v2758
        %3171 = vmatprep.subr.mxu0 0.0
        %3172 = vmatpush2.msra.mxu0 %v2757
        %3173 = vmatprep.subr.mxu0 0.0
        %3174 = vmatpush2.msra.mxu0 %v2756
        %3175 = vmatprep.subr.mxu0 0.0
        %3176 = vmatpush2.msra.mxu0 %v2755
        %3177 = vmatprep.subr.mxu0 0.0
        %3178 = vmatpush2.msra.mxu0 %v2754
        %3179 = vmatprep.subr.mxu0 0.0
        %3180 = vmatpush2.msra.mxu0 %v2753
        %3181 = vmatprep.subr.mxu0 0.0
        %3182 = vmatpush2.msra.mxu0 %v2752
        %3183 = vmatprep.subr.mxu0 0.0
        %3184 = vmatpush2.msra.mxu0 %v2751
        %3185 = vmatprep.subr.mxu0 0.0
        %3186 = vmatpush2.msra.mxu0 %v2750
        %3187 = vmatprep.subr.mxu0 0.0
        %3188 = vmatpush2.msra.mxu0 %v2749
        %3189 = vmatprep.subr.mxu0 0.0
        %3190 = vmatpush2.msra.mxu0 %v2748
        %3191 = vmatprep.subr.mxu0 0.0
        %3192 = vmatpush2.msra.mxu0 %v2747
        %3193 = vmatprep.subr.mxu0 0.0
        %3194 = vmatpush2.msra.mxu0 %v2746
        %3195 = vmatprep.subr.mxu0 0.0
        %3196 = vmatpush2.msra.mxu0 %v2745
        %3197 = vmatprep.subr.mxu0 0.0
        %3198 = vmatpush2.msra.mxu0 %v2744
        %3199 = vmatprep.mubr.f32.mxu0 %v2703
        %3200 = vmatmul.mubr.f32.gmra.mxu0 %v2702
        %v3201 = vpop.f32.mrf.mxu0
        %v3202 = vadd.f32 %v3133, %v3201
        %v3203 = vpop.f32.mrf.mxu0
        %3204 = vdwg.mxu0
        %3205 = vmatprep.subr.mxu0 0.0
        %3206 = vmatpush1.msra.mxu0 %v2775
        %3207 = vmatprep.subr.mxu0 0.0
        %3208 = vmatpush1.msra.mxu0 %v2774
        %3209 = vmatprep.subr.mxu0 0.0
        %3210 = vmatpush1.msra.mxu0 %v2773
        %3211 = vmatprep.subr.mxu0 0.0
        %3212 = vmatpush1.msra.mxu0 %v2772
        %3213 = vmatprep.subr.mxu0 0.0
        %3214 = vmatpush1.msra.mxu0 %v2771
        %3215 = vmatprep.subr.mxu0 0.0
        %3216 = vmatpush1.msra.mxu0 %v2770
        %3217 = vmatprep.subr.mxu0 0.0
        %3218 = vmatpush1.msra.mxu0 %v2769
        %3219 = vmatprep.subr.mxu0 0.0
        %3220 = vmatpush1.msra.mxu0 %v2768
        %3221 = vmatprep.subr.mxu0 0.0
        %3222 = vmatpush1.msra.mxu0 %v2767
        %3223 = vmatprep.subr.mxu0 0.0
        %3224 = vmatpush1.msra.mxu0 %v2766
        %3225 = vmatprep.subr.mxu0 0.0
        %3226 = vmatpush1.msra.mxu0 %v2765
        %3227 = vmatprep.subr.mxu0 0.0
        %3228 = vmatpush1.msra.mxu0 %v2764
        %3229 = vmatprep.subr.mxu0 0.0
        %3230 = vmatpush1.msra.mxu0 %v2763
        %3231 = vmatprep.subr.mxu0 0.0
        %3232 = vmatpush1.msra.mxu0 %v2762
        %3233 = vmatprep.subr.mxu0 0.0
        %3234 = vmatpush1.msra.mxu0 %v2761
        %3235 = vmatprep.subr.mxu0 0.0
        %3236 = vmatpush1.msra.mxu0 %v2760
        %3237 = vmatprep.subr.mxu0 0.0
        %3238 = vmatpush2.msra.mxu0 %v2791
        %3239 = vmatprep.subr.mxu0 0.0
        %3240 = vmatpush2.msra.mxu0 %v2790
        %3241 = vmatprep.subr.mxu0 0.0
        %3242 = vmatpush2.msra.mxu0 %v2789
        %3243 = vmatprep.subr.mxu0 0.0
        %3244 = vmatpush2.msra.mxu0 %v2788
        %3245 = vmatprep.subr.mxu0 0.0
        %3246 = vmatpush2.msra.mxu0 %v2787
        %3247 = vmatprep.subr.mxu0 0.0
        %3248 = vmatpush2.msra.mxu0 %v2786
        %3249 = vmatprep.subr.mxu0 0.0
        %3250 = vmatpush2.msra.mxu0 %v2785
        %3251 = vmatprep.subr.mxu0 0.0
        %3252 = vmatpush2.msra.mxu0 %v2784
        %3253 = vmatprep.subr.mxu0 0.0
        %3254 = vmatpush2.msra.mxu0 %v2783
        %3255 = vmatprep.subr.mxu0 0.0
        %3256 = vmatpush2.msra.mxu0 %v2782
        %3257 = vmatprep.subr.mxu0 0.0
        %3258 = vmatpush2.msra.mxu0 %v2781
        %3259 = vmatprep.subr.mxu0 0.0
        %3260 = vmatpush2.msra.mxu0 %v2780
        %3261 = vmatprep.subr.mxu0 0.0
        %3262 = vmatpush2.msra.mxu0 %v2779
        %3263 = vmatprep.subr.mxu0 0.0
        %3264 = vmatpush2.msra.mxu0 %v2778
        %3265 = vmatprep.subr.mxu0 0.0
        %3266 = vmatpush2.msra.mxu0 %v2777
        %3267 = vmatprep.subr.mxu0 0.0
        %3268 = vmatpush2.msra.mxu0 %v2776
        %3269 = vmatprep.mubr.f32.mxu0 %v2705
        %3270 = vmatmul.mubr.f32.gmra.mxu0 %v2704
        %v3271 = vpop.f32.mrf.mxu0
        %v3272 = vadd.f32 %v3202, %v3271
        %v3273 = vpop.f32.mrf.mxu0
        %3274 = vdwg.mxu0
        %3275 = vmatprep.subr.mxu0 0.0
        %3276 = vmatpush1.msra.mxu0 %v2807
        %3277 = vmatprep.subr.mxu0 0.0
        %3278 = vmatpush1.msra.mxu0 %v2806
        %3279 = vmatprep.subr.mxu0 0.0
        %3280 = vmatpush1.msra.mxu0 %v2805
        %3281 = vmatprep.subr.mxu0 0.0
        %3282 = vmatpush1.msra.mxu0 %v2804
        %3283 = vmatprep.subr.mxu0 0.0
        %3284 = vmatpush1.msra.mxu0 %v2803
        %3285 = vmatprep.subr.mxu0 0.0
        %3286 = vmatpush1.msra.mxu0 %v2802
        %3287 = vmatprep.subr.mxu0 0.0
        %3288 = vmatpush1.msra.mxu0 %v2801
        %3289 = vmatprep.subr.mxu0 0.0
        %3290 = vmatpush1.msra.mxu0 %v2800
        %3291 = vmatprep.subr.mxu0 0.0
        %3292 = vmatpush1.msra.mxu0 %v2799
        %3293 = vmatprep.subr.mxu0 0.0
        %3294 = vmatpush1.msra.mxu0 %v2798
        %3295 = vmatprep.subr.mxu0 0.0
        %3296 = vmatpush1.msra.mxu0 %v2797
        %3297 = vmatprep.subr.mxu0 0.0
        %3298 = vmatpush1.msra.mxu0 %v2796
        %3299 = vmatprep.subr.mxu0 0.0
        %3300 = vmatpush1.msra.mxu0 %v2795
        %3301 = vmatprep.subr.mxu0 0.0
        %3302 = vmatpush1.msra.mxu0 %v2794
        %3303 = vmatprep.subr.mxu0 0.0
        %3304 = vmatpush1.msra.mxu0 %v2793
        %3305 = vmatprep.subr.mxu0 0.0
        %3306 = vmatpush1.msra.mxu0 %v2792
        %3307 = vmatprep.subr.mxu0 0.0
        %3308 = vmatpush2.msra.mxu0 %v2823
        %3309 = vmatprep.subr.mxu0 0.0
        %3310 = vmatpush2.msra.mxu0 %v2822
        %3311 = vmatprep.subr.mxu0 0.0
        %3312 = vmatpush2.msra.mxu0 %v2821
        %3313 = vmatprep.subr.mxu0 0.0
        %3314 = vmatpush2.msra.mxu0 %v2820
        %3315 = vmatprep.subr.mxu0 0.0
        %3316 = vmatpush2.msra.mxu0 %v2819
        %3317 = vmatprep.subr.mxu0 0.0
        %3318 = vmatpush2.msra.mxu0 %v2818
        %3319 = vmatprep.subr.mxu0 0.0
        %3320 = vmatpush2.msra.mxu0 %v2817
        %3321 = vmatprep.subr.mxu0 0.0
        %3322 = vmatpush2.msra.mxu0 %v2816
        %3323 = vmatprep.subr.mxu0 0.0
        %3324 = vmatpush2.msra.mxu0 %v2815
        %3325 = vmatprep.subr.mxu0 0.0
        %3326 = vmatpush2.msra.mxu0 %v2814
        %3327 = vmatprep.subr.mxu0 0.0
        %3328 = vmatpush2.msra.mxu0 %v2813
        %3329 = vmatprep.subr.mxu0 0.0
        %3330 = vmatpush2.msra.mxu0 %v2812
        %3331 = vmatprep.subr.mxu0 0.0
        %3332 = vmatpush2.msra.mxu0 %v2811
        %3333 = vmatprep.subr.mxu0 0.0
        %3334 = vmatpush2.msra.mxu0 %v2810
        %3335 = vmatprep.subr.mxu0 0.0
        %3336 = vmatpush2.msra.mxu0 %v2809
        %3337 = vmatprep.subr.mxu0 0.0
        %3338 = vmatpush2.msra.mxu0 %v2808
        %3339 = vmatprep.mubr.f32.mxu0 %v2708
        %3340 = vmatmul.mubr.f32.gmra.mxu0 %v2706
        %v3341 = vpop.f32.mrf.mxu0
        %v3342 = vadd.f32 %v3272, %v3341
        %v3343 = vpop.f32.mrf.mxu0
        %3344 = vdwg.mxu0
        %3345 = vmatprep.subr.mxu0 0.0
        %3346 = vmatpush1.msra.mxu0 %v2839
        %3347 = vmatprep.subr.mxu0 0.0
        %3348 = vmatpush1.msra.mxu0 %v2838
        %3349 = vmatprep.subr.mxu0 0.0
        %3350 = vmatpush1.msra.mxu0 %v2837
        %3351 = vmatprep.subr.mxu0 0.0
        %3352 = vmatpush1.msra.mxu0 %v2836
        %3353 = vmatprep.subr.mxu0 0.0
        %3354 = vmatpush1.msra.mxu0 %v2835
        %3355 = vmatprep.subr.mxu0 0.0
        %3356 = vmatpush1.msra.mxu0 %v2834
        %3357 = vmatprep.subr.mxu0 0.0
        %3358 = vmatpush1.msra.mxu0 %v2833
        %3359 = vmatprep.subr.mxu0 0.0
        %3360 = vmatpush1.msra.mxu0 %v2832
        %3361 = vmatprep.subr.mxu0 0.0
        %3362 = vmatpush1.msra.mxu0 %v2831
        %3363 = vmatprep.subr.mxu0 0.0
        %3364 = vmatpush1.msra.mxu0 %v2830
        %3365 = vmatprep.subr.mxu0 0.0
        %3366 = vmatpush1.msra.mxu0 %v2829
        %3367 = vmatprep.subr.mxu0 0.0
        %3368 = vmatpush1.msra.mxu0 %v2828
        %3369 = vmatprep.subr.mxu0 0.0
        %3370 = vmatpush1.msra.mxu0 %v2827
        %3371 = vmatprep.subr.mxu0 0.0
        %3372 = vmatpush1.msra.mxu0 %v2826
        %3373 = vmatprep.subr.mxu0 0.0
        %3374 = vmatpush1.msra.mxu0 %v2825
        %3375 = vmatprep.subr.mxu0 0.0
        %3376 = vmatpush1.msra.mxu0 %v2824
        %3377 = vmatprep.subr.mxu0 0.0
        %3378 = vmatpush2.msra.mxu0 %v2855
        %3379 = vmatprep.subr.mxu0 0.0
        %3380 = vmatpush2.msra.mxu0 %v2854
        %3381 = vmatprep.subr.mxu0 0.0
        %3382 = vmatpush2.msra.mxu0 %v2853
        %3383 = vmatprep.subr.mxu0 0.0
        %3384 = vmatpush2.msra.mxu0 %v2852
        %3385 = vmatprep.subr.mxu0 0.0
        %3386 = vmatpush2.msra.mxu0 %v2851
        %3387 = vmatprep.subr.mxu0 0.0
        %3388 = vmatpush2.msra.mxu0 %v2850
        %3389 = vmatprep.subr.mxu0 0.0
        %3390 = vmatpush2.msra.mxu0 %v2849
        %3391 = vmatprep.subr.mxu0 0.0
        %3392 = vmatpush2.msra.mxu0 %v2848
        %3393 = vmatprep.subr.mxu0 0.0
        %3394 = vmatpush2.msra.mxu0 %v2847
        %3395 = vmatprep.subr.mxu0 0.0
        %3396 = vmatpush2.msra.mxu0 %v2846
        %3397 = vmatprep.subr.mxu0 0.0
        %3398 = vmatpush2.msra.mxu0 %v2845
        %3399 = vmatprep.subr.mxu0 0.0
        %3400 = vmatpush2.msra.mxu0 %v2844
        %3401 = vmatprep.subr.mxu0 0.0
        %3402 = vmatpush2.msra.mxu0 %v2843
        %3403 = vmatprep.subr.mxu0 0.0
        %3404 = vmatpush2.msra.mxu0 %v2842
        %3405 = vmatprep.subr.mxu0 0.0
        %3406 = vmatpush2.msra.mxu0 %v2841
        %3407 = vmatprep.subr.mxu0 0.0
        %3408 = vmatpush2.msra.mxu0 %v2840
        %3409 = vmatprep.mubr.f32.mxu0 %v2710
        %3410 = vmatmul.mubr.f32.gmra.mxu0 %v2709
        %v3411 = vpop.f32.mrf.mxu0
        %v3412 = vadd.f32 %v3342, %v3411
        %v3413 = vpop.f32.mrf.mxu0
        %3414 = vdwg.mxu0
        %3415 = vmatprep.subr.mxu0 0.0
        %3416 = vmatpush1.msra.mxu0 %v2871
        %3417 = vmatprep.subr.mxu0 0.0
        %3418 = vmatpush1.msra.mxu0 %v2870
        %3419 = vmatprep.subr.mxu0 0.0
        %3420 = vmatpush1.msra.mxu0 %v2869
        %3421 = vmatprep.subr.mxu0 0.0
        %3422 = vmatpush1.msra.mxu0 %v2868
        %3423 = vmatprep.subr.mxu0 0.0
        %3424 = vmatpush1.msra.mxu0 %v2867
        %3425 = vmatprep.subr.mxu0 0.0
        %3426 = vmatpush1.msra.mxu0 %v2866
        %3427 = vmatprep.subr.mxu0 0.0
        %3428 = vmatpush1.msra.mxu0 %v2865
        %3429 = vmatprep.subr.mxu0 0.0
        %3430 = vmatpush1.msra.mxu0 %v2864
        %3431 = vmatprep.subr.mxu0 0.0
        %3432 = vmatpush1.msra.mxu0 %v2863
        %3433 = vmatprep.subr.mxu0 0.0
        %3434 = vmatpush1.msra.mxu0 %v2862
        %3435 = vmatprep.subr.mxu0 0.0
        %3436 = vmatpush1.msra.mxu0 %v2861
        %3437 = vmatprep.subr.mxu0 0.0
        %3438 = vmatpush1.msra.mxu0 %v2860
        %3439 = vmatprep.subr.mxu0 0.0
        %3440 = vmatpush1.msra.mxu0 %v2859
        %3441 = vmatprep.subr.mxu0 0.0
        %3442 = vmatpush1.msra.mxu0 %v2858
        %3443 = vmatprep.subr.mxu0 0.0
        %3444 = vmatpush1.msra.mxu0 %v2857
        %3445 = vmatprep.subr.mxu0 0.0
        %3446 = vmatpush1.msra.mxu0 %v2856
        %3447 = vmatprep.subr.mxu0 0.0
        %3448 = vmatpush2.msra.mxu0 %v2887
        %3449 = vmatprep.subr.mxu0 0.0
        %3450 = vmatpush2.msra.mxu0 %v2886
        %3451 = vmatprep.subr.mxu0 0.0
        %3452 = vmatpush2.msra.mxu0 %v2885
        %3453 = vmatprep.subr.mxu0 0.0
        %3454 = vmatpush2.msra.mxu0 %v2884
        %3455 = vmatprep.subr.mxu0 0.0
        %3456 = vmatpush2.msra.mxu0 %v2883
        %3457 = vmatprep.subr.mxu0 0.0
        %3458 = vmatpush2.msra.mxu0 %v2882
        %3459 = vmatprep.subr.mxu0 0.0
        %3460 = vmatpush2.msra.mxu0 %v2881
        %3461 = vmatprep.subr.mxu0 0.0
        %3462 = vmatpush2.msra.mxu0 %v2880
        %3463 = vmatprep.subr.mxu0 0.0
        %3464 = vmatpush2.msra.mxu0 %v2879
        %3465 = vmatprep.subr.mxu0 0.0
        %3466 = vmatpush2.msra.mxu0 %v2878
        %3467 = vmatprep.subr.mxu0 0.0
        %3468 = vmatpush2.msra.mxu0 %v2877
        %3469 = vmatprep.subr.mxu0 0.0
        %3470 = vmatpush2.msra.mxu0 %v2876
        %3471 = vmatprep.subr.mxu0 0.0
        %3472 = vmatpush2.msra.mxu0 %v2875
        %3473 = vmatprep.subr.mxu0 0.0
        %3474 = vmatpush2.msra.mxu0 %v2874
        %3475 = vmatprep.subr.mxu0 0.0
        %3476 = vmatpush2.msra.mxu0 %v2873
        %3477 = vmatprep.subr.mxu0 0.0
        %3478 = vmatpush2.msra.mxu0 %v2872
        %3479 = vmatprep.mubr.f32.mxu0 %v2712
        %3480 = vmatmul.mubr.f32.gmra.mxu0 %v2711
        %v3481 = vpop.f32.mrf.mxu0
        %v3482 = vadd.f32 %v3412, %v3481
        %v3483 = vpop.f32.mrf.mxu0
        %3484 = vdwg.mxu0
        %3485 = vmatprep.subr.mxu0 0.0
        %3486 = vmatpush1.msra.mxu0 %v2903
        %3487 = vmatprep.subr.mxu0 0.0
        %3488 = vmatpush1.msra.mxu0 %v2902
        %3489 = vmatprep.subr.mxu0 0.0
        %3490 = vmatpush1.msra.mxu0 %v2901
        %3491 = vmatprep.subr.mxu0 0.0
        %3492 = vmatpush1.msra.mxu0 %v2900
        %3493 = vmatprep.subr.mxu0 0.0
        %3494 = vmatpush1.msra.mxu0 %v2899
        %3495 = vmatprep.subr.mxu0 0.0
        %3496 = vmatpush1.msra.mxu0 %v2898
        %3497 = vmatprep.subr.mxu0 0.0
        %3498 = vmatpush1.msra.mxu0 %v2897
        %3499 = vmatprep.subr.mxu0 0.0
        %3500 = vmatpush1.msra.mxu0 %v2896
        %3501 = vmatprep.subr.mxu0 0.0
        %3502 = vmatpush1.msra.mxu0 %v2895
        %3503 = vmatprep.subr.mxu0 0.0
        %3504 = vmatpush1.msra.mxu0 %v2894
        %3505 = vmatprep.subr.mxu0 0.0
        %3506 = vmatpush1.msra.mxu0 %v2893
        %3507 = vmatprep.subr.mxu0 0.0
        %3508 = vmatpush1.msra.mxu0 %v2892
        %3509 = vmatprep.subr.mxu0 0.0
        %3510 = vmatpush1.msra.mxu0 %v2891
        %3511 = vmatprep.subr.mxu0 0.0
        %3512 = vmatpush1.msra.mxu0 %v2890
        %3513 = vmatprep.subr.mxu0 0.0
        %3514 = vmatpush1.msra.mxu0 %v2889
        %3515 = vmatprep.subr.mxu0 0.0
        %3516 = vmatpush1.msra.mxu0 %v2888
        %3517 = vmatprep.subr.mxu0 0.0
        %3518 = vmatpush2.msra.mxu0 %v2919
        %3519 = vmatprep.subr.mxu0 0.0
        %3520 = vmatpush2.msra.mxu0 %v2918
        %3521 = vmatprep.subr.mxu0 0.0
        %3522 = vmatpush2.msra.mxu0 %v2917
        %3523 = vmatprep.subr.mxu0 0.0
        %3524 = vmatpush2.msra.mxu0 %v2916
        %3525 = vmatprep.subr.mxu0 0.0
        %3526 = vmatpush2.msra.mxu0 %v2915
        %3527 = vmatprep.subr.mxu0 0.0
        %3528 = vmatpush2.msra.mxu0 %v2914
        %3529 = vmatprep.subr.mxu0 0.0
        %3530 = vmatpush2.msra.mxu0 %v2913
        %3531 = vmatprep.subr.mxu0 0.0
        %3532 = vmatpush2.msra.mxu0 %v2912
        %3533 = vmatprep.subr.mxu0 0.0
        %3534 = vmatpush2.msra.mxu0 %v2911
        %3535 = vmatprep.subr.mxu0 0.0
        %3536 = vmatpush2.msra.mxu0 %v2910
        %3537 = vmatprep.subr.mxu0 0.0
        %3538 = vmatpush2.msra.mxu0 %v2909
        %3539 = vmatprep.subr.mxu0 0.0
        %3540 = vmatpush2.msra.mxu0 %v2908
        %3541 = vmatprep.subr.mxu0 0.0
        %3542 = vmatpush2.msra.mxu0 %v2907
        %3543 = vmatprep.subr.mxu0 0.0
        %3544 = vmatpush2.msra.mxu0 %v2906
        %3545 = vmatprep.subr.mxu0 0.0
        %3546 = vmatpush2.msra.mxu0 %v2905
        %3547 = vmatprep.subr.mxu0 0.0
        %3548 = vmatpush2.msra.mxu0 %v2904
        %3549 = vmatprep.mubr.f32.mxu0 %v2714
        %3550 = vmatmul.mubr.f32.gmra.mxu0 %v2713
        %v3551 = vpop.f32.mrf.mxu0
        %v3552 = vadd.f32 %v3482, %v3551
        %v3553 = vpop.f32.mrf.mxu0
        %3554 = vdwg.mxu0
        %3555 = vmatprep.subr.mxu0 0.0
        %3556 = vmatpush1.msra.mxu0 %v2935
        %3557 = vmatprep.subr.mxu0 0.0
        %3558 = vmatpush1.msra.mxu0 %v2934
        %3559 = vmatprep.subr.mxu0 0.0
        %3560 = vmatpush1.msra.mxu0 %v2933
        %3561 = vmatprep.subr.mxu0 0.0
        %3562 = vmatpush1.msra.mxu0 %v2932
        %3563 = vmatprep.subr.mxu0 0.0
        %3564 = vmatpush1.msra.mxu0 %v2931
        %3565 = vmatprep.subr.mxu0 0.0
        %3566 = vmatpush1.msra.mxu0 %v2930
        %3567 = vmatprep.subr.mxu0 0.0
        %3568 = vmatpush1.msra.mxu0 %v2929
        %3569 = vmatprep.subr.mxu0 0.0
        %3570 = vmatpush1.msra.mxu0 %v2928
        %3571 = vmatprep.subr.mxu0 0.0
        %3572 = vmatpush1.msra.mxu0 %v2927
        %3573 = vmatprep.subr.mxu0 0.0
        %3574 = vmatpush1.msra.mxu0 %v2926
        %3575 = vmatprep.subr.mxu0 0.0
        %3576 = vmatpush1.msra.mxu0 %v2925
        %3577 = vmatprep.subr.mxu0 0.0
        %3578 = vmatpush1.msra.mxu0 %v2924
        %3579 = vmatprep.subr.mxu0 0.0
        %3580 = vmatpush1.msra.mxu0 %v2923
        %3581 = vmatprep.subr.mxu0 0.0
        %3582 = vmatpush1.msra.mxu0 %v2922
        %3583 = vmatprep.subr.mxu0 0.0
        %3584 = vmatpush1.msra.mxu0 %v2921
        %3585 = vmatprep.subr.mxu0 0.0
        %3586 = vmatpush1.msra.mxu0 %v2920
        %3587 = vmatprep.subr.mxu0 0.0
        %3588 = vmatpush2.msra.mxu0 %v2951
        %3589 = vmatprep.subr.mxu0 0.0
        %3590 = vmatpush2.msra.mxu0 %v2950
        %3591 = vmatprep.subr.mxu0 0.0
        %3592 = vmatpush2.msra.mxu0 %v2949
        %3593 = vmatprep.subr.mxu0 0.0
        %3594 = vmatpush2.msra.mxu0 %v2948
        %3595 = vmatprep.subr.mxu0 0.0
        %3596 = vmatpush2.msra.mxu0 %v2947
        %3597 = vmatprep.subr.mxu0 0.0
        %3598 = vmatpush2.msra.mxu0 %v2946
        %3599 = vmatprep.subr.mxu0 0.0
        %3600 = vmatpush2.msra.mxu0 %v2945
        %3601 = vmatprep.subr.mxu0 0.0
        %3602 = vmatpush2.msra.mxu0 %v2944
        %3603 = vmatprep.subr.mxu0 0.0
        %3604 = vmatpush2.msra.mxu0 %v2943
        %3605 = vmatprep.subr.mxu0 0.0
        %3606 = vmatpush2.msra.mxu0 %v2942
        %3607 = vmatprep.subr.mxu0 0.0
        %3608 = vmatpush2.msra.mxu0 %v2941
        %3609 = vmatprep.subr.mxu0 0.0
        %3610 = vmatpush2.msra.mxu0 %v2940
        %3611 = vmatprep.subr.mxu0 0.0
        %3612 = vmatpush2.msra.mxu0 %v2939
        %3613 = vmatprep.subr.mxu0 0.0
        %3614 = vmatpush2.msra.mxu0 %v2938
        %3615 = vmatprep.subr.mxu0 0.0
        %3616 = vmatpush2.msra.mxu0 %v2937
        %3617 = vmatprep.subr.mxu0 0.0
        %3618 = vmatpush2.msra.mxu0 %v2936
        %3619 = vmatprep.mubr.f32.mxu0 %v2716
        %3620 = vmatmul.mubr.f32.gmra.mxu0 %v2715
        %v3621 = vpop.f32.mrf.mxu0
        %v3622 = vadd.f32 %v3552, %v3621
        %v3623 = vpop.f32.mrf.mxu0
        %3624 = vdwg.mxu0
        %3625 = vmatprep.subr.mxu0 0.0
        %3626 = vmatpush1.msra.mxu0 %v2967
        %3627 = vmatprep.subr.mxu0 0.0
        %3628 = vmatpush1.msra.mxu0 %v2966
        %3629 = vmatprep.subr.mxu0 0.0
        %3630 = vmatpush1.msra.mxu0 %v2965
        %3631 = vmatprep.subr.mxu0 0.0
        %3632 = vmatpush1.msra.mxu0 %v2964
        %3633 = vmatprep.subr.mxu0 0.0
        %3634 = vmatpush1.msra.mxu0 %v2963
        %3635 = vmatprep.subr.mxu0 0.0
        %3636 = vmatpush1.msra.mxu0 %v2962
        %3637 = vmatprep.subr.mxu0 0.0
        %3638 = vmatpush1.msra.mxu0 %v2961
        %3639 = vmatprep.subr.mxu0 0.0
        %3640 = vmatpush1.msra.mxu0 %v2960
        %3641 = vmatprep.subr.mxu0 0.0
        %3642 = vmatpush1.msra.mxu0 %v2959
        %3643 = vmatprep.subr.mxu0 0.0
        %3644 = vmatpush1.msra.mxu0 %v2958
        %3645 = vmatprep.subr.mxu0 0.0
        %3646 = vmatpush1.msra.mxu0 %v2957
        %3647 = vmatprep.subr.mxu0 0.0
        %3648 = vmatpush1.msra.mxu0 %v2956
        %3649 = vmatprep.subr.mxu0 0.0
        %3650 = vmatpush1.msra.mxu0 %v2955
        %3651 = vmatprep.subr.mxu0 0.0
        %3652 = vmatpush1.msra.mxu0 %v2954
        %3653 = vmatprep.subr.mxu0 0.0
        %3654 = vmatpush1.msra.mxu0 %v2953
        %3655 = vmatprep.subr.mxu0 0.0
        %3656 = vmatpush1.msra.mxu0 %v2952
        %3657 = vmatprep.subr.mxu0 0.0
        %3658 = vmatpush2.msra.mxu0 %v2983
        %3659 = vmatprep.subr.mxu0 0.0
        %3660 = vmatpush2.msra.mxu0 %v2982
        %3661 = vmatprep.subr.mxu0 0.0
        %3662 = vmatpush2.msra.mxu0 %v2981
        %3663 = vmatprep.subr.mxu0 0.0
        %3664 = vmatpush2.msra.mxu0 %v2980
        %3665 = vmatprep.subr.mxu0 0.0
        %3666 = vmatpush2.msra.mxu0 %v2979
        %3667 = vmatprep.subr.mxu0 0.0
        %3668 = vmatpush2.msra.mxu0 %v2978
        %3669 = vmatprep.subr.mxu0 0.0
        %3670 = vmatpush2.msra.mxu0 %v2977
        %3671 = vmatprep.subr.mxu0 0.0
        %3672 = vmatpush2.msra.mxu0 %v2976
        %3673 = vmatprep.subr.mxu0 0.0
        %3674 = vmatpush2.msra.mxu0 %v2975
        %3675 = vmatprep.subr.mxu0 0.0
        %3676 = vmatpush2.msra.mxu0 %v2974
        %3677 = vmatprep.subr.mxu0 0.0
        %3678 = vmatpush2.msra.mxu0 %v2973
        %3679 = vmatprep.subr.mxu0 0.0
        %3680 = vmatpush2.msra.mxu0 %v2972
        %3681 = vmatprep.subr.mxu0 0.0
        %3682 = vmatpush2.msra.mxu0 %v2971
        %3683 = vmatprep.subr.mxu0 0.0
        %3684 = vmatpush2.msra.mxu0 %v2970
        %3685 = vmatprep.subr.mxu0 0.0
        %3686 = vmatpush2.msra.mxu0 %v2969
        %3687 = vmatprep.subr.mxu0 0.0
        %3688 = vmatpush2.msra.mxu0 %v2968
        %3689 = vmatprep.mubr.f32.mxu0 %v2718
        %3690 = vmatmul.mubr.f32.gmra.mxu0 %v2717
        %v3691 = vpop.f32.mrf.mxu0
        %v3692 = vadd.f32 %v3622, %v3691
        %v3693 = vpop.f32.mrf.mxu0
        %3694 = vdwg.mxu0
        %3695 = vmatprep.subr.mxu0 0.0
        %3696 = vmatpush1.msra.mxu0 %v2999
        %3697 = vmatprep.subr.mxu0 0.0
        %3698 = vmatpush1.msra.mxu0 %v2998
        %3699 = vmatprep.subr.mxu0 0.0
        %3700 = vmatpush1.msra.mxu0 %v2997
        %3701 = vmatprep.subr.mxu0 0.0
        %3702 = vmatpush1.msra.mxu0 %v2996
        %3703 = vmatprep.subr.mxu0 0.0
        %3704 = vmatpush1.msra.mxu0 %v2995
        %3705 = vmatprep.subr.mxu0 0.0
        %3706 = vmatpush1.msra.mxu0 %v2994
        %3707 = vmatprep.subr.mxu0 0.0
        %3708 = vmatpush1.msra.mxu0 %v2993
        %3709 = vmatprep.subr.mxu0 0.0
        %3710 = vmatpush1.msra.mxu0 %v2992
        %3711 = vmatprep.subr.mxu0 0.0
        %3712 = vmatpush1.msra.mxu0 %v2991
        %3713 = vmatprep.subr.mxu0 0.0
        %3714 = vmatpush1.msra.mxu0 %v2990
        %3715 = vmatprep.subr.mxu0 0.0
        %3716 = vmatpush1.msra.mxu0 %v2989
        %3717 = vmatprep.subr.mxu0 0.0
        %3718 = vmatpush1.msra.mxu0 %v2988
        %3719 = vmatprep.subr.mxu0 0.0
        %3720 = vmatpush1.msra.mxu0 %v2987
        %3721 = vmatprep.subr.mxu0 0.0
        %3722 = vmatpush1.msra.mxu0 %v2986
        %3723 = vmatprep.subr.mxu0 0.0
        %3724 = vmatpush1.msra.mxu0 %v2985
        %3725 = vmatprep.subr.mxu0 0.0
        %3726 = vmatpush1.msra.mxu0 %v2984
        %3727 = vmatprep.subr.mxu0 0.0
        %3728 = vmatpush2.msra.mxu0 %v3015
        %3729 = vmatprep.subr.mxu0 0.0
        %3730 = vmatpush2.msra.mxu0 %v3014
        %3731 = vmatprep.subr.mxu0 0.0
        %3732 = vmatpush2.msra.mxu0 %v3013
        %3733 = vmatprep.subr.mxu0 0.0
        %3734 = vmatpush2.msra.mxu0 %v3012
        %3735 = vmatprep.subr.mxu0 0.0
        %3736 = vmatpush2.msra.mxu0 %v3011
        %3737 = vmatprep.subr.mxu0 0.0
        %3738 = vmatpush2.msra.mxu0 %v3010
        %3739 = vmatprep.subr.mxu0 0.0
        %3740 = vmatpush2.msra.mxu0 %v3009
        %3741 = vmatprep.subr.mxu0 0.0
        %3742 = vmatpush2.msra.mxu0 %v3008
        %3743 = vmatprep.subr.mxu0 0.0
        %3744 = vmatpush2.msra.mxu0 %v3007
        %3745 = vmatprep.subr.mxu0 0.0
        %3746 = vmatpush2.msra.mxu0 %v3006
        %3747 = vmatprep.subr.mxu0 0.0
        %3748 = vmatpush2.msra.mxu0 %v3005
        %3749 = vmatprep.subr.mxu0 0.0
        %3750 = vmatpush2.msra.mxu0 %v3004
        %3751 = vmatprep.subr.mxu0 0.0
        %3752 = vmatpush2.msra.mxu0 %v3003
        %3753 = vmatprep.subr.mxu0 0.0
        %3754 = vmatpush2.msra.mxu0 %v3002
        %3755 = vmatprep.subr.mxu0 0.0
        %3756 = vmatpush2.msra.mxu0 %v3001
        %3757 = vmatprep.subr.mxu0 0.0
        %3758 = vmatpush2.msra.mxu0 %v3000
        %3759 = vmatprep.mubr.f32.mxu0 %v2720
        %3760 = vmatmul.mubr.f32.gmra.mxu0 %v2719
        %v3761 = vpop.f32.mrf.mxu0
        %v3762 = vadd.f32 %v3692, %v3761
        %v3763 = vpop.f32.mrf.mxu0
        %3764 = vdwg.mxu0
        %3765 = vmatprep.subr.mxu0 0.0
        %3766 = vmatpush1.msra.mxu0 %v3031
        %3767 = vmatprep.subr.mxu0 0.0
        %3768 = vmatpush1.msra.mxu0 %v3030
        %3769 = vmatprep.subr.mxu0 0.0
        %3770 = vmatpush1.msra.mxu0 %v3029
        %3771 = vmatprep.subr.mxu0 0.0
        %3772 = vmatpush1.msra.mxu0 %v3028
        %3773 = vmatprep.subr.mxu0 0.0
        %3774 = vmatpush1.msra.mxu0 %v3027
        %3775 = vmatprep.subr.mxu0 0.0
        %3776 = vmatpush1.msra.mxu0 %v3026
        %3777 = vmatprep.subr.mxu0 0.0
        %3778 = vmatpush1.msra.mxu0 %v3025
        %3779 = vmatprep.subr.mxu0 0.0
        %3780 = vmatpush1.msra.mxu0 %v3024
        %3781 = vmatprep.subr.mxu0 0.0
        %3782 = vmatpush1.msra.mxu0 %v3023
        %3783 = vmatprep.subr.mxu0 0.0
        %3784 = vmatpush1.msra.mxu0 %v3022
        %3785 = vmatprep.subr.mxu0 0.0
        %3786 = vmatpush1.msra.mxu0 %v3021
        %3787 = vmatprep.subr.mxu0 0.0
        %3788 = vmatpush1.msra.mxu0 %v3020
        %3789 = vmatprep.subr.mxu0 0.0
        %3790 = vmatpush1.msra.mxu0 %v3019
        %3791 = vmatprep.subr.mxu0 0.0
        %3792 = vmatpush1.msra.mxu0 %v3018
        %3793 = vmatprep.subr.mxu0 0.0
        %3794 = vmatpush1.msra.mxu0 %v3017
        %3795 = vmatprep.subr.mxu0 0.0
        %3796 = vmatpush1.msra.mxu0 %v3016
        %3797 = vmatprep.subr.mxu0 0.0
        %3798 = vmatpush2.msra.mxu0 %v3047
        %3799 = vmatprep.subr.mxu0 0.0
        %3800 = vmatpush2.msra.mxu0 %v3046
        %3801 = vmatprep.subr.mxu0 0.0
        %3802 = vmatpush2.msra.mxu0 %v3045
        %3803 = vmatprep.subr.mxu0 0.0
        %3804 = vmatpush2.msra.mxu0 %v3044
        %3805 = vmatprep.subr.mxu0 0.0
        %3806 = vmatpush2.msra.mxu0 %v3043
        %3807 = vmatprep.subr.mxu0 0.0
        %3808 = vmatpush2.msra.mxu0 %v3042
        %3809 = vmatprep.subr.mxu0 0.0
        %3810 = vmatpush2.msra.mxu0 %v3041
        %3811 = vmatprep.subr.mxu0 0.0
        %3812 = vmatpush2.msra.mxu0 %v3040
        %3813 = vmatprep.subr.mxu0 0.0
        %3814 = vmatpush2.msra.mxu0 %v3039
        %3815 = vmatprep.subr.mxu0 0.0
        %3816 = vmatpush2.msra.mxu0 %v3038
        %3817 = vmatprep.subr.mxu0 0.0
        %3818 = vmatpush2.msra.mxu0 %v3037
        %3819 = vmatprep.subr.mxu0 0.0
        %3820 = vmatpush2.msra.mxu0 %v3036
        %3821 = vmatprep.subr.mxu0 0.0
        %3822 = vmatpush2.msra.mxu0 %v3035
        %3823 = vmatprep.subr.mxu0 0.0
        %3824 = vmatpush2.msra.mxu0 %v3034
        %3825 = vmatprep.subr.mxu0 0.0
        %3826 = vmatpush2.msra.mxu0 %v3033
        %3827 = vmatprep.subr.mxu0 0.0
        %3828 = vmatpush2.msra.mxu0 %v3032
        %3829 = vmatprep.mubr.f32.mxu0 %v2722
        %3830 = vmatmul.mubr.f32.gmra.mxu0 %v2721
        %v3831 = vpop.f32.mrf.mxu0
        %v3832 = vadd.f32 %v3762, %v3831
        %v3833 = vpop.f32.mrf.mxu0
        %3834 = vdwg.mxu0
        %3835 = vmatprep.subr.mxu0 0.0
        %3836 = vmatpush1.msra.mxu0 %v3063
        %3837 = vmatprep.subr.mxu0 0.0
        %3838 = vmatpush1.msra.mxu0 %v3062
        %3839 = vmatprep.subr.mxu0 0.0
        %3840 = vmatpush1.msra.mxu0 %v3061
        %3841 = vmatprep.subr.mxu0 0.0
        %3842 = vmatpush1.msra.mxu0 %v3060
        %3843 = vmatprep.subr.mxu0 0.0
        %3844 = vmatpush1.msra.mxu0 %v3059
        %3845 = vmatprep.subr.mxu0 0.0
        %3846 = vmatpush1.msra.mxu0 %v3058
        %3847 = vmatprep.subr.mxu0 0.0
        %3848 = vmatpush1.msra.mxu0 %v3057
        %3849 = vmatprep.subr.mxu0 0.0
        %3850 = vmatpush1.msra.mxu0 %v3056
        %3851 = vmatprep.subr.mxu0 0.0
        %3852 = vmatpush1.msra.mxu0 %v3055
        %3853 = vmatprep.subr.mxu0 0.0
        %3854 = vmatpush1.msra.mxu0 %v3054
        %3855 = vmatprep.subr.mxu0 0.0
        %3856 = vmatpush1.msra.mxu0 %v3053
        %3857 = vmatprep.subr.mxu0 0.0
        %3858 = vmatpush1.msra.mxu0 %v3052
        %3859 = vmatprep.subr.mxu0 0.0
        %3860 = vmatpush1.msra.mxu0 %v3051
        %3861 = vmatprep.subr.mxu0 0.0
        %3862 = vmatpush1.msra.mxu0 %v3050
        %3863 = vmatprep.subr.mxu0 0.0
        %3864 = vmatpush1.msra.mxu0 %v3049
        %3865 = vmatprep.subr.mxu0 0.0
        %3866 = vmatpush1.msra.mxu0 %v3048
        %3867 = vmatprep.subr.mxu0 0.0
        %3868 = vmatpush2.msra.mxu0 %v3079
        %3869 = vmatprep.subr.mxu0 0.0
        %3870 = vmatpush2.msra.mxu0 %v3078
        %3871 = vmatprep.subr.mxu0 0.0
        %3872 = vmatpush2.msra.mxu0 %v3077
        %3873 = vmatprep.subr.mxu0 0.0
        %3874 = vmatpush2.msra.mxu0 %v3076
        %3875 = vmatprep.subr.mxu0 0.0
        %3876 = vmatpush2.msra.mxu0 %v3075
        %3877 = vmatprep.subr.mxu0 0.0
        %3878 = vmatpush2.msra.mxu0 %v3074
        %3879 = vmatprep.subr.mxu0 0.0
        %3880 = vmatpush2.msra.mxu0 %v3073
        %3881 = vmatprep.subr.mxu0 0.0
        %3882 = vmatpush2.msra.mxu0 %v3072
        %3883 = vmatprep.subr.mxu0 0.0
        %3884 = vmatpush2.msra.mxu0 %v3071
        %3885 = vmatprep.subr.mxu0 0.0
        %3886 = vmatpush2.msra.mxu0 %v3070
        %3887 = vmatprep.subr.mxu0 0.0
        %3888 = vmatpush2.msra.mxu0 %v3069
        %3889 = vmatprep.subr.mxu0 0.0
        %3890 = vmatpush2.msra.mxu0 %v3068
        %3891 = vmatprep.subr.mxu0 0.0
        %3892 = vmatpush2.msra.mxu0 %v3067
        %3893 = vmatprep.subr.mxu0 0.0
        %3894 = vmatpush2.msra.mxu0 %v3066
        %3895 = vmatprep.subr.mxu0 0.0
        %3896 = vmatpush2.msra.mxu0 %v3065
        %3897 = vmatprep.subr.mxu0 0.0
        %3898 = vmatpush2.msra.mxu0 %v3064
        %3899 = vmatprep.mubr.f32.mxu0 %v2724
        %3900 = vmatmul.mubr.f32.gmra.mxu0 %v2723
        %v3901 = vpop.f32.mrf.mxu0
        %v3902 = vadd.f32 %v3832, %v3901
        %v3903 = vpop.f32.mrf.mxu0
        %3904 = vdwg.mxu0
        %3905 = vmatprep.subr.mxu0 0.0
        %3906 = vmatpush1.msra.mxu0 %v3095
        %3907 = vmatprep.subr.mxu0 0.0
        %3908 = vmatpush1.msra.mxu0 %v3094
        %3909 = vmatprep.subr.mxu0 0.0
        %3910 = vmatpush1.msra.mxu0 %v3093
        %3911 = vmatprep.subr.mxu0 0.0
        %3912 = vmatpush1.msra.mxu0 %v3092
        %3913 = vmatprep.subr.mxu0 0.0
        %3914 = vmatpush1.msra.mxu0 %v3091
        %3915 = vmatprep.subr.mxu0 0.0
        %3916 = vmatpush1.msra.mxu0 %v3090
        %3917 = vmatprep.subr.mxu0 0.0
        %3918 = vmatpush1.msra.mxu0 %v3089
        %3919 = vmatprep.subr.mxu0 0.0
        %3920 = vmatpush1.msra.mxu0 %v3088
        %3921 = vmatprep.subr.mxu0 0.0
        %3922 = vmatpush1.msra.mxu0 %v3087
        %3923 = vmatprep.subr.mxu0 0.0
        %3924 = vmatpush1.msra.mxu0 %v3086
        %3925 = vmatprep.subr.mxu0 0.0
        %3926 = vmatpush1.msra.mxu0 %v3085
        %3927 = vmatprep.subr.mxu0 0.0
        %3928 = vmatpush1.msra.mxu0 %v3084
        %3929 = vmatprep.subr.mxu0 0.0
        %3930 = vmatpush1.msra.mxu0 %v3083
        %3931 = vmatprep.subr.mxu0 0.0
        %3932 = vmatpush1.msra.mxu0 %v3082
        %3933 = vmatprep.subr.mxu0 0.0
        %3934 = vmatpush1.msra.mxu0 %v3081
        %3935 = vmatprep.subr.mxu0 0.0
        %3936 = vmatpush1.msra.mxu0 %v3080
        %3937 = vmatprep.subr.mxu0 0.0
        %3938 = vmatpush2.msra.mxu0 %v3111
        %3939 = vmatprep.subr.mxu0 0.0
        %3940 = vmatpush2.msra.mxu0 %v3110
        %3941 = vmatprep.subr.mxu0 0.0
        %3942 = vmatpush2.msra.mxu0 %v3109
        %3943 = vmatprep.subr.mxu0 0.0
        %3944 = vmatpush2.msra.mxu0 %v3108
        %3945 = vmatprep.subr.mxu0 0.0
        %3946 = vmatpush2.msra.mxu0 %v3107
        %3947 = vmatprep.subr.mxu0 0.0
        %3948 = vmatpush2.msra.mxu0 %v3106
        %3949 = vmatprep.subr.mxu0 0.0
        %3950 = vmatpush2.msra.mxu0 %v3105
        %3951 = vmatprep.subr.mxu0 0.0
        %3952 = vmatpush2.msra.mxu0 %v3104
        %3953 = vmatprep.subr.mxu0 0.0
        %3954 = vmatpush2.msra.mxu0 %v3103
        %3955 = vmatprep.subr.mxu0 0.0
        %3956 = vmatpush2.msra.mxu0 %v3102
        %3957 = vmatprep.subr.mxu0 0.0
        %3958 = vmatpush2.msra.mxu0 %v3101
        %3959 = vmatprep.subr.mxu0 0.0
        %3960 = vmatpush2.msra.mxu0 %v3100
        %3961 = vmatprep.subr.mxu0 0.0
        %3962 = vmatpush2.msra.mxu0 %v3099
        %3963 = vmatprep.subr.mxu0 0.0
        %3964 = vmatpush2.msra.mxu0 %v3098
        %3965 = vmatprep.subr.mxu0 0.0
        %3966 = vmatpush2.msra.mxu0 %v3097
        %3967 = vmatprep.subr.mxu0 0.0
        %3968 = vmatpush2.msra.mxu0 %v3096
        %3969 = vmatprep.mubr.f32.mxu0 %v2726
        %3970 = vmatmul.mubr.f32.gmra.mxu0 %v2725
        %v3971 = vpop.f32.mrf.mxu0
        %v3972 = vadd.f32 %v3902, %v3971
        %v3973 = vpop.f32.mrf.mxu0
        %3974 = vdwg.mxu0
        %3975 = vmatprep.subr.mxu0 0.0
        %3976 = vmatpush1.msra.mxu0 %v3127
        %3977 = vmatprep.subr.mxu0 0.0
        %3978 = vmatpush1.msra.mxu0 %v3126
        %3979 = vmatprep.subr.mxu0 0.0
        %3980 = vmatpush1.msra.mxu0 %v3125
        %3981 = vmatprep.subr.mxu0 0.0
        %3982 = vmatpush1.msra.mxu0 %v3124
        %3983 = vmatprep.subr.mxu0 0.0
        %3984 = vmatpush1.msra.mxu0 %v3123
        %3985 = vmatprep.subr.mxu0 0.0
        %3986 = vmatpush1.msra.mxu0 %v3122
        %3987 = vmatprep.subr.mxu0 0.0
        %3988 = vmatpush1.msra.mxu0 %v3121
        %3989 = vmatprep.subr.mxu0 0.0
        %3990 = vmatpush1.msra.mxu0 %v3120
        %3991 = vmatprep.subr.mxu0 0.0
        %3992 = vmatpush1.msra.mxu0 %v3119
        %3993 = vmatprep.subr.mxu0 0.0
        %3994 = vmatpush1.msra.mxu0 %v3118
        %3995 = vmatprep.subr.mxu0 0.0
        %3996 = vmatpush1.msra.mxu0 %v3117
        %3997 = vmatprep.subr.mxu0 0.0
        %3998 = vmatpush1.msra.mxu0 %v3116
        %3999 = vmatprep.subr.mxu0 0.0
        %4000 = vmatpush1.msra.mxu0 %v3115
        %4001 = vmatprep.subr.mxu0 0.0
        %4002 = vmatpush1.msra.mxu0 %v3114
        %4003 = vmatprep.subr.mxu0 0.0
        %4004 = vmatpush1.msra.mxu0 %v3113
        %4005 = vmatprep.subr.mxu0 0.0
        %4006 = vmatpush1.msra.mxu0 %v3112
        %4007 = vmatprep.subr.mxu0 0.0
        %4008 = vmatpush2.msra.mxu0 0.0
        %4009 = vmatprep.subr.mxu0 0.0
        %4010 = vmatpush2.msra.mxu0 0.0
        %4011 = vmatprep.subr.mxu0 0.0
        %4012 = vmatpush2.msra.mxu0 0.0
        %4013 = vmatprep.subr.mxu0 0.0
        %4014 = vmatpush2.msra.mxu0 0.0
        %4015 = vmatprep.subr.mxu0 0.0
        %4016 = vmatpush2.msra.mxu0 0.0
        %4017 = vmatprep.subr.mxu0 0.0
        %4018 = vmatpush2.msra.mxu0 0.0
        %4019 = vmatprep.subr.mxu0 0.0
        %4020 = vmatpush2.msra.mxu0 0.0
        %4021 = vmatprep.subr.mxu0 0.0
        %4022 = vmatpush2.msra.mxu0 0.0
        %4023 = vmatprep.subr.mxu0 0.0
        %4024 = vmatpush2.msra.mxu0 0.0
        %4025 = vmatprep.subr.mxu0 0.0
        %4026 = vmatpush2.msra.mxu0 0.0
        %4027 = vmatprep.subr.mxu0 0.0
        %4028 = vmatpush2.msra.mxu0 0.0
        %4029 = vmatprep.subr.mxu0 0.0
        %4030 = vmatpush2.msra.mxu0 0.0
        %4031 = vmatprep.subr.mxu0 0.0
        %4032 = vmatpush2.msra.mxu0 0.0
        %4033 = vmatprep.subr.mxu0 0.0
        %4034 = vmatpush2.msra.mxu0 0.0
        %4035 = vmatprep.subr.mxu0 0.0
        %4036 = vmatpush2.msra.mxu0 0.0
        %4037 = vmatprep.subr.mxu0 0.0
        %4038 = vmatpush2.msra.mxu0 0.0
        %4039 = vmatprep.mubr.f32.mxu0 0.0
        %4040 = vmatmul.mubr.f32.gmra.mxu0 %v2727
        %v4041 = vpop.f32.mrf.mxu0
        %v4042 = vadd.f32 %v3972, %v4041
        %v4043 = vpop.f32.mrf.mxu0
        %4044 = vdwg.mxu0
        %v4045 = vmax.f32 %v4042, 0.0
        %v4046 = vld [vmem:[%s7] sm:$0x7f]
        %v4047 = vmul.f32 %v4045, %v4046
        %vm4048 = vcmask 1046528
        %v4049 = vsel %vm4048, %v4047, 0.0
        %4050 = vadd.xlane.f32.xlu0 %v4049
        %v4051 = vpop.xlane.xlu0 %4050
        %v4052 = vrot.slane %v4051, 4
        %v4053 = vadd.f32 %v4051, %v4052
        %v4054 = vrot.slane %v4053, 2
        %v4055 = vadd.f32 %v4053, %v4054
        %v4056 = vrot.slane %v4055, 1
        %v4057 = vadd.f32 %v4055, %v4056
        %s4058 = vtos %v4057
        %s4059 = sadd.f32 %s4058, 0.0
        %s4060 = scalar_lea.vmem %s7, 32
        %v4061 = vld [vmem:[%s4060] sm:$0x7f]
        %v4062 = vmul.f32 %v4045, %v4061
        %v4063 = vsel %vm4048, %v4062, 0.0
        %4064 = vadd.xlane.f32.xlu0 %v4063
        %v4065 = vpop.xlane.xlu0 %4064
        %v4066 = vrot.slane %v4065, 4
        %v4067 = vadd.f32 %v4065, %v4066
        %v4068 = vrot.slane %v4067, 2
        %v4069 = vadd.f32 %v4067, %v4068
        %v4070 = vrot.slane %v4069, 1
        %v4071 = vadd.f32 %v4069, %v4070
        %s4072 = vtos %v4071
        %s4073 = sadd.f32 %s4072, 0.0
        %v4074 = vld [vmem:[%s2700] sm:$0x7f]
        %v4075 = vld [vmem:[%s2700 + $0x1] sm:$0x7f]
        %v4076 = vld [vmem:[%s2700 + $0x2] sm:$0x7f]
        %v4077 = vld [vmem:[%s2700 + $0x3] sm:$0x7f]
        %v4078 = vld [vmem:[%s2700 + $0x4] sm:$0x7f]
        %4079 = vmatprep.subr.mxu0 0.0
        %4080 = vmatpush1.msra.mxu0 %v2743
        %4081 = vmatprep.subr.mxu0 0.0
        %4082 = vmatpush1.msra.mxu0 %v2742
        %4083 = vmatprep.subr.mxu0 0.0
        %4084 = vmatpush1.msra.mxu0 %v2741
        %4085 = vmatprep.subr.mxu0 0.0
        %4086 = vmatpush1.msra.mxu0 %v2740
        %4087 = vmatprep.subr.mxu0 0.0
        %4088 = vmatpush1.msra.mxu0 %v2739
        %4089 = vmatprep.subr.mxu0 0.0
        %4090 = vmatpush1.msra.mxu0 %v2738
        %4091 = vmatprep.subr.mxu0 0.0
        %4092 = vmatpush1.msra.mxu0 %v2737
        %4093 = vmatprep.subr.mxu0 0.0
        %4094 = vmatpush1.msra.mxu0 %v2736
        %4095 = vmatprep.subr.mxu0 0.0
        %4096 = vmatpush1.msra.mxu0 %v2735
        %4097 = vmatprep.subr.mxu0 0.0
        %4098 = vmatpush1.msra.mxu0 %v2734
        %4099 = vmatprep.subr.mxu0 0.0
        %4100 = vmatpush1.msra.mxu0 %v2733
        %4101 = vmatprep.subr.mxu0 0.0
        %4102 = vmatpush1.msra.mxu0 %v2732
        %4103 = vmatprep.subr.mxu0 0.0
        %4104 = vmatpush1.msra.mxu0 %v2731
        %4105 = vmatprep.subr.mxu0 0.0
        %4106 = vmatpush1.msra.mxu0 %v2730
        %4107 = vmatprep.subr.mxu0 0.0
        %4108 = vmatpush1.msra.mxu0 %v2729
        %4109 = vmatprep.subr.mxu0 0.0
        %4110 = vmatpush1.msra.mxu0 %v2728
        %4111 = vmatprep.subr.mxu0 0.0
        %4112 = vmatpush2.msra.mxu0 %v2759
        %4113 = vmatprep.subr.mxu0 0.0
        %4114 = vmatpush2.msra.mxu0 %v2758
        %4115 = vmatprep.subr.mxu0 0.0
        %4116 = vmatpush2.msra.mxu0 %v2757
        %4117 = vmatprep.subr.mxu0 0.0
        %4118 = vmatpush2.msra.mxu0 %v2756
        %4119 = vmatprep.subr.mxu0 0.0
        %4120 = vmatpush2.msra.mxu0 %v2755
        %4121 = vmatprep.subr.mxu0 0.0
        %4122 = vmatpush2.msra.mxu0 %v2754
        %4123 = vmatprep.subr.mxu0 0.0
        %4124 = vmatpush2.msra.mxu0 %v2753
        %4125 = vmatprep.subr.mxu0 0.0
        %4126 = vmatpush2.msra.mxu0 %v2752
        %4127 = vmatprep.subr.mxu0 0.0
        %4128 = vmatpush2.msra.mxu0 %v2751
        %4129 = vmatprep.subr.mxu0 0.0
        %4130 = vmatpush2.msra.mxu0 %v2750
        %4131 = vmatprep.subr.mxu0 0.0
        %4132 = vmatpush2.msra.mxu0 %v2749
        %4133 = vmatprep.subr.mxu0 0.0
        %4134 = vmatpush2.msra.mxu0 %v2748
        %4135 = vmatprep.subr.mxu0 0.0
        %4136 = vmatpush2.msra.mxu0 %v2747
        %4137 = vmatprep.subr.mxu0 0.0
        %4138 = vmatpush2.msra.mxu0 %v2746
        %4139 = vmatprep.subr.mxu0 0.0
        %4140 = vmatpush2.msra.mxu0 %v2745
        %4141 = vmatprep.subr.mxu0 0.0
        %4142 = vmatpush2.msra.mxu0 %v2744
        %4143 = vmatprep.mubr.f32.mxu0 %v2709
        %4144 = vmatmul.mubr.f32.gmra.mxu0 %v2708
        %v4145 = vpop.f32.mrf.mxu0
        %v4146 = vadd.f32 %v3133, %v4145
        %v4147 = vpop.f32.mrf.mxu0
        %4148 = vdwg.mxu0
        %4149 = vmatprep.subr.mxu0 0.0
        %4150 = vmatpush1.msra.mxu0 %v2775
        %4151 = vmatprep.subr.mxu0 0.0
        %4152 = vmatpush1.msra.mxu0 %v2774
        %4153 = vmatprep.subr.mxu0 0.0
        %4154 = vmatpush1.msra.mxu0 %v2773
        %4155 = vmatprep.subr.mxu0 0.0
        %4156 = vmatpush1.msra.mxu0 %v2772
        %4157 = vmatprep.subr.mxu0 0.0
        %4158 = vmatpush1.msra.mxu0 %v2771
        %4159 = vmatprep.subr.mxu0 0.0
        %4160 = vmatpush1.msra.mxu0 %v2770
        %4161 = vmatprep.subr.mxu0 0.0
        %4162 = vmatpush1.msra.mxu0 %v2769
        %4163 = vmatprep.subr.mxu0 0.0
        %4164 = vmatpush1.msra.mxu0 %v2768
        %4165 = vmatprep.subr.mxu0 0.0
        %4166 = vmatpush1.msra.mxu0 %v2767
        %4167 = vmatprep.subr.mxu0 0.0
        %4168 = vmatpush1.msra.mxu0 %v2766
        %4169 = vmatprep.subr.mxu0 0.0
        %4170 = vmatpush1.msra.mxu0 %v2765
        %4171 = vmatprep.subr.mxu0 0.0
        %4172 = vmatpush1.msra.mxu0 %v2764
        %4173 = vmatprep.subr.mxu0 0.0
        %4174 = vmatpush1.msra.mxu0 %v2763
        %4175 = vmatprep.subr.mxu0 0.0
        %4176 = vmatpush1.msra.mxu0 %v2762
        %4177 = vmatprep.subr.mxu0 0.0
        %4178 = vmatpush1.msra.mxu0 %v2761
        %4179 = vmatprep.subr.mxu0 0.0
        %4180 = vmatpush1.msra.mxu0 %v2760
        %4181 = vmatprep.subr.mxu0 0.0
        %4182 = vmatpush2.msra.mxu0 %v2791
        %4183 = vmatprep.subr.mxu0 0.0
        %4184 = vmatpush2.msra.mxu0 %v2790
        %4185 = vmatprep.subr.mxu0 0.0
        %4186 = vmatpush2.msra.mxu0 %v2789
        %4187 = vmatprep.subr.mxu0 0.0
        %4188 = vmatpush2.msra.mxu0 %v2788
        %4189 = vmatprep.subr.mxu0 0.0
        %4190 = vmatpush2.msra.mxu0 %v2787
        %4191 = vmatprep.subr.mxu0 0.0
        %4192 = vmatpush2.msra.mxu0 %v2786
        %4193 = vmatprep.subr.mxu0 0.0
        %4194 = vmatpush2.msra.mxu0 %v2785
        %4195 = vmatprep.subr.mxu0 0.0
        %4196 = vmatpush2.msra.mxu0 %v2784
        %4197 = vmatprep.subr.mxu0 0.0
        %4198 = vmatpush2.msra.mxu0 %v2783
        %4199 = vmatprep.subr.mxu0 0.0
        %4200 = vmatpush2.msra.mxu0 %v2782
        %4201 = vmatprep.subr.mxu0 0.0
        %4202 = vmatpush2.msra.mxu0 %v2781
        %4203 = vmatprep.subr.mxu0 0.0
        %4204 = vmatpush2.msra.mxu0 %v2780
        %4205 = vmatprep.subr.mxu0 0.0
        %4206 = vmatpush2.msra.mxu0 %v2779
        %4207 = vmatprep.subr.mxu0 0.0
        %4208 = vmatpush2.msra.mxu0 %v2778
        %4209 = vmatprep.subr.mxu0 0.0
        %4210 = vmatpush2.msra.mxu0 %v2777
        %4211 = vmatprep.subr.mxu0 0.0
        %4212 = vmatpush2.msra.mxu0 %v2776
        %4213 = vmatprep.mubr.f32.mxu0 %v2711
        %4214 = vmatmul.mubr.f32.gmra.mxu0 %v2710
        %v4215 = vpop.f32.mrf.mxu0
        %v4216 = vadd.f32 %v4146, %v4215
        %v4217 = vpop.f32.mrf.mxu0
        %4218 = vdwg.mxu0
        %4219 = vmatprep.subr.mxu0 0.0
        %4220 = vmatpush1.msra.mxu0 %v2807
        %4221 = vmatprep.subr.mxu0 0.0
        %4222 = vmatpush1.msra.mxu0 %v2806
        %4223 = vmatprep.subr.mxu0 0.0
        %4224 = vmatpush1.msra.mxu0 %v2805
        %4225 = vmatprep.subr.mxu0 0.0
        %4226 = vmatpush1.msra.mxu0 %v2804
        %4227 = vmatprep.subr.mxu0 0.0
        %4228 = vmatpush1.msra.mxu0 %v2803
        %4229 = vmatprep.subr.mxu0 0.0
        %4230 = vmatpush1.msra.mxu0 %v2802
        %4231 = vmatprep.subr.mxu0 0.0
        %4232 = vmatpush1.msra.mxu0 %v2801
        %4233 = vmatprep.subr.mxu0 0.0
        %4234 = vmatpush1.msra.mxu0 %v2800
        %4235 = vmatprep.subr.mxu0 0.0
        %4236 = vmatpush1.msra.mxu0 %v2799
        %4237 = vmatprep.subr.mxu0 0.0
        %4238 = vmatpush1.msra.mxu0 %v2798
        %4239 = vmatprep.subr.mxu0 0.0
        %4240 = vmatpush1.msra.mxu0 %v2797
        %4241 = vmatprep.subr.mxu0 0.0
        %4242 = vmatpush1.msra.mxu0 %v2796
        %4243 = vmatprep.subr.mxu0 0.0
        %4244 = vmatpush1.msra.mxu0 %v2795
        %4245 = vmatprep.subr.mxu0 0.0
        %4246 = vmatpush1.msra.mxu0 %v2794
        %4247 = vmatprep.subr.mxu0 0.0
        %4248 = vmatpush1.msra.mxu0 %v2793
        %4249 = vmatprep.subr.mxu0 0.0
        %4250 = vmatpush1.msra.mxu0 %v2792
        %4251 = vmatprep.subr.mxu0 0.0
        %4252 = vmatpush2.msra.mxu0 %v2823
        %4253 = vmatprep.subr.mxu0 0.0
        %4254 = vmatpush2.msra.mxu0 %v2822
        %4255 = vmatprep.subr.mxu0 0.0
        %4256 = vmatpush2.msra.mxu0 %v2821
        %4257 = vmatprep.subr.mxu0 0.0
        %4258 = vmatpush2.msra.mxu0 %v2820
        %4259 = vmatprep.subr.mxu0 0.0
        %4260 = vmatpush2.msra.mxu0 %v2819
        %4261 = vmatprep.subr.mxu0 0.0
        %4262 = vmatpush2.msra.mxu0 %v2818
        %4263 = vmatprep.subr.mxu0 0.0
        %4264 = vmatpush2.msra.mxu0 %v2817
        %4265 = vmatprep.subr.mxu0 0.0
        %4266 = vmatpush2.msra.mxu0 %v2816
        %4267 = vmatprep.subr.mxu0 0.0
        %4268 = vmatpush2.msra.mxu0 %v2815
        %4269 = vmatprep.subr.mxu0 0.0
        %4270 = vmatpush2.msra.mxu0 %v2814
        %4271 = vmatprep.subr.mxu0 0.0
        %4272 = vmatpush2.msra.mxu0 %v2813
        %4273 = vmatprep.subr.mxu0 0.0
        %4274 = vmatpush2.msra.mxu0 %v2812
        %4275 = vmatprep.subr.mxu0 0.0
        %4276 = vmatpush2.msra.mxu0 %v2811
        %4277 = vmatprep.subr.mxu0 0.0
        %4278 = vmatpush2.msra.mxu0 %v2810
        %4279 = vmatprep.subr.mxu0 0.0
        %4280 = vmatpush2.msra.mxu0 %v2809
        %4281 = vmatprep.subr.mxu0 0.0
        %4282 = vmatpush2.msra.mxu0 %v2808
        %4283 = vmatprep.mubr.f32.mxu0 %v2713
        %4284 = vmatmul.mubr.f32.gmra.mxu0 %v2712
        %v4285 = vpop.f32.mrf.mxu0
        %v4286 = vadd.f32 %v4216, %v4285
        %v4287 = vpop.f32.mrf.mxu0
        %4288 = vdwg.mxu0
        %4289 = vmatprep.subr.mxu0 0.0
        %4290 = vmatpush1.msra.mxu0 %v2839
        %4291 = vmatprep.subr.mxu0 0.0
        %4292 = vmatpush1.msra.mxu0 %v2838
        %4293 = vmatprep.subr.mxu0 0.0
        %4294 = vmatpush1.msra.mxu0 %v2837
        %4295 = vmatprep.subr.mxu0 0.0
        %4296 = vmatpush1.msra.mxu0 %v2836
        %4297 = vmatprep.subr.mxu0 0.0
        %4298 = vmatpush1.msra.mxu0 %v2835
        %4299 = vmatprep.subr.mxu0 0.0
        %4300 = vmatpush1.msra.mxu0 %v2834
        %4301 = vmatprep.subr.mxu0 0.0
        %4302 = vmatpush1.msra.mxu0 %v2833
        %4303 = vmatprep.subr.mxu0 0.0
        %4304 = vmatpush1.msra.mxu0 %v2832
        %4305 = vmatprep.subr.mxu0 0.0
        %4306 = vmatpush1.msra.mxu0 %v2831
        %4307 = vmatprep.subr.mxu0 0.0
        %4308 = vmatpush1.msra.mxu0 %v2830
        %4309 = vmatprep.subr.mxu0 0.0
        %4310 = vmatpush1.msra.mxu0 %v2829
        %4311 = vmatprep.subr.mxu0 0.0
        %4312 = vmatpush1.msra.mxu0 %v2828
        %4313 = vmatprep.subr.mxu0 0.0
        %4314 = vmatpush1.msra.mxu0 %v2827
        %4315 = vmatprep.subr.mxu0 0.0
        %4316 = vmatpush1.msra.mxu0 %v2826
        %4317 = vmatprep.subr.mxu0 0.0
        %4318 = vmatpush1.msra.mxu0 %v2825
        %4319 = vmatprep.subr.mxu0 0.0
        %4320 = vmatpush1.msra.mxu0 %v2824
        %4321 = vmatprep.subr.mxu0 0.0
        %4322 = vmatpush2.msra.mxu0 %v2855
        %4323 = vmatprep.subr.mxu0 0.0
        %4324 = vmatpush2.msra.mxu0 %v2854
        %4325 = vmatprep.subr.mxu0 0.0
        %4326 = vmatpush2.msra.mxu0 %v2853
        %4327 = vmatprep.subr.mxu0 0.0
        %4328 = vmatpush2.msra.mxu0 %v2852
        %4329 = vmatprep.subr.mxu0 0.0
        %4330 = vmatpush2.msra.mxu0 %v2851
        %4331 = vmatprep.subr.mxu0 0.0
        %4332 = vmatpush2.msra.mxu0 %v2850
        %4333 = vmatprep.subr.mxu0 0.0
        %4334 = vmatpush2.msra.mxu0 %v2849
        %4335 = vmatprep.subr.mxu0 0.0
        %4336 = vmatpush2.msra.mxu0 %v2848
        %4337 = vmatprep.subr.mxu0 0.0
        %4338 = vmatpush2.msra.mxu0 %v2847
        %4339 = vmatprep.subr.mxu0 0.0
        %4340 = vmatpush2.msra.mxu0 %v2846
        %4341 = vmatprep.subr.mxu0 0.0
        %4342 = vmatpush2.msra.mxu0 %v2845
        %4343 = vmatprep.subr.mxu0 0.0
        %4344 = vmatpush2.msra.mxu0 %v2844
        %4345 = vmatprep.subr.mxu0 0.0
        %4346 = vmatpush2.msra.mxu0 %v2843
        %4347 = vmatprep.subr.mxu0 0.0
        %4348 = vmatpush2.msra.mxu0 %v2842
        %4349 = vmatprep.subr.mxu0 0.0
        %4350 = vmatpush2.msra.mxu0 %v2841
        %4351 = vmatprep.subr.mxu0 0.0
        %4352 = vmatpush2.msra.mxu0 %v2840
        %4353 = vmatprep.mubr.f32.mxu0 %v2715
        %4354 = vmatmul.mubr.f32.gmra.mxu0 %v2714
        %v4355 = vpop.f32.mrf.mxu0
        %v4356 = vadd.f32 %v4286, %v4355
        %v4357 = vpop.f32.mrf.mxu0
        %4358 = vdwg.mxu0
        %4359 = vmatprep.subr.mxu0 0.0
        %4360 = vmatpush1.msra.mxu0 %v2871
        %4361 = vmatprep.subr.mxu0 0.0
        %4362 = vmatpush1.msra.mxu0 %v2870
        %4363 = vmatprep.subr.mxu0 0.0
        %4364 = vmatpush1.msra.mxu0 %v2869
        %4365 = vmatprep.subr.mxu0 0.0
        %4366 = vmatpush1.msra.mxu0 %v2868
        %4367 = vmatprep.subr.mxu0 0.0
        %4368 = vmatpush1.msra.mxu0 %v2867
        %4369 = vmatprep.subr.mxu0 0.0
        %4370 = vmatpush1.msra.mxu0 %v2866
        %4371 = vmatprep.subr.mxu0 0.0
        %4372 = vmatpush1.msra.mxu0 %v2865
        %4373 = vmatprep.subr.mxu0 0.0
        %4374 = vmatpush1.msra.mxu0 %v2864
        %4375 = vmatprep.subr.mxu0 0.0
        %4376 = vmatpush1.msra.mxu0 %v2863
        %4377 = vmatprep.subr.mxu0 0.0
        %4378 = vmatpush1.msra.mxu0 %v2862
        %4379 = vmatprep.subr.mxu0 0.0
        %4380 = vmatpush1.msra.mxu0 %v2861
        %4381 = vmatprep.subr.mxu0 0.0
        %4382 = vmatpush1.msra.mxu0 %v2860
        %4383 = vmatprep.subr.mxu0 0.0
        %4384 = vmatpush1.msra.mxu0 %v2859
        %4385 = vmatprep.subr.mxu0 0.0
        %4386 = vmatpush1.msra.mxu0 %v2858
        %4387 = vmatprep.subr.mxu0 0.0
        %4388 = vmatpush1.msra.mxu0 %v2857
        %4389 = vmatprep.subr.mxu0 0.0
        %4390 = vmatpush1.msra.mxu0 %v2856
        %4391 = vmatprep.subr.mxu0 0.0
        %4392 = vmatpush2.msra.mxu0 %v2887
        %4393 = vmatprep.subr.mxu0 0.0
        %4394 = vmatpush2.msra.mxu0 %v2886
        %4395 = vmatprep.subr.mxu0 0.0
        %4396 = vmatpush2.msra.mxu0 %v2885
        %4397 = vmatprep.subr.mxu0 0.0
        %4398 = vmatpush2.msra.mxu0 %v2884
        %4399 = vmatprep.subr.mxu0 0.0
        %4400 = vmatpush2.msra.mxu0 %v2883
        %4401 = vmatprep.subr.mxu0 0.0
        %4402 = vmatpush2.msra.mxu0 %v2882
        %4403 = vmatprep.subr.mxu0 0.0
        %4404 = vmatpush2.msra.mxu0 %v2881
        %4405 = vmatprep.subr.mxu0 0.0
        %4406 = vmatpush2.msra.mxu0 %v2880
        %4407 = vmatprep.subr.mxu0 0.0
        %4408 = vmatpush2.msra.mxu0 %v2879
        %4409 = vmatprep.subr.mxu0 0.0
        %4410 = vmatpush2.msra.mxu0 %v2878
        %4411 = vmatprep.subr.mxu0 0.0
        %4412 = vmatpush2.msra.mxu0 %v2877
        %4413 = vmatprep.subr.mxu0 0.0
        %4414 = vmatpush2.msra.mxu0 %v2876
        %4415 = vmatprep.subr.mxu0 0.0
        %4416 = vmatpush2.msra.mxu0 %v2875
        %4417 = vmatprep.subr.mxu0 0.0
        %4418 = vmatpush2.msra.mxu0 %v2874
        %4419 = vmatprep.subr.mxu0 0.0
        %4420 = vmatpush2.msra.mxu0 %v2873
        %4421 = vmatprep.subr.mxu0 0.0
        %4422 = vmatpush2.msra.mxu0 %v2872
        %4423 = vmatprep.mubr.f32.mxu0 %v2717
        %4424 = vmatmul.mubr.f32.gmra.mxu0 %v2716
        %v4425 = vpop.f32.mrf.mxu0
        %v4426 = vadd.f32 %v4356, %v4425
        %v4427 = vpop.f32.mrf.mxu0
        %4428 = vdwg.mxu0
        %4429 = vmatprep.subr.mxu0 0.0
        %4430 = vmatpush1.msra.mxu0 %v2903
        %4431 = vmatprep.subr.mxu0 0.0
        %4432 = vmatpush1.msra.mxu0 %v2902
        %4433 = vmatprep.subr.mxu0 0.0
        %4434 = vmatpush1.msra.mxu0 %v2901
        %4435 = vmatprep.subr.mxu0 0.0
        %4436 = vmatpush1.msra.mxu0 %v2900
        %4437 = vmatprep.subr.mxu0 0.0
        %4438 = vmatpush1.msra.mxu0 %v2899
        %4439 = vmatprep.subr.mxu0 0.0
        %4440 = vmatpush1.msra.mxu0 %v2898
        %4441 = vmatprep.subr.mxu0 0.0
        %4442 = vmatpush1.msra.mxu0 %v2897
        %4443 = vmatprep.subr.mxu0 0.0
        %4444 = vmatpush1.msra.mxu0 %v2896
        %4445 = vmatprep.subr.mxu0 0.0
        %4446 = vmatpush1.msra.mxu0 %v2895
        %4447 = vmatprep.subr.mxu0 0.0
        %4448 = vmatpush1.msra.mxu0 %v2894
        %4449 = vmatprep.subr.mxu0 0.0
        %4450 = vmatpush1.msra.mxu0 %v2893
        %4451 = vmatprep.subr.mxu0 0.0
        %4452 = vmatpush1.msra.mxu0 %v2892
        %4453 = vmatprep.subr.mxu0 0.0
        %4454 = vmatpush1.msra.mxu0 %v2891
        %4455 = vmatprep.subr.mxu0 0.0
        %4456 = vmatpush1.msra.mxu0 %v2890
        %4457 = vmatprep.subr.mxu0 0.0
        %4458 = vmatpush1.msra.mxu0 %v2889
        %4459 = vmatprep.subr.mxu0 0.0
        %4460 = vmatpush1.msra.mxu0 %v2888
        %4461 = vmatprep.subr.mxu0 0.0
        %4462 = vmatpush2.msra.mxu0 %v2919
        %4463 = vmatprep.subr.mxu0 0.0
        %4464 = vmatpush2.msra.mxu0 %v2918
        %4465 = vmatprep.subr.mxu0 0.0
        %4466 = vmatpush2.msra.mxu0 %v2917
        %4467 = vmatprep.subr.mxu0 0.0
        %4468 = vmatpush2.msra.mxu0 %v2916
        %4469 = vmatprep.subr.mxu0 0.0
        %4470 = vmatpush2.msra.mxu0 %v2915
        %4471 = vmatprep.subr.mxu0 0.0
        %4472 = vmatpush2.msra.mxu0 %v2914
        %4473 = vmatprep.subr.mxu0 0.0
        %4474 = vmatpush2.msra.mxu0 %v2913
        %4475 = vmatprep.subr.mxu0 0.0
        %4476 = vmatpush2.msra.mxu0 %v2912
        %4477 = vmatprep.subr.mxu0 0.0
        %4478 = vmatpush2.msra.mxu0 %v2911
        %4479 = vmatprep.subr.mxu0 0.0
        %4480 = vmatpush2.msra.mxu0 %v2910
        %4481 = vmatprep.subr.mxu0 0.0
        %4482 = vmatpush2.msra.mxu0 %v2909
        %4483 = vmatprep.subr.mxu0 0.0
        %4484 = vmatpush2.msra.mxu0 %v2908
        %4485 = vmatprep.subr.mxu0 0.0
        %4486 = vmatpush2.msra.mxu0 %v2907
        %4487 = vmatprep.subr.mxu0 0.0
        %4488 = vmatpush2.msra.mxu0 %v2906
        %4489 = vmatprep.subr.mxu0 0.0
        %4490 = vmatpush2.msra.mxu0 %v2905
        %4491 = vmatprep.subr.mxu0 0.0
        %4492 = vmatpush2.msra.mxu0 %v2904
        %4493 = vmatprep.mubr.f32.mxu0 %v2719
        %4494 = vmatmul.mubr.f32.gmra.mxu0 %v2718
        %v4495 = vpop.f32.mrf.mxu0
        %v4496 = vadd.f32 %v4426, %v4495
        %v4497 = vpop.f32.mrf.mxu0
        %4498 = vdwg.mxu0
        %4499 = vmatprep.subr.mxu0 0.0
        %4500 = vmatpush1.msra.mxu0 %v2935
        %4501 = vmatprep.subr.mxu0 0.0
        %4502 = vmatpush1.msra.mxu0 %v2934
        %4503 = vmatprep.subr.mxu0 0.0
        %4504 = vmatpush1.msra.mxu0 %v2933
        %4505 = vmatprep.subr.mxu0 0.0
        %4506 = vmatpush1.msra.mxu0 %v2932
        %4507 = vmatprep.subr.mxu0 0.0
        %4508 = vmatpush1.msra.mxu0 %v2931
        %4509 = vmatprep.subr.mxu0 0.0
        %4510 = vmatpush1.msra.mxu0 %v2930
        %4511 = vmatprep.subr.mxu0 0.0
        %4512 = vmatpush1.msra.mxu0 %v2929
        %4513 = vmatprep.subr.mxu0 0.0
        %4514 = vmatpush1.msra.mxu0 %v2928
        %4515 = vmatprep.subr.mxu0 0.0
        %4516 = vmatpush1.msra.mxu0 %v2927
        %4517 = vmatprep.subr.mxu0 0.0
        %4518 = vmatpush1.msra.mxu0 %v2926
        %4519 = vmatprep.subr.mxu0 0.0
        %4520 = vmatpush1.msra.mxu0 %v2925
        %4521 = vmatprep.subr.mxu0 0.0
        %4522 = vmatpush1.msra.mxu0 %v2924
        %4523 = vmatprep.subr.mxu0 0.0
        %4524 = vmatpush1.msra.mxu0 %v2923
        %4525 = vmatprep.subr.mxu0 0.0
        %4526 = vmatpush1.msra.mxu0 %v2922
        %4527 = vmatprep.subr.mxu0 0.0
        %4528 = vmatpush1.msra.mxu0 %v2921
        %4529 = vmatprep.subr.mxu0 0.0
        %4530 = vmatpush1.msra.mxu0 %v2920
        %4531 = vmatprep.subr.mxu0 0.0
        %4532 = vmatpush2.msra.mxu0 %v2951
        %4533 = vmatprep.subr.mxu0 0.0
        %4534 = vmatpush2.msra.mxu0 %v2950
        %4535 = vmatprep.subr.mxu0 0.0
        %4536 = vmatpush2.msra.mxu0 %v2949
        %4537 = vmatprep.subr.mxu0 0.0
        %4538 = vmatpush2.msra.mxu0 %v2948
        %4539 = vmatprep.subr.mxu0 0.0
        %4540 = vmatpush2.msra.mxu0 %v2947
        %4541 = vmatprep.subr.mxu0 0.0
        %4542 = vmatpush2.msra.mxu0 %v2946
        %4543 = vmatprep.subr.mxu0 0.0
        %4544 = vmatpush2.msra.mxu0 %v2945
        %4545 = vmatprep.subr.mxu0 0.0
        %4546 = vmatpush2.msra.mxu0 %v2944
        %4547 = vmatprep.subr.mxu0 0.0
        %4548 = vmatpush2.msra.mxu0 %v2943
        %4549 = vmatprep.subr.mxu0 0.0
        %4550 = vmatpush2.msra.mxu0 %v2942
        %4551 = vmatprep.subr.mxu0 0.0
        %4552 = vmatpush2.msra.mxu0 %v2941
        %4553 = vmatprep.subr.mxu0 0.0
        %4554 = vmatpush2.msra.mxu0 %v2940
        %4555 = vmatprep.subr.mxu0 0.0
        %4556 = vmatpush2.msra.mxu0 %v2939
        %4557 = vmatprep.subr.mxu0 0.0
        %4558 = vmatpush2.msra.mxu0 %v2938
        %4559 = vmatprep.subr.mxu0 0.0
        %4560 = vmatpush2.msra.mxu0 %v2937
        %4561 = vmatprep.subr.mxu0 0.0
        %4562 = vmatpush2.msra.mxu0 %v2936
        %4563 = vmatprep.mubr.f32.mxu0 %v2721
        %4564 = vmatmul.mubr.f32.gmra.mxu0 %v2720
        %v4565 = vpop.f32.mrf.mxu0
        %v4566 = vadd.f32 %v4496, %v4565
        %v4567 = vpop.f32.mrf.mxu0
        %4568 = vdwg.mxu0
        %4569 = vmatprep.subr.mxu0 0.0
        %4570 = vmatpush1.msra.mxu0 %v2967
        %4571 = vmatprep.subr.mxu0 0.0
        %4572 = vmatpush1.msra.mxu0 %v2966
        %4573 = vmatprep.subr.mxu0 0.0
        %4574 = vmatpush1.msra.mxu0 %v2965
        %4575 = vmatprep.subr.mxu0 0.0
        %4576 = vmatpush1.msra.mxu0 %v2964
        %4577 = vmatprep.subr.mxu0 0.0
        %4578 = vmatpush1.msra.mxu0 %v2963
        %4579 = vmatprep.subr.mxu0 0.0
        %4580 = vmatpush1.msra.mxu0 %v2962
        %4581 = vmatprep.subr.mxu0 0.0
        %4582 = vmatpush1.msra.mxu0 %v2961
        %4583 = vmatprep.subr.mxu0 0.0
        %4584 = vmatpush1.msra.mxu0 %v2960
        %4585 = vmatprep.subr.mxu0 0.0
        %4586 = vmatpush1.msra.mxu0 %v2959
        %4587 = vmatprep.subr.mxu0 0.0
        %4588 = vmatpush1.msra.mxu0 %v2958
        %4589 = vmatprep.subr.mxu0 0.0
        %4590 = vmatpush1.msra.mxu0 %v2957
        %4591 = vmatprep.subr.mxu0 0.0
        %4592 = vmatpush1.msra.mxu0 %v2956
        %4593 = vmatprep.subr.mxu0 0.0
        %4594 = vmatpush1.msra.mxu0 %v2955
        %4595 = vmatprep.subr.mxu0 0.0
        %4596 = vmatpush1.msra.mxu0 %v2954
        %4597 = vmatprep.subr.mxu0 0.0
        %4598 = vmatpush1.msra.mxu0 %v2953
        %4599 = vmatprep.subr.mxu0 0.0
        %4600 = vmatpush1.msra.mxu0 %v2952
        %4601 = vmatprep.subr.mxu0 0.0
        %4602 = vmatpush2.msra.mxu0 %v2983
        %4603 = vmatprep.subr.mxu0 0.0
        %4604 = vmatpush2.msra.mxu0 %v2982
        %4605 = vmatprep.subr.mxu0 0.0
        %4606 = vmatpush2.msra.mxu0 %v2981
        %4607 = vmatprep.subr.mxu0 0.0
        %4608 = vmatpush2.msra.mxu0 %v2980
        %4609 = vmatprep.subr.mxu0 0.0
        %4610 = vmatpush2.msra.mxu0 %v2979
        %4611 = vmatprep.subr.mxu0 0.0
        %4612 = vmatpush2.msra.mxu0 %v2978
        %4613 = vmatprep.subr.mxu0 0.0
        %4614 = vmatpush2.msra.mxu0 %v2977
        %4615 = vmatprep.subr.mxu0 0.0
        %4616 = vmatpush2.msra.mxu0 %v2976
        %4617 = vmatprep.subr.mxu0 0.0
        %4618 = vmatpush2.msra.mxu0 %v2975
        %4619 = vmatprep.subr.mxu0 0.0
        %4620 = vmatpush2.msra.mxu0 %v2974
        %4621 = vmatprep.subr.mxu0 0.0
        %4622 = vmatpush2.msra.mxu0 %v2973
        %4623 = vmatprep.subr.mxu0 0.0
        %4624 = vmatpush2.msra.mxu0 %v2972
        %4625 = vmatprep.subr.mxu0 0.0
        %4626 = vmatpush2.msra.mxu0 %v2971
        %4627 = vmatprep.subr.mxu0 0.0
        %4628 = vmatpush2.msra.mxu0 %v2970
        %4629 = vmatprep.subr.mxu0 0.0
        %4630 = vmatpush2.msra.mxu0 %v2969
        %4631 = vmatprep.subr.mxu0 0.0
        %4632 = vmatpush2.msra.mxu0 %v2968
        %4633 = vmatprep.mubr.f32.mxu0 %v2723
        %4634 = vmatmul.mubr.f32.gmra.mxu0 %v2722
        %v4635 = vpop.f32.mrf.mxu0
        %v4636 = vadd.f32 %v4566, %v4635
        %v4637 = vpop.f32.mrf.mxu0
        %4638 = vdwg.mxu0
        %4639 = vmatprep.subr.mxu0 0.0
        %4640 = vmatpush1.msra.mxu0 %v2999
        %4641 = vmatprep.subr.mxu0 0.0
        %4642 = vmatpush1.msra.mxu0 %v2998
        %4643 = vmatprep.subr.mxu0 0.0
        %4644 = vmatpush1.msra.mxu0 %v2997
        %4645 = vmatprep.subr.mxu0 0.0
        %4646 = vmatpush1.msra.mxu0 %v2996
        %4647 = vmatprep.subr.mxu0 0.0
        %4648 = vmatpush1.msra.mxu0 %v2995
        %4649 = vmatprep.subr.mxu0 0.0
        %4650 = vmatpush1.msra.mxu0 %v2994
        %4651 = vmatprep.subr.mxu0 0.0
        %4652 = vmatpush1.msra.mxu0 %v2993
        %4653 = vmatprep.subr.mxu0 0.0
        %4654 = vmatpush1.msra.mxu0 %v2992
        %4655 = vmatprep.subr.mxu0 0.0
        %4656 = vmatpush1.msra.mxu0 %v2991
        %4657 = vmatprep.subr.mxu0 0.0
        %4658 = vmatpush1.msra.mxu0 %v2990
        %4659 = vmatprep.subr.mxu0 0.0
        %4660 = vmatpush1.msra.mxu0 %v2989
        %4661 = vmatprep.subr.mxu0 0.0
        %4662 = vmatpush1.msra.mxu0 %v2988
        %4663 = vmatprep.subr.mxu0 0.0
        %4664 = vmatpush1.msra.mxu0 %v2987
        %4665 = vmatprep.subr.mxu0 0.0
        %4666 = vmatpush1.msra.mxu0 %v2986
        %4667 = vmatprep.subr.mxu0 0.0
        %4668 = vmatpush1.msra.mxu0 %v2985
        %4669 = vmatprep.subr.mxu0 0.0
        %4670 = vmatpush1.msra.mxu0 %v2984
        %4671 = vmatprep.subr.mxu0 0.0
        %4672 = vmatpush2.msra.mxu0 %v3015
        %4673 = vmatprep.subr.mxu0 0.0
        %4674 = vmatpush2.msra.mxu0 %v3014
        %4675 = vmatprep.subr.mxu0 0.0
        %4676 = vmatpush2.msra.mxu0 %v3013
        %4677 = vmatprep.subr.mxu0 0.0
        %4678 = vmatpush2.msra.mxu0 %v3012
        %4679 = vmatprep.subr.mxu0 0.0
        %4680 = vmatpush2.msra.mxu0 %v3011
        %4681 = vmatprep.subr.mxu0 0.0
        %4682 = vmatpush2.msra.mxu0 %v3010
        %4683 = vmatprep.subr.mxu0 0.0
        %4684 = vmatpush2.msra.mxu0 %v3009
        %4685 = vmatprep.subr.mxu0 0.0
        %4686 = vmatpush2.msra.mxu0 %v3008
        %4687 = vmatprep.subr.mxu0 0.0
        %4688 = vmatpush2.msra.mxu0 %v3007
        %4689 = vmatprep.subr.mxu0 0.0
        %4690 = vmatpush2.msra.mxu0 %v3006
        %4691 = vmatprep.subr.mxu0 0.0
        %4692 = vmatpush2.msra.mxu0 %v3005
        %4693 = vmatprep.subr.mxu0 0.0
        %4694 = vmatpush2.msra.mxu0 %v3004
        %4695 = vmatprep.subr.mxu0 0.0
        %4696 = vmatpush2.msra.mxu0 %v3003
        %4697 = vmatprep.subr.mxu0 0.0
        %4698 = vmatpush2.msra.mxu0 %v3002
        %4699 = vmatprep.subr.mxu0 0.0
        %4700 = vmatpush2.msra.mxu0 %v3001
        %4701 = vmatprep.subr.mxu0 0.0
        %4702 = vmatpush2.msra.mxu0 %v3000
        %4703 = vmatprep.mubr.f32.mxu0 %v2725
        %4704 = vmatmul.mubr.f32.gmra.mxu0 %v2724
        %v4705 = vpop.f32.mrf.mxu0
        %v4706 = vadd.f32 %v4636, %v4705
        %v4707 = vpop.f32.mrf.mxu0
        %4708 = vdwg.mxu0
        %4709 = vmatprep.subr.mxu0 0.0
        %4710 = vmatpush1.msra.mxu0 %v3031
        %4711 = vmatprep.subr.mxu0 0.0
        %4712 = vmatpush1.msra.mxu0 %v3030
        %4713 = vmatprep.subr.mxu0 0.0
        %4714 = vmatpush1.msra.mxu0 %v3029
        %4715 = vmatprep.subr.mxu0 0.0
        %4716 = vmatpush1.msra.mxu0 %v3028
        %4717 = vmatprep.subr.mxu0 0.0
        %4718 = vmatpush1.msra.mxu0 %v3027
        %4719 = vmatprep.subr.mxu0 0.0
        %4720 = vmatpush1.msra.mxu0 %v3026
        %4721 = vmatprep.subr.mxu0 0.0
        %4722 = vmatpush1.msra.mxu0 %v3025
        %4723 = vmatprep.subr.mxu0 0.0
        %4724 = vmatpush1.msra.mxu0 %v3024
        %4725 = vmatprep.subr.mxu0 0.0
        %4726 = vmatpush1.msra.mxu0 %v3023
        %4727 = vmatprep.subr.mxu0 0.0
        %4728 = vmatpush1.msra.mxu0 %v3022
        %4729 = vmatprep.subr.mxu0 0.0
        %4730 = vmatpush1.msra.mxu0 %v3021
        %4731 = vmatprep.subr.mxu0 0.0
        %4732 = vmatpush1.msra.mxu0 %v3020
        %4733 = vmatprep.subr.mxu0 0.0
        %4734 = vmatpush1.msra.mxu0 %v3019
        %4735 = vmatprep.subr.mxu0 0.0
        %4736 = vmatpush1.msra.mxu0 %v3018
        %4737 = vmatprep.subr.mxu0 0.0
        %4738 = vmatpush1.msra.mxu0 %v3017
        %4739 = vmatprep.subr.mxu0 0.0
        %4740 = vmatpush1.msra.mxu0 %v3016
        %4741 = vmatprep.subr.mxu0 0.0
        %4742 = vmatpush2.msra.mxu0 %v3047
        %4743 = vmatprep.subr.mxu0 0.0
        %4744 = vmatpush2.msra.mxu0 %v3046
        %4745 = vmatprep.subr.mxu0 0.0
        %4746 = vmatpush2.msra.mxu0 %v3045
        %4747 = vmatprep.subr.mxu0 0.0
        %4748 = vmatpush2.msra.mxu0 %v3044
        %4749 = vmatprep.subr.mxu0 0.0
        %4750 = vmatpush2.msra.mxu0 %v3043
        %4751 = vmatprep.subr.mxu0 0.0
        %4752 = vmatpush2.msra.mxu0 %v3042
        %4753 = vmatprep.subr.mxu0 0.0
        %4754 = vmatpush2.msra.mxu0 %v3041
        %4755 = vmatprep.subr.mxu0 0.0
        %4756 = vmatpush2.msra.mxu0 %v3040
        %4757 = vmatprep.subr.mxu0 0.0
        %4758 = vmatpush2.msra.mxu0 %v3039
        %4759 = vmatprep.subr.mxu0 0.0
        %4760 = vmatpush2.msra.mxu0 %v3038
        %4761 = vmatprep.subr.mxu0 0.0
        %4762 = vmatpush2.msra.mxu0 %v3037
        %4763 = vmatprep.subr.mxu0 0.0
        %4764 = vmatpush2.msra.mxu0 %v3036
        %4765 = vmatprep.subr.mxu0 0.0
        %4766 = vmatpush2.msra.mxu0 %v3035
        %4767 = vmatprep.subr.mxu0 0.0
        %4768 = vmatpush2.msra.mxu0 %v3034
        %4769 = vmatprep.subr.mxu0 0.0
        %4770 = vmatpush2.msra.mxu0 %v3033
        %4771 = vmatprep.subr.mxu0 0.0
        %4772 = vmatpush2.msra.mxu0 %v3032
        %4773 = vmatprep.mubr.f32.mxu0 %v2727
        %4774 = vmatmul.mubr.f32.gmra.mxu0 %v2726
        %v4775 = vpop.f32.mrf.mxu0
        %v4776 = vadd.f32 %v4706, %v4775
        %v4777 = vpop.f32.mrf.mxu0
        %4778 = vdwg.mxu0
        %4779 = vmatprep.subr.mxu0 0.0
        %4780 = vmatpush1.msra.mxu0 %v3063
        %4781 = vmatprep.subr.mxu0 0.0
        %4782 = vmatpush1.msra.mxu0 %v3062
        %4783 = vmatprep.subr.mxu0 0.0
        %4784 = vmatpush1.msra.mxu0 %v3061
        %4785 = vmatprep.subr.mxu0 0.0
        %4786 = vmatpush1.msra.mxu0 %v3060
        %4787 = vmatprep.subr.mxu0 0.0
        %4788 = vmatpush1.msra.mxu0 %v3059
        %4789 = vmatprep.subr.mxu0 0.0
        %4790 = vmatpush1.msra.mxu0 %v3058
        %4791 = vmatprep.subr.mxu0 0.0
        %4792 = vmatpush1.msra.mxu0 %v3057
        %4793 = vmatprep.subr.mxu0 0.0
        %4794 = vmatpush1.msra.mxu0 %v3056
        %4795 = vmatprep.subr.mxu0 0.0
        %4796 = vmatpush1.msra.mxu0 %v3055
        %4797 = vmatprep.subr.mxu0 0.0
        %4798 = vmatpush1.msra.mxu0 %v3054
        %4799 = vmatprep.subr.mxu0 0.0
        %4800 = vmatpush1.msra.mxu0 %v3053
        %4801 = vmatprep.subr.mxu0 0.0
        %4802 = vmatpush1.msra.mxu0 %v3052
        %4803 = vmatprep.subr.mxu0 0.0
        %4804 = vmatpush1.msra.mxu0 %v3051
        %4805 = vmatprep.subr.mxu0 0.0
        %4806 = vmatpush1.msra.mxu0 %v3050
        %4807 = vmatprep.subr.mxu0 0.0
        %4808 = vmatpush1.msra.mxu0 %v3049
        %4809 = vmatprep.subr.mxu0 0.0
        %4810 = vmatpush1.msra.mxu0 %v3048
        %4811 = vmatprep.subr.mxu0 0.0
        %4812 = vmatpush2.msra.mxu0 %v3079
        %4813 = vmatprep.subr.mxu0 0.0
        %4814 = vmatpush2.msra.mxu0 %v3078
        %4815 = vmatprep.subr.mxu0 0.0
        %4816 = vmatpush2.msra.mxu0 %v3077
        %4817 = vmatprep.subr.mxu0 0.0
        %4818 = vmatpush2.msra.mxu0 %v3076
        %4819 = vmatprep.subr.mxu0 0.0
        %4820 = vmatpush2.msra.mxu0 %v3075
        %4821 = vmatprep.subr.mxu0 0.0
        %4822 = vmatpush2.msra.mxu0 %v3074
        %4823 = vmatprep.subr.mxu0 0.0
        %4824 = vmatpush2.msra.mxu0 %v3073
        %4825 = vmatprep.subr.mxu0 0.0
        %4826 = vmatpush2.msra.mxu0 %v3072
        %4827 = vmatprep.subr.mxu0 0.0
        %4828 = vmatpush2.msra.mxu0 %v3071
        %4829 = vmatprep.subr.mxu0 0.0
        %4830 = vmatpush2.msra.mxu0 %v3070
        %4831 = vmatprep.subr.mxu0 0.0
        %4832 = vmatpush2.msra.mxu0 %v3069
        %4833 = vmatprep.subr.mxu0 0.0
        %4834 = vmatpush2.msra.mxu0 %v3068
        %4835 = vmatprep.subr.mxu0 0.0
        %4836 = vmatpush2.msra.mxu0 %v3067
        %4837 = vmatprep.subr.mxu0 0.0
        %4838 = vmatpush2.msra.mxu0 %v3066
        %4839 = vmatprep.subr.mxu0 0.0
        %4840 = vmatpush2.msra.mxu0 %v3065
        %4841 = vmatprep.subr.mxu0 0.0
        %4842 = vmatpush2.msra.mxu0 %v3064
        %4843 = vmatprep.mubr.f32.mxu0 %v4075
        %4844 = vmatmul.mubr.f32.gmra.mxu0 %v4074
        %v4845 = vpop.f32.mrf.mxu0
        %v4846 = vadd.f32 %v4776, %v4845
        %v4847 = vpop.f32.mrf.mxu0
        %4848 = vdwg.mxu0
        %4849 = vmatprep.subr.mxu0 0.0
        %4850 = vmatpush1.msra.mxu0 %v3095
        %4851 = vmatprep.subr.mxu0 0.0
        %4852 = vmatpush1.msra.mxu0 %v3094
        %4853 = vmatprep.subr.mxu0 0.0
        %4854 = vmatpush1.msra.mxu0 %v3093
        %4855 = vmatprep.subr.mxu0 0.0
        %4856 = vmatpush1.msra.mxu0 %v3092
        %4857 = vmatprep.subr.mxu0 0.0
        %4858 = vmatpush1.msra.mxu0 %v3091
        %4859 = vmatprep.subr.mxu0 0.0
        %4860 = vmatpush1.msra.mxu0 %v3090
        %4861 = vmatprep.subr.mxu0 0.0
        %4862 = vmatpush1.msra.mxu0 %v3089
        %4863 = vmatprep.subr.mxu0 0.0
        %4864 = vmatpush1.msra.mxu0 %v3088
        %4865 = vmatprep.subr.mxu0 0.0
        %4866 = vmatpush1.msra.mxu0 %v3087
        %4867 = vmatprep.subr.mxu0 0.0
        %4868 = vmatpush1.msra.mxu0 %v3086
        %4869 = vmatprep.subr.mxu0 0.0
        %4870 = vmatpush1.msra.mxu0 %v3085
        %4871 = vmatprep.subr.mxu0 0.0
        %4872 = vmatpush1.msra.mxu0 %v3084
        %4873 = vmatprep.subr.mxu0 0.0
        %4874 = vmatpush1.msra.mxu0 %v3083
        %4875 = vmatprep.subr.mxu0 0.0
        %4876 = vmatpush1.msra.mxu0 %v3082
        %4877 = vmatprep.subr.mxu0 0.0
        %4878 = vmatpush1.msra.mxu0 %v3081
        %4879 = vmatprep.subr.mxu0 0.0
        %4880 = vmatpush1.msra.mxu0 %v3080
        %4881 = vmatprep.subr.mxu0 0.0
        %4882 = vmatpush2.msra.mxu0 %v3111
        %4883 = vmatprep.subr.mxu0 0.0
        %4884 = vmatpush2.msra.mxu0 %v3110
        %4885 = vmatprep.subr.mxu0 0.0
        %4886 = vmatpush2.msra.mxu0 %v3109
        %4887 = vmatprep.subr.mxu0 0.0
        %4888 = vmatpush2.msra.mxu0 %v3108
        %4889 = vmatprep.subr.mxu0 0.0
        %4890 = vmatpush2.msra.mxu0 %v3107
        %4891 = vmatprep.subr.mxu0 0.0
        %4892 = vmatpush2.msra.mxu0 %v3106
        %4893 = vmatprep.subr.mxu0 0.0
        %4894 = vmatpush2.msra.mxu0 %v3105
        %4895 = vmatprep.subr.mxu0 0.0
        %4896 = vmatpush2.msra.mxu0 %v3104
        %4897 = vmatprep.subr.mxu0 0.0
        %4898 = vmatpush2.msra.mxu0 %v3103
        %4899 = vmatprep.subr.mxu0 0.0
        %4900 = vmatpush2.msra.mxu0 %v3102
        %4901 = vmatprep.subr.mxu0 0.0
        %4902 = vmatpush2.msra.mxu0 %v3101
        %4903 = vmatprep.subr.mxu0 0.0
        %4904 = vmatpush2.msra.mxu0 %v3100
        %4905 = vmatprep.subr.mxu0 0.0
        %4906 = vmatpush2.msra.mxu0 %v3099
        %4907 = vmatprep.subr.mxu0 0.0
        %4908 = vmatpush2.msra.mxu0 %v3098
        %4909 = vmatprep.subr.mxu0 0.0
        %4910 = vmatpush2.msra.mxu0 %v3097
        %4911 = vmatprep.subr.mxu0 0.0
        %4912 = vmatpush2.msra.mxu0 %v3096
        %4913 = vmatprep.mubr.f32.mxu0 %v4077
        %4914 = vmatmul.mubr.f32.gmra.mxu0 %v4076
        %v4915 = vpop.f32.mrf.mxu0
        %v4916 = vadd.f32 %v4846, %v4915
        %v4917 = vpop.f32.mrf.mxu0
        %4918 = vdwg.mxu0
        %4919 = vmatprep.subr.mxu0 0.0
        %4920 = vmatpush1.msra.mxu0 %v3127
        %4921 = vmatprep.subr.mxu0 0.0
        %4922 = vmatpush1.msra.mxu0 %v3126
        %4923 = vmatprep.subr.mxu0 0.0
        %4924 = vmatpush1.msra.mxu0 %v3125
        %4925 = vmatprep.subr.mxu0 0.0
        %4926 = vmatpush1.msra.mxu0 %v3124
        %4927 = vmatprep.subr.mxu0 0.0
        %4928 = vmatpush1.msra.mxu0 %v3123
        %4929 = vmatprep.subr.mxu0 0.0
        %4930 = vmatpush1.msra.mxu0 %v3122
        %4931 = vmatprep.subr.mxu0 0.0
        %4932 = vmatpush1.msra.mxu0 %v3121
        %4933 = vmatprep.subr.mxu0 0.0
        %4934 = vmatpush1.msra.mxu0 %v3120
        %4935 = vmatprep.subr.mxu0 0.0
        %4936 = vmatpush1.msra.mxu0 %v3119
        %4937 = vmatprep.subr.mxu0 0.0
        %4938 = vmatpush1.msra.mxu0 %v3118
        %4939 = vmatprep.subr.mxu0 0.0
        %4940 = vmatpush1.msra.mxu0 %v3117
        %4941 = vmatprep.subr.mxu0 0.0
        %4942 = vmatpush1.msra.mxu0 %v3116
        %4943 = vmatprep.subr.mxu0 0.0
        %4944 = vmatpush1.msra.mxu0 %v3115
        %4945 = vmatprep.subr.mxu0 0.0
        %4946 = vmatpush1.msra.mxu0 %v3114
        %4947 = vmatprep.subr.mxu0 0.0
        %4948 = vmatpush1.msra.mxu0 %v3113
        %4949 = vmatprep.subr.mxu0 0.0
        %4950 = vmatpush1.msra.mxu0 %v3112
        %4951 = vmatprep.subr.mxu0 0.0
        %4952 = vmatpush2.msra.mxu0 0.0
        %4953 = vmatprep.subr.mxu0 0.0
        %4954 = vmatpush2.msra.mxu0 0.0
        %4955 = vmatprep.subr.mxu0 0.0
        %4956 = vmatpush2.msra.mxu0 0.0
        %4957 = vmatprep.subr.mxu0 0.0
        %4958 = vmatpush2.msra.mxu0 0.0
        %4959 = vmatprep.subr.mxu0 0.0
        %4960 = vmatpush2.msra.mxu0 0.0
        %4961 = vmatprep.subr.mxu0 0.0
        %4962 = vmatpush2.msra.mxu0 0.0
        %4963 = vmatprep.subr.mxu0 0.0
        %4964 = vmatpush2.msra.mxu0 0.0
        %4965 = vmatprep.subr.mxu0 0.0
        %4966 = vmatpush2.msra.mxu0 0.0
        %4967 = vmatprep.subr.mxu0 0.0
        %4968 = vmatpush2.msra.mxu0 0.0
        %4969 = vmatprep.subr.mxu0 0.0
        %4970 = vmatpush2.msra.mxu0 0.0
        %4971 = vmatprep.subr.mxu0 0.0
        %4972 = vmatpush2.msra.mxu0 0.0
        %4973 = vmatprep.subr.mxu0 0.0
        %4974 = vmatpush2.msra.mxu0 0.0
        %4975 = vmatprep.subr.mxu0 0.0
        %4976 = vmatpush2.msra.mxu0 0.0
        %4977 = vmatprep.subr.mxu0 0.0
        %4978 = vmatpush2.msra.mxu0 0.0
        %4979 = vmatprep.subr.mxu0 0.0
        %4980 = vmatpush2.msra.mxu0 0.0
        %4981 = vmatprep.subr.mxu0 0.0
        %4982 = vmatpush2.msra.mxu0 0.0
        %4983 = vmatprep.mubr.f32.mxu0 0.0
        %4984 = vmatmul.mubr.f32.gmra.mxu0 %v4078
        %v4985 = vpop.f32.mrf.mxu0
        %v4986 = vadd.f32 %v4916, %v4985
        %v4987 = vpop.f32.mrf.mxu0
        %4988 = vdwg.mxu0
        %v4989 = vmax.f32 %v4986, 0.0
        %s4990 = scalar_lea.vmem %s7, 8
        %v4991 = vld [vmem:[%s4990] sm:$0x7f]
        %v4992 = vmul.f32 %v4989, %v4991
        %v4993 = vsel %vm4048, %v4992, 0.0
        %4994 = vadd.xlane.f32.xlu0 %v4993
        %v4995 = vpop.xlane.xlu0 %4994
        %v4996 = vrot.slane %v4995, 4
        %v4997 = vadd.f32 %v4995, %v4996
        %v4998 = vrot.slane %v4997, 2
        %v4999 = vadd.f32 %v4997, %v4998
        %v5000 = vrot.slane %v4999, 1
        %v5001 = vadd.f32 %v4999, %v5000
        %s5002 = vtos %v5001
        %s5003 = sadd.f32 %s4059, %s5002
        %s5004 = scalar_lea.vmem %s7, 40
        %v5005 = vld [vmem:[%s5004] sm:$0x7f]
        %v5006 = vmul.f32 %v4989, %v5005
        %v5007 = vsel %vm4048, %v5006, 0.0
        %5008 = vadd.xlane.f32.xlu0 %v5007
        %v5009 = vpop.xlane.xlu0 %5008
        %v5010 = vrot.slane %v5009, 4
        %v5011 = vadd.f32 %v5009, %v5010
        %v5012 = vrot.slane %v5011, 2
        %v5013 = vadd.f32 %v5011, %v5012
        %v5014 = vrot.slane %v5013, 1
        %v5015 = vadd.f32 %v5013, %v5014
        %s5016 = vtos %v5015
        %s5017 = sadd.f32 %s4073, %s5016
        %s5018 = scalar_lea.vmem [#allocation3], 96
        %v5019 = vld [vmem:[%s5018] sm:$0x7f]
        %v5020 = vld [vmem:[%s5018 + $0x1] sm:$0x7f]
        %v5021 = vld [vmem:[%s5018 + $0x2] sm:$0x7f]
        %v5022 = vld [vmem:[%s5018 + $0x3] sm:$0x7f]
        %v5023 = vld [vmem:[%s5018 + $0x4] sm:$0x7f]
        %5024 = vmatprep.subr.mxu0 0.0
        %5025 = vmatpush1.msra.mxu0 %v2743
        %5026 = vmatprep.subr.mxu0 0.0
        %5027 = vmatpush1.msra.mxu0 %v2742
        %5028 = vmatprep.subr.mxu0 0.0
        %5029 = vmatpush1.msra.mxu0 %v2741
        %5030 = vmatprep.subr.mxu0 0.0
        %5031 = vmatpush1.msra.mxu0 %v2740
        %5032 = vmatprep.subr.mxu0 0.0
        %5033 = vmatpush1.msra.mxu0 %v2739
        %5034 = vmatprep.subr.mxu0 0.0
        %5035 = vmatpush1.msra.mxu0 %v2738
        %5036 = vmatprep.subr.mxu0 0.0
        %5037 = vmatpush1.msra.mxu0 %v2737
        %5038 = vmatprep.subr.mxu0 0.0
        %5039 = vmatpush1.msra.mxu0 %v2736
        %5040 = vmatprep.subr.mxu0 0.0
        %5041 = vmatpush1.msra.mxu0 %v2735
        %5042 = vmatprep.subr.mxu0 0.0
        %5043 = vmatpush1.msra.mxu0 %v2734
        %5044 = vmatprep.subr.mxu0 0.0
        %5045 = vmatpush1.msra.mxu0 %v2733
        %5046 = vmatprep.subr.mxu0 0.0
        %5047 = vmatpush1.msra.mxu0 %v2732
        %5048 = vmatprep.subr.mxu0 0.0
        %5049 = vmatpush1.msra.mxu0 %v2731
        %5050 = vmatprep.subr.mxu0 0.0
        %5051 = vmatpush1.msra.mxu0 %v2730
        %5052 = vmatprep.subr.mxu0 0.0
        %5053 = vmatpush1.msra.mxu0 %v2729
        %5054 = vmatprep.subr.mxu0 0.0
        %5055 = vmatpush1.msra.mxu0 %v2728
        %5056 = vmatprep.subr.mxu0 0.0
        %5057 = vmatpush2.msra.mxu0 %v2759
        %5058 = vmatprep.subr.mxu0 0.0
        %5059 = vmatpush2.msra.mxu0 %v2758
        %5060 = vmatprep.subr.mxu0 0.0
        %5061 = vmatpush2.msra.mxu0 %v2757
        %5062 = vmatprep.subr.mxu0 0.0
        %5063 = vmatpush2.msra.mxu0 %v2756
        %5064 = vmatprep.subr.mxu0 0.0
        %5065 = vmatpush2.msra.mxu0 %v2755
        %5066 = vmatprep.subr.mxu0 0.0
        %5067 = vmatpush2.msra.mxu0 %v2754
        %5068 = vmatprep.subr.mxu0 0.0
        %5069 = vmatpush2.msra.mxu0 %v2753
        %5070 = vmatprep.subr.mxu0 0.0
        %5071 = vmatpush2.msra.mxu0 %v2752
        %5072 = vmatprep.subr.mxu0 0.0
        %5073 = vmatpush2.msra.mxu0 %v2751
        %5074 = vmatprep.subr.mxu0 0.0
        %5075 = vmatpush2.msra.mxu0 %v2750
        %5076 = vmatprep.subr.mxu0 0.0
        %5077 = vmatpush2.msra.mxu0 %v2749
        %5078 = vmatprep.subr.mxu0 0.0
        %5079 = vmatpush2.msra.mxu0 %v2748
        %5080 = vmatprep.subr.mxu0 0.0
        %5081 = vmatpush2.msra.mxu0 %v2747
        %5082 = vmatprep.subr.mxu0 0.0
        %5083 = vmatpush2.msra.mxu0 %v2746
        %5084 = vmatprep.subr.mxu0 0.0
        %5085 = vmatpush2.msra.mxu0 %v2745
        %5086 = vmatprep.subr.mxu0 0.0
        %5087 = vmatpush2.msra.mxu0 %v2744
        %5088 = vmatprep.mubr.f32.mxu0 %v2714
        %5089 = vmatmul.mubr.f32.gmra.mxu0 %v2713
        %v5090 = vpop.f32.mrf.mxu0
        %v5091 = vadd.f32 %v3133, %v5090
        %v5092 = vpop.f32.mrf.mxu0
        %5093 = vdwg.mxu0
        %5094 = vmatprep.subr.mxu0 0.0
        %5095 = vmatpush1.msra.mxu0 %v2775
        %5096 = vmatprep.subr.mxu0 0.0
        %5097 = vmatpush1.msra.mxu0 %v2774
        %5098 = vmatprep.subr.mxu0 0.0
        %5099 = vmatpush1.msra.mxu0 %v2773
        %5100 = vmatprep.subr.mxu0 0.0
        %5101 = vmatpush1.msra.mxu0 %v2772
        %5102 = vmatprep.subr.mxu0 0.0
        %5103 = vmatpush1.msra.mxu0 %v2771
        %5104 = vmatprep.subr.mxu0 0.0
        %5105 = vmatpush1.msra.mxu0 %v2770
        %5106 = vmatprep.subr.mxu0 0.0
        %5107 = vmatpush1.msra.mxu0 %v2769
        %5108 = vmatprep.subr.mxu0 0.0
        %5109 = vmatpush1.msra.mxu0 %v2768
        %5110 = vmatprep.subr.mxu0 0.0
        %5111 = vmatpush1.msra.mxu0 %v2767
        %5112 = vmatprep.subr.mxu0 0.0
        %5113 = vmatpush1.msra.mxu0 %v2766
        %5114 = vmatprep.subr.mxu0 0.0
        %5115 = vmatpush1.msra.mxu0 %v2765
        %5116 = vmatprep.subr.mxu0 0.0
        %5117 = vmatpush1.msra.mxu0 %v2764
        %5118 = vmatprep.subr.mxu0 0.0
        %5119 = vmatpush1.msra.mxu0 %v2763
        %5120 = vmatprep.subr.mxu0 0.0
        %5121 = vmatpush1.msra.mxu0 %v2762
        %5122 = vmatprep.subr.mxu0 0.0
        %5123 = vmatpush1.msra.mxu0 %v2761
        %5124 = vmatprep.subr.mxu0 0.0
        %5125 = vmatpush1.msra.mxu0 %v2760
        %5126 = vmatprep.subr.mxu0 0.0
        %5127 = vmatpush2.msra.mxu0 %v2791
        %5128 = vmatprep.subr.mxu0 0.0
        %5129 = vmatpush2.msra.mxu0 %v2790
        %5130 = vmatprep.subr.mxu0 0.0
        %5131 = vmatpush2.msra.mxu0 %v2789
        %5132 = vmatprep.subr.mxu0 0.0
        %5133 = vmatpush2.msra.mxu0 %v2788
        %5134 = vmatprep.subr.mxu0 0.0
        %5135 = vmatpush2.msra.mxu0 %v2787
        %5136 = vmatprep.subr.mxu0 0.0
        %5137 = vmatpush2.msra.mxu0 %v2786
        %5138 = vmatprep.subr.mxu0 0.0
        %5139 = vmatpush2.msra.mxu0 %v2785
        %5140 = vmatprep.subr.mxu0 0.0
        %5141 = vmatpush2.msra.mxu0 %v2784
        %5142 = vmatprep.subr.mxu0 0.0
        %5143 = vmatpush2.msra.mxu0 %v2783
        %5144 = vmatprep.subr.mxu0 0.0
        %5145 = vmatpush2.msra.mxu0 %v2782
        %5146 = vmatprep.subr.mxu0 0.0
        %5147 = vmatpush2.msra.mxu0 %v2781
        %5148 = vmatprep.subr.mxu0 0.0
        %5149 = vmatpush2.msra.mxu0 %v2780
        %5150 = vmatprep.subr.mxu0 0.0
        %5151 = vmatpush2.msra.mxu0 %v2779
        %5152 = vmatprep.subr.mxu0 0.0
        %5153 = vmatpush2.msra.mxu0 %v2778
        %5154 = vmatprep.subr.mxu0 0.0
        %5155 = vmatpush2.msra.mxu0 %v2777
        %5156 = vmatprep.subr.mxu0 0.0
        %5157 = vmatpush2.msra.mxu0 %v2776
        %5158 = vmatprep.mubr.f32.mxu0 %v2716
        %5159 = vmatmul.mubr.f32.gmra.mxu0 %v2715
        %v5160 = vpop.f32.mrf.mxu0
        %v5161 = vadd.f32 %v5091, %v5160
        %v5162 = vpop.f32.mrf.mxu0
        %5163 = vdwg.mxu0
        %5164 = vmatprep.subr.mxu0 0.0
        %5165 = vmatpush1.msra.mxu0 %v2807
        %5166 = vmatprep.subr.mxu0 0.0
        %5167 = vmatpush1.msra.mxu0 %v2806
        %5168 = vmatprep.subr.mxu0 0.0
        %5169 = vmatpush1.msra.mxu0 %v2805
        %5170 = vmatprep.subr.mxu0 0.0
        %5171 = vmatpush1.msra.mxu0 %v2804
        %5172 = vmatprep.subr.mxu0 0.0
        %5173 = vmatpush1.msra.mxu0 %v2803
        %5174 = vmatprep.subr.mxu0 0.0
        %5175 = vmatpush1.msra.mxu0 %v2802
        %5176 = vmatprep.subr.mxu0 0.0
        %5177 = vmatpush1.msra.mxu0 %v2801
        %5178 = vmatprep.subr.mxu0 0.0
        %5179 = vmatpush1.msra.mxu0 %v2800
        %5180 = vmatprep.subr.mxu0 0.0
        %5181 = vmatpush1.msra.mxu0 %v2799
        %5182 = vmatprep.subr.mxu0 0.0
        %5183 = vmatpush1.msra.mxu0 %v2798
        %5184 = vmatprep.subr.mxu0 0.0
        %5185 = vmatpush1.msra.mxu0 %v2797
        %5186 = vmatprep.subr.mxu0 0.0
        %5187 = vmatpush1.msra.mxu0 %v2796
        %5188 = vmatprep.subr.mxu0 0.0
        %5189 = vmatpush1.msra.mxu0 %v2795
        %5190 = vmatprep.subr.mxu0 0.0
        %5191 = vmatpush1.msra.mxu0 %v2794
        %5192 = vmatprep.subr.mxu0 0.0
        %5193 = vmatpush1.msra.mxu0 %v2793
        %5194 = vmatprep.subr.mxu0 0.0
        %5195 = vmatpush1.msra.mxu0 %v2792
        %5196 = vmatprep.subr.mxu0 0.0
        %5197 = vmatpush2.msra.mxu0 %v2823
        %5198 = vmatprep.subr.mxu0 0.0
        %5199 = vmatpush2.msra.mxu0 %v2822
        %5200 = vmatprep.subr.mxu0 0.0
        %5201 = vmatpush2.msra.mxu0 %v2821
        %5202 = vmatprep.subr.mxu0 0.0
        %5203 = vmatpush2.msra.mxu0 %v2820
        %5204 = vmatprep.subr.mxu0 0.0
        %5205 = vmatpush2.msra.mxu0 %v2819
        %5206 = vmatprep.subr.mxu0 0.0
        %5207 = vmatpush2.msra.mxu0 %v2818
        %5208 = vmatprep.subr.mxu0 0.0
        %5209 = vmatpush2.msra.mxu0 %v2817
        %5210 = vmatprep.subr.mxu0 0.0
        %5211 = vmatpush2.msra.mxu0 %v2816
        %5212 = vmatprep.subr.mxu0 0.0
        %5213 = vmatpush2.msra.mxu0 %v2815
        %5214 = vmatprep.subr.mxu0 0.0
        %5215 = vmatpush2.msra.mxu0 %v2814
        %5216 = vmatprep.subr.mxu0 0.0
        %5217 = vmatpush2.msra.mxu0 %v2813
        %5218 = vmatprep.subr.mxu0 0.0
        %5219 = vmatpush2.msra.mxu0 %v2812
        %5220 = vmatprep.subr.mxu0 0.0
        %5221 = vmatpush2.msra.mxu0 %v2811
        %5222 = vmatprep.subr.mxu0 0.0
        %5223 = vmatpush2.msra.mxu0 %v2810
        %5224 = vmatprep.subr.mxu0 0.0
        %5225 = vmatpush2.msra.mxu0 %v2809
        %5226 = vmatprep.subr.mxu0 0.0
        %5227 = vmatpush2.msra.mxu0 %v2808
        %5228 = vmatprep.mubr.f32.mxu0 %v2718
        %5229 = vmatmul.mubr.f32.gmra.mxu0 %v2717
        %v5230 = vpop.f32.mrf.mxu0
        %v5231 = vadd.f32 %v5161, %v5230
        %v5232 = vpop.f32.mrf.mxu0
        %5233 = vdwg.mxu0
        %5234 = vmatprep.subr.mxu0 0.0
        %5235 = vmatpush1.msra.mxu0 %v2839
        %5236 = vmatprep.subr.mxu0 0.0
        %5237 = vmatpush1.msra.mxu0 %v2838
        %5238 = vmatprep.subr.mxu0 0.0
        %5239 = vmatpush1.msra.mxu0 %v2837
        %5240 = vmatprep.subr.mxu0 0.0
        %5241 = vmatpush1.msra.mxu0 %v2836
        %5242 = vmatprep.subr.mxu0 0.0
        %5243 = vmatpush1.msra.mxu0 %v2835
        %5244 = vmatprep.subr.mxu0 0.0
        %5245 = vmatpush1.msra.mxu0 %v2834
        %5246 = vmatprep.subr.mxu0 0.0
        %5247 = vmatpush1.msra.mxu0 %v2833
        %5248 = vmatprep.subr.mxu0 0.0
        %5249 = vmatpush1.msra.mxu0 %v2832
        %5250 = vmatprep.subr.mxu0 0.0
        %5251 = vmatpush1.msra.mxu0 %v2831
        %5252 = vmatprep.subr.mxu0 0.0
        %5253 = vmatpush1.msra.mxu0 %v2830
        %5254 = vmatprep.subr.mxu0 0.0
        %5255 = vmatpush1.msra.mxu0 %v2829
        %5256 = vmatprep.subr.mxu0 0.0
        %5257 = vmatpush1.msra.mxu0 %v2828
        %5258 = vmatprep.subr.mxu0 0.0
        %5259 = vmatpush1.msra.mxu0 %v2827
        %5260 = vmatprep.subr.mxu0 0.0
        %5261 = vmatpush1.msra.mxu0 %v2826
        %5262 = vmatprep.subr.mxu0 0.0
        %5263 = vmatpush1.msra.mxu0 %v2825
        %5264 = vmatprep.subr.mxu0 0.0
        %5265 = vmatpush1.msra.mxu0 %v2824
        %5266 = vmatprep.subr.mxu0 0.0
        %5267 = vmatpush2.msra.mxu0 %v2855
        %5268 = vmatprep.subr.mxu0 0.0
        %5269 = vmatpush2.msra.mxu0 %v2854
        %5270 = vmatprep.subr.mxu0 0.0
        %5271 = vmatpush2.msra.mxu0 %v2853
        %5272 = vmatprep.subr.mxu0 0.0
        %5273 = vmatpush2.msra.mxu0 %v2852
        %5274 = vmatprep.subr.mxu0 0.0
        %5275 = vmatpush2.msra.mxu0 %v2851
        %5276 = vmatprep.subr.mxu0 0.0
        %5277 = vmatpush2.msra.mxu0 %v2850
        %5278 = vmatprep.subr.mxu0 0.0
        %5279 = vmatpush2.msra.mxu0 %v2849
        %5280 = vmatprep.subr.mxu0 0.0
        %5281 = vmatpush2.msra.mxu0 %v2848
        %5282 = vmatprep.subr.mxu0 0.0
        %5283 = vmatpush2.msra.mxu0 %v2847
        %5284 = vmatprep.subr.mxu0 0.0
        %5285 = vmatpush2.msra.mxu0 %v2846
        %5286 = vmatprep.subr.mxu0 0.0
        %5287 = vmatpush2.msra.mxu0 %v2845
        %5288 = vmatprep.subr.mxu0 0.0
        %5289 = vmatpush2.msra.mxu0 %v2844
        %5290 = vmatprep.subr.mxu0 0.0
        %5291 = vmatpush2.msra.mxu0 %v2843
        %5292 = vmatprep.subr.mxu0 0.0
        %5293 = vmatpush2.msra.mxu0 %v2842
        %5294 = vmatprep.subr.mxu0 0.0
        %5295 = vmatpush2.msra.mxu0 %v2841
        %5296 = vmatprep.subr.mxu0 0.0
        %5297 = vmatpush2.msra.mxu0 %v2840
        %5298 = vmatprep.mubr.f32.mxu0 %v2720
        %5299 = vmatmul.mubr.f32.gmra.mxu0 %v2719
        %v5300 = vpop.f32.mrf.mxu0
        %v5301 = vadd.f32 %v5231, %v5300
        %v5302 = vpop.f32.mrf.mxu0
        %5303 = vdwg.mxu0
        %5304 = vmatprep.subr.mxu0 0.0
        %5305 = vmatpush1.msra.mxu0 %v2871
        %5306 = vmatprep.subr.mxu0 0.0
        %5307 = vmatpush1.msra.mxu0 %v2870
        %5308 = vmatprep.subr.mxu0 0.0
        %5309 = vmatpush1.msra.mxu0 %v2869
        %5310 = vmatprep.subr.mxu0 0.0
        %5311 = vmatpush1.msra.mxu0 %v2868
        %5312 = vmatprep.subr.mxu0 0.0
        %5313 = vmatpush1.msra.mxu0 %v2867
        %5314 = vmatprep.subr.mxu0 0.0
        %5315 = vmatpush1.msra.mxu0 %v2866
        %5316 = vmatprep.subr.mxu0 0.0
        %5317 = vmatpush1.msra.mxu0 %v2865
        %5318 = vmatprep.subr.mxu0 0.0
        %5319 = vmatpush1.msra.mxu0 %v2864
        %5320 = vmatprep.subr.mxu0 0.0
        %5321 = vmatpush1.msra.mxu0 %v2863
        %5322 = vmatprep.subr.mxu0 0.0
        %5323 = vmatpush1.msra.mxu0 %v2862
        %5324 = vmatprep.subr.mxu0 0.0
        %5325 = vmatpush1.msra.mxu0 %v2861
        %5326 = vmatprep.subr.mxu0 0.0
        %5327 = vmatpush1.msra.mxu0 %v2860
        %5328 = vmatprep.subr.mxu0 0.0
        %5329 = vmatpush1.msra.mxu0 %v2859
        %5330 = vmatprep.subr.mxu0 0.0
        %5331 = vmatpush1.msra.mxu0 %v2858
        %5332 = vmatprep.subr.mxu0 0.0
        %5333 = vmatpush1.msra.mxu0 %v2857
        %5334 = vmatprep.subr.mxu0 0.0
        %5335 = vmatpush1.msra.mxu0 %v2856
        %5336 = vmatprep.subr.mxu0 0.0
        %5337 = vmatpush2.msra.mxu0 %v2887
        %5338 = vmatprep.subr.mxu0 0.0
        %5339 = vmatpush2.msra.mxu0 %v2886
        %5340 = vmatprep.subr.mxu0 0.0
        %5341 = vmatpush2.msra.mxu0 %v2885
        %5342 = vmatprep.subr.mxu0 0.0
        %5343 = vmatpush2.msra.mxu0 %v2884
        %5344 = vmatprep.subr.mxu0 0.0
        %5345 = vmatpush2.msra.mxu0 %v2883
        %5346 = vmatprep.subr.mxu0 0.0
        %5347 = vmatpush2.msra.mxu0 %v2882
        %5348 = vmatprep.subr.mxu0 0.0
        %5349 = vmatpush2.msra.mxu0 %v2881
        %5350 = vmatprep.subr.mxu0 0.0
        %5351 = vmatpush2.msra.mxu0 %v2880
        %5352 = vmatprep.subr.mxu0 0.0
        %5353 = vmatpush2.msra.mxu0 %v2879
        %5354 = vmatprep.subr.mxu0 0.0
        %5355 = vmatpush2.msra.mxu0 %v2878
        %5356 = vmatprep.subr.mxu0 0.0
        %5357 = vmatpush2.msra.mxu0 %v2877
        %5358 = vmatprep.subr.mxu0 0.0
        %5359 = vmatpush2.msra.mxu0 %v2876
        %5360 = vmatprep.subr.mxu0 0.0
        %5361 = vmatpush2.msra.mxu0 %v2875
        %5362 = vmatprep.subr.mxu0 0.0
        %5363 = vmatpush2.msra.mxu0 %v2874
        %5364 = vmatprep.subr.mxu0 0.0
        %5365 = vmatpush2.msra.mxu0 %v2873
        %5366 = vmatprep.subr.mxu0 0.0
        %5367 = vmatpush2.msra.mxu0 %v2872
        %5368 = vmatprep.mubr.f32.mxu0 %v2722
        %5369 = vmatmul.mubr.f32.gmra.mxu0 %v2721
        %v5370 = vpop.f32.mrf.mxu0
        %v5371 = vadd.f32 %v5301, %v5370
        %v5372 = vpop.f32.mrf.mxu0
        %5373 = vdwg.mxu0
        %5374 = vmatprep.subr.mxu0 0.0
        %5375 = vmatpush1.msra.mxu0 %v2903
        %5376 = vmatprep.subr.mxu0 0.0
        %5377 = vmatpush1.msra.mxu0 %v2902
        %5378 = vmatprep.subr.mxu0 0.0
        %5379 = vmatpush1.msra.mxu0 %v2901
        %5380 = vmatprep.subr.mxu0 0.0
        %5381 = vmatpush1.msra.mxu0 %v2900
        %5382 = vmatprep.subr.mxu0 0.0
        %5383 = vmatpush1.msra.mxu0 %v2899
        %5384 = vmatprep.subr.mxu0 0.0
        %5385 = vmatpush1.msra.mxu0 %v2898
        %5386 = vmatprep.subr.mxu0 0.0
        %5387 = vmatpush1.msra.mxu0 %v2897
        %5388 = vmatprep.subr.mxu0 0.0
        %5389 = vmatpush1.msra.mxu0 %v2896
        %5390 = vmatprep.subr.mxu0 0.0
        %5391 = vmatpush1.msra.mxu0 %v2895
        %5392 = vmatprep.subr.mxu0 0.0
        %5393 = vmatpush1.msra.mxu0 %v2894
        %5394 = vmatprep.subr.mxu0 0.0
        %5395 = vmatpush1.msra.mxu0 %v2893
        %5396 = vmatprep.subr.mxu0 0.0
        %5397 = vmatpush1.msra.mxu0 %v2892
        %5398 = vmatprep.subr.mxu0 0.0
        %5399 = vmatpush1.msra.mxu0 %v2891
        %5400 = vmatprep.subr.mxu0 0.0
        %5401 = vmatpush1.msra.mxu0 %v2890
        %5402 = vmatprep.subr.mxu0 0.0
        %5403 = vmatpush1.msra.mxu0 %v2889
        %5404 = vmatprep.subr.mxu0 0.0
        %5405 = vmatpush1.msra.mxu0 %v2888
        %5406 = vmatprep.subr.mxu0 0.0
        %5407 = vmatpush2.msra.mxu0 %v2919
        %5408 = vmatprep.subr.mxu0 0.0
        %5409 = vmatpush2.msra.mxu0 %v2918
        %5410 = vmatprep.subr.mxu0 0.0
        %5411 = vmatpush2.msra.mxu0 %v2917
        %5412 = vmatprep.subr.mxu0 0.0
        %5413 = vmatpush2.msra.mxu0 %v2916
        %5414 = vmatprep.subr.mxu0 0.0
        %5415 = vmatpush2.msra.mxu0 %v2915
        %5416 = vmatprep.subr.mxu0 0.0
        %5417 = vmatpush2.msra.mxu0 %v2914
        %5418 = vmatprep.subr.mxu0 0.0
        %5419 = vmatpush2.msra.mxu0 %v2913
        %5420 = vmatprep.subr.mxu0 0.0
        %5421 = vmatpush2.msra.mxu0 %v2912
        %5422 = vmatprep.subr.mxu0 0.0
        %5423 = vmatpush2.msra.mxu0 %v2911
        %5424 = vmatprep.subr.mxu0 0.0
        %5425 = vmatpush2.msra.mxu0 %v2910
        %5426 = vmatprep.subr.mxu0 0.0
        %5427 = vmatpush2.msra.mxu0 %v2909
        %5428 = vmatprep.subr.mxu0 0.0
        %5429 = vmatpush2.msra.mxu0 %v2908
        %5430 = vmatprep.subr.mxu0 0.0
        %5431 = vmatpush2.msra.mxu0 %v2907
        %5432 = vmatprep.subr.mxu0 0.0
        %5433 = vmatpush2.msra.mxu0 %v2906
        %5434 = vmatprep.subr.mxu0 0.0
        %5435 = vmatpush2.msra.mxu0 %v2905
        %5436 = vmatprep.subr.mxu0 0.0
        %5437 = vmatpush2.msra.mxu0 %v2904
        %5438 = vmatprep.mubr.f32.mxu0 %v2724
        %5439 = vmatmul.mubr.f32.gmra.mxu0 %v2723
        %v5440 = vpop.f32.mrf.mxu0
        %v5441 = vadd.f32 %v5371, %v5440
        %v5442 = vpop.f32.mrf.mxu0
        %5443 = vdwg.mxu0
        %5444 = vmatprep.subr.mxu0 0.0
        %5445 = vmatpush1.msra.mxu0 %v2935
        %5446 = vmatprep.subr.mxu0 0.0
        %5447 = vmatpush1.msra.mxu0 %v2934
        %5448 = vmatprep.subr.mxu0 0.0
        %5449 = vmatpush1.msra.mxu0 %v2933
        %5450 = vmatprep.subr.mxu0 0.0
        %5451 = vmatpush1.msra.mxu0 %v2932
        %5452 = vmatprep.subr.mxu0 0.0
        %5453 = vmatpush1.msra.mxu0 %v2931
        %5454 = vmatprep.subr.mxu0 0.0
        %5455 = vmatpush1.msra.mxu0 %v2930
        %5456 = vmatprep.subr.mxu0 0.0
        %5457 = vmatpush1.msra.mxu0 %v2929
        %5458 = vmatprep.subr.mxu0 0.0
        %5459 = vmatpush1.msra.mxu0 %v2928
        %5460 = vmatprep.subr.mxu0 0.0
        %5461 = vmatpush1.msra.mxu0 %v2927
        %5462 = vmatprep.subr.mxu0 0.0
        %5463 = vmatpush1.msra.mxu0 %v2926
        %5464 = vmatprep.subr.mxu0 0.0
        %5465 = vmatpush1.msra.mxu0 %v2925
        %5466 = vmatprep.subr.mxu0 0.0
        %5467 = vmatpush1.msra.mxu0 %v2924
        %5468 = vmatprep.subr.mxu0 0.0
        %5469 = vmatpush1.msra.mxu0 %v2923
        %5470 = vmatprep.subr.mxu0 0.0
        %5471 = vmatpush1.msra.mxu0 %v2922
        %5472 = vmatprep.subr.mxu0 0.0
        %5473 = vmatpush1.msra.mxu0 %v2921
        %5474 = vmatprep.subr.mxu0 0.0
        %5475 = vmatpush1.msra.mxu0 %v2920
        %5476 = vmatprep.subr.mxu0 0.0
        %5477 = vmatpush2.msra.mxu0 %v2951
        %5478 = vmatprep.subr.mxu0 0.0
        %5479 = vmatpush2.msra.mxu0 %v2950
        %5480 = vmatprep.subr.mxu0 0.0
        %5481 = vmatpush2.msra.mxu0 %v2949
        %5482 = vmatprep.subr.mxu0 0.0
        %5483 = vmatpush2.msra.mxu0 %v2948
        %5484 = vmatprep.subr.mxu0 0.0
        %5485 = vmatpush2.msra.mxu0 %v2947
        %5486 = vmatprep.subr.mxu0 0.0
        %5487 = vmatpush2.msra.mxu0 %v2946
        %5488 = vmatprep.subr.mxu0 0.0
        %5489 = vmatpush2.msra.mxu0 %v2945
        %5490 = vmatprep.subr.mxu0 0.0
        %5491 = vmatpush2.msra.mxu0 %v2944
        %5492 = vmatprep.subr.mxu0 0.0
        %5493 = vmatpush2.msra.mxu0 %v2943
        %5494 = vmatprep.subr.mxu0 0.0
        %5495 = vmatpush2.msra.mxu0 %v2942
        %5496 = vmatprep.subr.mxu0 0.0
        %5497 = vmatpush2.msra.mxu0 %v2941
        %5498 = vmatprep.subr.mxu0 0.0
        %5499 = vmatpush2.msra.mxu0 %v2940
        %5500 = vmatprep.subr.mxu0 0.0
        %5501 = vmatpush2.msra.mxu0 %v2939
        %5502 = vmatprep.subr.mxu0 0.0
        %5503 = vmatpush2.msra.mxu0 %v2938
        %5504 = vmatprep.subr.mxu0 0.0
        %5505 = vmatpush2.msra.mxu0 %v2937
        %5506 = vmatprep.subr.mxu0 0.0
        %5507 = vmatpush2.msra.mxu0 %v2936
        %5508 = vmatprep.mubr.f32.mxu0 %v2726
        %5509 = vmatmul.mubr.f32.gmra.mxu0 %v2725
        %v5510 = vpop.f32.mrf.mxu0
        %v5511 = vadd.f32 %v5441, %v5510
        %v5512 = vpop.f32.mrf.mxu0
        %5513 = vdwg.mxu0
        %5514 = vmatprep.subr.mxu0 0.0
        %5515 = vmatpush1.msra.mxu0 %v2967
        %5516 = vmatprep.subr.mxu0 0.0
        %5517 = vmatpush1.msra.mxu0 %v2966
        %5518 = vmatprep.subr.mxu0 0.0
        %5519 = vmatpush1.msra.mxu0 %v2965
        %5520 = vmatprep.subr.mxu0 0.0
        %5521 = vmatpush1.msra.mxu0 %v2964
        %5522 = vmatprep.subr.mxu0 0.0
        %5523 = vmatpush1.msra.mxu0 %v2963
        %5524 = vmatprep.subr.mxu0 0.0
        %5525 = vmatpush1.msra.mxu0 %v2962
        %5526 = vmatprep.subr.mxu0 0.0
        %5527 = vmatpush1.msra.mxu0 %v2961
        %5528 = vmatprep.subr.mxu0 0.0
        %5529 = vmatpush1.msra.mxu0 %v2960
        %5530 = vmatprep.subr.mxu0 0.0
        %5531 = vmatpush1.msra.mxu0 %v2959
        %5532 = vmatprep.subr.mxu0 0.0
        %5533 = vmatpush1.msra.mxu0 %v2958
        %5534 = vmatprep.subr.mxu0 0.0
        %5535 = vmatpush1.msra.mxu0 %v2957
        %5536 = vmatprep.subr.mxu0 0.0
        %5537 = vmatpush1.msra.mxu0 %v2956
        %5538 = vmatprep.subr.mxu0 0.0
        %5539 = vmatpush1.msra.mxu0 %v2955
        %5540 = vmatprep.subr.mxu0 0.0
        %5541 = vmatpush1.msra.mxu0 %v2954
        %5542 = vmatprep.subr.mxu0 0.0
        %5543 = vmatpush1.msra.mxu0 %v2953
        %5544 = vmatprep.subr.mxu0 0.0
        %5545 = vmatpush1.msra.mxu0 %v2952
        %5546 = vmatprep.subr.mxu0 0.0
        %5547 = vmatpush2.msra.mxu0 %v2983
        %5548 = vmatprep.subr.mxu0 0.0
        %5549 = vmatpush2.msra.mxu0 %v2982
        %5550 = vmatprep.subr.mxu0 0.0
        %5551 = vmatpush2.msra.mxu0 %v2981
        %5552 = vmatprep.subr.mxu0 0.0
        %5553 = vmatpush2.msra.mxu0 %v2980
        %5554 = vmatprep.subr.mxu0 0.0
        %5555 = vmatpush2.msra.mxu0 %v2979
        %5556 = vmatprep.subr.mxu0 0.0
        %5557 = vmatpush2.msra.mxu0 %v2978
        %5558 = vmatprep.subr.mxu0 0.0
        %5559 = vmatpush2.msra.mxu0 %v2977
        %5560 = vmatprep.subr.mxu0 0.0
        %5561 = vmatpush2.msra.mxu0 %v2976
        %5562 = vmatprep.subr.mxu0 0.0
        %5563 = vmatpush2.msra.mxu0 %v2975
        %5564 = vmatprep.subr.mxu0 0.0
        %5565 = vmatpush2.msra.mxu0 %v2974
        %5566 = vmatprep.subr.mxu0 0.0
        %5567 = vmatpush2.msra.mxu0 %v2973
        %5568 = vmatprep.subr.mxu0 0.0
        %5569 = vmatpush2.msra.mxu0 %v2972
        %5570 = vmatprep.subr.mxu0 0.0
        %5571 = vmatpush2.msra.mxu0 %v2971
        %5572 = vmatprep.subr.mxu0 0.0
        %5573 = vmatpush2.msra.mxu0 %v2970
        %5574 = vmatprep.subr.mxu0 0.0
        %5575 = vmatpush2.msra.mxu0 %v2969
        %5576 = vmatprep.subr.mxu0 0.0
        %5577 = vmatpush2.msra.mxu0 %v2968
        %5578 = vmatprep.mubr.f32.mxu0 %v4074
        %5579 = vmatmul.mubr.f32.gmra.mxu0 %v2727
        %v5580 = vpop.f32.mrf.mxu0
        %v5581 = vadd.f32 %v5511, %v5580
        %v5582 = vpop.f32.mrf.mxu0
        %5583 = vdwg.mxu0
        %5584 = vmatprep.subr.mxu0 0.0
        %5585 = vmatpush1.msra.mxu0 %v2999
        %5586 = vmatprep.subr.mxu0 0.0
        %5587 = vmatpush1.msra.mxu0 %v2998
        %5588 = vmatprep.subr.mxu0 0.0
        %5589 = vmatpush1.msra.mxu0 %v2997
        %5590 = vmatprep.subr.mxu0 0.0
        %5591 = vmatpush1.msra.mxu0 %v2996
        %5592 = vmatprep.subr.mxu0 0.0
        %5593 = vmatpush1.msra.mxu0 %v2995
        %5594 = vmatprep.subr.mxu0 0.0
        %5595 = vmatpush1.msra.mxu0 %v2994
        %5596 = vmatprep.subr.mxu0 0.0
        %5597 = vmatpush1.msra.mxu0 %v2993
        %5598 = vmatprep.subr.mxu0 0.0
        %5599 = vmatpush1.msra.mxu0 %v2992
        %5600 = vmatprep.subr.mxu0 0.0
        %5601 = vmatpush1.msra.mxu0 %v2991
        %5602 = vmatprep.subr.mxu0 0.0
        %5603 = vmatpush1.msra.mxu0 %v2990
        %5604 = vmatprep.subr.mxu0 0.0
        %5605 = vmatpush1.msra.mxu0 %v2989
        %5606 = vmatprep.subr.mxu0 0.0
        %5607 = vmatpush1.msra.mxu0 %v2988
        %5608 = vmatprep.subr.mxu0 0.0
        %5609 = vmatpush1.msra.mxu0 %v2987
        %5610 = vmatprep.subr.mxu0 0.0
        %5611 = vmatpush1.msra.mxu0 %v2986
        %5612 = vmatprep.subr.mxu0 0.0
        %5613 = vmatpush1.msra.mxu0 %v2985
        %5614 = vmatprep.subr.mxu0 0.0
        %5615 = vmatpush1.msra.mxu0 %v2984
        %5616 = vmatprep.subr.mxu0 0.0
        %5617 = vmatpush2.msra.mxu0 %v3015
        %5618 = vmatprep.subr.mxu0 0.0
        %5619 = vmatpush2.msra.mxu0 %v3014
        %5620 = vmatprep.subr.mxu0 0.0
        %5621 = vmatpush2.msra.mxu0 %v3013
        %5622 = vmatprep.subr.mxu0 0.0
        %5623 = vmatpush2.msra.mxu0 %v3012
        %5624 = vmatprep.subr.mxu0 0.0
        %5625 = vmatpush2.msra.mxu0 %v3011
        %5626 = vmatprep.subr.mxu0 0.0
        %5627 = vmatpush2.msra.mxu0 %v3010
        %5628 = vmatprep.subr.mxu0 0.0
        %5629 = vmatpush2.msra.mxu0 %v3009
        %5630 = vmatprep.subr.mxu0 0.0
        %5631 = vmatpush2.msra.mxu0 %v3008
        %5632 = vmatprep.subr.mxu0 0.0
        %5633 = vmatpush2.msra.mxu0 %v3007
        %5634 = vmatprep.subr.mxu0 0.0
        %5635 = vmatpush2.msra.mxu0 %v3006
        %5636 = vmatprep.subr.mxu0 0.0
        %5637 = vmatpush2.msra.mxu0 %v3005
        %5638 = vmatprep.subr.mxu0 0.0
        %5639 = vmatpush2.msra.mxu0 %v3004
        %5640 = vmatprep.subr.mxu0 0.0
        %5641 = vmatpush2.msra.mxu0 %v3003
        %5642 = vmatprep.subr.mxu0 0.0
        %5643 = vmatpush2.msra.mxu0 %v3002
        %5644 = vmatprep.subr.mxu0 0.0
        %5645 = vmatpush2.msra.mxu0 %v3001
        %5646 = vmatprep.subr.mxu0 0.0
        %5647 = vmatpush2.msra.mxu0 %v3000
        %5648 = vmatprep.mubr.f32.mxu0 %v4076
        %5649 = vmatmul.mubr.f32.gmra.mxu0 %v4075
        %v5650 = vpop.f32.mrf.mxu0
        %v5651 = vadd.f32 %v5581, %v5650
        %v5652 = vpop.f32.mrf.mxu0
        %5653 = vdwg.mxu0
        %5654 = vmatprep.subr.mxu0 0.0
        %5655 = vmatpush1.msra.mxu0 %v3031
        %5656 = vmatprep.subr.mxu0 0.0
        %5657 = vmatpush1.msra.mxu0 %v3030
        %5658 = vmatprep.subr.mxu0 0.0
        %5659 = vmatpush1.msra.mxu0 %v3029
        %5660 = vmatprep.subr.mxu0 0.0
        %5661 = vmatpush1.msra.mxu0 %v3028
        %5662 = vmatprep.subr.mxu0 0.0
        %5663 = vmatpush1.msra.mxu0 %v3027
        %5664 = vmatprep.subr.mxu0 0.0
        %5665 = vmatpush1.msra.mxu0 %v3026
        %5666 = vmatprep.subr.mxu0 0.0
        %5667 = vmatpush1.msra.mxu0 %v3025
        %5668 = vmatprep.subr.mxu0 0.0
        %5669 = vmatpush1.msra.mxu0 %v3024
        %5670 = vmatprep.subr.mxu0 0.0
        %5671 = vmatpush1.msra.mxu0 %v3023
        %5672 = vmatprep.subr.mxu0 0.0
        %5673 = vmatpush1.msra.mxu0 %v3022
        %5674 = vmatprep.subr.mxu0 0.0
        %5675 = vmatpush1.msra.mxu0 %v3021
        %5676 = vmatprep.subr.mxu0 0.0
        %5677 = vmatpush1.msra.mxu0 %v3020
        %5678 = vmatprep.subr.mxu0 0.0
        %5679 = vmatpush1.msra.mxu0 %v3019
        %5680 = vmatprep.subr.mxu0 0.0
        %5681 = vmatpush1.msra.mxu0 %v3018
        %5682 = vmatprep.subr.mxu0 0.0
        %5683 = vmatpush1.msra.mxu0 %v3017
        %5684 = vmatprep.subr.mxu0 0.0
        %5685 = vmatpush1.msra.mxu0 %v3016
        %5686 = vmatprep.subr.mxu0 0.0
        %5687 = vmatpush2.msra.mxu0 %v3047
        %5688 = vmatprep.subr.mxu0 0.0
        %5689 = vmatpush2.msra.mxu0 %v3046
        %5690 = vmatprep.subr.mxu0 0.0
        %5691 = vmatpush2.msra.mxu0 %v3045
        %5692 = vmatprep.subr.mxu0 0.0
        %5693 = vmatpush2.msra.mxu0 %v3044
        %5694 = vmatprep.subr.mxu0 0.0
        %5695 = vmatpush2.msra.mxu0 %v3043
        %5696 = vmatprep.subr.mxu0 0.0
        %5697 = vmatpush2.msra.mxu0 %v3042
        %5698 = vmatprep.subr.mxu0 0.0
        %5699 = vmatpush2.msra.mxu0 %v3041
        %5700 = vmatprep.subr.mxu0 0.0
        %5701 = vmatpush2.msra.mxu0 %v3040
        %5702 = vmatprep.subr.mxu0 0.0
        %5703 = vmatpush2.msra.mxu0 %v3039
        %5704 = vmatprep.subr.mxu0 0.0
        %5705 = vmatpush2.msra.mxu0 %v3038
        %5706 = vmatprep.subr.mxu0 0.0
        %5707 = vmatpush2.msra.mxu0 %v3037
        %5708 = vmatprep.subr.mxu0 0.0
        %5709 = vmatpush2.msra.mxu0 %v3036
        %5710 = vmatprep.subr.mxu0 0.0
        %5711 = vmatpush2.msra.mxu0 %v3035
        %5712 = vmatprep.subr.mxu0 0.0
        %5713 = vmatpush2.msra.mxu0 %v3034
        %5714 = vmatprep.subr.mxu0 0.0
        %5715 = vmatpush2.msra.mxu0 %v3033
        %5716 = vmatprep.subr.mxu0 0.0
        %5717 = vmatpush2.msra.mxu0 %v3032
        %5718 = vmatprep.mubr.f32.mxu0 %v4078
        %5719 = vmatmul.mubr.f32.gmra.mxu0 %v4077
        %v5720 = vpop.f32.mrf.mxu0
        %v5721 = vadd.f32 %v5651, %v5720
        %v5722 = vpop.f32.mrf.mxu0
        %5723 = vdwg.mxu0
        %5724 = vmatprep.subr.mxu0 0.0
        %5725 = vmatpush1.msra.mxu0 %v3063
        %5726 = vmatprep.subr.mxu0 0.0
        %5727 = vmatpush1.msra.mxu0 %v3062
        %5728 = vmatprep.subr.mxu0 0.0
        %5729 = vmatpush1.msra.mxu0 %v3061
        %5730 = vmatprep.subr.mxu0 0.0
        %5731 = vmatpush1.msra.mxu0 %v3060
        %5732 = vmatprep.subr.mxu0 0.0
        %5733 = vmatpush1.msra.mxu0 %v3059
        %5734 = vmatprep.subr.mxu0 0.0
        %5735 = vmatpush1.msra.mxu0 %v3058
        %5736 = vmatprep.subr.mxu0 0.0
        %5737 = vmatpush1.msra.mxu0 %v3057
        %5738 = vmatprep.subr.mxu0 0.0
        %5739 = vmatpush1.msra.mxu0 %v3056
        %5740 = vmatprep.subr.mxu0 0.0
        %5741 = vmatpush1.msra.mxu0 %v3055
        %5742 = vmatprep.subr.mxu0 0.0
        %5743 = vmatpush1.msra.mxu0 %v3054
        %5744 = vmatprep.subr.mxu0 0.0
        %5745 = vmatpush1.msra.mxu0 %v3053
        %5746 = vmatprep.subr.mxu0 0.0
        %5747 = vmatpush1.msra.mxu0 %v3052
        %5748 = vmatprep.subr.mxu0 0.0
        %5749 = vmatpush1.msra.mxu0 %v3051
        %5750 = vmatprep.subr.mxu0 0.0
        %5751 = vmatpush1.msra.mxu0 %v3050
        %5752 = vmatprep.subr.mxu0 0.0
        %5753 = vmatpush1.msra.mxu0 %v3049
        %5754 = vmatprep.subr.mxu0 0.0
        %5755 = vmatpush1.msra.mxu0 %v3048
        %5756 = vmatprep.subr.mxu0 0.0
        %5757 = vmatpush2.msra.mxu0 %v3079
        %5758 = vmatprep.subr.mxu0 0.0
        %5759 = vmatpush2.msra.mxu0 %v3078
        %5760 = vmatprep.subr.mxu0 0.0
        %5761 = vmatpush2.msra.mxu0 %v3077
        %5762 = vmatprep.subr.mxu0 0.0
        %5763 = vmatpush2.msra.mxu0 %v3076
        %5764 = vmatprep.subr.mxu0 0.0
        %5765 = vmatpush2.msra.mxu0 %v3075
        %5766 = vmatprep.subr.mxu0 0.0
        %5767 = vmatpush2.msra.mxu0 %v3074
        %5768 = vmatprep.subr.mxu0 0.0
        %5769 = vmatpush2.msra.mxu0 %v3073
        %5770 = vmatprep.subr.mxu0 0.0
        %5771 = vmatpush2.msra.mxu0 %v3072
        %5772 = vmatprep.subr.mxu0 0.0
        %5773 = vmatpush2.msra.mxu0 %v3071
        %5774 = vmatprep.subr.mxu0 0.0
        %5775 = vmatpush2.msra.mxu0 %v3070
        %5776 = vmatprep.subr.mxu0 0.0
        %5777 = vmatpush2.msra.mxu0 %v3069
        %5778 = vmatprep.subr.mxu0 0.0
        %5779 = vmatpush2.msra.mxu0 %v3068
        %5780 = vmatprep.subr.mxu0 0.0
        %5781 = vmatpush2.msra.mxu0 %v3067
        %5782 = vmatprep.subr.mxu0 0.0
        %5783 = vmatpush2.msra.mxu0 %v3066
        %5784 = vmatprep.subr.mxu0 0.0
        %5785 = vmatpush2.msra.mxu0 %v3065
        %5786 = vmatprep.subr.mxu0 0.0
        %5787 = vmatpush2.msra.mxu0 %v3064
        %5788 = vmatprep.mubr.f32.mxu0 %v5020
        %5789 = vmatmul.mubr.f32.gmra.mxu0 %v5019
        %v5790 = vpop.f32.mrf.mxu0
        %v5791 = vadd.f32 %v5721, %v5790
        %v5792 = vpop.f32.mrf.mxu0
        %5793 = vdwg.mxu0
        %5794 = vmatprep.subr.mxu0 0.0
        %5795 = vmatpush1.msra.mxu0 %v3095
        %5796 = vmatprep.subr.mxu0 0.0
        %5797 = vmatpush1.msra.mxu0 %v3094
        %5798 = vmatprep.subr.mxu0 0.0
        %5799 = vmatpush1.msra.mxu0 %v3093
        %5800 = vmatprep.subr.mxu0 0.0
        %5801 = vmatpush1.msra.mxu0 %v3092
        %5802 = vmatprep.subr.mxu0 0.0
        %5803 = vmatpush1.msra.mxu0 %v3091
        %5804 = vmatprep.subr.mxu0 0.0
        %5805 = vmatpush1.msra.mxu0 %v3090
        %5806 = vmatprep.subr.mxu0 0.0
        %5807 = vmatpush1.msra.mxu0 %v3089
        %5808 = vmatprep.subr.mxu0 0.0
        %5809 = vmatpush1.msra.mxu0 %v3088
        %5810 = vmatprep.subr.mxu0 0.0
        %5811 = vmatpush1.msra.mxu0 %v3087
        %5812 = vmatprep.subr.mxu0 0.0
        %5813 = vmatpush1.msra.mxu0 %v3086
        %5814 = vmatprep.subr.mxu0 0.0
        %5815 = vmatpush1.msra.mxu0 %v3085
        %5816 = vmatprep.subr.mxu0 0.0
        %5817 = vmatpush1.msra.mxu0 %v3084
        %5818 = vmatprep.subr.mxu0 0.0
        %5819 = vmatpush1.msra.mxu0 %v3083
        %5820 = vmatprep.subr.mxu0 0.0
        %5821 = vmatpush1.msra.mxu0 %v3082
        %5822 = vmatprep.subr.mxu0 0.0
        %5823 = vmatpush1.msra.mxu0 %v3081
        %5824 = vmatprep.subr.mxu0 0.0
        %5825 = vmatpush1.msra.mxu0 %v3080
        %5826 = vmatprep.subr.mxu0 0.0
        %5827 = vmatpush2.msra.mxu0 %v3111
        %5828 = vmatprep.subr.mxu0 0.0
        %5829 = vmatpush2.msra.mxu0 %v3110
        %5830 = vmatprep.subr.mxu0 0.0
        %5831 = vmatpush2.msra.mxu0 %v3109
        %5832 = vmatprep.subr.mxu0 0.0
        %5833 = vmatpush2.msra.mxu0 %v3108
        %5834 = vmatprep.subr.mxu0 0.0
        %5835 = vmatpush2.msra.mxu0 %v3107
        %5836 = vmatprep.subr.mxu0 0.0
        %5837 = vmatpush2.msra.mxu0 %v3106
        %5838 = vmatprep.subr.mxu0 0.0
        %5839 = vmatpush2.msra.mxu0 %v3105
        %5840 = vmatprep.subr.mxu0 0.0
        %5841 = vmatpush2.msra.mxu0 %v3104
        %5842 = vmatprep.subr.mxu0 0.0
        %5843 = vmatpush2.msra.mxu0 %v3103
        %5844 = vmatprep.subr.mxu0 0.0
        %5845 = vmatpush2.msra.mxu0 %v3102
        %5846 = vmatprep.subr.mxu0 0.0
        %5847 = vmatpush2.msra.mxu0 %v3101
        %5848 = vmatprep.subr.mxu0 0.0
        %5849 = vmatpush2.msra.mxu0 %v3100
        %5850 = vmatprep.subr.mxu0 0.0
        %5851 = vmatpush2.msra.mxu0 %v3099
        %5852 = vmatprep.subr.mxu0 0.0
        %5853 = vmatpush2.msra.mxu0 %v3098
        %5854 = vmatprep.subr.mxu0 0.0
        %5855 = vmatpush2.msra.mxu0 %v3097
        %5856 = vmatprep.subr.mxu0 0.0
        %5857 = vmatpush2.msra.mxu0 %v3096
        %5858 = vmatprep.mubr.f32.mxu0 %v5022
        %5859 = vmatmul.mubr.f32.gmra.mxu0 %v5021
        %v5860 = vpop.f32.mrf.mxu0
        %v5861 = vadd.f32 %v5791, %v5860
        %v5862 = vpop.f32.mrf.mxu0
        %5863 = vdwg.mxu0
        %5864 = vmatprep.subr.mxu0 0.0
        %5865 = vmatpush1.msra.mxu0 %v3127
        %5866 = vmatprep.subr.mxu0 0.0
        %5867 = vmatpush1.msra.mxu0 %v3126
        %5868 = vmatprep.subr.mxu0 0.0
        %5869 = vmatpush1.msra.mxu0 %v3125
        %5870 = vmatprep.subr.mxu0 0.0
        %5871 = vmatpush1.msra.mxu0 %v3124
        %5872 = vmatprep.subr.mxu0 0.0
        %5873 = vmatpush1.msra.mxu0 %v3123
        %5874 = vmatprep.subr.mxu0 0.0
        %5875 = vmatpush1.msra.mxu0 %v3122
        %5876 = vmatprep.subr.mxu0 0.0
        %5877 = vmatpush1.msra.mxu0 %v3121
        %5878 = vmatprep.subr.mxu0 0.0
        %5879 = vmatpush1.msra.mxu0 %v3120
        %5880 = vmatprep.subr.mxu0 0.0
        %5881 = vmatpush1.msra.mxu0 %v3119
        %5882 = vmatprep.subr.mxu0 0.0
        %5883 = vmatpush1.msra.mxu0 %v3118
        %5884 = vmatprep.subr.mxu0 0.0
        %5885 = vmatpush1.msra.mxu0 %v3117
        %5886 = vmatprep.subr.mxu0 0.0
        %5887 = vmatpush1.msra.mxu0 %v3116
        %5888 = vmatprep.subr.mxu0 0.0
        %5889 = vmatpush1.msra.mxu0 %v3115
        %5890 = vmatprep.subr.mxu0 0.0
        %5891 = vmatpush1.msra.mxu0 %v3114
        %5892 = vmatprep.subr.mxu0 0.0
        %5893 = vmatpush1.msra.mxu0 %v3113
        %5894 = vmatprep.subr.mxu0 0.0
        %5895 = vmatpush1.msra.mxu0 %v3112
        %5896 = vmatprep.subr.mxu0 0.0
        %5897 = vmatpush2.msra.mxu0 0.0
        %5898 = vmatprep.subr.mxu0 0.0
        %5899 = vmatpush2.msra.mxu0 0.0
        %5900 = vmatprep.subr.mxu0 0.0
        %5901 = vmatpush2.msra.mxu0 0.0
        %5902 = vmatprep.subr.mxu0 0.0
        %5903 = vmatpush2.msra.mxu0 0.0
        %5904 = vmatprep.subr.mxu0 0.0
        %5905 = vmatpush2.msra.mxu0 0.0
        %5906 = vmatprep.subr.mxu0 0.0
        %5907 = vmatpush2.msra.mxu0 0.0
        %5908 = vmatprep.subr.mxu0 0.0
        %5909 = vmatpush2.msra.mxu0 0.0
        %5910 = vmatprep.subr.mxu0 0.0
        %5911 = vmatpush2.msra.mxu0 0.0
        %5912 = vmatprep.subr.mxu0 0.0
        %5913 = vmatpush2.msra.mxu0 0.0
        %5914 = vmatprep.subr.mxu0 0.0
        %5915 = vmatpush2.msra.mxu0 0.0
        %5916 = vmatprep.subr.mxu0 0.0
        %5917 = vmatpush2.msra.mxu0 0.0
        %5918 = vmatprep.subr.mxu0 0.0
        %5919 = vmatpush2.msra.mxu0 0.0
        %5920 = vmatprep.subr.mxu0 0.0
        %5921 = vmatpush2.msra.mxu0 0.0
        %5922 = vmatprep.subr.mxu0 0.0
        %5923 = vmatpush2.msra.mxu0 0.0
        %5924 = vmatprep.subr.mxu0 0.0
        %5925 = vmatpush2.msra.mxu0 0.0
        %5926 = vmatprep.subr.mxu0 0.0
        %5927 = vmatpush2.msra.mxu0 0.0
        %5928 = vmatprep.mubr.f32.mxu0 0.0
        %5929 = vmatmul.mubr.f32.gmra.mxu0 %v5023
        %v5930 = vpop.f32.mrf.mxu0
        %v5931 = vadd.f32 %v5861, %v5930
        %v5932 = vpop.f32.mrf.mxu0
        %5933 = vdwg.mxu0
        %v5934 = vmax.f32 %v5931, 0.0
        %s5935 = scalar_lea.vmem %s7, 16
        %v5936 = vld [vmem:[%s5935] sm:$0x7f]
        %v5937 = vmul.f32 %v5934, %v5936
        %v5938 = vsel %vm4048, %v5937, 0.0
        %5939 = vadd.xlane.f32.xlu0 %v5938
        %v5940 = vpop.xlane.xlu0 %5939
        %v5941 = vrot.slane %v5940, 4
        %v5942 = vadd.f32 %v5940, %v5941
        %v5943 = vrot.slane %v5942, 2
        %v5944 = vadd.f32 %v5942, %v5943
        %v5945 = vrot.slane %v5944, 1
        %v5946 = vadd.f32 %v5944, %v5945
        %s5947 = vtos %v5946
        %s5948 = sadd.f32 %s5003, %s5947
        %s5949 = scalar_lea.vmem %s7, 48
        %v5950 = vld [vmem:[%s5949] sm:$0x7f]
        %v5951 = vmul.f32 %v5934, %v5950
        %v5952 = vsel %vm4048, %v5951, 0.0
        %5953 = vadd.xlane.f32.xlu0 %v5952
        %v5954 = vpop.xlane.xlu0 %5953
        %v5955 = vrot.slane %v5954, 4
        %v5956 = vadd.f32 %v5954, %v5955
        %v5957 = vrot.slane %v5956, 2
        %v5958 = vadd.f32 %v5956, %v5957
        %v5959 = vrot.slane %v5958, 1
        %v5960 = vadd.f32 %v5958, %v5959
        %s5961 = vtos %v5960
        %s5962 = sadd.f32 %s5017, %s5961
        %s5963 = scalar_lea.vmem [#allocation3], 112
        %v5964 = vld [vmem:[%s5963] sm:$0x7f]
        %v5965 = vld [vmem:[%s5963 + $0x1] sm:$0x7f]
        %v5966 = vld [vmem:[%s5963 + $0x2] sm:$0x7f]
        %v5967 = vld [vmem:[%s5963 + $0x3] sm:$0x7f]
        %v5968 = vld [vmem:[%s5963 + $0x4] sm:$0x7f]
        %5969 = vmatprep.subr.mxu0 0.0
        %5970 = vmatpush1.msra.mxu0 %v2743
        %5971 = vmatprep.subr.mxu0 0.0
        %5972 = vmatpush1.msra.mxu0 %v2742
        %5973 = vmatprep.subr.mxu0 0.0
        %5974 = vmatpush1.msra.mxu0 %v2741
        %5975 = vmatprep.subr.mxu0 0.0
        %5976 = vmatpush1.msra.mxu0 %v2740
        %5977 = vmatprep.subr.mxu0 0.0
        %5978 = vmatpush1.msra.mxu0 %v2739
        %5979 = vmatprep.subr.mxu0 0.0
        %5980 = vmatpush1.msra.mxu0 %v2738
        %5981 = vmatprep.subr.mxu0 0.0
        %5982 = vmatpush1.msra.mxu0 %v2737
        %5983 = vmatprep.subr.mxu0 0.0
        %5984 = vmatpush1.msra.mxu0 %v2736
        %5985 = vmatprep.subr.mxu0 0.0
        %5986 = vmatpush1.msra.mxu0 %v2735
        %5987 = vmatprep.subr.mxu0 0.0
        %5988 = vmatpush1.msra.mxu0 %v2734
        %5989 = vmatprep.subr.mxu0 0.0
        %5990 = vmatpush1.msra.mxu0 %v2733
        %5991 = vmatprep.subr.mxu0 0.0
        %5992 = vmatpush1.msra.mxu0 %v2732
        %5993 = vmatprep.subr.mxu0 0.0
        %5994 = vmatpush1.msra.mxu0 %v2731
        %5995 = vmatprep.subr.mxu0 0.0
        %5996 = vmatpush1.msra.mxu0 %v2730
        %5997 = vmatprep.subr.mxu0 0.0
        %5998 = vmatpush1.msra.mxu0 %v2729
        %5999 = vmatprep.subr.mxu0 0.0
        %6000 = vmatpush1.msra.mxu0 %v2728
        %6001 = vmatprep.subr.mxu0 0.0
        %6002 = vmatpush2.msra.mxu0 %v2759
        %6003 = vmatprep.subr.mxu0 0.0
        %6004 = vmatpush2.msra.mxu0 %v2758
        %6005 = vmatprep.subr.mxu0 0.0
        %6006 = vmatpush2.msra.mxu0 %v2757
        %6007 = vmatprep.subr.mxu0 0.0
        %6008 = vmatpush2.msra.mxu0 %v2756
        %6009 = vmatprep.subr.mxu0 0.0
        %6010 = vmatpush2.msra.mxu0 %v2755
        %6011 = vmatprep.subr.mxu0 0.0
        %6012 = vmatpush2.msra.mxu0 %v2754
        %6013 = vmatprep.subr.mxu0 0.0
        %6014 = vmatpush2.msra.mxu0 %v2753
        %6015 = vmatprep.subr.mxu0 0.0
        %6016 = vmatpush2.msra.mxu0 %v2752
        %6017 = vmatprep.subr.mxu0 0.0
        %6018 = vmatpush2.msra.mxu0 %v2751
        %6019 = vmatprep.subr.mxu0 0.0
        %6020 = vmatpush2.msra.mxu0 %v2750
        %6021 = vmatprep.subr.mxu0 0.0
        %6022 = vmatpush2.msra.mxu0 %v2749
        %6023 = vmatprep.subr.mxu0 0.0
        %6024 = vmatpush2.msra.mxu0 %v2748
        %6025 = vmatprep.subr.mxu0 0.0
        %6026 = vmatpush2.msra.mxu0 %v2747
        %6027 = vmatprep.subr.mxu0 0.0
        %6028 = vmatpush2.msra.mxu0 %v2746
        %6029 = vmatprep.subr.mxu0 0.0
        %6030 = vmatpush2.msra.mxu0 %v2745
        %6031 = vmatprep.subr.mxu0 0.0
        %6032 = vmatpush2.msra.mxu0 %v2744
        %6033 = vmatprep.mubr.f32.mxu0 %v2719
        %6034 = vmatmul.mubr.f32.gmra.mxu0 %v2718
        %v6035 = vpop.f32.mrf.mxu0
        %v6036 = vadd.f32 %v3133, %v6035
        %v6037 = vpop.f32.mrf.mxu0
        %6038 = vdwg.mxu0
        %6039 = vmatprep.subr.mxu0 0.0
        %6040 = vmatpush1.msra.mxu0 %v2775
        %6041 = vmatprep.subr.mxu0 0.0
        %6042 = vmatpush1.msra.mxu0 %v2774
        %6043 = vmatprep.subr.mxu0 0.0
        %6044 = vmatpush1.msra.mxu0 %v2773
        %6045 = vmatprep.subr.mxu0 0.0
        %6046 = vmatpush1.msra.mxu0 %v2772
        %6047 = vmatprep.subr.mxu0 0.0
        %6048 = vmatpush1.msra.mxu0 %v2771
        %6049 = vmatprep.subr.mxu0 0.0
        %6050 = vmatpush1.msra.mxu0 %v2770
        %6051 = vmatprep.subr.mxu0 0.0
        %6052 = vmatpush1.msra.mxu0 %v2769
        %6053 = vmatprep.subr.mxu0 0.0
        %6054 = vmatpush1.msra.mxu0 %v2768
        %6055 = vmatprep.subr.mxu0 0.0
        %6056 = vmatpush1.msra.mxu0 %v2767
        %6057 = vmatprep.subr.mxu0 0.0
        %6058 = vmatpush1.msra.mxu0 %v2766
        %6059 = vmatprep.subr.mxu0 0.0
        %6060 = vmatpush1.msra.mxu0 %v2765
        %6061 = vmatprep.subr.mxu0 0.0
        %6062 = vmatpush1.msra.mxu0 %v2764
        %6063 = vmatprep.subr.mxu0 0.0
        %6064 = vmatpush1.msra.mxu0 %v2763
        %6065 = vmatprep.subr.mxu0 0.0
        %6066 = vmatpush1.msra.mxu0 %v2762
        %6067 = vmatprep.subr.mxu0 0.0
        %6068 = vmatpush1.msra.mxu0 %v2761
        %6069 = vmatprep.subr.mxu0 0.0
        %6070 = vmatpush1.msra.mxu0 %v2760
        %6071 = vmatprep.subr.mxu0 0.0
        %6072 = vmatpush2.msra.mxu0 %v2791
        %6073 = vmatprep.subr.mxu0 0.0
        %6074 = vmatpush2.msra.mxu0 %v2790
        %6075 = vmatprep.subr.mxu0 0.0
        %6076 = vmatpush2.msra.mxu0 %v2789
        %6077 = vmatprep.subr.mxu0 0.0
        %6078 = vmatpush2.msra.mxu0 %v2788
        %6079 = vmatprep.subr.mxu0 0.0
        %6080 = vmatpush2.msra.mxu0 %v2787
        %6081 = vmatprep.subr.mxu0 0.0
        %6082 = vmatpush2.msra.mxu0 %v2786
        %6083 = vmatprep.subr.mxu0 0.0
        %6084 = vmatpush2.msra.mxu0 %v2785
        %6085 = vmatprep.subr.mxu0 0.0
        %6086 = vmatpush2.msra.mxu0 %v2784
        %6087 = vmatprep.subr.mxu0 0.0
        %6088 = vmatpush2.msra.mxu0 %v2783
        %6089 = vmatprep.subr.mxu0 0.0
        %6090 = vmatpush2.msra.mxu0 %v2782
        %6091 = vmatprep.subr.mxu0 0.0
        %6092 = vmatpush2.msra.mxu0 %v2781
        %6093 = vmatprep.subr.mxu0 0.0
        %6094 = vmatpush2.msra.mxu0 %v2780
        %6095 = vmatprep.subr.mxu0 0.0
        %6096 = vmatpush2.msra.mxu0 %v2779
        %6097 = vmatprep.subr.mxu0 0.0
        %6098 = vmatpush2.msra.mxu0 %v2778
        %6099 = vmatprep.subr.mxu0 0.0
        %6100 = vmatpush2.msra.mxu0 %v2777
        %6101 = vmatprep.subr.mxu0 0.0
        %6102 = vmatpush2.msra.mxu0 %v2776
        %6103 = vmatprep.mubr.f32.mxu0 %v2721
        %6104 = vmatmul.mubr.f32.gmra.mxu0 %v2720
        %v6105 = vpop.f32.mrf.mxu0
        %v6106 = vadd.f32 %v6036, %v6105
        %v6107 = vpop.f32.mrf.mxu0
        %6108 = vdwg.mxu0
        %6109 = vmatprep.subr.mxu0 0.0
        %6110 = vmatpush1.msra.mxu0 %v2807
        %6111 = vmatprep.subr.mxu0 0.0
        %6112 = vmatpush1.msra.mxu0 %v2806
        %6113 = vmatprep.subr.mxu0 0.0
        %6114 = vmatpush1.msra.mxu0 %v2805
        %6115 = vmatprep.subr.mxu0 0.0
        %6116 = vmatpush1.msra.mxu0 %v2804
        %6117 = vmatprep.subr.mxu0 0.0
        %6118 = vmatpush1.msra.mxu0 %v2803
        %6119 = vmatprep.subr.mxu0 0.0
        %6120 = vmatpush1.msra.mxu0 %v2802
        %6121 = vmatprep.subr.mxu0 0.0
        %6122 = vmatpush1.msra.mxu0 %v2801
        %6123 = vmatprep.subr.mxu0 0.0
        %6124 = vmatpush1.msra.mxu0 %v2800
        %6125 = vmatprep.subr.mxu0 0.0
        %6126 = vmatpush1.msra.mxu0 %v2799
        %6127 = vmatprep.subr.mxu0 0.0
        %6128 = vmatpush1.msra.mxu0 %v2798
        %6129 = vmatprep.subr.mxu0 0.0
        %6130 = vmatpush1.msra.mxu0 %v2797
        %6131 = vmatprep.subr.mxu0 0.0
        %6132 = vmatpush1.msra.mxu0 %v2796
        %6133 = vmatprep.subr.mxu0 0.0
        %6134 = vmatpush1.msra.mxu0 %v2795
        %6135 = vmatprep.subr.mxu0 0.0
        %6136 = vmatpush1.msra.mxu0 %v2794
        %6137 = vmatprep.subr.mxu0 0.0
        %6138 = vmatpush1.msra.mxu0 %v2793
        %6139 = vmatprep.subr.mxu0 0.0
        %6140 = vmatpush1.msra.mxu0 %v2792
        %6141 = vmatprep.subr.mxu0 0.0
        %6142 = vmatpush2.msra.mxu0 %v2823
        %6143 = vmatprep.subr.mxu0 0.0
        %6144 = vmatpush2.msra.mxu0 %v2822
        %6145 = vmatprep.subr.mxu0 0.0
        %6146 = vmatpush2.msra.mxu0 %v2821
        %6147 = vmatprep.subr.mxu0 0.0
        %6148 = vmatpush2.msra.mxu0 %v2820
        %6149 = vmatprep.subr.mxu0 0.0
        %6150 = vmatpush2.msra.mxu0 %v2819
        %6151 = vmatprep.subr.mxu0 0.0
        %6152 = vmatpush2.msra.mxu0 %v2818
        %6153 = vmatprep.subr.mxu0 0.0
        %6154 = vmatpush2.msra.mxu0 %v2817
        %6155 = vmatprep.subr.mxu0 0.0
        %6156 = vmatpush2.msra.mxu0 %v2816
        %6157 = vmatprep.subr.mxu0 0.0
        %6158 = vmatpush2.msra.mxu0 %v2815
        %6159 = vmatprep.subr.mxu0 0.0
        %6160 = vmatpush2.msra.mxu0 %v2814
        %6161 = vmatprep.subr.mxu0 0.0
        %6162 = vmatpush2.msra.mxu0 %v2813
        %6163 = vmatprep.subr.mxu0 0.0
        %6164 = vmatpush2.msra.mxu0 %v2812
        %6165 = vmatprep.subr.mxu0 0.0
        %6166 = vmatpush2.msra.mxu0 %v2811
        %6167 = vmatprep.subr.mxu0 0.0
        %6168 = vmatpush2.msra.mxu0 %v2810
        %6169 = vmatprep.subr.mxu0 0.0
        %6170 = vmatpush2.msra.mxu0 %v2809
        %6171 = vmatprep.subr.mxu0 0.0
        %6172 = vmatpush2.msra.mxu0 %v2808
        %6173 = vmatprep.mubr.f32.mxu0 %v2723
        %6174 = vmatmul.mubr.f32.gmra.mxu0 %v2722
        %v6175 = vpop.f32.mrf.mxu0
        %v6176 = vadd.f32 %v6106, %v6175
        %v6177 = vpop.f32.mrf.mxu0
        %6178 = vdwg.mxu0
        %6179 = vmatprep.subr.mxu0 0.0
        %6180 = vmatpush1.msra.mxu0 %v2839
        %6181 = vmatprep.subr.mxu0 0.0
        %6182 = vmatpush1.msra.mxu0 %v2838
        %6183 = vmatprep.subr.mxu0 0.0
        %6184 = vmatpush1.msra.mxu0 %v2837
        %6185 = vmatprep.subr.mxu0 0.0
        %6186 = vmatpush1.msra.mxu0 %v2836
        %6187 = vmatprep.subr.mxu0 0.0
        %6188 = vmatpush1.msra.mxu0 %v2835
        %6189 = vmatprep.subr.mxu0 0.0
        %6190 = vmatpush1.msra.mxu0 %v2834
        %6191 = vmatprep.subr.mxu0 0.0
        %6192 = vmatpush1.msra.mxu0 %v2833
        %6193 = vmatprep.subr.mxu0 0.0
        %6194 = vmatpush1.msra.mxu0 %v2832
        %6195 = vmatprep.subr.mxu0 0.0
        %6196 = vmatpush1.msra.mxu0 %v2831
        %6197 = vmatprep.subr.mxu0 0.0
        %6198 = vmatpush1.msra.mxu0 %v2830
        %6199 = vmatprep.subr.mxu0 0.0
        %6200 = vmatpush1.msra.mxu0 %v2829
        %6201 = vmatprep.subr.mxu0 0.0
        %6202 = vmatpush1.msra.mxu0 %v2828
        %6203 = vmatprep.subr.mxu0 0.0
        %6204 = vmatpush1.msra.mxu0 %v2827
        %6205 = vmatprep.subr.mxu0 0.0
        %6206 = vmatpush1.msra.mxu0 %v2826
        %6207 = vmatprep.subr.mxu0 0.0
        %6208 = vmatpush1.msra.mxu0 %v2825
        %6209 = vmatprep.subr.mxu0 0.0
        %6210 = vmatpush1.msra.mxu0 %v2824
        %6211 = vmatprep.subr.mxu0 0.0
        %6212 = vmatpush2.msra.mxu0 %v2855
        %6213 = vmatprep.subr.mxu0 0.0
        %6214 = vmatpush2.msra.mxu0 %v2854
        %6215 = vmatprep.subr.mxu0 0.0
        %6216 = vmatpush2.msra.mxu0 %v2853
        %6217 = vmatprep.subr.mxu0 0.0
        %6218 = vmatpush2.msra.mxu0 %v2852
        %6219 = vmatprep.subr.mxu0 0.0
        %6220 = vmatpush2.msra.mxu0 %v2851
        %6221 = vmatprep.subr.mxu0 0.0
        %6222 = vmatpush2.msra.mxu0 %v2850
        %6223 = vmatprep.subr.mxu0 0.0
        %6224 = vmatpush2.msra.mxu0 %v2849
        %6225 = vmatprep.subr.mxu0 0.0
        %6226 = vmatpush2.msra.mxu0 %v2848
        %6227 = vmatprep.subr.mxu0 0.0
        %6228 = vmatpush2.msra.mxu0 %v2847
        %6229 = vmatprep.subr.mxu0 0.0
        %6230 = vmatpush2.msra.mxu0 %v2846
        %6231 = vmatprep.subr.mxu0 0.0
        %6232 = vmatpush2.msra.mxu0 %v2845
        %6233 = vmatprep.subr.mxu0 0.0
        %6234 = vmatpush2.msra.mxu0 %v2844
        %6235 = vmatprep.subr.mxu0 0.0
        %6236 = vmatpush2.msra.mxu0 %v2843
        %6237 = vmatprep.subr.mxu0 0.0
        %6238 = vmatpush2.msra.mxu0 %v2842
        %6239 = vmatprep.subr.mxu0 0.0
        %6240 = vmatpush2.msra.mxu0 %v2841
        %6241 = vmatprep.subr.mxu0 0.0
        %6242 = vmatpush2.msra.mxu0 %v2840
        %6243 = vmatprep.mubr.f32.mxu0 %v2725
        %6244 = vmatmul.mubr.f32.gmra.mxu0 %v2724
        %v6245 = vpop.f32.mrf.mxu0
        %v6246 = vadd.f32 %v6176, %v6245
        %v6247 = vpop.f32.mrf.mxu0
        %6248 = vdwg.mxu0
        %6249 = vmatprep.subr.mxu0 0.0
        %6250 = vmatpush1.msra.mxu0 %v2871
        %6251 = vmatprep.subr.mxu0 0.0
        %6252 = vmatpush1.msra.mxu0 %v2870
        %6253 = vmatprep.subr.mxu0 0.0
        %6254 = vmatpush1.msra.mxu0 %v2869
        %6255 = vmatprep.subr.mxu0 0.0
        %6256 = vmatpush1.msra.mxu0 %v2868
        %6257 = vmatprep.subr.mxu0 0.0
        %6258 = vmatpush1.msra.mxu0 %v2867
        %6259 = vmatprep.subr.mxu0 0.0
        %6260 = vmatpush1.msra.mxu0 %v2866
        %6261 = vmatprep.subr.mxu0 0.0
        %6262 = vmatpush1.msra.mxu0 %v2865
        %6263 = vmatprep.subr.mxu0 0.0
        %6264 = vmatpush1.msra.mxu0 %v2864
        %6265 = vmatprep.subr.mxu0 0.0
        %6266 = vmatpush1.msra.mxu0 %v2863
        %6267 = vmatprep.subr.mxu0 0.0
        %6268 = vmatpush1.msra.mxu0 %v2862
        %6269 = vmatprep.subr.mxu0 0.0
        %6270 = vmatpush1.msra.mxu0 %v2861
        %6271 = vmatprep.subr.mxu0 0.0
        %6272 = vmatpush1.msra.mxu0 %v2860
        %6273 = vmatprep.subr.mxu0 0.0
        %6274 = vmatpush1.msra.mxu0 %v2859
        %6275 = vmatprep.subr.mxu0 0.0
        %6276 = vmatpush1.msra.mxu0 %v2858
        %6277 = vmatprep.subr.mxu0 0.0
        %6278 = vmatpush1.msra.mxu0 %v2857
        %6279 = vmatprep.subr.mxu0 0.0
        %6280 = vmatpush1.msra.mxu0 %v2856
        %6281 = vmatprep.subr.mxu0 0.0
        %6282 = vmatpush2.msra.mxu0 %v2887
        %6283 = vmatprep.subr.mxu0 0.0
        %6284 = vmatpush2.msra.mxu0 %v2886
        %6285 = vmatprep.subr.mxu0 0.0
        %6286 = vmatpush2.msra.mxu0 %v2885
        %6287 = vmatprep.subr.mxu0 0.0
        %6288 = vmatpush2.msra.mxu0 %v2884
        %6289 = vmatprep.subr.mxu0 0.0
        %6290 = vmatpush2.msra.mxu0 %v2883
        %6291 = vmatprep.subr.mxu0 0.0
        %6292 = vmatpush2.msra.mxu0 %v2882
        %6293 = vmatprep.subr.mxu0 0.0
        %6294 = vmatpush2.msra.mxu0 %v2881
        %6295 = vmatprep.subr.mxu0 0.0
        %6296 = vmatpush2.msra.mxu0 %v2880
        %6297 = vmatprep.subr.mxu0 0.0
        %6298 = vmatpush2.msra.mxu0 %v2879
        %6299 = vmatprep.subr.mxu0 0.0
        %6300 = vmatpush2.msra.mxu0 %v2878
        %6301 = vmatprep.subr.mxu0 0.0
        %6302 = vmatpush2.msra.mxu0 %v2877
        %6303 = vmatprep.subr.mxu0 0.0
        %6304 = vmatpush2.msra.mxu0 %v2876
        %6305 = vmatprep.subr.mxu0 0.0
        %6306 = vmatpush2.msra.mxu0 %v2875
        %6307 = vmatprep.subr.mxu0 0.0
        %6308 = vmatpush2.msra.mxu0 %v2874
        %6309 = vmatprep.subr.mxu0 0.0
        %6310 = vmatpush2.msra.mxu0 %v2873
        %6311 = vmatprep.subr.mxu0 0.0
        %6312 = vmatpush2.msra.mxu0 %v2872
        %6313 = vmatprep.mubr.f32.mxu0 %v2727
        %6314 = vmatmul.mubr.f32.gmra.mxu0 %v2726
        %v6315 = vpop.f32.mrf.mxu0
        %v6316 = vadd.f32 %v6246, %v6315
        %v6317 = vpop.f32.mrf.mxu0
        %6318 = vdwg.mxu0
        %6319 = vmatprep.subr.mxu0 0.0
        %6320 = vmatpush1.msra.mxu0 %v2903
        %6321 = vmatprep.subr.mxu0 0.0
        %6322 = vmatpush1.msra.mxu0 %v2902
        %6323 = vmatprep.subr.mxu0 0.0
        %6324 = vmatpush1.msra.mxu0 %v2901
        %6325 = vmatprep.subr.mxu0 0.0
        %6326 = vmatpush1.msra.mxu0 %v2900
        %6327 = vmatprep.subr.mxu0 0.0
        %6328 = vmatpush1.msra.mxu0 %v2899
        %6329 = vmatprep.subr.mxu0 0.0
        %6330 = vmatpush1.msra.mxu0 %v2898
        %6331 = vmatprep.subr.mxu0 0.0
        %6332 = vmatpush1.msra.mxu0 %v2897
        %6333 = vmatprep.subr.mxu0 0.0
        %6334 = vmatpush1.msra.mxu0 %v2896
        %6335 = vmatprep.subr.mxu0 0.0
        %6336 = vmatpush1.msra.mxu0 %v2895
        %6337 = vmatprep.subr.mxu0 0.0
        %6338 = vmatpush1.msra.mxu0 %v2894
        %6339 = vmatprep.subr.mxu0 0.0
        %6340 = vmatpush1.msra.mxu0 %v2893
        %6341 = vmatprep.subr.mxu0 0.0
        %6342 = vmatpush1.msra.mxu0 %v2892
        %6343 = vmatprep.subr.mxu0 0.0
        %6344 = vmatpush1.msra.mxu0 %v2891
        %6345 = vmatprep.subr.mxu0 0.0
        %6346 = vmatpush1.msra.mxu0 %v2890
        %6347 = vmatprep.subr.mxu0 0.0
        %6348 = vmatpush1.msra.mxu0 %v2889
        %6349 = vmatprep.subr.mxu0 0.0
        %6350 = vmatpush1.msra.mxu0 %v2888
        %6351 = vmatprep.subr.mxu0 0.0
        %6352 = vmatpush2.msra.mxu0 %v2919
        %6353 = vmatprep.subr.mxu0 0.0
        %6354 = vmatpush2.msra.mxu0 %v2918
        %6355 = vmatprep.subr.mxu0 0.0
        %6356 = vmatpush2.msra.mxu0 %v2917
        %6357 = vmatprep.subr.mxu0 0.0
        %6358 = vmatpush2.msra.mxu0 %v2916
        %6359 = vmatprep.subr.mxu0 0.0
        %6360 = vmatpush2.msra.mxu0 %v2915
        %6361 = vmatprep.subr.mxu0 0.0
        %6362 = vmatpush2.msra.mxu0 %v2914
        %6363 = vmatprep.subr.mxu0 0.0
        %6364 = vmatpush2.msra.mxu0 %v2913
        %6365 = vmatprep.subr.mxu0 0.0
        %6366 = vmatpush2.msra.mxu0 %v2912
        %6367 = vmatprep.subr.mxu0 0.0
        %6368 = vmatpush2.msra.mxu0 %v2911
        %6369 = vmatprep.subr.mxu0 0.0
        %6370 = vmatpush2.msra.mxu0 %v2910
        %6371 = vmatprep.subr.mxu0 0.0
        %6372 = vmatpush2.msra.mxu0 %v2909
        %6373 = vmatprep.subr.mxu0 0.0
        %6374 = vmatpush2.msra.mxu0 %v2908
        %6375 = vmatprep.subr.mxu0 0.0
        %6376 = vmatpush2.msra.mxu0 %v2907
        %6377 = vmatprep.subr.mxu0 0.0
        %6378 = vmatpush2.msra.mxu0 %v2906
        %6379 = vmatprep.subr.mxu0 0.0
        %6380 = vmatpush2.msra.mxu0 %v2905
        %6381 = vmatprep.subr.mxu0 0.0
        %6382 = vmatpush2.msra.mxu0 %v2904
        %6383 = vmatprep.mubr.f32.mxu0 %v4075
        %6384 = vmatmul.mubr.f32.gmra.mxu0 %v4074
        %v6385 = vpop.f32.mrf.mxu0
        %v6386 = vadd.f32 %v6316, %v6385
        %v6387 = vpop.f32.mrf.mxu0
        %6388 = vdwg.mxu0
        %6389 = vmatprep.subr.mxu0 0.0
        %6390 = vmatpush1.msra.mxu0 %v2935
        %6391 = vmatprep.subr.mxu0 0.0
        %6392 = vmatpush1.msra.mxu0 %v2934
        %6393 = vmatprep.subr.mxu0 0.0
        %6394 = vmatpush1.msra.mxu0 %v2933
        %6395 = vmatprep.subr.mxu0 0.0
        %6396 = vmatpush1.msra.mxu0 %v2932
        %6397 = vmatprep.subr.mxu0 0.0
        %6398 = vmatpush1.msra.mxu0 %v2931
        %6399 = vmatprep.subr.mxu0 0.0
        %6400 = vmatpush1.msra.mxu0 %v2930
        %6401 = vmatprep.subr.mxu0 0.0
        %6402 = vmatpush1.msra.mxu0 %v2929
        %6403 = vmatprep.subr.mxu0 0.0
        %6404 = vmatpush1.msra.mxu0 %v2928
        %6405 = vmatprep.subr.mxu0 0.0
        %6406 = vmatpush1.msra.mxu0 %v2927
        %6407 = vmatprep.subr.mxu0 0.0
        %6408 = vmatpush1.msra.mxu0 %v2926
        %6409 = vmatprep.subr.mxu0 0.0
        %6410 = vmatpush1.msra.mxu0 %v2925
        %6411 = vmatprep.subr.mxu0 0.0
        %6412 = vmatpush1.msra.mxu0 %v2924
        %6413 = vmatprep.subr.mxu0 0.0
        %6414 = vmatpush1.msra.mxu0 %v2923
        %6415 = vmatprep.subr.mxu0 0.0
        %6416 = vmatpush1.msra.mxu0 %v2922
        %6417 = vmatprep.subr.mxu0 0.0
        %6418 = vmatpush1.msra.mxu0 %v2921
        %6419 = vmatprep.subr.mxu0 0.0
        %6420 = vmatpush1.msra.mxu0 %v2920
        %6421 = vmatprep.subr.mxu0 0.0
        %6422 = vmatpush2.msra.mxu0 %v2951
        %6423 = vmatprep.subr.mxu0 0.0
        %6424 = vmatpush2.msra.mxu0 %v2950
        %6425 = vmatprep.subr.mxu0 0.0
        %6426 = vmatpush2.msra.mxu0 %v2949
        %6427 = vmatprep.subr.mxu0 0.0
        %6428 = vmatpush2.msra.mxu0 %v2948
        %6429 = vmatprep.subr.mxu0 0.0
        %6430 = vmatpush2.msra.mxu0 %v2947
        %6431 = vmatprep.subr.mxu0 0.0
        %6432 = vmatpush2.msra.mxu0 %v2946
        %6433 = vmatprep.subr.mxu0 0.0
        %6434 = vmatpush2.msra.mxu0 %v2945
        %6435 = vmatprep.subr.mxu0 0.0
        %6436 = vmatpush2.msra.mxu0 %v2944
        %6437 = vmatprep.subr.mxu0 0.0
        %6438 = vmatpush2.msra.mxu0 %v2943
        %6439 = vmatprep.subr.mxu0 0.0
        %6440 = vmatpush2.msra.mxu0 %v2942
        %6441 = vmatprep.subr.mxu0 0.0
        %6442 = vmatpush2.msra.mxu0 %v2941
        %6443 = vmatprep.subr.mxu0 0.0
        %6444 = vmatpush2.msra.mxu0 %v2940
        %6445 = vmatprep.subr.mxu0 0.0
        %6446 = vmatpush2.msra.mxu0 %v2939
        %6447 = vmatprep.subr.mxu0 0.0
        %6448 = vmatpush2.msra.mxu0 %v2938
        %6449 = vmatprep.subr.mxu0 0.0
        %6450 = vmatpush2.msra.mxu0 %v2937
        %6451 = vmatprep.subr.mxu0 0.0
        %6452 = vmatpush2.msra.mxu0 %v2936
        %6453 = vmatprep.mubr.f32.mxu0 %v4077
        %6454 = vmatmul.mubr.f32.gmra.mxu0 %v4076
        %v6455 = vpop.f32.mrf.mxu0
        %v6456 = vadd.f32 %v6386, %v6455
        %v6457 = vpop.f32.mrf.mxu0
        %6458 = vdwg.mxu0
        %6459 = vmatprep.subr.mxu0 0.0
        %6460 = vmatpush1.msra.mxu0 %v2967
        %6461 = vmatprep.subr.mxu0 0.0
        %6462 = vmatpush1.msra.mxu0 %v2966
        %6463 = vmatprep.subr.mxu0 0.0
        %6464 = vmatpush1.msra.mxu0 %v2965
        %6465 = vmatprep.subr.mxu0 0.0
        %6466 = vmatpush1.msra.mxu0 %v2964
        %6467 = vmatprep.subr.mxu0 0.0
        %6468 = vmatpush1.msra.mxu0 %v2963
        %6469 = vmatprep.subr.mxu0 0.0
        %6470 = vmatpush1.msra.mxu0 %v2962
        %6471 = vmatprep.subr.mxu0 0.0
        %6472 = vmatpush1.msra.mxu0 %v2961
        %6473 = vmatprep.subr.mxu0 0.0
        %6474 = vmatpush1.msra.mxu0 %v2960
        %6475 = vmatprep.subr.mxu0 0.0
        %6476 = vmatpush1.msra.mxu0 %v2959
        %6477 = vmatprep.subr.mxu0 0.0
        %6478 = vmatpush1.msra.mxu0 %v2958
        %6479 = vmatprep.subr.mxu0 0.0
        %6480 = vmatpush1.msra.mxu0 %v2957
        %6481 = vmatprep.subr.mxu0 0.0
        %6482 = vmatpush1.msra.mxu0 %v2956
        %6483 = vmatprep.subr.mxu0 0.0
        %6484 = vmatpush1.msra.mxu0 %v2955
        %6485 = vmatprep.subr.mxu0 0.0
        %6486 = vmatpush1.msra.mxu0 %v2954
        %6487 = vmatprep.subr.mxu0 0.0
        %6488 = vmatpush1.msra.mxu0 %v2953
        %6489 = vmatprep.subr.mxu0 0.0
        %6490 = vmatpush1.msra.mxu0 %v2952
        %6491 = vmatprep.subr.mxu0 0.0
        %6492 = vmatpush2.msra.mxu0 %v2983
        %6493 = vmatprep.subr.mxu0 0.0
        %6494 = vmatpush2.msra.mxu0 %v2982
        %6495 = vmatprep.subr.mxu0 0.0
        %6496 = vmatpush2.msra.mxu0 %v2981
        %6497 = vmatprep.subr.mxu0 0.0
        %6498 = vmatpush2.msra.mxu0 %v2980
        %6499 = vmatprep.subr.mxu0 0.0
        %6500 = vmatpush2.msra.mxu0 %v2979
        %6501 = vmatprep.subr.mxu0 0.0
        %6502 = vmatpush2.msra.mxu0 %v2978
        %6503 = vmatprep.subr.mxu0 0.0
        %6504 = vmatpush2.msra.mxu0 %v2977
        %6505 = vmatprep.subr.mxu0 0.0
        %6506 = vmatpush2.msra.mxu0 %v2976
        %6507 = vmatprep.subr.mxu0 0.0
        %6508 = vmatpush2.msra.mxu0 %v2975
        %6509 = vmatprep.subr.mxu0 0.0
        %6510 = vmatpush2.msra.mxu0 %v2974
        %6511 = vmatprep.subr.mxu0 0.0
        %6512 = vmatpush2.msra.mxu0 %v2973
        %6513 = vmatprep.subr.mxu0 0.0
        %6514 = vmatpush2.msra.mxu0 %v2972
        %6515 = vmatprep.subr.mxu0 0.0
        %6516 = vmatpush2.msra.mxu0 %v2971
        %6517 = vmatprep.subr.mxu0 0.0
        %6518 = vmatpush2.msra.mxu0 %v2970
        %6519 = vmatprep.subr.mxu0 0.0
        %6520 = vmatpush2.msra.mxu0 %v2969
        %6521 = vmatprep.subr.mxu0 0.0
        %6522 = vmatpush2.msra.mxu0 %v2968
        %6523 = vmatprep.mubr.f32.mxu0 %v5019
        %6524 = vmatmul.mubr.f32.gmra.mxu0 %v4078
        %v6525 = vpop.f32.mrf.mxu0
        %v6526 = vadd.f32 %v6456, %v6525
        %v6527 = vpop.f32.mrf.mxu0
        %6528 = vdwg.mxu0
        %6529 = vmatprep.subr.mxu0 0.0
        %6530 = vmatpush1.msra.mxu0 %v2999
        %6531 = vmatprep.subr.mxu0 0.0
        %6532 = vmatpush1.msra.mxu0 %v2998
        %6533 = vmatprep.subr.mxu0 0.0
        %6534 = vmatpush1.msra.mxu0 %v2997
        %6535 = vmatprep.subr.mxu0 0.0
        %6536 = vmatpush1.msra.mxu0 %v2996
        %6537 = vmatprep.subr.mxu0 0.0
        %6538 = vmatpush1.msra.mxu0 %v2995
        %6539 = vmatprep.subr.mxu0 0.0
        %6540 = vmatpush1.msra.mxu0 %v2994
        %6541 = vmatprep.subr.mxu0 0.0
        %6542 = vmatpush1.msra.mxu0 %v2993
        %6543 = vmatprep.subr.mxu0 0.0
        %6544 = vmatpush1.msra.mxu0 %v2992
        %6545 = vmatprep.subr.mxu0 0.0
        %6546 = vmatpush1.msra.mxu0 %v2991
        %6547 = vmatprep.subr.mxu0 0.0
        %6548 = vmatpush1.msra.mxu0 %v2990
        %6549 = vmatprep.subr.mxu0 0.0
        %6550 = vmatpush1.msra.mxu0 %v2989
        %6551 = vmatprep.subr.mxu0 0.0
        %6552 = vmatpush1.msra.mxu0 %v2988
        %6553 = vmatprep.subr.mxu0 0.0
        %6554 = vmatpush1.msra.mxu0 %v2987
        %6555 = vmatprep.subr.mxu0 0.0
        %6556 = vmatpush1.msra.mxu0 %v2986
        %6557 = vmatprep.subr.mxu0 0.0
        %6558 = vmatpush1.msra.mxu0 %v2985
        %6559 = vmatprep.subr.mxu0 0.0
        %6560 = vmatpush1.msra.mxu0 %v2984
        %6561 = vmatprep.subr.mxu0 0.0
        %6562 = vmatpush2.msra.mxu0 %v3015
        %6563 = vmatprep.subr.mxu0 0.0
        %6564 = vmatpush2.msra.mxu0 %v3014
        %6565 = vmatprep.subr.mxu0 0.0
        %6566 = vmatpush2.msra.mxu0 %v3013
        %6567 = vmatprep.subr.mxu0 0.0
        %6568 = vmatpush2.msra.mxu0 %v3012
        %6569 = vmatprep.subr.mxu0 0.0
        %6570 = vmatpush2.msra.mxu0 %v3011
        %6571 = vmatprep.subr.mxu0 0.0
        %6572 = vmatpush2.msra.mxu0 %v3010
        %6573 = vmatprep.subr.mxu0 0.0
        %6574 = vmatpush2.msra.mxu0 %v3009
        %6575 = vmatprep.subr.mxu0 0.0
        %6576 = vmatpush2.msra.mxu0 %v3008
        %6577 = vmatprep.subr.mxu0 0.0
        %6578 = vmatpush2.msra.mxu0 %v3007
        %6579 = vmatprep.subr.mxu0 0.0
        %6580 = vmatpush2.msra.mxu0 %v3006
        %6581 = vmatprep.subr.mxu0 0.0
        %6582 = vmatpush2.msra.mxu0 %v3005
        %6583 = vmatprep.subr.mxu0 0.0
        %6584 = vmatpush2.msra.mxu0 %v3004
        %6585 = vmatprep.subr.mxu0 0.0
        %6586 = vmatpush2.msra.mxu0 %v3003
        %6587 = vmatprep.subr.mxu0 0.0
        %6588 = vmatpush2.msra.mxu0 %v3002
        %6589 = vmatprep.subr.mxu0 0.0
        %6590 = vmatpush2.msra.mxu0 %v3001
        %6591 = vmatprep.subr.mxu0 0.0
        %6592 = vmatpush2.msra.mxu0 %v3000
        %6593 = vmatprep.mubr.f32.mxu0 %v5021
        %6594 = vmatmul.mubr.f32.gmra.mxu0 %v5020
        %v6595 = vpop.f32.mrf.mxu0
        %v6596 = vadd.f32 %v6526, %v6595
        %v6597 = vpop.f32.mrf.mxu0
        %6598 = vdwg.mxu0
        %6599 = vmatprep.subr.mxu0 0.0
        %6600 = vmatpush1.msra.mxu0 %v3031
        %6601 = vmatprep.subr.mxu0 0.0
        %6602 = vmatpush1.msra.mxu0 %v3030
        %6603 = vmatprep.subr.mxu0 0.0
        %6604 = vmatpush1.msra.mxu0 %v3029
        %6605 = vmatprep.subr.mxu0 0.0
        %6606 = vmatpush1.msra.mxu0 %v3028
        %6607 = vmatprep.subr.mxu0 0.0
        %6608 = vmatpush1.msra.mxu0 %v3027
        %6609 = vmatprep.subr.mxu0 0.0
        %6610 = vmatpush1.msra.mxu0 %v3026
        %6611 = vmatprep.subr.mxu0 0.0
        %6612 = vmatpush1.msra.mxu0 %v3025
        %6613 = vmatprep.subr.mxu0 0.0
        %6614 = vmatpush1.msra.mxu0 %v3024
        %6615 = vmatprep.subr.mxu0 0.0
        %6616 = vmatpush1.msra.mxu0 %v3023
        %6617 = vmatprep.subr.mxu0 0.0
        %6618 = vmatpush1.msra.mxu0 %v3022
        %6619 = vmatprep.subr.mxu0 0.0
        %6620 = vmatpush1.msra.mxu0 %v3021
        %6621 = vmatprep.subr.mxu0 0.0
        %6622 = vmatpush1.msra.mxu0 %v3020
        %6623 = vmatprep.subr.mxu0 0.0
        %6624 = vmatpush1.msra.mxu0 %v3019
        %6625 = vmatprep.subr.mxu0 0.0
        %6626 = vmatpush1.msra.mxu0 %v3018
        %6627 = vmatprep.subr.mxu0 0.0
        %6628 = vmatpush1.msra.mxu0 %v3017
        %6629 = vmatprep.subr.mxu0 0.0
        %6630 = vmatpush1.msra.mxu0 %v3016
        %6631 = vmatprep.subr.mxu0 0.0
        %6632 = vmatpush2.msra.mxu0 %v3047
        %6633 = vmatprep.subr.mxu0 0.0
        %6634 = vmatpush2.msra.mxu0 %v3046
        %6635 = vmatprep.subr.mxu0 0.0
        %6636 = vmatpush2.msra.mxu0 %v3045
        %6637 = vmatprep.subr.mxu0 0.0
        %6638 = vmatpush2.msra.mxu0 %v3044
        %6639 = vmatprep.subr.mxu0 0.0
        %6640 = vmatpush2.msra.mxu0 %v3043
        %6641 = vmatprep.subr.mxu0 0.0
        %6642 = vmatpush2.msra.mxu0 %v3042
        %6643 = vmatprep.subr.mxu0 0.0
        %6644 = vmatpush2.msra.mxu0 %v3041
        %6645 = vmatprep.subr.mxu0 0.0
        %6646 = vmatpush2.msra.mxu0 %v3040
        %6647 = vmatprep.subr.mxu0 0.0
        %6648 = vmatpush2.msra.mxu0 %v3039
        %6649 = vmatprep.subr.mxu0 0.0
        %6650 = vmatpush2.msra.mxu0 %v3038
        %6651 = vmatprep.subr.mxu0 0.0
        %6652 = vmatpush2.msra.mxu0 %v3037
        %6653 = vmatprep.subr.mxu0 0.0
        %6654 = vmatpush2.msra.mxu0 %v3036
        %6655 = vmatprep.subr.mxu0 0.0
        %6656 = vmatpush2.msra.mxu0 %v3035
        %6657 = vmatprep.subr.mxu0 0.0
        %6658 = vmatpush2.msra.mxu0 %v3034
        %6659 = vmatprep.subr.mxu0 0.0
        %6660 = vmatpush2.msra.mxu0 %v3033
        %6661 = vmatprep.subr.mxu0 0.0
        %6662 = vmatpush2.msra.mxu0 %v3032
        %6663 = vmatprep.mubr.f32.mxu0 %v5023
        %6664 = vmatmul.mubr.f32.gmra.mxu0 %v5022
        %v6665 = vpop.f32.mrf.mxu0
        %v6666 = vadd.f32 %v6596, %v6665
        %v6667 = vpop.f32.mrf.mxu0
        %6668 = vdwg.mxu0
        %6669 = vmatprep.subr.mxu0 0.0
        %6670 = vmatpush1.msra.mxu0 %v3063
        %6671 = vmatprep.subr.mxu0 0.0
        %6672 = vmatpush1.msra.mxu0 %v3062
        %6673 = vmatprep.subr.mxu0 0.0
        %6674 = vmatpush1.msra.mxu0 %v3061
        %6675 = vmatprep.subr.mxu0 0.0
        %6676 = vmatpush1.msra.mxu0 %v3060
        %6677 = vmatprep.subr.mxu0 0.0
        %6678 = vmatpush1.msra.mxu0 %v3059
        %6679 = vmatprep.subr.mxu0 0.0
        %6680 = vmatpush1.msra.mxu0 %v3058
        %6681 = vmatprep.subr.mxu0 0.0
        %6682 = vmatpush1.msra.mxu0 %v3057
        %6683 = vmatprep.subr.mxu0 0.0
        %6684 = vmatpush1.msra.mxu0 %v3056
        %6685 = vmatprep.subr.mxu0 0.0
        %6686 = vmatpush1.msra.mxu0 %v3055
        %6687 = vmatprep.subr.mxu0 0.0
        %6688 = vmatpush1.msra.mxu0 %v3054
        %6689 = vmatprep.subr.mxu0 0.0
        %6690 = vmatpush1.msra.mxu0 %v3053
        %6691 = vmatprep.subr.mxu0 0.0
        %6692 = vmatpush1.msra.mxu0 %v3052
        %6693 = vmatprep.subr.mxu0 0.0
        %6694 = vmatpush1.msra.mxu0 %v3051
        %6695 = vmatprep.subr.mxu0 0.0
        %6696 = vmatpush1.msra.mxu0 %v3050
        %6697 = vmatprep.subr.mxu0 0.0
        %6698 = vmatpush1.msra.mxu0 %v3049
        %6699 = vmatprep.subr.mxu0 0.0
        %6700 = vmatpush1.msra.mxu0 %v3048
        %6701 = vmatprep.subr.mxu0 0.0
        %6702 = vmatpush2.msra.mxu0 %v3079
        %6703 = vmatprep.subr.mxu0 0.0
        %6704 = vmatpush2.msra.mxu0 %v3078
        %6705 = vmatprep.subr.mxu0 0.0
        %6706 = vmatpush2.msra.mxu0 %v3077
        %6707 = vmatprep.subr.mxu0 0.0
        %6708 = vmatpush2.msra.mxu0 %v3076
        %6709 = vmatprep.subr.mxu0 0.0
        %6710 = vmatpush2.msra.mxu0 %v3075
        %6711 = vmatprep.subr.mxu0 0.0
        %6712 = vmatpush2.msra.mxu0 %v3074
        %6713 = vmatprep.subr.mxu0 0.0
        %6714 = vmatpush2.msra.mxu0 %v3073
        %6715 = vmatprep.subr.mxu0 0.0
        %6716 = vmatpush2.msra.mxu0 %v3072
        %6717 = vmatprep.subr.mxu0 0.0
        %6718 = vmatpush2.msra.mxu0 %v3071
        %6719 = vmatprep.subr.mxu0 0.0
        %6720 = vmatpush2.msra.mxu0 %v3070
        %6721 = vmatprep.subr.mxu0 0.0
        %6722 = vmatpush2.msra.mxu0 %v3069
        %6723 = vmatprep.subr.mxu0 0.0
        %6724 = vmatpush2.msra.mxu0 %v3068
        %6725 = vmatprep.subr.mxu0 0.0
        %6726 = vmatpush2.msra.mxu0 %v3067
        %6727 = vmatprep.subr.mxu0 0.0
        %6728 = vmatpush2.msra.mxu0 %v3066
        %6729 = vmatprep.subr.mxu0 0.0
        %6730 = vmatpush2.msra.mxu0 %v3065
        %6731 = vmatprep.subr.mxu0 0.0
        %6732 = vmatpush2.msra.mxu0 %v3064
        %6733 = vmatprep.mubr.f32.mxu0 %v5965
        %6734 = vmatmul.mubr.f32.gmra.mxu0 %v5964
        %v6735 = vpop.f32.mrf.mxu0
        %v6736 = vadd.f32 %v6666, %v6735
        %v6737 = vpop.f32.mrf.mxu0
        %6738 = vdwg.mxu0
        %6739 = vmatprep.subr.mxu0 0.0
        %6740 = vmatpush1.msra.mxu0 %v3095
        %6741 = vmatprep.subr.mxu0 0.0
        %6742 = vmatpush1.msra.mxu0 %v3094
        %6743 = vmatprep.subr.mxu0 0.0
        %6744 = vmatpush1.msra.mxu0 %v3093
        %6745 = vmatprep.subr.mxu0 0.0
        %6746 = vmatpush1.msra.mxu0 %v3092
        %6747 = vmatprep.subr.mxu0 0.0
        %6748 = vmatpush1.msra.mxu0 %v3091
        %6749 = vmatprep.subr.mxu0 0.0
        %6750 = vmatpush1.msra.mxu0 %v3090
        %6751 = vmatprep.subr.mxu0 0.0
        %6752 = vmatpush1.msra.mxu0 %v3089
        %6753 = vmatprep.subr.mxu0 0.0
        %6754 = vmatpush1.msra.mxu0 %v3088
        %6755 = vmatprep.subr.mxu0 0.0
        %6756 = vmatpush1.msra.mxu0 %v3087
        %6757 = vmatprep.subr.mxu0 0.0
        %6758 = vmatpush1.msra.mxu0 %v3086
        %6759 = vmatprep.subr.mxu0 0.0
        %6760 = vmatpush1.msra.mxu0 %v3085
        %6761 = vmatprep.subr.mxu0 0.0
        %6762 = vmatpush1.msra.mxu0 %v3084
        %6763 = vmatprep.subr.mxu0 0.0
        %6764 = vmatpush1.msra.mxu0 %v3083
        %6765 = vmatprep.subr.mxu0 0.0
        %6766 = vmatpush1.msra.mxu0 %v3082
        %6767 = vmatprep.subr.mxu0 0.0
        %6768 = vmatpush1.msra.mxu0 %v3081
        %6769 = vmatprep.subr.mxu0 0.0
        %6770 = vmatpush1.msra.mxu0 %v3080
        %6771 = vmatprep.subr.mxu0 0.0
        %6772 = vmatpush2.msra.mxu0 %v3111
        %6773 = vmatprep.subr.mxu0 0.0
        %6774 = vmatpush2.msra.mxu0 %v3110
        %6775 = vmatprep.subr.mxu0 0.0
        %6776 = vmatpush2.msra.mxu0 %v3109
        %6777 = vmatprep.subr.mxu0 0.0
        %6778 = vmatpush2.msra.mxu0 %v3108
        %6779 = vmatprep.subr.mxu0 0.0
        %6780 = vmatpush2.msra.mxu0 %v3107
        %6781 = vmatprep.subr.mxu0 0.0
        %6782 = vmatpush2.msra.mxu0 %v3106
        %6783 = vmatprep.subr.mxu0 0.0
        %6784 = vmatpush2.msra.mxu0 %v3105
        %6785 = vmatprep.subr.mxu0 0.0
        %6786 = vmatpush2.msra.mxu0 %v3104
        %6787 = vmatprep.subr.mxu0 0.0
        %6788 = vmatpush2.msra.mxu0 %v3103
        %6789 = vmatprep.subr.mxu0 0.0
        %6790 = vmatpush2.msra.mxu0 %v3102
        %6791 = vmatprep.subr.mxu0 0.0
        %6792 = vmatpush2.msra.mxu0 %v3101
        %6793 = vmatprep.subr.mxu0 0.0
        %6794 = vmatpush2.msra.mxu0 %v3100
        %6795 = vmatprep.subr.mxu0 0.0
        %6796 = vmatpush2.msra.mxu0 %v3099
        %6797 = vmatprep.subr.mxu0 0.0
        %6798 = vmatpush2.msra.mxu0 %v3098
        %6799 = vmatprep.subr.mxu0 0.0
        %6800 = vmatpush2.msra.mxu0 %v3097
        %6801 = vmatprep.subr.mxu0 0.0
        %6802 = vmatpush2.msra.mxu0 %v3096
        %6803 = vmatprep.mubr.f32.mxu0 %v5967
        %6804 = vmatmul.mubr.f32.gmra.mxu0 %v5966
        %v6805 = vpop.f32.mrf.mxu0
        %v6806 = vadd.f32 %v6736, %v6805
        %v6807 = vpop.f32.mrf.mxu0
        %6808 = vdwg.mxu0
        %6809 = vmatprep.subr.mxu0 0.0
        %6810 = vmatpush1.msra.mxu0 %v3127
        %6811 = vmatprep.subr.mxu0 0.0
        %6812 = vmatpush1.msra.mxu0 %v3126
        %6813 = vmatprep.subr.mxu0 0.0
        %6814 = vmatpush1.msra.mxu0 %v3125
        %6815 = vmatprep.subr.mxu0 0.0
        %6816 = vmatpush1.msra.mxu0 %v3124
        %6817 = vmatprep.subr.mxu0 0.0
        %6818 = vmatpush1.msra.mxu0 %v3123
        %6819 = vmatprep.subr.mxu0 0.0
        %6820 = vmatpush1.msra.mxu0 %v3122
        %6821 = vmatprep.subr.mxu0 0.0
        %6822 = vmatpush1.msra.mxu0 %v3121
        %6823 = vmatprep.subr.mxu0 0.0
        %6824 = vmatpush1.msra.mxu0 %v3120
        %6825 = vmatprep.subr.mxu0 0.0
        %6826 = vmatpush1.msra.mxu0 %v3119
        %6827 = vmatprep.subr.mxu0 0.0
        %6828 = vmatpush1.msra.mxu0 %v3118
        %6829 = vmatprep.subr.mxu0 0.0
        %6830 = vmatpush1.msra.mxu0 %v3117
        %6831 = vmatprep.subr.mxu0 0.0
        %6832 = vmatpush1.msra.mxu0 %v3116
        %6833 = vmatprep.subr.mxu0 0.0
        %6834 = vmatpush1.msra.mxu0 %v3115
        %6835 = vmatprep.subr.mxu0 0.0
        %6836 = vmatpush1.msra.mxu0 %v3114
        %6837 = vmatprep.subr.mxu0 0.0
        %6838 = vmatpush1.msra.mxu0 %v3113
        %6839 = vmatprep.subr.mxu0 0.0
        %6840 = vmatpush1.msra.mxu0 %v3112
        %6841 = vmatprep.subr.mxu0 0.0
        %6842 = vmatpush2.msra.mxu0 0.0
        %6843 = vmatprep.subr.mxu0 0.0
        %6844 = vmatpush2.msra.mxu0 0.0
        %6845 = vmatprep.subr.mxu0 0.0
        %6846 = vmatpush2.msra.mxu0 0.0
        %6847 = vmatprep.subr.mxu0 0.0
        %6848 = vmatpush2.msra.mxu0 0.0
        %6849 = vmatprep.subr.mxu0 0.0
        %6850 = vmatpush2.msra.mxu0 0.0
        %6851 = vmatprep.subr.mxu0 0.0
        %6852 = vmatpush2.msra.mxu0 0.0
        %6853 = vmatprep.subr.mxu0 0.0
        %6854 = vmatpush2.msra.mxu0 0.0
        %6855 = vmatprep.subr.mxu0 0.0
        %6856 = vmatpush2.msra.mxu0 0.0
        %6857 = vmatprep.subr.mxu0 0.0
        %6858 = vmatpush2.msra.mxu0 0.0
        %6859 = vmatprep.subr.mxu0 0.0
        %6860 = vmatpush2.msra.mxu0 0.0
        %6861 = vmatprep.subr.mxu0 0.0
        %6862 = vmatpush2.msra.mxu0 0.0
        %6863 = vmatprep.subr.mxu0 0.0
        %6864 = vmatpush2.msra.mxu0 0.0
        %6865 = vmatprep.subr.mxu0 0.0
        %6866 = vmatpush2.msra.mxu0 0.0
        %6867 = vmatprep.subr.mxu0 0.0
        %6868 = vmatpush2.msra.mxu0 0.0
        %6869 = vmatprep.subr.mxu0 0.0
        %6870 = vmatpush2.msra.mxu0 0.0
        %6871 = vmatprep.subr.mxu0 0.0
        %6872 = vmatpush2.msra.mxu0 0.0
        %6873 = vmatprep.mubr.f32.mxu0 0.0
        %6874 = vmatmul.mubr.f32.gmra.mxu0 %v5968
        %v6875 = vpop.f32.mrf.mxu0
        %v6876 = vadd.f32 %v6806, %v6875
        %v6877 = vpop.f32.mrf.mxu0
        %6878 = vdwg.mxu0
        %v6879 = vmax.f32 %v6876, 0.0
        %s6880 = scalar_lea.vmem %s7, 24
        %v6881 = vld [vmem:[%s6880] sm:$0x7f]
        %v6882 = vmul.f32 %v6879, %v6881
        %v6883 = vsel %vm4048, %v6882, 0.0
        %6884 = vadd.xlane.f32.xlu0 %v6883
        %v6885 = vpop.xlane.xlu0 %6884
        %v6886 = vrot.slane %v6885, 4
        %v6887 = vadd.f32 %v6885, %v6886
        %v6888 = vrot.slane %v6887, 2
        %v6889 = vadd.f32 %v6887, %v6888
        %v6890 = vrot.slane %v6889, 1
        %v6891 = vadd.f32 %v6889, %v6890
        %s6892 = vtos %v6891
        %s6893 = sadd.f32 %s5948, %s6892
        %s6894 = scalar_lea.vmem %s7, 56
        %v6895 = vld [vmem:[%s6894] sm:$0x7f]
        %v6896 = vmul.f32 %v6879, %v6895
        %v6897 = vsel %vm4048, %v6896, 0.0
        %6898 = vadd.xlane.f32.xlu0 %v6897
        %v6899 = vpop.xlane.xlu0 %6898
        %v6900 = vrot.slane %v6899, 4
        %v6901 = vadd.f32 %v6899, %v6900
        %v6902 = vrot.slane %v6901, 2
        %v6903 = vadd.f32 %v6901, %v6902
        %v6904 = vrot.slane %v6903, 1
        %v6905 = vadd.f32 %v6903, %v6904
        %s6906 = vtos %v6905
        %s6907 = sadd.f32 %s5962, %s6906
        %v6908 = vlaneseq
        %v6909 = vand.u32 %v6908, 127
        %v6910 = vld [vmem:[%s8] sm:$0x1]
        %vm6911 = vcmp.eq.s32.totalorder %v6909, 0
        %v6912 = vstv %s6893
        %v6913 = vsel %vm6911, %v6912, 0.0
        %v6914 = vadd.f32 %v6910, %v6913
        %vm6915 = vcmp.eq.s32.totalorder %v6909, 1
        %v6916 = vstv %s6907
        %v6917 = vsel %vm6915, %v6916, 0.0
        %v6918 = vadd.f32 %v6914, %v6917
        %6919 = vst [vmem:[%s325] sm:$0x1] %v6918
        %s6920 = sand.u32 %s225, 1
        %s6921 = scalar_lea.sflag [#allocation5], %s6920
        %s6922 = sand.u32 %s225, 1
        %s6923 = scalar_lea.vmem [#allocation4], %s6922
        // Predicated region
        $region57: #{lenet_mnist_forward.1} parent=55 // pred_check
          %p6924 = pneg %p235
        $region58: #{lenet_mnist_forward.1} parent=55 // pred_check_branch
          %6926 = sbr.rel (%p6924) target = $region60
        $region59: #{lenet_mnist_forward.1} parent=55 // pred_region
          %s6928 = ssub.s32 16, 16
          %6929 = vsyncadd %s6921, %s6928
          %s6930 = smul.addr %s23, 16
          %s6931 = scalar_lea.hbm %s9, %s6930
          %s6933 = sshll.u32 %s6923, 4
          %s6934 = int_to_ptr.vmem [resolvable:$true] %s6933
          %6936 = dma.vmem_to_hbm [thread:$0]  %s6934, 16, %s6931, %s6921
        $region60: #{lenet_mnist_forward.1} parent=55 // pred_fallthru
          _
      $region56: #{lenet_mnist_forward.1} parent=5 // pred_fallthru
        _
      %p6937 = scmp.le.s32.totalorder 2, %s18
      // Predicated region
      $region61: #{lenet_mnist_forward.1} parent=5 // pred_check
        %p6938 = pneg %p6937
      $region62: #{lenet_mnist_forward.1} parent=5 // pred_check_branch
        %6940 = sbr.rel (%p6938) target = $region64
      $region63: #{lenet_mnist_forward.1} parent=5 // pred_region
        %s6941 = ssub.s32 %s18, 2
        // Predicated region
        $region65: #{lenet_mnist_forward.1} parent=63 // pred_check
          %p6942 = pneg %p241
        $region66: #{lenet_mnist_forward.1} parent=63 // pred_check_branch
          %6944 = sbr.rel (%p6942) target = $region68
        $region67: #{lenet_mnist_forward.1} parent=63 // pred_region
          %s6945 = sand.u32 %s226, 1
          %s6946 = scalar_lea.sflag [#allocation5], %s6945
          %s6947 = sand.u32 %s226, 1
          %s6948 = scalar_lea.vmem [#allocation4], %s6947
          %6949 = dma.done %s6946, 16
        $region68: #{lenet_mnist_forward.1} parent=63 // pred_fallthru
          _
      $region64: #{lenet_mnist_forward.1} parent=5 // pred_fallthru
        _
    $region6: #{lenet_mnist_forward.1} parent=1 // loop_footer
      %s22 = sadd.s32 1, %s18
    $region7: #{lenet_mnist_forward.1} parent=1 // loop_footer_branch
      %17 = sbr.rel target = $region3
    $region8: #{lenet_mnist_forward.1} parent=1 // loop_exit
      _
    %6950 = vsyncpa [#allocation5], 1
    %s6951 = scalar_lea.sflag [#allocation5], 1
    %6952 = vsyncpa %s6951, 1

</llo_original>
